<compile_context>
chip_gen: v7x
topology: tpu7x:2x2x1
jax: 0.10.0
libtpu: 0.0.40
codegen_flags: <defaults>
</compile_context>

<pallas_src>
import math
import jax
import jax.numpy as jnp
from jax.experimental import pallas as pl
from jax.experimental.pallas import tpu as pltpu

BN_EPS = 1e-5
LANE = 128


def _round_up(x, m):
    return ((x + m - 1) // m) * m


def _pad_to_lane(c):
    return _round_up(c, LANE)


def _detect_vmem_limit():
    # Per-generation VMEM budgeting (v7x has only 64 MiB/TC).
    try:
        cap = int(pltpu.get_tpu_info().vmem_capacity_bytes)
        return int(min(cap * 3 // 4, 96 * 1024 * 1024))
    except Exception:
        return 32 * 1024 * 1024


_VMEM_LIMIT = _detect_vmem_limit()
_TM_TARGET = 1024 if _VMEM_LIMIT >= 64 * 1024 * 1024 else 512


def _pick_tiles(rows, target=_TM_TARGET):
    """Row tile (multiple of 16), number of tiles, padded row count."""
    r16 = _round_up(rows, 16)
    if r16 <= target:
        return r16, 1, r16
    tm = target
    nt = -(-rows // tm)
    return tm, nt, nt * tm


# ---------------------------------------------------------------------------
# Pallas kernels
# ---------------------------------------------------------------------------
def _gemm_stats_kernel(p_ref, w_ref, y_ref, s_ref, ss_ref):
    """Pass 1 (nt > 1): bf16 GEMM tile (f32 accumulate) -> bf16 intermediate,
    plus f32 per-tile per-channel sum / sum-of-squares partials."""
    y = jnp.dot(p_ref[...], w_ref[...], preferred_element_type=jnp.float32)
    y_ref[...] = y.astype(y_ref.dtype)
    s_ref[...] = jnp.sum(y, axis=0, keepdims=True)[None]        # (1,1,Cp)
    ss_ref[...] = jnp.sum(y * y, axis=0, keepdims=True)[None]   # (1,1,Cp)


def _bn_apply_kernel(has_residual, apply_relu):
    """Pass 2 (nt > 1): lane-dense axpy with precomputed folded scale/shift
    [+ residual] [+ ReLU]; math in f32, bf16 in / bf16 out."""
    def kernel(*refs):
        if has_residual:
            sc_ref, sh_ref, y_ref, r_ref, o_ref = refs
        else:
            sc_ref, sh_ref, y_ref, o_ref = refs
        o = y_ref[...].astype(jnp.float32) * sc_ref[...] + sh_ref[...]
        if has_residual:
            o = o + r_ref[...].astype(jnp.float32)
        if apply_relu:
            o = jnp.maximum(o, 0.0)
        o_ref[...] = o.astype(o_ref.dtype)
    return kernel


def _fused_conv_bn_kernel(real_rows, hw, has_residual, apply_relu, pool_nimg):
    """Single-tile path (nt == 1): GEMM + exact batch-stats BN [+ residual]
    [+ ReLU] [+ global average pool] in one kernel; no HBM intermediate.
    Zero-padded rows contribute 0 to both sums, so dividing by the real row
    count keeps the training-mode mean / biased variance exact."""
    inv_n = 1.0 / float(real_rows)

    def kernel(*refs):
        if has_residual:
            p_ref, w_ref, g_ref, b_ref, r_ref, o_ref = refs
        else:
            p_ref, w_ref, g_ref, b_ref, o_ref = refs
        y = jnp.dot(p_ref[...], w_ref[...], preferred_element_type=jnp.float32)
        mean = jnp.sum(y, axis=0, keepdims=True) * inv_n
        var = jnp.maximum(jnp.sum(y * y, axis=0, keepdims=True) * inv_n
                          - mean * mean, 0.0)                     # biased var
        scale = g_ref[...] * jax.lax.rsqrt(var + BN_EPS)
        shift = b_ref[...] - mean * scale
        o = y * scale + shift
        if has_residual:
            o = o + r_ref[...].astype(jnp.float32)
        if apply_relu:
            o = jnp.maximum(o, 0.0)
        if pool_nimg:
            # Fold the final 4x4 global average pool: per-image spatial mean
            # over the hw real rows of each image (sublane-aligned slices).
            parts = [jnp.mean(o[i * hw:(i + 1) * hw, :], axis=0, keepdims=True)
                     for i in range(pool_nimg)]
            pooled = parts[0] if pool_nimg == 1 else jnp.concatenate(parts, axis=0)
            o_ref[...] = pooled.astype(o_ref.dtype)
        else:
            o_ref[...] = o.astype(o_ref.dtype)
    return kernel


def _avgpool_kernel(x_ref, o_ref):
    # Fallback pool: (N, H*W, Cp) bf16 -> per-image spatial mean -> (N, Cp) f32
    o_ref[...] = jnp.mean(x_ref[...].astype(jnp.float32), axis=1)


# ---------------------------------------------------------------------------
# Glue: im2col (data movement, stays in XLA) + pallas_call wrappers
# ---------------------------------------------------------------------------
def _im2col(x_nhwc, ksize, stride, pad, kd_pad):
    """Extract (R, k*k*cin) patches in bf16 and pad the flattened reduction
    dim up to kd_pad (a multiple of 128) -- only the lane dim is aligned."""
    N, H, W, C = x_nhwc.shape
    xp = jnp.pad(x_nhwc, ((0, 0), (pad, pad), (pad, pad), (0, 0)))
    Ho = (H + 2 * pad - ksize) // stride + 1
    Wo = (W + 2 * pad - ksize) // stride + 1
    cols = []
    for kh in range(ksize):
        for kw in range(ksize):
            cols.append(xp[:, kh:kh + (Ho - 1) * stride + 1:stride,
                              kw:kw + (Wo - 1) * stride + 1:stride, :])
    patches = jnp.stack(cols, axis=3).reshape(N * Ho * Wo, ksize * ksize * C)
    if kd_pad > ksize * ksize * C:
        patches = jnp.pad(patches, ((0, 0), (0, kd_pad - ksize * ksize * C)))
    return patches, Ho, Wo


def conv_bn_act(x_nhwc, wmat, gamma, beta, *, cin, ksize, stride, pad,
                residual=None, relu=True, pool=False):
    """conv(KxK, bias folded away) -> BatchNorm(batch stats, eps=1e-5)
    [-> +residual] [-> ReLU] [-> global avg pool].  NHWC in, output channels
    padded to 128 lanes (pad lanes stay exactly zero)."""
    N = x_nhwc.shape[0]
    Kd, Cp = wmat.shape
    # Only the REAL input channels feed the patch matrix.
    patches, Ho, Wo = _im2col(x_nhwc[..., :cin], ksize, stride, pad, Kd)
    R = N * Ho * Wo
    TM, nt, R_pad = _pick_tiles(R)
    if R_pad > R:
        patches = jnp.pad(patches, ((0, R_pad - R), (0, 0)))

    has_res = residual is not None
    res2d = None
    if has_res:
        res2d = residual.reshape(R, Cp)
        if R_pad > R:
            res2d = jnp.pad(res2d, ((0, R_pad - R), (0, 0)))

    vmem = pl.BlockSpec(memory_space=pltpu.MemorySpace.VMEM)
    cparams_grid = pltpu.CompilerParams(
        dimension_semantics=("parallel",),     # row tiles shard across TCs (v7x)
        vmem_limit_bytes=_VMEM_LIMIT)
    cparams_flat = pltpu.CompilerParams(vmem_limit_bytes=_VMEM_LIMIT)

    if nt == 1:
        # ---- fully fused single-tile path: no HBM intermediate, no pass 2 ----
        pool_nimg = N if pool else 0
        args = [patches, wmat, gamma, beta] + ([res2d] if has_res else [])
        out_shape = (jax.ShapeDtypeStruct((N, Cp), jnp.float32) if pool_nimg
                     else jax.ShapeDtypeStruct((R_pad, Cp), jnp.bfloat16))
        out = pl.pallas_call(
            _fused_conv_bn_kernel(R, Ho * Wo, has_res, relu, pool_nimg),
            out_shape=out_shape,
            in_specs=[vmem] * len(args),
            out_specs=vmem,
            compiler_params=cparams_flat,
        )(*args)
        if pool_nimg:
            return out                          # (N, Cp) f32, already pooled
        out2d = out
    else:
        # ---- pass 1: row-tiled GEMM (bf16 intermediate) + f32 stat partials ----
        y, s_parts, ss_parts = pl.pallas_call(
            _gemm_stats_kernel,
            grid=(nt,),
            in_specs=[
                pl.BlockSpec((TM, Kd), lambda i: (i, 0)),       # patch tile
                pl.BlockSpec((Kd, Cp), lambda i: (0, 0)),       # weights (grid-invariant)
            ],
            out_specs=[
                pl.BlockSpec((TM, Cp), lambda i: (i, 0)),       # bf16 intermediate
                pl.BlockSpec((1, 1, Cp), lambda i: (i, 0, 0)),  # per-tile sum
                pl.BlockSpec((1, 1, Cp), lambda i: (i, 0, 0)),  # per-tile sumsq
            ],
            out_shape=[
                jax.ShapeDtypeStruct((R_pad, Cp), jnp.bfloat16),
                jax.ShapeDtypeStruct((nt, 1, Cp), jnp.float32),
                jax.ShapeDtypeStruct((nt, 1, Cp), jnp.float32),
            ],
            compiler_params=cparams_grid,
        )(patches, wmat)

        # ---- tiny XLA epilogue: fold exact batch stats into scale/shift ----
        s_tot = jnp.sum(s_parts, axis=0)                  # (1, Cp)
        ss_tot = jnp.sum(ss_parts, axis=0)                # (1, Cp)
        mean = s_tot / R                                  # padded rows add 0
        var = jnp.maximum(ss_tot / R - mean * mean, 0.0)  # biased variance
        scale = gamma * jax.lax.rsqrt(var + BN_EPS)
        shift = beta - mean * scale

        # ---- pass 2: lane-dense axpy (+residual, +ReLU), bf16 in/out ----
        args = [scale, shift, y] + ([res2d] if has_res else [])
        in_specs = [
            pl.BlockSpec((1, Cp), lambda i: (0, 0)),
            pl.BlockSpec((1, Cp), lambda i: (0, 0)),
            pl.BlockSpec((TM, Cp), lambda i: (i, 0)),
        ] + ([pl.BlockSpec((TM, Cp), lambda i: (i, 0))] if has_res else [])
        out2d = pl.pallas_call(
            _bn_apply_kernel(has_res, relu),
            grid=(nt,),
            in_specs=in_specs,
            out_specs=pl.BlockSpec((TM, Cp), lambda i: (i, 0)),
            out_shape=jax.ShapeDtypeStruct((R_pad, Cp), jnp.bfloat16),
            compiler_params=cparams_grid,
        )(*args)

    if pool:
        # Fallback pool (layer too large for the fused path).
        act = out2d[:R].reshape(N, Ho * Wo, Cp)
        return pl.pallas_call(
            _avgpool_kernel,
            out_shape=jax.ShapeDtypeStruct((N, Cp), jnp.float32),
            in_specs=[vmem],
            out_specs=vmem,
            compiler_params=cparams_flat,
        )(act)
    return out2d[:R].reshape(N, Ho, Wo, Cp)


# ---------------------------------------------------------------------------
# Deterministic parameter init (weights pre-flattened / K-padded / bf16)
# ---------------------------------------------------------------------------
def _conv_wmat(key, cout, cin, k, cout_pad):
    bound = 1.0 / math.sqrt(cin * k * k)
    w = jax.random.uniform(key, (cout, cin, k, k), jnp.float32, -bound, bound)
    # (Cout, Cin, K, K) -> (K, K, Cin, Cout): flattened-K order matches im2col.
    wt = jnp.transpose(w, (2, 3, 1, 0)).reshape(k * k * cin, cout)
    kd = _round_up(k * k * cin, LANE)
    wt = jnp.pad(wt, ((0, kd - k * k * cin), (0, cout_pad - cout)))
    return wt.astype(jnp.bfloat16)
    # NOTE: conv bias is intentionally omitted -- it is added before BatchNorm
    # and cancels exactly in the mean subtraction.


def _bn_params(c, cp):
    gamma = jnp.pad(jnp.ones((c,), jnp.float32), (0, cp - c)).reshape(1, cp)
    beta = jnp.zeros((1, cp), jnp.float32)
    return gamma, beta   # pad channels: gamma=0, beta=0 -> stay exactly zero


def init_resnet(key, num_blocks, nf):
    params = {'nf': nf}
    key, k0 = jax.random.split(key)
    c1p = _pad_to_lane(nf)
    params['conv1_w'] = _conv_wmat(k0, nf, 3, 3, c1p)
    params['bn1_g'], params['bn1_b'] = _bn_params(nf, c1p)

    in_planes = nf
    layers = []
    for nb, planes, first_stride in zip(num_blocks,
                                        [nf, 2 * nf, 4 * nf, 8 * nf],
                                        [1, 2, 2, 2]):
        blocks = []
        for s in [first_stride] + [1] * (nb - 1):
            key, k1, k2, k3 = jax.random.split(key, 4)
            cout_p = _pad_to_lane(planes)
            bp = {'stride': s, 'cin': in_planes, 'planes': planes}
            bp['w1'] = _conv_wmat(k1, planes, in_planes, 3, cout_p)
            bp['bn1_g'], bp['bn1_b'] = _bn_params(planes, cout_p)
            bp['w2'] = _conv_wmat(k2, planes, planes, 3, cout_p)
            bp['bn2_g'], bp['bn2_b'] = _bn_params(planes, cout_p)
            if s != 1 or in_planes != planes:          # BasicBlock expansion == 1
                sw = _conv_wmat(k3, planes, in_planes, 1, cout_p)
                sg, sb = _bn_params(planes, cout_p)
                bp['shortcut'] = (sw, sg, sb)
            else:
                bp['shortcut'] = None
            blocks.append(bp)
            in_planes = planes
        layers.append(blocks)
    params['layers'] = layers
    return params


# ---------------------------------------------------------------------------
# Forward pass
# ---------------------------------------------------------------------------
def basic_block_forward(x, bp, *, pool=False):
    s = bp['stride']
    if bp['shortcut'] is None:
        sc = x
    else:
        sw, sg, sb = bp['shortcut']
        sc = conv_bn_act(x, sw, sg, sb, cin=bp['cin'],
                         ksize=1, stride=s, pad=0, relu=False)
    h = conv_bn_act(x, bp['w1'], bp['bn1_g'], bp['bn1_b'], cin=bp['cin'],
                    ksize=3, stride=s, pad=1, relu=True)
    return conv_bn_act(h, bp['w2'], bp['bn2_g'], bp['bn2_b'], cin=bp['planes'],
                       ksize=3, stride=1, pad=1, residual=sc, relu=True,
                       pool=pool)


def resnet_forward(params, x_nchw):
    bsz = x_nchw.shape[0]
    x = x_nchw.reshape(bsz, 3, 32, 32)                    # matches x.view(bsz,3,32,32)
    x = jnp.transpose(x, (0, 2, 3, 1)).astype(jnp.bfloat16)   # NCHW -> NHWC (MXU feed)
    out = conv_bn_act(x, params['conv1_w'], params['bn1_g'], params['bn1_b'],
                      cin=3, ksize=3, stride=1, pad=1, relu=True)
    blocks = [bp for layer in params['layers'] for bp in layer]
    for idx, bp in enumerate(blocks):
        # The last block folds avg_pool2d(out, 4) (a full 4x4 spatial mean)
        # into its fused conv+BN+residual+ReLU kernel.
        out = basic_block_forward(out, bp, pool=(idx == len(blocks) - 1))
    C = 8 * params['nf']
    return out[:, :C].reshape(bsz, C, 1, 1)               # NCHW (N, 8*nf, 1, 1)


if __name__ == "__main__":
    key = jax.random.PRNGKey(0)
    pkey, xkey = jax.random.split(key)
    num_blocks = (1, 1, 1, 1)   # small synthetic config (block=BasicBlock, expansion=1)
    nf = 8
    params = init_resnet(pkey, num_blocks, nf)
    x = jax.random.normal(xkey, (2, 3, 32, 32), jnp.float32)

    fwd = jax.jit(lambda inp: resnet_forward(params, inp))
    out = jax.block_until_ready(fwd(x))

    assert out.shape == (2, 8 * nf, 1, 1), out.shape
    assert bool(jnp.all(jnp.isfinite(out)))
    print("KERNEL_OK")
</pallas_src>

<mosaic_0001>
module attributes {stable_mosaic.version = 11 : i64} {
  func.func @_gemm_stats_kernel(%arg0: i32, %arg1: memref<512x128xbf16, #tpu.memory_space<vmem>>, %arg2: memref<128x128xbf16, #tpu.memory_space<vmem>>, %arg3: memref<512x128xbf16, #tpu.memory_space<vmem>>, %arg4: memref<1x1x128xf32, #tpu.memory_space<vmem>>, %arg5: memref<1x1x128xf32, #tpu.memory_space<vmem>>) attributes {dimension_semantics = [#tpu.dimension_semantics<parallel>], iteration_bounds = array<i64: 4>, scalar_prefetch = 0 : i64, scratch_operands = 0 : i64, tpu.core_type = #tpu.core_type<tc>, window_params = [{transform_indices = @transform_0, window_bounds = array<i64: 512, 128>}, {pipeline_mode = #tpu.pipeline_mode<synchronous>, transform_indices = @transform_1, window_bounds = array<i64: 128, 128>}, {transform_indices = @transform_2, window_bounds = array<i64: 512, 128>}, {transform_indices = @transform_3, window_bounds = array<i64: 1, 1, 128>}, {transform_indices = @transform_4, window_bounds = array<i64: 1, 1, 128>}]} {
    %c0 = arith.constant 0 : index
    %c0_0 = arith.constant 0 : index
    %0 = vector.load %arg1[%c0, %c0_0] : memref<512x128xbf16, #tpu.memory_space<vmem>>, vector<512x128xbf16>
    %c0_1 = arith.constant 0 : index
    %c0_2 = arith.constant 0 : index
    %1 = vector.load %arg2[%c0_1, %c0_2] : memref<128x128xbf16, #tpu.memory_space<vmem>>, vector<128x128xbf16>
    %cst = arith.constant dense<0.000000e+00> : vector<512x128xf32>
    %2 = tpu.matmul %0, %1, %cst {dimension_numbers = #tpu.dot_dimension_numbers<[1], [0], [0], [1], [0, 0, 1, 1], [], []>} : vector<512x128xbf16>, vector<128x128xbf16>, vector<512x128xf32> -> vector<512x128xf32>
    %3 = arith.truncf %2 : vector<512x128xf32> to vector<512x128xbf16>
    %c0_3 = arith.constant 0 : index
    %c0_4 = arith.constant 0 : index
    %4 = vector.load %arg3[%c0_3, %c0_4] : memref<512x128xbf16, #tpu.memory_space<vmem>>, vector<512x128xbf16>
    tpu.vector_store %arg3[%c0_3, %c0_4], %3 {strides = array<i32>} : memref<512x128xbf16, #tpu.memory_space<vmem>>, vector<512x128xbf16>,
    %cst_5 = arith.constant dense<0.000000e+00> : vector<128xf32>
    %5 = vector.multi_reduction <add>, %2, %cst_5 [0] : vector<512x128xf32> to vector<128xf32>
    %6 = vector.shape_cast %5 : vector<128xf32> to vector<1x128xf32>
    %7 = vector.shape_cast %6 : vector<1x128xf32> to vector<1x1x128xf32>
    %c0_6 = arith.constant 0 : index
    %c0_7 = arith.constant 0 : index
    %c0_8 = arith.constant 0 : index
    %8 = vector.load %arg4[%c0_6, %c0_7, %c0_8] : memref<1x1x128xf32, #tpu.memory_space<vmem>>, vector<1x1x128xf32>
    tpu.vector_store %arg4[%c0_6, %c0_7, %c0_8], %7 {strides = array<i32>} : memref<1x1x128xf32, #tpu.memory_space<vmem>>, vector<1x1x128xf32>,
    %9 = arith.mulf %2, %2 : vector<512x128xf32>
    %cst_9 = arith.constant dense<0.000000e+00> : vector<128xf32>
    %10 = vector.multi_reduction <add>, %9, %cst_9 [0] : vector<512x128xf32> to vector<128xf32>
    %11 = vector.shape_cast %10 : vector<128xf32> to vector<1x128xf32>
    %12 = vector.shape_cast %11 : vector<1x128xf32> to vector<1x1x128xf32>
    %c0_10 = arith.constant 0 : index
    %c0_11 = arith.constant 0 : index
    %c0_12 = arith.constant 0 : index
    %13 = vector.load %arg5[%c0_10, %c0_11, %c0_12] : memref<1x1x128xf32, #tpu.memory_space<vmem>>, vector<1x1x128xf32>
    tpu.vector_store %arg5[%c0_10, %c0_11, %c0_12], %12 {strides = array<i32>} : memref<1x1x128xf32, #tpu.memory_space<vmem>>, vector<1x1x128xf32>,
    return
  }
  func.func @transform_0(%arg0: i32) -> (i32, i32) {
    %c0_i32 = arith.constant 0 : i32
    %c0_i32_0 = arith.constant 0 : i32
    return %arg0, %c0_i32 : i32, i32
  }
  func.func @transform_1(%arg0: i32) -> (i32, i32) {
    %c0_i32 = arith.constant 0 : i32
    %c0_i32_0 = arith.constant 0 : i32
    %c0_i32_1 = arith.constant 0 : i32
    return %c0_i32, %c0_i32_0 : i32, i32
  }
  func.func @transform_2(%arg0: i32) -> (i32, i32) {
    %c0_i32 = arith.constant 0 : i32
    %c0_i32_0 = arith.constant 0 : i32
    return %arg0, %c0_i32 : i32, i32
  }
  func.func @transform_3(%arg0: i32) -> (i32, i32, i32) {
    %c0_i32 = arith.constant 0 : i32
    %c0_i32_0 = arith.constant 0 : i32
    %c0_i32_1 = arith.constant 0 : i32
    return %arg0, %c0_i32, %c0_i32_0 : i32, i32, i32
  }
  func.func @transform_4(%arg0: i32) -> (i32, i32, i32) {
    %c0_i32 = arith.constant 0 : i32
    %c0_i32_0 = arith.constant 0 : i32
    %c0_i32_1 = arith.constant 0 : i32
    return %arg0, %c0_i32, %c0_i32_0 : i32, i32, i32
  }
}

module attributes {stable_mosaic.version = 11 : i64} {
  func.func @kernel(%arg0: i32, %arg1: memref<1x128xf32, #tpu.memory_space<vmem>>, %arg2: memref<1x128xf32, #tpu.memory_space<vmem>>, %arg3: memref<512x128xbf16, #tpu.memory_space<vmem>>, %arg4: memref<512x128xbf16, #tpu.memory_space<vmem>>) attributes {dimension_semantics = [#tpu.dimension_semantics<parallel>], iteration_bounds = array<i64: 4>, scalar_prefetch = 0 : i64, scratch_operands = 0 : i64, tpu.core_type = #tpu.core_type<tc>, window_params = [{pipeline_mode = #tpu.pipeline_mode<synchronous>, transform_indices = @transform_0, window_bounds = array<i64: 1, 128>}, {pipeline_mode = #tpu.pipeline_mode<synchronous>, transform_indices = @transform_1, window_bounds = array<i64: 1, 128>}, {transform_indices = @transform_2, window_bounds = array<i64: 512, 128>}, {transform_indices = @transform_3, window_bounds = array<i64: 512, 128>}]} {
    %c0 = arith.constant 0 : index
    %c0_0 = arith.constant 0 : index
    %0 = vector.load %arg3[%c0, %c0_0] : memref<512x128xbf16, #tpu.memory_space<vmem>>, vector<512x128xbf16>
    %1 = arith.extf %0 : vector<512x128xbf16> to vector<512x128xf32>
    %c0_1 = arith.constant 0 : index
    %c0_2 = arith.constant 0 : index
    %2 = vector.load %arg1[%c0_1, %c0_2] : memref<1x128xf32, #tpu.memory_space<vmem>>, vector<1x128xf32>
    %3 = vector.broadcast %2 : vector<1x128xf32> to vector<512x128xf32>
    %4 = arith.mulf %1, %3 : vector<512x128xf32>
    %c0_3 = arith.constant 0 : index
    %c0_4 = arith.constant 0 : index
    %5 = vector.load %arg2[%c0_3, %c0_4] : memref<1x128xf32, #tpu.memory_space<vmem>>, vector<1x128xf32>
    %6 = vector.broadcast %5 : vector<1x128xf32> to vector<512x128xf32>
    %7 = arith.addf %4, %6 : vector<512x128xf32>
    %cst = arith.constant 0.000000e+00 : f32
    %8 = vector.broadcast %cst : f32 to vector<512x128xf32>
    %9 = arith.maximumf %7, %8 : vector<512x128xf32>
    %10 = arith.truncf %9 : vector<512x128xf32> to vector<512x128xbf16>
    %c0_5 = arith.constant 0 : index
    %c0_6 = arith.constant 0 : index
    %11 = vector.load %arg4[%c0_5, %c0_6] : memref<512x128xbf16, #tpu.memory_space<vmem>>, vector<512x128xbf16>
    tpu.vector_store %arg4[%c0_5, %c0_6], %10 {strides = array<i32>} : memref<512x128xbf16, #tpu.memory_space<vmem>>, vector<512x128xbf16>,
    return
  }
  func.func @transform_0(%arg0: i32) -> (i32, i32) {
    %c0_i32 = arith.constant 0 : i32
    %c0_i32_0 = arith.constant 0 : i32
    %c0_i32_1 = arith.constant 0 : i32
    return %c0_i32, %c0_i32_0 : i32, i32
  }
  func.func @transform_1(%arg0: i32) -> (i32, i32) {
    %c0_i32 = arith.constant 0 : i32
    %c0_i32_0 = arith.constant 0 : i32
    %c0_i32_1 = arith.constant 0 : i32
    return %c0_i32, %c0_i32_0 : i32, i32
  }
  func.func @transform_2(%arg0: i32) -> (i32, i32) {
    %c0_i32 = arith.constant 0 : i32
    %c0_i32_0 = arith.constant 0 : i32
    return %arg0, %c0_i32 : i32, i32
  }
  func.func @transform_3(%arg0: i32) -> (i32, i32) {
    %c0_i32 = arith.constant 0 : i32
    %c0_i32_0 = arith.constant 0 : i32
    return %arg0, %c0_i32 : i32, i32
  }
}

module attributes {stable_mosaic.version = 11 : i64} {
  func.func @kernel(%arg0: i32, %arg1: memref<1x128xf32, #tpu.memory_space<vmem>>, %arg2: memref<1x128xf32, #tpu.memory_space<vmem>>, %arg3: memref<512x128xbf16, #tpu.memory_space<vmem>>, %arg4: memref<512x128xbf16, #tpu.memory_space<vmem>>, %arg5: memref<512x128xbf16, #tpu.memory_space<vmem>>) attributes {dimension_semantics = [#tpu.dimension_semantics<parallel>], iteration_bounds = array<i64: 4>, scalar_prefetch = 0 : i64, scratch_operands = 0 : i64, tpu.core_type = #tpu.core_type<tc>, window_params = [{pipeline_mode = #tpu.pipeline_mode<synchronous>, transform_indices = @transform_0, window_bounds = array<i64: 1, 128>}, {pipeline_mode = #tpu.pipeline_mode<synchronous>, transform_indices = @transform_1, window_bounds = array<i64: 1, 128>}, {transform_indices = @transform_2, window_bounds = array<i64: 512, 128>}, {transform_indices = @transform_3, window_bounds = array<i64: 512, 128>}, {transform_indices = @transform_4, window_bounds = array<i64: 512, 128>}]} {
    %c0 = arith.constant 0 : index
    %c0_0 = arith.constant 0 : index
    %0 = vector.load %arg3[%c0, %c0_0] : memref<512x128xbf16, #tpu.memory_space<vmem>>, vector<512x128xbf16>
    %1 = arith.extf %0 : vector<512x128xbf16> to vector<512x128xf32>
    %c0_1 = arith.constant 0 : index
    %c0_2 = arith.constant 0 : index
    %2 = vector.load %arg1[%c0_1, %c0_2] : memref<1x128xf32, #tpu.memory_space<vmem>>, vector<1x128xf32>
    %3 = vector.broadcast %2 : vector<1x128xf32> to vector<512x128xf32>
    %4 = arith.mulf %1, %3 : vector<512x128xf32>
    %c0_3 = arith.constant 0 : index
    %c0_4 = arith.constant 0 : index
    %5 = vector.load %arg2[%c0_3, %c0_4] : memref<1x128xf32, #tpu.memory_space<vmem>>, vector<1x128xf32>
    %6 = vector.broadcast %5 : vector<1x128xf32> to vector<512x128xf32>
    %7 = arith.addf %4, %6 : vector<512x128xf32>
    %c0_5 = arith.constant 0 : index
    %c0_6 = arith.constant 0 : index
    %8 = vector.load %arg4[%c0_5, %c0_6] : memref<512x128xbf16, #tpu.memory_space<vmem>>, vector<512x128xbf16>
    %9 = arith.extf %8 : vector<512x128xbf16> to vector<512x128xf32>
    %10 = arith.addf %7, %9 : vector<512x128xf32>
    %cst = arith.constant 0.000000e+00 : f32
    %11 = vector.broadcast %cst : f32 to vector<512x128xf32>
    %12 = arith.maximumf %10, %11 : vector<512x128xf32>
    %13 = arith.truncf %12 : vector<512x128xf32> to vector<512x128xbf16>
    %c0_7 = arith.constant 0 : index
    %c0_8 = arith.constant 0 : index
    %14 = vector.load %arg5[%c0_7, %c0_8] : memref<512x128xbf16, #tpu.memory_space<vmem>>, vector<512x128xbf16>
    tpu.vector_store %arg5[%c0_7, %c0_8], %13 {strides = array<i32>} : memref<512x128xbf16, #tpu.memory_space<vmem>>, vector<512x128xbf16>,
    return
  }
  func.func @transform_0(%arg0: i32) -> (i32, i32) {
    %c0_i32 = arith.constant 0 : i32
    %c0_i32_0 = arith.constant 0 : i32
    %c0_i32_1 = arith.constant 0 : i32
    return %c0_i32, %c0_i32_0 : i32, i32
  }
  func.func @transform_1(%arg0: i32) -> (i32, i32) {
    %c0_i32 = arith.constant 0 : i32
    %c0_i32_0 = arith.constant 0 : i32
    %c0_i32_1 = arith.constant 0 : i32
    return %c0_i32, %c0_i32_0 : i32, i32
  }
  func.func @transform_2(%arg0: i32) -> (i32, i32) {
    %c0_i32 = arith.constant 0 : i32
    %c0_i32_0 = arith.constant 0 : i32
    return %arg0, %c0_i32 : i32, i32
  }
  func.func @transform_3(%arg0: i32) -> (i32, i32) {
    %c0_i32 = arith.constant 0 : i32
    %c0_i32_0 = arith.constant 0 : i32
    return %arg0, %c0_i32 : i32, i32
  }
  func.func @transform_4(%arg0: i32) -> (i32, i32) {
    %c0_i32 = arith.constant 0 : i32
    %c0_i32_0 = arith.constant 0 : i32
    return %arg0, %c0_i32 : i32, i32
  }
}

module attributes {stable_mosaic.version = 11 : i64} {
  func.func @kernel(%arg0: memref<512x128xbf16, #tpu.memory_space<vmem>>, %arg1: memref<128x128xbf16, #tpu.memory_space<vmem>>, %arg2: memref<1x128xf32, #tpu.memory_space<vmem>>, %arg3: memref<1x128xf32, #tpu.memory_space<vmem>>, %arg4: memref<512x128xbf16, #tpu.memory_space<vmem>>) attributes {dimension_semantics = [], scalar_prefetch = 0 : i64, scratch_operands = 0 : i64, tpu.core_type = #tpu.core_type<tc>} {
    %c0 = arith.constant 0 : index
    %c0_0 = arith.constant 0 : index
    %0 = vector.load %arg0[%c0, %c0_0] : memref<512x128xbf16, #tpu.memory_space<vmem>>, vector<512x128xbf16>
    %c0_1 = arith.constant 0 : index
    %c0_2 = arith.constant 0 : index
    %1 = vector.load %arg1[%c0_1, %c0_2] : memref<128x128xbf16, #tpu.memory_space<vmem>>, vector<128x128xbf16>
    %cst = arith.constant dense<0.000000e+00> : vector<512x128xf32>
    %2 = tpu.matmul %0, %1, %cst {dimension_numbers = #tpu.dot_dimension_numbers<[1], [0], [0], [1], [0, 0, 1, 1], [], []>} : vector<512x128xbf16>, vector<128x128xbf16>, vector<512x128xf32> -> vector<512x128xf32>
    %cst_3 = arith.constant dense<0.000000e+00> : vector<128xf32>
    %3 = vector.multi_reduction <add>, %2, %cst_3 [0] : vector<512x128xf32> to vector<128xf32>
    %4 = vector.shape_cast %3 : vector<128xf32> to vector<1x128xf32>
    %cst_4 = arith.constant 0.001953125 : f32
    %5 = vector.broadcast %cst_4 : f32 to vector<1x128xf32>
    %6 = arith.mulf %4, %5 : vector<1x128xf32>
    %7 = arith.mulf %2, %2 : vector<512x128xf32>
    %cst_5 = arith.constant dense<0.000000e+00> : vector<128xf32>
    %8 = vector.multi_reduction <add>, %7, %cst_5 [0] : vector<512x128xf32> to vector<128xf32>
    %9 = vector.shape_cast %8 : vector<128xf32> to vector<1x128xf32>
    %cst_6 = arith.constant 0.001953125 : f32
    %10 = vector.broadcast %cst_6 : f32 to vector<1x128xf32>
    %11 = arith.mulf %9, %10 : vector<1x128xf32>
    %12 = arith.mulf %6, %6 : vector<1x128xf32>
    %13 = arith.subf %11, %12 : vector<1x128xf32>
    %cst_7 = arith.constant 0.000000e+00 : f32
    %14 = vector.broadcast %cst_7 : f32 to vector<1x128xf32>
    %15 = arith.maximumf %13, %14 : vector<1x128xf32>
    %c0_8 = arith.constant 0 : index
    %c0_9 = arith.constant 0 : index
    %16 = vector.load %arg2[%c0_8, %c0_9] : memref<1x128xf32, #tpu.memory_space<vmem>>, vector<1x128xf32>
    %cst_10 = arith.constant 9.99999974E-6 : f32
    %17 = vector.broadcast %cst_10 : f32 to vector<1x128xf32>
    %18 = arith.addf %15, %17 : vector<1x128xf32>
    %19 = math.rsqrt %18 : vector<1x128xf32>
    %20 = arith.mulf %16, %19 : vector<1x128xf32>
    %c0_11 = arith.constant 0 : index
    %c0_12 = arith.constant 0 : index
    %21 = vector.load %arg3[%c0_11, %c0_12] : memref<1x128xf32, #tpu.memory_space<vmem>>, vector<1x128xf32>
    %22 = arith.mulf %6, %20 : vector<1x128xf32>
    %23 = arith.subf %21, %22 : vector<1x128xf32>
    %24 = vector.broadcast %20 : vector<1x128xf32> to vector<512x128xf32>
    %25 = arith.mulf %2, %24 : vector<512x128xf32>
    %26 = vector.broadcast %23 : vector<1x128xf32> to vector<512x128xf32>
    %27 = arith.addf %25, %26 : vector<512x128xf32>
    %cst_13 = arith.constant 0.000000e+00 : f32
    %28 = vector.broadcast %cst_13 : f32 to vector<512x128xf32>
    %29 = arith.maximumf %27, %28 : vector<512x128xf32>
    %30 = arith.truncf %29 : vector<512x128xf32> to vector<512x128xbf16>
    %c0_14 = arith.constant 0 : index
    %c0_15 = arith.constant 0 : index
    %31 = vector.load %arg4[%c0_14, %c0_15] : memref<512x128xbf16, #tpu.memory_space<vmem>>, vector<512x128xbf16>
    tpu.vector_store %arg4[%c0_14, %c0_15], %30 {strides = array<i32>} : memref<512x128xbf16, #tpu.memory_space<vmem>>, vector<512x128xbf16>,
    return
  }
}

module attributes {stable_mosaic.version = 11 : i64} {
  func.func @kernel(%arg0: memref<512x128xbf16, #tpu.memory_space<vmem>>, %arg1: memref<128x128xbf16, #tpu.memory_space<vmem>>, %arg2: memref<1x128xf32, #tpu.memory_space<vmem>>, %arg3: memref<1x128xf32, #tpu.memory_space<vmem>>, %arg4: memref<512x128xbf16, #tpu.memory_space<vmem>>) attributes {dimension_semantics = [], scalar_prefetch = 0 : i64, scratch_operands = 0 : i64, tpu.core_type = #tpu.core_type<tc>} {
    %c0 = arith.constant 0 : index
    %c0_0 = arith.constant 0 : index
    %0 = vector.load %arg0[%c0, %c0_0] : memref<512x128xbf16, #tpu.memory_space<vmem>>, vector<512x128xbf16>
    %c0_1 = arith.constant 0 : index
    %c0_2 = arith.constant 0 : index
    %1 = vector.load %arg1[%c0_1, %c0_2] : memref<128x128xbf16, #tpu.memory_space<vmem>>, vector<128x128xbf16>
    %cst = arith.constant dense<0.000000e+00> : vector<512x128xf32>
    %2 = tpu.matmul %0, %1, %cst {dimension_numbers = #tpu.dot_dimension_numbers<[1], [0], [0], [1], [0, 0, 1, 1], [], []>} : vector<512x128xbf16>, vector<128x128xbf16>, vector<512x128xf32> -> vector<512x128xf32>
    %cst_3 = arith.constant dense<0.000000e+00> : vector<128xf32>
    %3 = vector.multi_reduction <add>, %2, %cst_3 [0] : vector<512x128xf32> to vector<128xf32>
    %4 = vector.shape_cast %3 : vector<128xf32> to vector<1x128xf32>
    %cst_4 = arith.constant 0.001953125 : f32
    %5 = vector.broadcast %cst_4 : f32 to vector<1x128xf32>
    %6 = arith.mulf %4, %5 : vector<1x128xf32>
    %7 = arith.mulf %2, %2 : vector<512x128xf32>
    %cst_5 = arith.constant dense<0.000000e+00> : vector<128xf32>
    %8 = vector.multi_reduction <add>, %7, %cst_5 [0] : vector<512x128xf32> to vector<128xf32>
    %9 = vector.shape_cast %8 : vector<128xf32> to vector<1x128xf32>
    %cst_6 = arith.constant 0.001953125 : f32
    %10 = vector.broadcast %cst_6 : f32 to vector<1x128xf32>
    %11 = arith.mulf %9, %10 : vector<1x128xf32>
    %12 = arith.mulf %6, %6 : vector<1x128xf32>
    %13 = arith.subf %11, %12 : vector<1x128xf32>
    %cst_7 = arith.constant 0.000000e+00 : f32
    %14 = vector.broadcast %cst_7 : f32 to vector<1x128xf32>
    %15 = arith.maximumf %13, %14 : vector<1x128xf32>
    %c0_8 = arith.constant 0 : index
    %c0_9 = arith.constant 0 : index
    %16 = vector.load %arg2[%c0_8, %c0_9] : memref<1x128xf32, #tpu.memory_space<vmem>>, vector<1x128xf32>
    %cst_10 = arith.constant 9.99999974E-6 : f32
    %17 = vector.broadcast %cst_10 : f32 to vector<1x128xf32>
    %18 = arith.addf %15, %17 : vector<1x128xf32>
    %19 = math.rsqrt %18 : vector<1x128xf32>
    %20 = arith.mulf %16, %19 : vector<1x128xf32>
    %c0_11 = arith.constant 0 : index
    %c0_12 = arith.constant 0 : index
    %21 = vector.load %arg3[%c0_11, %c0_12] : memref<1x128xf32, #tpu.memory_space<vmem>>, vector<1x128xf32>
    %22 = arith.mulf %6, %20 : vector<1x128xf32>
    %23 = arith.subf %21, %22 : vector<1x128xf32>
    %24 = vector.broadcast %20 : vector<1x128xf32> to vector<512x128xf32>
    %25 = arith.mulf %2, %24 : vector<512x128xf32>
    %26 = vector.broadcast %23 : vector<1x128xf32> to vector<512x128xf32>
    %27 = arith.addf %25, %26 : vector<512x128xf32>
    %28 = arith.truncf %27 : vector<512x128xf32> to vector<512x128xbf16>
    %c0_13 = arith.constant 0 : index
    %c0_14 = arith.constant 0 : index
    %29 = vector.load %arg4[%c0_13, %c0_14] : memref<512x128xbf16, #tpu.memory_space<vmem>>, vector<512x128xbf16>
    tpu.vector_store %arg4[%c0_13, %c0_14], %28 {strides = array<i32>} : memref<512x128xbf16, #tpu.memory_space<vmem>>, vector<512x128xbf16>,
    return
  }
}

module attributes {stable_mosaic.version = 11 : i64} {
  func.func @kernel(%arg0: memref<512x256xbf16, #tpu.memory_space<vmem>>, %arg1: memref<256x128xbf16, #tpu.memory_space<vmem>>, %arg2: memref<1x128xf32, #tpu.memory_space<vmem>>, %arg3: memref<1x128xf32, #tpu.memory_space<vmem>>, %arg4: memref<512x128xbf16, #tpu.memory_space<vmem>>, %arg5: memref<512x128xbf16, #tpu.memory_space<vmem>>) attributes {dimension_semantics = [], scalar_prefetch = 0 : i64, scratch_operands = 0 : i64, tpu.core_type = #tpu.core_type<tc>} {
    %c0 = arith.constant 0 : index
    %c0_0 = arith.constant 0 : index
    %0 = vector.load %arg0[%c0, %c0_0] : memref<512x256xbf16, #tpu.memory_space<vmem>>, vector<512x256xbf16>
    %c0_1 = arith.constant 0 : index
    %c0_2 = arith.constant 0 : index
    %1 = vector.load %arg1[%c0_1, %c0_2] : memref<256x128xbf16, #tpu.memory_space<vmem>>, vector<256x128xbf16>
    %cst = arith.constant dense<0.000000e+00> : vector<512x128xf32>
    %2 = tpu.matmul %0, %1, %cst {dimension_numbers = #tpu.dot_dimension_numbers<[1], [0], [0], [1], [0, 0, 1, 1], [], []>} : vector<512x256xbf16>, vector<256x128xbf16>, vector<512x128xf32> -> vector<512x128xf32>
    %cst_3 = arith.constant dense<0.000000e+00> : vector<128xf32>
    %3 = vector.multi_reduction <add>, %2, %cst_3 [0] : vector<512x128xf32> to vector<128xf32>
    %4 = vector.shape_cast %3 : vector<128xf32> to vector<1x128xf32>
    %cst_4 = arith.constant 0.001953125 : f32
    %5 = vector.broadcast %cst_4 : f32 to vector<1x128xf32>
    %6 = arith.mulf %4, %5 : vector<1x128xf32>
    %7 = arith.mulf %2, %2 : vector<512x128xf32>
    %cst_5 = arith.constant dense<0.000000e+00> : vector<128xf32>
    %8 = vector.multi_reduction <add>, %7, %cst_5 [0] : vector<512x128xf32> to vector<128xf32>
    %9 = vector.shape_cast %8 : vector<128xf32> to vector<1x128xf32>
    %cst_6 = arith.constant 0.001953125 : f32
    %10 = vector.broadcast %cst_6 : f32 to vector<1x128xf32>
    %11 = arith.mulf %9, %10 : vector<1x128xf32>
    %12 = arith.mulf %6, %6 : vector<1x128xf32>
    %13 = arith.subf %11, %12 : vector<1x128xf32>
    %cst_7 = arith.constant 0.000000e+00 : f32
    %14 = vector.broadcast %cst_7 : f32 to vector<1x128xf32>
    %15 = arith.maximumf %13, %14 : vector<1x128xf32>
    %c0_8 = arith.constant 0 : index
    %c0_9 = arith.constant 0 : index
    %16 = vector.load %arg2[%c0_8, %c0_9] : memref<1x128xf32, #tpu.memory_space<vmem>>, vector<1x128xf32>
    %cst_10 = arith.constant 9.99999974E-6 : f32
    %17 = vector.broadcast %cst_10 : f32 to vector<1x128xf32>
    %18 = arith.addf %15, %17 : vector<1x128xf32>
    %19 = math.rsqrt %18 : vector<1x128xf32>
    %20 = arith.mulf %16, %19 : vector<1x128xf32>
    %c0_11 = arith.constant 0 : index
    %c0_12 = arith.constant 0 : index
    %21 = vector.load %arg3[%c0_11, %c0_12] : memref<1x128xf32, #tpu.memory_space<vmem>>, vector<1x128xf32>
    %22 = arith.mulf %6, %20 : vector<1x128xf32>
    %23 = arith.subf %21, %22 : vector<1x128xf32>
    %24 = vector.broadcast %20 : vector<1x128xf32> to vector<512x128xf32>
    %25 = arith.mulf %2, %24 : vector<512x128xf32>
    %26 = vector.broadcast %23 : vector<1x128xf32> to vector<512x128xf32>
    %27 = arith.addf %25, %26 : vector<512x128xf32>
    %c0_13 = arith.constant 0 : index
    %c0_14 = arith.constant 0 : index
    %28 = vector.load %arg4[%c0_13, %c0_14] : memref<512x128xbf16, #tpu.memory_space<vmem>>, vector<512x128xbf16>
    %29 = arith.extf %28 : vector<512x128xbf16> to vector<512x128xf32>
    %30 = arith.addf %27, %29 : vector<512x128xf32>
    %cst_15 = arith.constant 0.000000e+00 : f32
    %31 = vector.broadcast %cst_15 : f32 to vector<512x128xf32>
    %32 = arith.maximumf %30, %31 : vector<512x128xf32>
    %33 = arith.truncf %32 : vector<512x128xf32> to vector<512x128xbf16>
    %c0_16 = arith.constant 0 : index
    %c0_17 = arith.constant 0 : index
    %34 = vector.load %arg5[%c0_16, %c0_17] : memref<512x128xbf16, #tpu.memory_space<vmem>>, vector<512x128xbf16>
    tpu.vector_store %arg5[%c0_16, %c0_17], %33 {strides = array<i32>} : memref<512x128xbf16, #tpu.memory_space<vmem>>, vector<512x128xbf16>,
    return
  }
}

module attributes {stable_mosaic.version = 11 : i64} {
  func.func @kernel(%arg0: memref<128x256xbf16, #tpu.memory_space<vmem>>, %arg1: memref<256x128xbf16, #tpu.memory_space<vmem>>, %arg2: memref<1x128xf32, #tpu.memory_space<vmem>>, %arg3: memref<1x128xf32, #tpu.memory_space<vmem>>, %arg4: memref<128x128xbf16, #tpu.memory_space<vmem>>) attributes {dimension_semantics = [], scalar_prefetch = 0 : i64, scratch_operands = 0 : i64, tpu.core_type = #tpu.core_type<tc>} {
    %c0 = arith.constant 0 : index
    %c0_0 = arith.constant 0 : index
    %0 = vector.load %arg0[%c0, %c0_0] : memref<128x256xbf16, #tpu.memory_space<vmem>>, vector<128x256xbf16>
    %c0_1 = arith.constant 0 : index
    %c0_2 = arith.constant 0 : index
    %1 = vector.load %arg1[%c0_1, %c0_2] : memref<256x128xbf16, #tpu.memory_space<vmem>>, vector<256x128xbf16>
    %cst = arith.constant dense<0.000000e+00> : vector<128x128xf32>
    %2 = tpu.matmul %0, %1, %cst {dimension_numbers = #tpu.dot_dimension_numbers<[1], [0], [0], [1], [0, 0, 1, 1], [], []>} : vector<128x256xbf16>, vector<256x128xbf16>, vector<128x128xf32> -> vector<128x128xf32>
    %cst_3 = arith.constant dense<0.000000e+00> : vector<128xf32>
    %3 = vector.multi_reduction <add>, %2, %cst_3 [0] : vector<128x128xf32> to vector<128xf32>
    %4 = vector.shape_cast %3 : vector<128xf32> to vector<1x128xf32>
    %cst_4 = arith.constant 7.812500e-03 : f32
    %5 = vector.broadcast %cst_4 : f32 to vector<1x128xf32>
    %6 = arith.mulf %4, %5 : vector<1x128xf32>
    %7 = arith.mulf %2, %2 : vector<128x128xf32>
    %cst_5 = arith.constant dense<0.000000e+00> : vector<128xf32>
    %8 = vector.multi_reduction <add>, %7, %cst_5 [0] : vector<128x128xf32> to vector<128xf32>
    %9 = vector.shape_cast %8 : vector<128xf32> to vector<1x128xf32>
    %cst_6 = arith.constant 7.812500e-03 : f32
    %10 = vector.broadcast %cst_6 : f32 to vector<1x128xf32>
    %11 = arith.mulf %9, %10 : vector<1x128xf32>
    %12 = arith.mulf %6, %6 : vector<1x128xf32>
    %13 = arith.subf %11, %12 : vector<1x128xf32>
    %cst_7 = arith.constant 0.000000e+00 : f32
    %14 = vector.broadcast %cst_7 : f32 to vector<1x128xf32>
    %15 = arith.maximumf %13, %14 : vector<1x128xf32>
    %c0_8 = arith.constant 0 : index
    %c0_9 = arith.constant 0 : index
    %16 = vector.load %arg2[%c0_8, %c0_9] : memref<1x128xf32, #tpu.memory_space<vmem>>, vector<1x128xf32>
    %cst_10 = arith.constant 9.99999974E-6 : f32
    %17 = vector.broadcast %cst_10 : f32 to vector<1x128xf32>
    %18 = arith.addf %15, %17 : vector<1x128xf32>
    %19 = math.rsqrt %18 : vector<1x128xf32>
    %20 = arith.mulf %16, %19 : vector<1x128xf32>
    %c0_11 = arith.constant 0 : index
    %c0_12 = arith.constant 0 : index
    %21 = vector.load %arg3[%c0_11, %c0_12] : memref<1x128xf32, #tpu.memory_space<vmem>>, vector<1x128xf32>
    %22 = arith.mulf %6, %20 : vector<1x128xf32>
    %23 = arith.subf %21, %22 : vector<1x128xf32>
    %24 = vector.broadcast %20 : vector<1x128xf32> to vector<128x128xf32>
    %25 = arith.mulf %2, %24 : vector<128x128xf32>
    %26 = vector.broadcast %23 : vector<1x128xf32> to vector<128x128xf32>
    %27 = arith.addf %25, %26 : vector<128x128xf32>
    %cst_13 = arith.constant 0.000000e+00 : f32
    %28 = vector.broadcast %cst_13 : f32 to vector<128x128xf32>
    %29 = arith.maximumf %27, %28 : vector<128x128xf32>
    %30 = arith.truncf %29 : vector<128x128xf32> to vector<128x128xbf16>
    %c0_14 = arith.constant 0 : index
    %c0_15 = arith.constant 0 : index
    %31 = vector.load %arg4[%c0_14, %c0_15] : memref<128x128xbf16, #tpu.memory_space<vmem>>, vector<128x128xbf16>
    tpu.vector_store %arg4[%c0_14, %c0_15], %30 {strides = array<i32>} : memref<128x128xbf16, #tpu.memory_space<vmem>>, vector<128x128xbf16>,
    return
  }
}

module attributes {stable_mosaic.version = 11 : i64} {
  func.func @kernel(%arg0: memref<128x128xbf16, #tpu.memory_space<vmem>>, %arg1: memref<128x128xbf16, #tpu.memory_space<vmem>>, %arg2: memref<1x128xf32, #tpu.memory_space<vmem>>, %arg3: memref<1x128xf32, #tpu.memory_space<vmem>>, %arg4: memref<128x128xbf16, #tpu.memory_space<vmem>>) attributes {dimension_semantics = [], scalar_prefetch = 0 : i64, scratch_operands = 0 : i64, tpu.core_type = #tpu.core_type<tc>} {
    %c0 = arith.constant 0 : index
    %c0_0 = arith.constant 0 : index
    %0 = vector.load %arg0[%c0, %c0_0] : memref<128x128xbf16, #tpu.memory_space<vmem>>, vector<128x128xbf16>
    %c0_1 = arith.constant 0 : index
    %c0_2 = arith.constant 0 : index
    %1 = vector.load %arg1[%c0_1, %c0_2] : memref<128x128xbf16, #tpu.memory_space<vmem>>, vector<128x128xbf16>
    %cst = arith.constant dense<0.000000e+00> : vector<128x128xf32>
    %2 = tpu.matmul %0, %1, %cst {dimension_numbers = #tpu.dot_dimension_numbers<[1], [0], [0], [1], [0, 0, 1, 1], [], []>} : vector<128x128xbf16>, vector<128x128xbf16>, vector<128x128xf32> -> vector<128x128xf32>
    %cst_3 = arith.constant dense<0.000000e+00> : vector<128xf32>
    %3 = vector.multi_reduction <add>, %2, %cst_3 [0] : vector<128x128xf32> to vector<128xf32>
    %4 = vector.shape_cast %3 : vector<128xf32> to vector<1x128xf32>
    %cst_4 = arith.constant 7.812500e-03 : f32
    %5 = vector.broadcast %cst_4 : f32 to vector<1x128xf32>
    %6 = arith.mulf %4, %5 : vector<1x128xf32>
    %7 = arith.mulf %2, %2 : vector<128x128xf32>
    %cst_5 = arith.constant dense<0.000000e+00> : vector<128xf32>
    %8 = vector.multi_reduction <add>, %7, %cst_5 [0] : vector<128x128xf32> to vector<128xf32>
    %9 = vector.shape_cast %8 : vector<128xf32> to vector<1x128xf32>
    %cst_6 = arith.constant 7.812500e-03 : f32
    %10 = vector.broadcast %cst_6 : f32 to vector<1x128xf32>
    %11 = arith.mulf %9, %10 : vector<1x128xf32>
    %12 = arith.mulf %6, %6 : vector<1x128xf32>
    %13 = arith.subf %11, %12 : vector<1x128xf32>
    %cst_7 = arith.constant 0.000000e+00 : f32
    %14 = vector.broadcast %cst_7 : f32 to vector<1x128xf32>
    %15 = arith.maximumf %13, %14 : vector<1x128xf32>
    %c0_8 = arith.constant 0 : index
    %c0_9 = arith.constant 0 : index
    %16 = vector.load %arg2[%c0_8, %c0_9] : memref<1x128xf32, #tpu.memory_space<vmem>>, vector<1x128xf32>
    %cst_10 = arith.constant 9.99999974E-6 : f32
    %17 = vector.broadcast %cst_10 : f32 to vector<1x128xf32>
    %18 = arith.addf %15, %17 : vector<1x128xf32>
    %19 = math.rsqrt %18 : vector<1x128xf32>
    %20 = arith.mulf %16, %19 : vector<1x128xf32>
    %c0_11 = arith.constant 0 : index
    %c0_12 = arith.constant 0 : index
    %21 = vector.load %arg3[%c0_11, %c0_12] : memref<1x128xf32, #tpu.memory_space<vmem>>, vector<1x128xf32>
    %22 = arith.mulf %6, %20 : vector<1x128xf32>
    %23 = arith.subf %21, %22 : vector<1x128xf32>
    %24 = vector.broadcast %20 : vector<1x128xf32> to vector<128x128xf32>
    %25 = arith.mulf %2, %24 : vector<128x128xf32>
    %26 = vector.broadcast %23 : vector<1x128xf32> to vector<128x128xf32>
    %27 = arith.addf %25, %26 : vector<128x128xf32>
    %28 = arith.truncf %27 : vector<128x128xf32> to vector<128x128xbf16>
    %c0_13 = arith.constant 0 : index
    %c0_14 = arith.constant 0 : index
    %29 = vector.load %arg4[%c0_13, %c0_14] : memref<128x128xbf16, #tpu.memory_space<vmem>>, vector<128x128xbf16>
    tpu.vector_store %arg4[%c0_13, %c0_14], %28 {strides = array<i32>} : memref<128x128xbf16, #tpu.memory_space<vmem>>, vector<128x128xbf16>,
    return
  }
}

module attributes {stable_mosaic.version = 11 : i64} {
  func.func @kernel(%arg0: memref<128x384xbf16, #tpu.memory_space<vmem>>, %arg1: memref<384x128xbf16, #tpu.memory_space<vmem>>, %arg2: memref<1x128xf32, #tpu.memory_space<vmem>>, %arg3: memref<1x128xf32, #tpu.memory_space<vmem>>, %arg4: memref<128x128xbf16, #tpu.memory_space<vmem>>, %arg5: memref<128x128xbf16, #tpu.memory_space<vmem>>) attributes {dimension_semantics = [], scalar_prefetch = 0 : i64, scratch_operands = 0 : i64, tpu.core_type = #tpu.core_type<tc>} {
    %c0 = arith.constant 0 : index
    %c0_0 = arith.constant 0 : index
    %0 = vector.load %arg0[%c0, %c0_0] : memref<128x384xbf16, #tpu.memory_space<vmem>>, vector<128x384xbf16>
    %c0_1 = arith.constant 0 : index
    %c0_2 = arith.constant 0 : index
    %1 = vector.load %arg1[%c0_1, %c0_2] : memref<384x128xbf16, #tpu.memory_space<vmem>>, vector<384x128xbf16>
    %cst = arith.constant dense<0.000000e+00> : vector<128x128xf32>
    %2 = tpu.matmul %0, %1, %cst {dimension_numbers = #tpu.dot_dimension_numbers<[1], [0], [0], [1], [0, 0, 1, 1], [], []>} : vector<128x384xbf16>, vector<384x128xbf16>, vector<128x128xf32> -> vector<128x128xf32>
    %cst_3 = arith.constant dense<0.000000e+00> : vector<128xf32>
    %3 = vector.multi_reduction <add>, %2, %cst_3 [0] : vector<128x128xf32> to vector<128xf32>
    %4 = vector.shape_cast %3 : vector<128xf32> to vector<1x128xf32>
    %cst_4 = arith.constant 7.812500e-03 : f32
    %5 = vector.broadcast %cst_4 : f32 to vector<1x128xf32>
    %6 = arith.mulf %4, %5 : vector<1x128xf32>
    %7 = arith.mulf %2, %2 : vector<128x128xf32>
    %cst_5 = arith.constant dense<0.000000e+00> : vector<128xf32>
    %8 = vector.multi_reduction <add>, %7, %cst_5 [0] : vector<128x128xf32> to vector<128xf32>
    %9 = vector.shape_cast %8 : vector<128xf32> to vector<1x128xf32>
    %cst_6 = arith.constant 7.812500e-03 : f32
    %10 = vector.broadcast %cst_6 : f32 to vector<1x128xf32>
    %11 = arith.mulf %9, %10 : vector<1x128xf32>
    %12 = arith.mulf %6, %6 : vector<1x128xf32>
    %13 = arith.subf %11, %12 : vector<1x128xf32>
    %cst_7 = arith.constant 0.000000e+00 : f32
    %14 = vector.broadcast %cst_7 : f32 to vector<1x128xf32>
    %15 = arith.maximumf %13, %14 : vector<1x128xf32>
    %c0_8 = arith.constant 0 : index
    %c0_9 = arith.constant 0 : index
    %16 = vector.load %arg2[%c0_8, %c0_9] : memref<1x128xf32, #tpu.memory_space<vmem>>, vector<1x128xf32>
    %cst_10 = arith.constant 9.99999974E-6 : f32
    %17 = vector.broadcast %cst_10 : f32 to vector<1x128xf32>
    %18 = arith.addf %15, %17 : vector<1x128xf32>
    %19 = math.rsqrt %18 : vector<1x128xf32>
    %20 = arith.mulf %16, %19 : vector<1x128xf32>
    %c0_11 = arith.constant 0 : index
    %c0_12 = arith.constant 0 : index
    %21 = vector.load %arg3[%c0_11, %c0_12] : memref<1x128xf32, #tpu.memory_space<vmem>>, vector<1x128xf32>
    %22 = arith.mulf %6, %20 : vector<1x128xf32>
    %23 = arith.subf %21, %22 : vector<1x128xf32>
    %24 = vector.broadcast %20 : vector<1x128xf32> to vector<128x128xf32>
    %25 = arith.mulf %2, %24 : vector<128x128xf32>
    %26 = vector.broadcast %23 : vector<1x128xf32> to vector<128x128xf32>
    %27 = arith.addf %25, %26 : vector<128x128xf32>
    %c0_13 = arith.constant 0 : index
    %c0_14 = arith.constant 0 : index
    %28 = vector.load %arg4[%c0_13, %c0_14] : memref<128x128xbf16, #tpu.memory_space<vmem>>, vector<128x128xbf16>
    %29 = arith.extf %28 : vector<128x128xbf16> to vector<128x128xf32>
    %30 = arith.addf %27, %29 : vector<128x128xf32>
    %cst_15 = arith.constant 0.000000e+00 : f32
    %31 = vector.broadcast %cst_15 : f32 to vector<128x128xf32>
    %32 = arith.maximumf %30, %31 : vector<128x128xf32>
    %33 = arith.truncf %32 : vector<128x128xf32> to vector<128x128xbf16>
    %c0_16 = arith.constant 0 : index
    %c0_17 = arith.constant 0 : index
    %34 = vector.load %arg5[%c0_16, %c0_17] : memref<128x128xbf16, #tpu.memory_space<vmem>>, vector<128x128xbf16>
    tpu.vector_store %arg5[%c0_16, %c0_17], %33 {strides = array<i32>} : memref<128x128xbf16, #tpu.memory_space<vmem>>, vector<128x128xbf16>,
    return
  }
}

module attributes {stable_mosaic.version = 11 : i64} {
  func.func @kernel(%arg0: memref<32x384xbf16, #tpu.memory_space<vmem>>, %arg1: memref<384x128xbf16, #tpu.memory_space<vmem>>, %arg2: memref<1x128xf32, #tpu.memory_space<vmem>>, %arg3: memref<1x128xf32, #tpu.memory_space<vmem>>, %arg4: memref<32x128xbf16, #tpu.memory_space<vmem>>) attributes {dimension_semantics = [], scalar_prefetch = 0 : i64, scratch_operands = 0 : i64, tpu.core_type = #tpu.core_type<tc>} {
    %c0 = arith.constant 0 : index
    %c0_0 = arith.constant 0 : index
    %0 = vector.load %arg0[%c0, %c0_0] : memref<32x384xbf16, #tpu.memory_space<vmem>>, vector<32x384xbf16>
    %c0_1 = arith.constant 0 : index
    %c0_2 = arith.constant 0 : index
    %1 = vector.load %arg1[%c0_1, %c0_2] : memref<384x128xbf16, #tpu.memory_space<vmem>>, vector<384x128xbf16>
    %cst = arith.constant dense<0.000000e+00> : vector<32x128xf32>
    %2 = tpu.matmul %0, %1, %cst {dimension_numbers = #tpu.dot_dimension_numbers<[1], [0], [0], [1], [0, 0, 1, 1], [], []>} : vector<32x384xbf16>, vector<384x128xbf16>, vector<32x128xf32> -> vector<32x128xf32>
    %cst_3 = arith.constant dense<0.000000e+00> : vector<128xf32>
    %3 = vector.multi_reduction <add>, %2, %cst_3 [0] : vector<32x128xf32> to vector<128xf32>
    %4 = vector.shape_cast %3 : vector<128xf32> to vector<1x128xf32>
    %cst_4 = arith.constant 3.125000e-02 : f32
    %5 = vector.broadcast %cst_4 : f32 to vector<1x128xf32>
    %6 = arith.mulf %4, %5 : vector<1x128xf32>
    %7 = arith.mulf %2, %2 : vector<32x128xf32>
    %cst_5 = arith.constant dense<0.000000e+00> : vector<128xf32>
    %8 = vector.multi_reduction <add>, %7, %cst_5 [0] : vector<32x128xf32> to vector<128xf32>
    %9 = vector.shape_cast %8 : vector<128xf32> to vector<1x128xf32>
    %cst_6 = arith.constant 3.125000e-02 : f32
    %10 = vector.broadcast %cst_6 : f32 to vector<1x128xf32>
    %11 = arith.mulf %9, %10 : vector<1x128xf32>
    %12 = arith.mulf %6, %6 : vector<1x128xf32>
    %13 = arith.subf %11, %12 : vector<1x128xf32>
    %cst_7 = arith.constant 0.000000e+00 : f32
    %14 = vector.broadcast %cst_7 : f32 to vector<1x128xf32>
    %15 = arith.maximumf %13, %14 : vector<1x128xf32>
    %c0_8 = arith.constant 0 : index
    %c0_9 = arith.constant 0 : index
    %16 = vector.load %arg2[%c0_8, %c0_9] : memref<1x128xf32, #tpu.memory_space<vmem>>, vector<1x128xf32>
    %cst_10 = arith.constant 9.99999974E-6 : f32
    %17 = vector.broadcast %cst_10 : f32 to vector<1x128xf32>
    %18 = arith.addf %15, %17 : vector<1x128xf32>
    %19 = math.rsqrt %18 : vector<1x128xf32>
    %20 = arith.mulf %16, %19 : vector<1x128xf32>
    %c0_11 = arith.constant 0 : index
    %c0_12 = arith.constant 0 : index
    %21 = vector.load %arg3[%c0_11, %c0_12] : memref<1x128xf32, #tpu.memory_space<vmem>>, vector<1x128xf32>
    %22 = arith.mulf %6, %20 : vector<1x128xf32>
    %23 = arith.subf %21, %22 : vector<1x128xf32>
    %24 = vector.broadcast %20 : vector<1x128xf32> to vector<32x128xf32>
    %25 = arith.mulf %2, %24 : vector<32x128xf32>
    %26 = vector.broadcast %23 : vector<1x128xf32> to vector<32x128xf32>
    %27 = arith.addf %25, %26 : vector<32x128xf32>
    %cst_13 = arith.constant 0.000000e+00 : f32
    %28 = vector.broadcast %cst_13 : f32 to vector<32x128xf32>
    %29 = arith.maximumf %27, %28 : vector<32x128xf32>
    %30 = arith.truncf %29 : vector<32x128xf32> to vector<32x128xbf16>
    %c0_14 = arith.constant 0 : index
    %c0_15 = arith.constant 0 : index
    %31 = vector.load %arg4[%c0_14, %c0_15] : memref<32x128xbf16, #tpu.memory_space<vmem>>, vector<32x128xbf16>
    tpu.vector_store %arg4[%c0_14, %c0_15], %30 {strides = array<i32>} : memref<32x128xbf16, #tpu.memory_space<vmem>>, vector<32x128xbf16>,
    return
  }
}

module attributes {stable_mosaic.version = 11 : i64} {
  func.func @kernel(%arg0: memref<32x640xbf16, #tpu.memory_space<vmem>>, %arg1: memref<640x128xbf16, #tpu.memory_space<vmem>>, %arg2: memref<1x128xf32, #tpu.memory_space<vmem>>, %arg3: memref<1x128xf32, #tpu.memory_space<vmem>>, %arg4: memref<32x128xbf16, #tpu.memory_space<vmem>>, %arg5: memref<2x128xf32, #tpu.memory_space<vmem>>) attributes {dimension_semantics = [], scalar_prefetch = 0 : i64, scratch_operands = 0 : i64, tpu.core_type = #tpu.core_type<tc>} {
    %c0 = arith.constant 0 : index
    %c0_0 = arith.constant 0 : index
    %0 = vector.load %arg0[%c0, %c0_0] : memref<32x640xbf16, #tpu.memory_space<vmem>>, vector<32x640xbf16>
    %c0_1 = arith.constant 0 : index
    %c0_2 = arith.constant 0 : index
    %1 = vector.load %arg1[%c0_1, %c0_2] : memref<640x128xbf16, #tpu.memory_space<vmem>>, vector<640x128xbf16>
    %cst = arith.constant dense<0.000000e+00> : vector<32x128xf32>
    %2 = tpu.matmul %0, %1, %cst {dimension_numbers = #tpu.dot_dimension_numbers<[1], [0], [0], [1], [0, 0, 1, 1], [], []>} : vector<32x640xbf16>, vector<640x128xbf16>, vector<32x128xf32> -> vector<32x128xf32>
    %cst_3 = arith.constant dense<0.000000e+00> : vector<128xf32>
    %3 = vector.multi_reduction <add>, %2, %cst_3 [0] : vector<32x128xf32> to vector<128xf32>
    %4 = vector.shape_cast %3 : vector<128xf32> to vector<1x128xf32>
    %cst_4 = arith.constant 3.125000e-02 : f32
    %5 = vector.broadcast %cst_4 : f32 to vector<1x128xf32>
    %6 = arith.mulf %4, %5 : vector<1x128xf32>
    %7 = arith.mulf %2, %2 : vector<32x128xf32>
    %cst_5 = arith.constant dense<0.000000e+00> : vector<128xf32>
    %8 = vector.multi_reduction <add>, %7, %cst_5 [0] : vector<32x128xf32> to vector<128xf32>
    %9 = vector.shape_cast %8 : vector<128xf32> to vector<1x128xf32>
    %cst_6 = arith.constant 3.125000e-02 : f32
    %10 = vector.broadcast %cst_6 : f32 to vector<1x128xf32>
    %11 = arith.mulf %9, %10 : vector<1x128xf32>
    %12 = arith.mulf %6, %6 : vector<1x128xf32>
    %13 = arith.subf %11, %12 : vector<1x128xf32>
    %cst_7 = arith.constant 0.000000e+00 : f32
    %14 = vector.broadcast %cst_7 : f32 to vector<1x128xf32>
    %15 = arith.maximumf %13, %14 : vector<1x128xf32>
    %c0_8 = arith.constant 0 : index
    %c0_9 = arith.constant 0 : index
    %16 = vector.load %arg2[%c0_8, %c0_9] : memref<1x128xf32, #tpu.memory_space<vmem>>, vector<1x128xf32>
    %cst_10 = arith.constant 9.99999974E-6 : f32
    %17 = vector.broadcast %cst_10 : f32 to vector<1x128xf32>
    %18 = arith.addf %15, %17 : vector<1x128xf32>
    %19 = math.rsqrt %18 : vector<1x128xf32>
    %20 = arith.mulf %16, %19 : vector<1x128xf32>
    %c0_11 = arith.constant 0 : index
    %c0_12 = arith.constant 0 : index
    %21 = vector.load %arg3[%c0_11, %c0_12] : memref<1x128xf32, #tpu.memory_space<vmem>>, vector<1x128xf32>
    %22 = arith.mulf %6, %20 : vector<1x128xf32>
    %23 = arith.subf %21, %22 : vector<1x128xf32>
    %24 = vector.broadcast %20 : vector<1x128xf32> to vector<32x128xf32>
    %25 = arith.mulf %2, %24 : vector<32x128xf32>
    %26 = vector.broadcast %23 : vector<1x128xf32> to vector<32x128xf32>
    %27 = arith.addf %25, %26 : vector<32x128xf32>
    %c0_13 = arith.constant 0 : index
    %c0_14 = arith.constant 0 : index
    %28 = vector.load %arg4[%c0_13, %c0_14] : memref<32x128xbf16, #tpu.memory_space<vmem>>, vector<32x128xbf16>
    %29 = arith.extf %28 : vector<32x128xbf16> to vector<32x128xf32>
    %30 = arith.addf %27, %29 : vector<32x128xf32>
    %cst_15 = arith.constant 0.000000e+00 : f32
    %31 = vector.broadcast %cst_15 : f32 to vector<32x128xf32>
    %32 = arith.maximumf %30, %31 : vector<32x128xf32>
    %33 = vector.extract_strided_slice %32 {offsets = [0, 0], sizes = [16, 128], strides = [1, 1]} : vector<32x128xf32> to vector<16x128xf32>
    %cst_16 = arith.constant dense<0.000000e+00> : vector<128xf32>
    %34 = vector.multi_reduction <add>, %33, %cst_16 [0] : vector<16x128xf32> to vector<128xf32>
    %35 = vector.shape_cast %34 : vector<128xf32> to vector<1x128xf32>
    %cst_17 = arith.constant 1.600000e+01 : f32
    %36 = vector.broadcast %cst_17 : f32 to vector<1x128xf32>
    %37 = arith.divf %35, %36 : vector<1x128xf32>
    %38 = vector.extract_strided_slice %32 {offsets = [16, 0], sizes = [16, 128], strides = [1, 1]} : vector<32x128xf32> to vector<16x128xf32>
    %cst_18 = arith.constant dense<0.000000e+00> : vector<128xf32>
    %39 = vector.multi_reduction <add>, %38, %cst_18 [0] : vector<16x128xf32> to vector<128xf32>
    %40 = vector.shape_cast %39 : vector<128xf32> to vector<1x128xf32>
    %cst_19 = arith.constant 1.600000e+01 : f32
    %41 = vector.broadcast %cst_19 : f32 to vector<1x128xf32>
    %42 = arith.divf %40, %41 : vector<1x128xf32>
    %43 = tpu.concatenate %37, %42 in 0 : vector<1x128xf32>, vector<1x128xf32> -> vector<2x128xf32>
    %c0_20 = arith.constant 0 : index
    %c0_21 = arith.constant 0 : index
    %44 = vector.load %arg5[%c0_20, %c0_21] : memref<2x128xf32, #tpu.memory_space<vmem>>, vector<2x128xf32>
    tpu.vector_store %arg5[%c0_20, %c0_21], %43 {strides = array<i32>} : memref<2x128xf32, #tpu.memory_space<vmem>>, vector<2x128xf32>,
    return
  }
}

module attributes {stable_mosaic.version = 11 : i64} {
  func.func @kernel(%arg0: memref<32x128xbf16, #tpu.memory_space<vmem>>, %arg1: memref<128x128xbf16, #tpu.memory_space<vmem>>, %arg2: memref<1x128xf32, #tpu.memory_space<vmem>>, %arg3: memref<1x128xf32, #tpu.memory_space<vmem>>, %arg4: memref<32x128xbf16, #tpu.memory_space<vmem>>) attributes {dimension_semantics = [], scalar_prefetch = 0 : i64, scratch_operands = 0 : i64, tpu.core_type = #tpu.core_type<tc>} {
    %c0 = arith.constant 0 : index
    %c0_0 = arith.constant 0 : index
    %0 = vector.load %arg0[%c0, %c0_0] : memref<32x128xbf16, #tpu.memory_space<vmem>>, vector<32x128xbf16>
    %c0_1 = arith.constant 0 : index
    %c0_2 = arith.constant 0 : index
    %1 = vector.load %arg1[%c0_1, %c0_2] : memref<128x128xbf16, #tpu.memory_space<vmem>>, vector<128x128xbf16>
    %cst = arith.constant dense<0.000000e+00> : vector<32x128xf32>
    %2 = tpu.matmul %0, %1, %cst {dimension_numbers = #tpu.dot_dimension_numbers<[1], [0], [0], [1], [0, 0, 1, 1], [], []>} : vector<32x128xbf16>, vector<128x128xbf16>, vector<32x128xf32> -> vector<32x128xf32>
    %cst_3 = arith.constant dense<0.000000e+00> : vector<128xf32>
    %3 = vector.multi_reduction <add>, %2, %cst_3 [0] : vector<32x128xf32> to vector<128xf32>
    %4 = vector.shape_cast %3 : vector<128xf32> to vector<1x128xf32>
    %cst_4 = arith.constant 3.125000e-02 : f32
    %5 = vector.broadcast %cst_4 : f32 to vector<1x128xf32>
    %6 = arith.mulf %4, %5 : vector<1x128xf32>
    %7 = arith.mulf %2, %2 : vector<32x128xf32>
    %cst_5 = arith.constant dense<0.000000e+00> : vector<128xf32>
    %8 = vector.multi_reduction <add>, %7, %cst_5 [0] : vector<32x128xf32> to vector<128xf32>
    %9 = vector.shape_cast %8 : vector<128xf32> to vector<1x128xf32>
    %cst_6 = arith.constant 3.125000e-02 : f32
    %10 = vector.broadcast %cst_6 : f32 to vector<1x128xf32>
    %11 = arith.mulf %9, %10 : vector<1x128xf32>
    %12 = arith.mulf %6, %6 : vector<1x128xf32>
    %13 = arith.subf %11, %12 : vector<1x128xf32>
    %cst_7 = arith.constant 0.000000e+00 : f32
    %14 = vector.broadcast %cst_7 : f32 to vector<1x128xf32>
    %15 = arith.maximumf %13, %14 : vector<1x128xf32>
    %c0_8 = arith.constant 0 : index
    %c0_9 = arith.constant 0 : index
    %16 = vector.load %arg2[%c0_8, %c0_9] : memref<1x128xf32, #tpu.memory_space<vmem>>, vector<1x128xf32>
    %cst_10 = arith.constant 9.99999974E-6 : f32
    %17 = vector.broadcast %cst_10 : f32 to vector<1x128xf32>
    %18 = arith.addf %15, %17 : vector<1x128xf32>
    %19 = math.rsqrt %18 : vector<1x128xf32>
    %20 = arith.mulf %16, %19 : vector<1x128xf32>
    %c0_11 = arith.constant 0 : index
    %c0_12 = arith.constant 0 : index
    %21 = vector.load %arg3[%c0_11, %c0_12] : memref<1x128xf32, #tpu.memory_space<vmem>>, vector<1x128xf32>
    %22 = arith.mulf %6, %20 : vector<1x128xf32>
    %23 = arith.subf %21, %22 : vector<1x128xf32>
    %24 = vector.broadcast %20 : vector<1x128xf32> to vector<32x128xf32>
    %25 = arith.mulf %2, %24 : vector<32x128xf32>
    %26 = vector.broadcast %23 : vector<1x128xf32> to vector<32x128xf32>
    %27 = arith.addf %25, %26 : vector<32x128xf32>
    %28 = arith.truncf %27 : vector<32x128xf32> to vector<32x128xbf16>
    %c0_13 = arith.constant 0 : index
    %c0_14 = arith.constant 0 : index
    %29 = vector.load %arg4[%c0_13, %c0_14] : memref<32x128xbf16, #tpu.memory_space<vmem>>, vector<32x128xbf16>
    tpu.vector_store %arg4[%c0_13, %c0_14], %28 {strides = array<i32>} : memref<32x128xbf16, #tpu.memory_space<vmem>>, vector<32x128xbf16>,
    return
  }
}

</mosaic_0001>

<llo_original>
// kernel: _lambda_.15
$region0: #{_lambda_.15}
  #allocation0 [shape = 'u32[]', space=smem, size = 0x4, offset = 0x4, fixed_abs, tag = 'smem constant byte address 0x4 - core index']
  #allocation1 [shape = 'u32[144,128]{1,0:T(1,128)}', space=vmem, size = 0x12000, scoped, tag = 'internal scratch']
  %s0 = inlined_call_operand.vmem [shape: bf16[2048,128], index: 0, kind: input, shape index: {}]
  %s1 = inlined_call_operand.vmem [shape: bf16[128,128], index: 1, kind: input, shape index: {}]
  %s2 = inlined_call_operand.vmem [shape: bf16[2048,128], index: 2, kind: output, shape index: {0}]
  %s3 = inlined_call_operand.vmem [shape: f32[4,1,128], index: 3, kind: output, shape index: {1}]
  %s4 = inlined_call_operand.vmem [shape: f32[4,1,128], index: 4, kind: output, shape index: {2}]
  %5 = xla_tuple %s2, %s3, %s4
  %s6 = sld [smem:[#allocation0]]
  $region57: #{_lambda_.15} parent=0
    _
  %s8 = ssub.s32 1, %s6
  %s9 = scalar_select 0, %s8, %s6
  loop: start=0, step=1, limit=6
  $region2: #{_lambda_.15} parent=0 // loop_pre_header
    _
  $region3: #{_lambda_.15} parent=0 // loop_header
    %s11 = sphi 0, %s15
    %p12 = scmp.ge.s32.totalorder %s11, 6
    %s21 = sphi 0, %s23
    %s24 = sphi 0, %s21
    %s25 = sphi 0, %s24
    %s41 = sphi 0, %s25
    %s45 = sphi 0, %s45
    %s47 = sphi 0, %s45
    %s48 = sphi 0, %s47
    %s62 = sphi 0, %s48
    %s68 = sphi 0, %s70
    %s71 = sphi 0, %s68
    %s72 = sphi 0, %s71
    %s88 = sphi 0, %s72
    %s94 = sphi 0, %s96
    %s97 = sphi 0, %s94
    %s98 = sphi 0, %s97
    %s114 = sphi 0, %s98
    %s120 = sphi 0, %s122
    %s123 = sphi 0, %s120
    %s124 = sphi 0, %s123
    %s140 = sphi 0, %s124
  $region4: #{_lambda_.15} parent=0 // loop_header_branch
    %14 = sbr.rel (%p12) target = $region8
  $region5: #{_lambda_.15} parent=0 // loop_body
    %s16 = ssub.s32 %s11, 1
    %s17 = ssub.s32 %s11, 2
    %s18 = sadd.s32 %s11, 1
    %s19 = ssub.s32 %s11, %s18
    %p20 = scmp.eq.s32.totalorder %s19, 0
    %s22 = sadd.s32 %s21, 1
    %s23 = scalar_select %p20, %s21, %s22
    %p26 = pneg %p20
    %p27 = scmp.eq.s32.totalorder %s11, 3
    %p28 = por %p26, %p27
    %p29 = scmp.ne.s32.totalorder %s21, %s24
    %p30 = scmp.eq.s32.totalorder %s11, 0
    %p31 = por %p29, %p30
    %p32 = scmp.ne.s32.totalorder %s21, %s24
    %p33 = scmp.eq.s32.totalorder %s16, 3
    %p34 = por %p32, %p33
    %p35 = scmp.ne.s32.totalorder %s24, %s25
    %p36 = scmp.eq.s32.totalorder %s16, 0
    %p37 = por %p35, %p36
    %p38 = scmp.ne.s32.totalorder %s24, %s25
    %p39 = scmp.eq.s32.totalorder %s17, 3
    %p40 = por %p38, %p39
    %p42 = scmp.ne.s32.totalorder %s25, %s41
    %p43 = scmp.eq.s32.totalorder %s17, 0
    %p44 = por %p42, %p43
    %s46 = sadd.s32 %s45, 1
    %p49 = scmp.eq.s32.totalorder %s11, 3
    %p50 = scmp.ne.s32.totalorder %s45, %s47
    %p51 = scmp.eq.s32.totalorder %s11, 0
    %p52 = por %p50, %p51
    %p53 = scmp.ne.s32.totalorder %s45, %s47
    %p54 = scmp.eq.s32.totalorder %s16, 3
    %p55 = por %p53, %p54
    %p56 = scmp.ne.s32.totalorder %s47, %s48
    %p57 = scmp.eq.s32.totalorder %s16, 0
    %p58 = por %p56, %p57
    %p59 = scmp.ne.s32.totalorder %s47, %s48
    %p60 = scmp.eq.s32.totalorder %s17, 3
    %p61 = por %p59, %p60
    %p63 = scmp.ne.s32.totalorder %s48, %s62
    %p64 = scmp.eq.s32.totalorder %s17, 0
    %p65 = por %p63, %p64
    %s66 = ssub.s32 %s11, %s18
    %p67 = scmp.eq.s32.totalorder %s66, 0
    %s69 = sadd.s32 %s68, 1
    %s70 = scalar_select %p67, %s68, %s69
    %p73 = pneg %p67
    %p74 = scmp.eq.s32.totalorder %s11, 3
    %p75 = por %p73, %p74
    %p76 = scmp.ne.s32.totalorder %s68, %s71
    %p77 = scmp.eq.s32.totalorder %s11, 0
    %p78 = por %p76, %p77
    %p79 = scmp.ne.s32.totalorder %s68, %s71
    %p80 = scmp.eq.s32.totalorder %s16, 3
    %p81 = por %p79, %p80
    %p82 = scmp.ne.s32.totalorder %s71, %s72
    %p83 = scmp.eq.s32.totalorder %s16, 0
    %p84 = por %p82, %p83
    %p85 = scmp.ne.s32.totalorder %s71, %s72
    %p86 = scmp.eq.s32.totalorder %s17, 3
    %p87 = por %p85, %p86
    %p89 = scmp.ne.s32.totalorder %s72, %s88
    %p90 = scmp.eq.s32.totalorder %s17, 0
    %p91 = por %p89, %p90
    %s92 = ssub.s32 %s11, %s18
    %p93 = scmp.eq.s32.totalorder %s92, 0
    %s95 = sadd.s32 %s94, 1
    %s96 = scalar_select %p93, %s94, %s95
    %p99 = pneg %p93
    %p100 = scmp.eq.s32.totalorder %s11, 3
    %p101 = por %p99, %p100
    %p102 = scmp.ne.s32.totalorder %s94, %s97
    %p103 = scmp.eq.s32.totalorder %s11, 0
    %p104 = por %p102, %p103
    %p105 = scmp.ne.s32.totalorder %s94, %s97
    %p106 = scmp.eq.s32.totalorder %s16, 3
    %p107 = por %p105, %p106
    %p108 = scmp.ne.s32.totalorder %s97, %s98
    %p109 = scmp.eq.s32.totalorder %s16, 0
    %p110 = por %p108, %p109
    %p111 = scmp.ne.s32.totalorder %s97, %s98
    %p112 = scmp.eq.s32.totalorder %s17, 3
    %p113 = por %p111, %p112
    %p115 = scmp.ne.s32.totalorder %s98, %s114
    %p116 = scmp.eq.s32.totalorder %s17, 0
    %p117 = por %p115, %p116
    %s118 = ssub.s32 %s11, %s18
    %p119 = scmp.eq.s32.totalorder %s118, 0
    %s121 = sadd.s32 %s120, 1
    %s122 = scalar_select %p119, %s120, %s121
    %p125 = pneg %p119
    %p126 = scmp.eq.s32.totalorder %s11, 3
    %p127 = por %p125, %p126
    %p128 = scmp.ne.s32.totalorder %s120, %s123
    %p129 = scmp.eq.s32.totalorder %s11, 0
    %p130 = por %p128, %p129
    %p131 = scmp.ne.s32.totalorder %s120, %s123
    %p132 = scmp.eq.s32.totalorder %s16, 3
    %p133 = por %p131, %p132
    %p134 = scmp.ne.s32.totalorder %s123, %s124
    %p135 = scmp.eq.s32.totalorder %s16, 0
    %p136 = por %p134, %p135
    %p137 = scmp.ne.s32.totalorder %s123, %s124
    %p138 = scmp.eq.s32.totalorder %s17, 3
    %p139 = por %p137, %p138
    %p141 = scmp.ne.s32.totalorder %s124, %s140
    %p142 = scmp.eq.s32.totalorder %s17, 0
    %p143 = por %p141, %p142
    %p144 = scmp.le.s32.totalorder 1, %s11
    %p145 = scmp.lt.s32.totalorder %s11, 5
    %p146 = pnand %p144, %p145
    %p147 = pneg %p146
    // Predicated region
    $region9: #{_lambda_.15} parent=5 // pred_check
      _
    $region10: #{_lambda_.15} parent=5 // pred_check_branch
      %149 = sbr.rel (%p146) target = $region12
    $region11: #{_lambda_.15} parent=5 // pred_region
      %s150 = ssub.s32 %s11, 1
      // Predicated region
      $region13: #{_lambda_.15} parent=11 // pred_check
        %p151 = pneg %p58
      $region14: #{_lambda_.15} parent=11 // pred_check_branch
        %153 = sbr.rel (%p151) target = $region16
      $region15: #{_lambda_.15} parent=11 // pred_region
        _
      $region16: #{_lambda_.15} parent=11 // pred_fallthru
        _
    $region12: #{_lambda_.15} parent=5 // pred_fallthru
      _
    %p154 = scmp.lt.s32.totalorder %s11, 4
    // Predicated region
    $region17: #{_lambda_.15} parent=5 // pred_check
      %p155 = pneg %p154
    $region18: #{_lambda_.15} parent=5 // pred_check_branch
      %157 = sbr.rel (%p155) target = $region20
    $region19: #{_lambda_.15} parent=5 // pred_region
      // Predicated region
      $region21: #{_lambda_.15} parent=19 // pred_check
        %p158 = pneg %p31
      $region22: #{_lambda_.15} parent=19 // pred_check_branch
        %160 = sbr.rel (%p158) target = $region24
      $region23: #{_lambda_.15} parent=19 // pred_region
        %s161 = smul.u32 64, %s11
        %p162 = scmp.lt.s32.totalorder %s161, 255
        %s163 = scalar_select %p162, %s161, 255
        %s164 = smul.addr %s163, 4
        %s165 = scalar_lea.vmem %s0, %s164
        %s166 = smul.u32 64, %s11
      $region24: #{_lambda_.15} parent=19 // pred_fallthru
        _
    $region20: #{_lambda_.15} parent=5 // pred_fallthru
      _
    %p167 = scmp.le.s32.totalorder 1, %s11
    %p168 = scmp.lt.s32.totalorder %s11, 5
    %p169 = pnand %p167, %p168
    %p170 = pneg %p169
    // Predicated region
    $region25: #{_lambda_.15} parent=5 // pred_check
      _
    $region26: #{_lambda_.15} parent=5 // pred_check_branch
      %172 = sbr.rel (%p169) target = $region28
    $region27: #{_lambda_.15} parent=5 // pred_region
      %s173 = ssub.s32 %s11, 1
      %s174 = smul.u32 64, %s16
      %p175 = scmp.lt.s32.totalorder %s174, 255
      %s176 = scalar_select %p175, %s174, 255
      %s177 = smul.addr %s176, 4
      %s178 = scalar_lea.vmem %s0, %s177
      %p179 = pneg %p37
      %p180 = pneg %p34
      %p181 = pneg %p58
      %p182 = pneg %p55
      %p183 = pneg %p84
      %p184 = pneg %p81
      %s185 = smul.u32 64, %s16
      %p186 = scmp.lt.s32.totalorder %s185, 255
      %s187 = scalar_select %p186, %s185, 255
      %s188 = smul.addr %s187, 4
      %s189 = scalar_lea.vmem %s2, %s188
      %p190 = pneg %p110
      %p191 = pneg %p107
      %p192 = scmp.lt.s32.totalorder %s16, 3
      %s193 = scalar_select %p192, %s16, 3
      %s194 = scalar_lea.vmem %s3, %s193
      %p195 = pneg %p136
      %p196 = pneg %p133
      %p197 = scmp.lt.s32.totalorder %s16, 3
      %s198 = scalar_select %p197, %s16, 3
      %s199 = scalar_lea.vmem %s4, %s198
      %s200 = smul.u32 64, %s16
      %p201 = scmp.lt.s32.totalorder %s200, 255
      %s202 = scalar_select %p201, %s200, 255
      %s203 = smul.addr %s202, 4
      %s204 = scalar_lea.vmem %s0, %s203
      %s205 = smul.u32 64, %s16
      %s206 = smul.u32 64, %s16
      %p207 = scmp.lt.s32.totalorder %s206, 255
      %s208 = scalar_select %p207, %s206, 255
      %s209 = smul.addr %s208, 4
      %s210 = scalar_lea.vmem %s2, %s209
      %s211 = smul.u32 64, %s16
      %p212 = scmp.lt.s32.totalorder %s16, 3
      %s213 = scalar_select %p212, %s16, 3
      %s214 = scalar_lea.vmem %s3, %s213
      %p215 = scmp.lt.s32.totalorder %s16, 3
      %s216 = scalar_select %p215, %s16, 3
      %s217 = scalar_lea.vmem %s4, %s216
      %v219 = vld [vmem:[%s204] sm:$0xf]
      %v220 = vld [vmem:[%s204 + $0x4] sm:$0xf]
      %v221 = vld [vmem:[%s204 + $0x8] sm:$0xf]
      %v222 = vld [vmem:[%s204 + $0xc] sm:$0xf]
      %v223 = vld [vmem:[%s204 + $0x10] sm:$0xf]
      %v224 = vld [vmem:[%s204 + $0x14] sm:$0xf]
      %v225 = vld [vmem:[%s204 + $0x18] sm:$0xf]
      %v226 = vld [vmem:[%s204 + $0x1c] sm:$0xf]
      %v227 = vld [vmem:[%s204 + $0x20] sm:$0xf]
      %v228 = vld [vmem:[%s204 + $0x24] sm:$0xf]
      %v229 = vld [vmem:[%s204 + $0x28] sm:$0xf]
      %v230 = vld [vmem:[%s204 + $0x2c] sm:$0xf]
      %v231 = vld [vmem:[%s204 + $0x30] sm:$0xf]
      %v232 = vld [vmem:[%s204 + $0x34] sm:$0xf]
      %v233 = vld [vmem:[%s204 + $0x38] sm:$0xf]
      %v234 = vld [vmem:[%s204 + $0x3c] sm:$0xf]
      %v235 = vld [vmem:[%s204 + $0x40] sm:$0xf]
      %v236 = vld [vmem:[%s204 + $0x44] sm:$0xf]
      %v237 = vld [vmem:[%s204 + $0x48] sm:$0xf]
      %v238 = vld [vmem:[%s204 + $0x4c] sm:$0xf]
      %v239 = vld [vmem:[%s204 + $0x50] sm:$0xf]
      %v240 = vld [vmem:[%s204 + $0x54] sm:$0xf]
      %v241 = vld [vmem:[%s204 + $0x58] sm:$0xf]
      %v242 = vld [vmem:[%s204 + $0x5c] sm:$0xf]
      %v243 = vld [vmem:[%s204 + $0x60] sm:$0xf]
      %v244 = vld [vmem:[%s204 + $0x64] sm:$0xf]
      %v245 = vld [vmem:[%s204 + $0x68] sm:$0xf]
      %v246 = vld [vmem:[%s204 + $0x6c] sm:$0xf]
      %v247 = vld [vmem:[%s204 + $0x70] sm:$0xf]
      %v248 = vld [vmem:[%s204 + $0x74] sm:$0xf]
      %v249 = vld [vmem:[%s204 + $0x78] sm:$0xf]
      %v250 = vld [vmem:[%s204 + $0x7c] sm:$0xf]
      %v251 = vld [vmem:[%s204 + $0x80] sm:$0xf]
      %v252 = vld [vmem:[%s204 + $0x84] sm:$0xf]
      %v253 = vld [vmem:[%s204 + $0x88] sm:$0xf]
      %v254 = vld [vmem:[%s204 + $0x8c] sm:$0xf]
      %v255 = vld [vmem:[%s204 + $0x90] sm:$0xf]
      %v256 = vld [vmem:[%s204 + $0x94] sm:$0xf]
      %v257 = vld [vmem:[%s204 + $0x98] sm:$0xf]
      %v258 = vld [vmem:[%s204 + $0x9c] sm:$0xf]
      %v259 = vld [vmem:[%s204 + $0xa0] sm:$0xf]
      %v260 = vld [vmem:[%s204 + $0xa4] sm:$0xf]
      %v261 = vld [vmem:[%s204 + $0xa8] sm:$0xf]
      %v262 = vld [vmem:[%s204 + $0xac] sm:$0xf]
      %v263 = vld [vmem:[%s204 + $0xb0] sm:$0xf]
      %v264 = vld [vmem:[%s204 + $0xb4] sm:$0xf]
      %v265 = vld [vmem:[%s204 + $0xb8] sm:$0xf]
      %v266 = vld [vmem:[%s204 + $0xbc] sm:$0xf]
      %v267 = vld [vmem:[%s204 + $0xc0] sm:$0xf]
      %v268 = vld [vmem:[%s204 + $0xc4] sm:$0xf]
      %v269 = vld [vmem:[%s204 + $0xc8] sm:$0xf]
      %v270 = vld [vmem:[%s204 + $0xcc] sm:$0xf]
      %v271 = vld [vmem:[%s204 + $0xd0] sm:$0xf]
      %v272 = vld [vmem:[%s204 + $0xd4] sm:$0xf]
      %v273 = vld [vmem:[%s204 + $0xd8] sm:$0xf]
      %v274 = vld [vmem:[%s204 + $0xdc] sm:$0xf]
      %v275 = vld [vmem:[%s204 + $0xe0] sm:$0xf]
      %v276 = vld [vmem:[%s204 + $0xe4] sm:$0xf]
      %v277 = vld [vmem:[%s204 + $0xe8] sm:$0xf]
      %v278 = vld [vmem:[%s204 + $0xec] sm:$0xf]
      %v279 = vld [vmem:[%s204 + $0xf0] sm:$0xf]
      %v280 = vld [vmem:[%s204 + $0xf4] sm:$0xf]
      %v281 = vld [vmem:[%s204 + $0xf8] sm:$0xf]
      %v282 = vld [vmem:[%s204 + $0xfc] sm:$0xf]
      %v283 = vld [vmem:[%s1] sm:$0xf]
      %v284 = vld [vmem:[%s1 + $0x4] sm:$0xf]
      %v285 = vld [vmem:[%s1 + $0x8] sm:$0xf]
      %v286 = vld [vmem:[%s1 + $0xc] sm:$0xf]
      %v287 = vld [vmem:[%s1 + $0x10] sm:$0xf]
      %v288 = vld [vmem:[%s1 + $0x14] sm:$0xf]
      %v289 = vld [vmem:[%s1 + $0x18] sm:$0xf]
      %v290 = vld [vmem:[%s1 + $0x1c] sm:$0xf]
      %v291 = vld [vmem:[%s1 + $0x20] sm:$0xf]
      %v292 = vld [vmem:[%s1 + $0x24] sm:$0xf]
      %v293 = vld [vmem:[%s1 + $0x28] sm:$0xf]
      %v294 = vld [vmem:[%s1 + $0x2c] sm:$0xf]
      %v295 = vld [vmem:[%s1 + $0x30] sm:$0xf]
      %v296 = vld [vmem:[%s1 + $0x34] sm:$0xf]
      %v297 = vld [vmem:[%s1 + $0x38] sm:$0xf]
      %v298 = vld [vmem:[%s1 + $0x3c] sm:$0xf]
      %v363 = vunpack.c.l.b16 %v219
      %v364 = vunpack.c.l.b16 %v220
      %v365 = vunpack.c.l.b16 %v221
      %v366 = vunpack.c.l.b16 %v222
      %v367 = vunpack.c.l.b16 %v223
      %v368 = vunpack.c.l.b16 %v224
      %v369 = vunpack.c.l.b16 %v225
      %v370 = vunpack.c.l.b16 %v226
      %v371 = vunpack.c.l.b16 %v227
      %v372 = vunpack.c.l.b16 %v228
      %v373 = vunpack.c.l.b16 %v229
      %v374 = vunpack.c.l.b16 %v230
      %v375 = vunpack.c.l.b16 %v231
      %v376 = vunpack.c.l.b16 %v232
      %v377 = vunpack.c.l.b16 %v233
      %v378 = vunpack.c.l.b16 %v234
      %v379 = vunpack.c.l.b16 %v235
      %v380 = vunpack.c.l.b16 %v236
      %v381 = vunpack.c.l.b16 %v237
      %v382 = vunpack.c.l.b16 %v238
      %v383 = vunpack.c.l.b16 %v239
      %v384 = vunpack.c.l.b16 %v240
      %v385 = vunpack.c.l.b16 %v241
      %v386 = vunpack.c.l.b16 %v242
      %v387 = vunpack.c.l.b16 %v243
      %v388 = vunpack.c.l.b16 %v244
      %v389 = vunpack.c.l.b16 %v245
      %v390 = vunpack.c.l.b16 %v246
      %v391 = vunpack.c.l.b16 %v247
      %v392 = vunpack.c.l.b16 %v248
      %v393 = vunpack.c.l.b16 %v249
      %v394 = vunpack.c.l.b16 %v250
      %v395 = vunpack.c.l.b16 %v251
      %v396 = vunpack.c.l.b16 %v252
      %v397 = vunpack.c.l.b16 %v253
      %v398 = vunpack.c.l.b16 %v254
      %v399 = vunpack.c.l.b16 %v255
      %v400 = vunpack.c.l.b16 %v256
      %v401 = vunpack.c.l.b16 %v257
      %v402 = vunpack.c.l.b16 %v258
      %v403 = vunpack.c.l.b16 %v259
      %v404 = vunpack.c.l.b16 %v260
      %v405 = vunpack.c.l.b16 %v261
      %v406 = vunpack.c.l.b16 %v262
      %v407 = vunpack.c.l.b16 %v263
      %v408 = vunpack.c.l.b16 %v264
      %v409 = vunpack.c.l.b16 %v265
      %v410 = vunpack.c.l.b16 %v266
      %v411 = vunpack.c.l.b16 %v267
      %v412 = vunpack.c.l.b16 %v268
      %v413 = vunpack.c.l.b16 %v269
      %v414 = vunpack.c.l.b16 %v270
      %v415 = vunpack.c.l.b16 %v271
      %v416 = vunpack.c.l.b16 %v272
      %v417 = vunpack.c.l.b16 %v273
      %v418 = vunpack.c.l.b16 %v274
      %v419 = vunpack.c.l.b16 %v275
      %v420 = vunpack.c.l.b16 %v276
      %v421 = vunpack.c.l.b16 %v277
      %v422 = vunpack.c.l.b16 %v278
      %v423 = vunpack.c.l.b16 %v279
      %v424 = vunpack.c.l.b16 %v280
      %v425 = vunpack.c.l.b16 %v281
      %v426 = vunpack.c.l.b16 %v282
      %v427 = vpack.c.b16 %v364, %v363
      %v428 = vpack.c.b16 %v366, %v365
      %v429 = vpack.c.b16 %v368, %v367
      %v430 = vpack.c.b16 %v370, %v369
      %v431 = vpack.c.b16 %v372, %v371
      %v432 = vpack.c.b16 %v374, %v373
      %v433 = vpack.c.b16 %v376, %v375
      %v434 = vpack.c.b16 %v378, %v377
      %v435 = vpack.c.b16 %v380, %v379
      %v436 = vpack.c.b16 %v382, %v381
      %v437 = vpack.c.b16 %v384, %v383
      %v438 = vpack.c.b16 %v386, %v385
      %v439 = vpack.c.b16 %v388, %v387
      %v440 = vpack.c.b16 %v390, %v389
      %v441 = vpack.c.b16 %v392, %v391
      %v442 = vpack.c.b16 %v394, %v393
      %v443 = vpack.c.b16 %v396, %v395
      %v444 = vpack.c.b16 %v398, %v397
      %v445 = vpack.c.b16 %v400, %v399
      %v446 = vpack.c.b16 %v402, %v401
      %v447 = vpack.c.b16 %v404, %v403
      %v448 = vpack.c.b16 %v406, %v405
      %v449 = vpack.c.b16 %v408, %v407
      %v450 = vpack.c.b16 %v410, %v409
      %v451 = vpack.c.b16 %v412, %v411
      %v452 = vpack.c.b16 %v414, %v413
      %v453 = vpack.c.b16 %v416, %v415
      %v454 = vpack.c.b16 %v418, %v417
      %v455 = vpack.c.b16 %v420, %v419
      %v456 = vpack.c.b16 %v422, %v421
      %v457 = vpack.c.b16 %v424, %v423
      %v458 = vpack.c.b16 %v426, %v425
      %v507 = vunpack.c.l.b16 %v283
      %v508 = vunpack.c.l.b16 %v284
      %v509 = vunpack.c.l.b16 %v285
      %v510 = vunpack.c.l.b16 %v286
      %v511 = vunpack.c.l.b16 %v287
      %v512 = vunpack.c.l.b16 %v288
      %v513 = vunpack.c.l.b16 %v289
      %v514 = vunpack.c.l.b16 %v290
      %v515 = vunpack.c.l.b16 %v291
      %v516 = vunpack.c.l.b16 %v292
      %v517 = vunpack.c.l.b16 %v293
      %v518 = vunpack.c.l.b16 %v294
      %v519 = vunpack.c.l.b16 %v295
      %v520 = vunpack.c.l.b16 %v296
      %v521 = vunpack.c.l.b16 %v297
      %v522 = vunpack.c.l.b16 %v298
      %v523 = vpack.c.b16 %v508, %v507
      %v524 = vpack.c.b16 %v510, %v509
      %v525 = vpack.c.b16 %v512, %v511
      %v526 = vpack.c.b16 %v514, %v513
      %v527 = vpack.c.b16 %v516, %v515
      %v528 = vpack.c.b16 %v518, %v517
      %v529 = vpack.c.b16 %v520, %v519
      %v530 = vpack.c.b16 %v522, %v521
      %539 = vmatprep.subr.bf16.mxu0 0
      %540 = vmatpush1.bf16.msra.mxu0 %v523
      %541 = vmatprep.subr.bf16.mxu0 0
      %542 = vmatpush1.bf16.msra.mxu0 %v524
      %543 = vmatprep.subr.bf16.mxu0 0
      %544 = vmatpush1.bf16.msra.mxu0 %v525
      %545 = vmatprep.subr.bf16.mxu0 0
      %546 = vmatpush1.bf16.msra.mxu0 %v526
      %547 = vmatprep.subr.bf16.mxu0 0
      %548 = vmatpush1.bf16.msra.mxu0 %v527
      %549 = vmatprep.subr.bf16.mxu0 0
      %550 = vmatpush1.bf16.msra.mxu0 %v528
      %551 = vmatprep.subr.bf16.mxu0 0
      %552 = vmatpush1.bf16.msra.mxu0 %v529
      %553 = vmatprep.subr.bf16.mxu0 0
      %554 = vmatpush1.bf16.msra.mxu0 %v530
      %555 = vmatprep.subr.bf16.mxu0 0
      %556 = vmatpush1.bf16.msra.mxu0 0
      %557 = vmatprep.subr.bf16.mxu0 0
      %558 = vmatpush1.bf16.msra.mxu0 0
      %559 = vmatprep.subr.bf16.mxu0 0
      %560 = vmatpush1.bf16.msra.mxu0 0
      %561 = vmatprep.subr.bf16.mxu0 0
      %562 = vmatpush1.bf16.msra.mxu0 0
      %563 = vmatprep.subr.bf16.mxu0 0
      %564 = vmatpush1.bf16.msra.mxu0 0
      %565 = vmatprep.subr.bf16.mxu0 0
      %566 = vmatpush1.bf16.msra.mxu0 0
      %567 = vmatprep.subr.bf16.mxu0 0
      %568 = vmatpush1.bf16.msra.mxu0 0
      %569 = vmatprep.subr.bf16.mxu0 0
      %570 = vmatpush1.bf16.msra.mxu0 0
      %571 = vmatprep.mubr.bf16.mxu0 0
      %572 = vmatmul.mubr.bf16.gmra.mrb[0].mxu0 %v427
      %v573 = vpop.f32.mrb[0].mxu0
      %v574 = vadd.f32 0.0, %v573
      %v575 = vpop.f32.mrb[0].mxu0
      %v576 = vpop.f32.mrb[0].mxu0
      %v577 = vadd.f32 0.0, %v576
      %v578 = vpop.f32.mrb[0].mxu0
      %579 = vmatprep.mubr.bf16.mxu0 0
      %580 = vmatmul.mubr.bf16.gmra.mrb[0].mxu0 %v428
      %v581 = vpop.f32.mrb[0].mxu0
      %v582 = vadd.f32 0.0, %v581
      %v583 = vpop.f32.mrb[0].mxu0
      %v584 = vpop.f32.mrb[0].mxu0
      %v585 = vadd.f32 0.0, %v584
      %v586 = vpop.f32.mrb[0].mxu0
      %587 = vmatprep.mubr.bf16.mxu0 0
      %588 = vmatmul.mubr.bf16.gmra.mrb[0].mxu0 %v429
      %v589 = vpop.f32.mrb[0].mxu0
      %v590 = vadd.f32 0.0, %v589
      %v591 = vpop.f32.mrb[0].mxu0
      %v592 = vpop.f32.mrb[0].mxu0
      %v593 = vadd.f32 0.0, %v592
      %v594 = vpop.f32.mrb[0].mxu0
      %595 = vmatprep.mubr.bf16.mxu0 0
      %596 = vmatmul.mubr.bf16.gmra.mrb[0].mxu0 %v430
      %v597 = vpop.f32.mrb[0].mxu0
      %v598 = vadd.f32 0.0, %v597
      %v599 = vpop.f32.mrb[0].mxu0
      %v600 = vpop.f32.mrb[0].mxu0
      %v601 = vadd.f32 0.0, %v600
      %v602 = vpop.f32.mrb[0].mxu0
      %603 = vmatprep.mubr.bf16.mxu0 0
      %604 = vmatmul.mubr.bf16.gmra.mrb[0].mxu0 %v431
      %v605 = vpop.f32.mrb[0].mxu0
      %v606 = vadd.f32 0.0, %v605
      %v607 = vpop.f32.mrb[0].mxu0
      %v608 = vpop.f32.mrb[0].mxu0
      %v609 = vadd.f32 0.0, %v608
      %v610 = vpop.f32.mrb[0].mxu0
      %611 = vmatprep.mubr.bf16.mxu0 0
      %612 = vmatmul.mubr.bf16.gmra.mrb[0].mxu0 %v432
      %v613 = vpop.f32.mrb[0].mxu0
      %v614 = vadd.f32 0.0, %v613
      %v615 = vpop.f32.mrb[0].mxu0
      %v616 = vpop.f32.mrb[0].mxu0
      %v617 = vadd.f32 0.0, %v616
      %v618 = vpop.f32.mrb[0].mxu0
      %619 = vmatprep.mubr.bf16.mxu0 0
      %620 = vmatmul.mubr.bf16.gmra.mrb[0].mxu0 %v433
      %v621 = vpop.f32.mrb[0].mxu0
      %v622 = vadd.f32 0.0, %v621
      %v623 = vpop.f32.mrb[0].mxu0
      %v624 = vpop.f32.mrb[0].mxu0
      %v625 = vadd.f32 0.0, %v624
      %v626 = vpop.f32.mrb[0].mxu0
      %627 = vmatprep.mubr.bf16.mxu0 0
      %628 = vmatmul.mubr.bf16.gmra.mrb[0].mxu0 %v434
      %v629 = vpop.f32.mrb[0].mxu0
      %v630 = vadd.f32 0.0, %v629
      %v631 = vpop.f32.mrb[0].mxu0
      %v632 = vpop.f32.mrb[0].mxu0
      %v633 = vadd.f32 0.0, %v632
      %v634 = vpop.f32.mrb[0].mxu0
      %635 = vmatprep.mubr.bf16.mxu0 0
      %636 = vmatmul.mubr.bf16.gmra.mrb[0].mxu0 %v435
      %v637 = vpop.f32.mrb[0].mxu0
      %v638 = vadd.f32 0.0, %v637
      %v639 = vpop.f32.mrb[0].mxu0
      %v640 = vpop.f32.mrb[0].mxu0
      %v641 = vadd.f32 0.0, %v640
      %v642 = vpop.f32.mrb[0].mxu0
      %643 = vmatprep.mubr.bf16.mxu0 0
      %644 = vmatmul.mubr.bf16.gmra.mrb[0].mxu0 %v436
      %v645 = vpop.f32.mrb[0].mxu0
      %v646 = vadd.f32 0.0, %v645
      %v647 = vpop.f32.mrb[0].mxu0
      %v648 = vpop.f32.mrb[0].mxu0
      %v649 = vadd.f32 0.0, %v648
      %v650 = vpop.f32.mrb[0].mxu0
      %651 = vmatprep.mubr.bf16.mxu0 0
      %652 = vmatmul.mubr.bf16.gmra.mrb[0].mxu0 %v437
      %v653 = vpop.f32.mrb[0].mxu0
      %v654 = vadd.f32 0.0, %v653
      %v655 = vpop.f32.mrb[0].mxu0
      %v656 = vpop.f32.mrb[0].mxu0
      %v657 = vadd.f32 0.0, %v656
      %v658 = vpop.f32.mrb[0].mxu0
      %659 = vmatprep.mubr.bf16.mxu0 0
      %660 = vmatmul.mubr.bf16.gmra.mrb[0].mxu0 %v438
      %v661 = vpop.f32.mrb[0].mxu0
      %v662 = vadd.f32 0.0, %v661
      %v663 = vpop.f32.mrb[0].mxu0
      %v664 = vpop.f32.mrb[0].mxu0
      %v665 = vadd.f32 0.0, %v664
      %v666 = vpop.f32.mrb[0].mxu0
      %667 = vmatprep.mubr.bf16.mxu0 0
      %668 = vmatmul.mubr.bf16.gmra.mrb[0].mxu0 %v439
      %v669 = vpop.f32.mrb[0].mxu0
      %v670 = vadd.f32 0.0, %v669
      %v671 = vpop.f32.mrb[0].mxu0
      %v672 = vpop.f32.mrb[0].mxu0
      %v673 = vadd.f32 0.0, %v672
      %v674 = vpop.f32.mrb[0].mxu0
      %675 = vmatprep.mubr.bf16.mxu0 0
      %676 = vmatmul.mubr.bf16.gmra.mrb[0].mxu0 %v440
      %v677 = vpop.f32.mrb[0].mxu0
      %v678 = vadd.f32 0.0, %v677
      %v679 = vpop.f32.mrb[0].mxu0
      %v680 = vpop.f32.mrb[0].mxu0
      %v681 = vadd.f32 0.0, %v680
      %v682 = vpop.f32.mrb[0].mxu0
      %683 = vmatprep.mubr.bf16.mxu0 0
      %684 = vmatmul.mubr.bf16.gmra.mrb[0].mxu0 %v441
      %v685 = vpop.f32.mrb[0].mxu0
      %v686 = vadd.f32 0.0, %v685
      %v687 = vpop.f32.mrb[0].mxu0
      %v688 = vpop.f32.mrb[0].mxu0
      %v689 = vadd.f32 0.0, %v688
      %v690 = vpop.f32.mrb[0].mxu0
      %691 = vmatprep.mubr.bf16.mxu0 0
      %692 = vmatmul.mubr.bf16.gmra.mrb[0].mxu0 %v442
      %v693 = vpop.f32.mrb[0].mxu0
      %v694 = vadd.f32 0.0, %v693
      %v695 = vpop.f32.mrb[0].mxu0
      %v696 = vpop.f32.mrb[0].mxu0
      %v697 = vadd.f32 0.0, %v696
      %v698 = vpop.f32.mrb[0].mxu0
      %699 = vmatprep.mubr.bf16.mxu0 0
      %700 = vmatmul.mubr.bf16.gmra.mrb[0].mxu0 %v443
      %v701 = vpop.f32.mrb[0].mxu0
      %v702 = vadd.f32 0.0, %v701
      %v703 = vpop.f32.mrb[0].mxu0
      %v704 = vpop.f32.mrb[0].mxu0
      %v705 = vadd.f32 0.0, %v704
      %v706 = vpop.f32.mrb[0].mxu0
      %707 = vmatprep.mubr.bf16.mxu0 0
      %708 = vmatmul.mubr.bf16.gmra.mrb[0].mxu0 %v444
      %v709 = vpop.f32.mrb[0].mxu0
      %v710 = vadd.f32 0.0, %v709
      %v711 = vpop.f32.mrb[0].mxu0
      %v712 = vpop.f32.mrb[0].mxu0
      %v713 = vadd.f32 0.0, %v712
      %v714 = vpop.f32.mrb[0].mxu0
      %715 = vmatprep.mubr.bf16.mxu0 0
      %716 = vmatmul.mubr.bf16.gmra.mrb[0].mxu0 %v445
      %v717 = vpop.f32.mrb[0].mxu0
      %v718 = vadd.f32 0.0, %v717
      %v719 = vpop.f32.mrb[0].mxu0
      %v720 = vpop.f32.mrb[0].mxu0
      %v721 = vadd.f32 0.0, %v720
      %v722 = vpop.f32.mrb[0].mxu0
      %723 = vmatprep.mubr.bf16.mxu0 0
      %724 = vmatmul.mubr.bf16.gmra.mrb[0].mxu0 %v446
      %v725 = vpop.f32.mrb[0].mxu0
      %v726 = vadd.f32 0.0, %v725
      %v727 = vpop.f32.mrb[0].mxu0
      %v728 = vpop.f32.mrb[0].mxu0
      %v729 = vadd.f32 0.0, %v728
      %v730 = vpop.f32.mrb[0].mxu0
      %731 = vmatprep.mubr.bf16.mxu0 0
      %732 = vmatmul.mubr.bf16.gmra.mrb[0].mxu0 %v447
      %v733 = vpop.f32.mrb[0].mxu0
      %v734 = vadd.f32 0.0, %v733
      %v735 = vpop.f32.mrb[0].mxu0
      %v736 = vpop.f32.mrb[0].mxu0
      %v737 = vadd.f32 0.0, %v736
      %v738 = vpop.f32.mrb[0].mxu0
      %739 = vmatprep.mubr.bf16.mxu0 0
      %740 = vmatmul.mubr.bf16.gmra.mrb[0].mxu0 %v448
      %v741 = vpop.f32.mrb[0].mxu0
      %v742 = vadd.f32 0.0, %v741
      %v743 = vpop.f32.mrb[0].mxu0
      %v744 = vpop.f32.mrb[0].mxu0
      %v745 = vadd.f32 0.0, %v744
      %v746 = vpop.f32.mrb[0].mxu0
      %747 = vmatprep.mubr.bf16.mxu0 0
      %748 = vmatmul.mubr.bf16.gmra.mrb[0].mxu0 %v449
      %v749 = vpop.f32.mrb[0].mxu0
      %v750 = vadd.f32 0.0, %v749
      %v751 = vpop.f32.mrb[0].mxu0
      %v752 = vpop.f32.mrb[0].mxu0
      %v753 = vadd.f32 0.0, %v752
      %v754 = vpop.f32.mrb[0].mxu0
      %755 = vmatprep.mubr.bf16.mxu0 0
      %756 = vmatmul.mubr.bf16.gmra.mrb[0].mxu0 %v450
      %v757 = vpop.f32.mrb[0].mxu0
      %v758 = vadd.f32 0.0, %v757
      %v759 = vpop.f32.mrb[0].mxu0
      %v760 = vpop.f32.mrb[0].mxu0
      %v761 = vadd.f32 0.0, %v760
      %v762 = vpop.f32.mrb[0].mxu0
      %763 = vmatprep.mubr.bf16.mxu0 0
      %764 = vmatmul.mubr.bf16.gmra.mrb[0].mxu0 %v451
      %v765 = vpop.f32.mrb[0].mxu0
      %v766 = vadd.f32 0.0, %v765
      %v767 = vpop.f32.mrb[0].mxu0
      %v768 = vpop.f32.mrb[0].mxu0
      %v769 = vadd.f32 0.0, %v768
      %v770 = vpop.f32.mrb[0].mxu0
      %771 = vmatprep.mubr.bf16.mxu0 0
      %772 = vmatmul.mubr.bf16.gmra.mrb[0].mxu0 %v452
      %v773 = vpop.f32.mrb[0].mxu0
      %v774 = vadd.f32 0.0, %v773
      %v775 = vpop.f32.mrb[0].mxu0
      %v776 = vpop.f32.mrb[0].mxu0
      %v777 = vadd.f32 0.0, %v776
      %v778 = vpop.f32.mrb[0].mxu0
      %779 = vmatprep.mubr.bf16.mxu0 0
      %780 = vmatmul.mubr.bf16.gmra.mrb[0].mxu0 %v453
      %v781 = vpop.f32.mrb[0].mxu0
      %v782 = vadd.f32 0.0, %v781
      %v783 = vpop.f32.mrb[0].mxu0
      %v784 = vpop.f32.mrb[0].mxu0
      %v785 = vadd.f32 0.0, %v784
      %v786 = vpop.f32.mrb[0].mxu0
      %787 = vmatprep.mubr.bf16.mxu0 0
      %788 = vmatmul.mubr.bf16.gmra.mrb[0].mxu0 %v454
      %v789 = vpop.f32.mrb[0].mxu0
      %v790 = vadd.f32 0.0, %v789
      %v791 = vpop.f32.mrb[0].mxu0
      %v792 = vpop.f32.mrb[0].mxu0
      %v793 = vadd.f32 0.0, %v792
      %v794 = vpop.f32.mrb[0].mxu0
      %795 = vmatprep.mubr.bf16.mxu0 0
      %796 = vmatmul.mubr.bf16.gmra.mrb[0].mxu0 %v455
      %v797 = vpop.f32.mrb[0].mxu0
      %v798 = vadd.f32 0.0, %v797
      %v799 = vpop.f32.mrb[0].mxu0
      %v800 = vpop.f32.mrb[0].mxu0
      %v801 = vadd.f32 0.0, %v800
      %v802 = vpop.f32.mrb[0].mxu0
      %803 = vmatprep.mubr.bf16.mxu0 0
      %804 = vmatmul.mubr.bf16.gmra.mrb[0].mxu0 %v456
      %v805 = vpop.f32.mrb[0].mxu0
      %v806 = vadd.f32 0.0, %v805
      %v807 = vpop.f32.mrb[0].mxu0
      %v808 = vpop.f32.mrb[0].mxu0
      %v809 = vadd.f32 0.0, %v808
      %v810 = vpop.f32.mrb[0].mxu0
      %811 = vmatprep.mubr.bf16.mxu0 0
      %812 = vmatmul.mubr.bf16.gmra.mrb[0].mxu0 %v457
      %v813 = vpop.f32.mrb[0].mxu0
      %v814 = vadd.f32 0.0, %v813
      %v815 = vpop.f32.mrb[0].mxu0
      %v816 = vpop.f32.mrb[0].mxu0
      %v817 = vadd.f32 0.0, %v816
      %v818 = vpop.f32.mrb[0].mxu0
      %819 = vmatprep.mubr.bf16.mxu0 0
      %820 = vmatmul.mubr.bf16.gmra.mrb[0].mxu0 %v458
      %v821 = vpop.f32.mrb[0].mxu0
      %v822 = vadd.f32 0.0, %v821
      %v823 = vpop.f32.mrb[0].mxu0
      %v824 = vpop.f32.mrb[0].mxu0
      %v825 = vadd.f32 0.0, %v824
      %v826 = vpop.f32.mrb[0].mxu0
      %827 = vdwg.mxu0
      %v828 = vpack.c.bf16 %v577, %v574
      %v829 = vpack.c.bf16 %v585, %v582
      %v830 = vpack.c.bf16 %v593, %v590
      %v831 = vpack.c.bf16 %v601, %v598
      %v832 = vpack.c.bf16 %v609, %v606
      %v833 = vpack.c.bf16 %v617, %v614
      %v834 = vpack.c.bf16 %v625, %v622
      %v835 = vpack.c.bf16 %v633, %v630
      %v836 = vpack.c.bf16 %v641, %v638
      %v837 = vpack.c.bf16 %v649, %v646
      %v838 = vpack.c.bf16 %v657, %v654
      %v839 = vpack.c.bf16 %v665, %v662
      %v840 = vpack.c.bf16 %v673, %v670
      %v841 = vpack.c.bf16 %v681, %v678
      %v842 = vpack.c.bf16 %v689, %v686
      %v843 = vpack.c.bf16 %v697, %v694
      %v844 = vpack.c.bf16 %v705, %v702
      %v845 = vpack.c.bf16 %v713, %v710
      %v846 = vpack.c.bf16 %v721, %v718
      %v847 = vpack.c.bf16 %v729, %v726
      %v848 = vpack.c.bf16 %v737, %v734
      %v849 = vpack.c.bf16 %v745, %v742
      %v850 = vpack.c.bf16 %v753, %v750
      %v851 = vpack.c.bf16 %v761, %v758
      %v852 = vpack.c.bf16 %v769, %v766
      %v853 = vpack.c.bf16 %v777, %v774
      %v854 = vpack.c.bf16 %v785, %v782
      %v855 = vpack.c.bf16 %v793, %v790
      %v856 = vpack.c.bf16 %v801, %v798
      %v857 = vpack.c.bf16 %v809, %v806
      %v858 = vpack.c.bf16 %v817, %v814
      %v859 = vpack.c.bf16 %v825, %v822
      %v892 = vunpack.c.l.b16 %v828
      %v893 = vunpack.c.h.b16 %v828
      %v894 = vunpack.c.l.b16 %v829
      %v895 = vunpack.c.h.b16 %v829
      %v896 = vunpack.c.l.b16 %v830
      %v897 = vunpack.c.h.b16 %v830
      %v898 = vunpack.c.l.b16 %v831
      %v899 = vunpack.c.h.b16 %v831
      %v900 = vunpack.c.l.b16 %v832
      %v901 = vunpack.c.h.b16 %v832
      %v902 = vunpack.c.l.b16 %v833
      %v903 = vunpack.c.h.b16 %v833
      %v904 = vunpack.c.l.b16 %v834
      %v905 = vunpack.c.h.b16 %v834
      %v906 = vunpack.c.l.b16 %v835
      %v907 = vunpack.c.h.b16 %v835
      %v908 = vunpack.c.l.b16 %v836
      %v909 = vunpack.c.h.b16 %v836
      %v910 = vunpack.c.l.b16 %v837
      %v911 = vunpack.c.h.b16 %v837
      %v912 = vunpack.c.l.b16 %v838
      %v913 = vunpack.c.h.b16 %v838
      %v914 = vunpack.c.l.b16 %v839
      %v915 = vunpack.c.h.b16 %v839
      %v916 = vunpack.c.l.b16 %v840
      %v917 = vunpack.c.h.b16 %v840
      %v918 = vunpack.c.l.b16 %v841
      %v919 = vunpack.c.h.b16 %v841
      %v920 = vunpack.c.l.b16 %v842
      %v921 = vunpack.c.h.b16 %v842
      %v922 = vunpack.c.l.b16 %v843
      %v923 = vunpack.c.h.b16 %v843
      %v924 = vunpack.c.l.b16 %v844
      %v925 = vunpack.c.h.b16 %v844
      %v926 = vunpack.c.l.b16 %v845
      %v927 = vunpack.c.h.b16 %v845
      %v928 = vunpack.c.l.b16 %v846
      %v929 = vunpack.c.h.b16 %v846
      %v930 = vunpack.c.l.b16 %v847
      %v931 = vunpack.c.h.b16 %v847
      %v932 = vunpack.c.l.b16 %v848
      %v933 = vunpack.c.h.b16 %v848
      %v934 = vunpack.c.l.b16 %v849
      %v935 = vunpack.c.h.b16 %v849
      %v936 = vunpack.c.l.b16 %v850
      %v937 = vunpack.c.h.b16 %v850
      %v938 = vunpack.c.l.b16 %v851
      %v939 = vunpack.c.h.b16 %v851
      %v940 = vunpack.c.l.b16 %v852
      %v941 = vunpack.c.h.b16 %v852
      %v942 = vunpack.c.l.b16 %v853
      %v943 = vunpack.c.h.b16 %v853
      %v944 = vunpack.c.l.b16 %v854
      %v945 = vunpack.c.h.b16 %v854
      %v946 = vunpack.c.l.b16 %v855
      %v947 = vunpack.c.h.b16 %v855
      %v948 = vunpack.c.l.b16 %v856
      %v949 = vunpack.c.h.b16 %v856
      %v950 = vunpack.c.l.b16 %v857
      %v951 = vunpack.c.h.b16 %v857
      %v952 = vunpack.c.l.b16 %v858
      %v953 = vunpack.c.h.b16 %v858
      %v954 = vunpack.c.l.b16 %v859
      %v955 = vunpack.c.h.b16 %v859
      %v956 = vpack.c.b16 %v892, %v892
      %v957 = vpack.c.b16 %v893, %v893
      %v958 = vpack.c.b16 %v894, %v894
      %v959 = vpack.c.b16 %v895, %v895
      %v960 = vpack.c.b16 %v896, %v896
      %v961 = vpack.c.b16 %v897, %v897
      %v962 = vpack.c.b16 %v898, %v898
      %v963 = vpack.c.b16 %v899, %v899
      %v964 = vpack.c.b16 %v900, %v900
      %v965 = vpack.c.b16 %v901, %v901
      %v966 = vpack.c.b16 %v902, %v902
      %v967 = vpack.c.b16 %v903, %v903
      %v968 = vpack.c.b16 %v904, %v904
      %v969 = vpack.c.b16 %v905, %v905
      %v970 = vpack.c.b16 %v906, %v906
      %v971 = vpack.c.b16 %v907, %v907
      %v972 = vpack.c.b16 %v908, %v908
      %v973 = vpack.c.b16 %v909, %v909
      %v974 = vpack.c.b16 %v910, %v910
      %v975 = vpack.c.b16 %v911, %v911
      %v976 = vpack.c.b16 %v912, %v912
      %v977 = vpack.c.b16 %v913, %v913
      %v978 = vpack.c.b16 %v914, %v914
      %v979 = vpack.c.b16 %v915, %v915
      %v980 = vpack.c.b16 %v916, %v916
      %v981 = vpack.c.b16 %v917, %v917
      %v982 = vpack.c.b16 %v918, %v918
      %v983 = vpack.c.b16 %v919, %v919
      %v984 = vpack.c.b16 %v920, %v920
      %v985 = vpack.c.b16 %v921, %v921
      %v986 = vpack.c.b16 %v922, %v922
      %v987 = vpack.c.b16 %v923, %v923
      %v988 = vpack.c.b16 %v924, %v924
      %v989 = vpack.c.b16 %v925, %v925
      %v990 = vpack.c.b16 %v926, %v926
      %v991 = vpack.c.b16 %v927, %v927
      %v992 = vpack.c.b16 %v928, %v928
      %v993 = vpack.c.b16 %v929, %v929
      %v994 = vpack.c.b16 %v930, %v930
      %v995 = vpack.c.b16 %v931, %v931
      %v996 = vpack.c.b16 %v932, %v932
      %v997 = vpack.c.b16 %v933, %v933
      %v998 = vpack.c.b16 %v934, %v934
      %v999 = vpack.c.b16 %v935, %v935
      %v1000 = vpack.c.b16 %v936, %v936
      %v1001 = vpack.c.b16 %v937, %v937
      %v1002 = vpack.c.b16 %v938, %v938
      %v1003 = vpack.c.b16 %v939, %v939
      %v1004 = vpack.c.b16 %v940, %v940
      %v1005 = vpack.c.b16 %v941, %v941
      %v1006 = vpack.c.b16 %v942, %v942
      %v1007 = vpack.c.b16 %v943, %v943
      %v1008 = vpack.c.b16 %v944, %v944
      %v1009 = vpack.c.b16 %v945, %v945
      %v1010 = vpack.c.b16 %v946, %v946
      %v1011 = vpack.c.b16 %v947, %v947
      %v1012 = vpack.c.b16 %v948, %v948
      %v1013 = vpack.c.b16 %v949, %v949
      %v1014 = vpack.c.b16 %v950, %v950
      %v1015 = vpack.c.b16 %v951, %v951
      %v1016 = vpack.c.b16 %v952, %v952
      %v1017 = vpack.c.b16 %v953, %v953
      %v1018 = vpack.c.b16 %v954, %v954
      %v1019 = vpack.c.b16 %v955, %v955
      %1084 = vst [vmem:[%s210] sm:$0xf] %v956
      %1085 = vst [vmem:[%s210 + $0x4] sm:$0xf] %v957
      %1086 = vst [vmem:[%s210 + $0x8] sm:$0xf] %v958
      %1087 = vst [vmem:[%s210 + $0xc] sm:$0xf] %v959
      %1088 = vst [vmem:[%s210 + $0x10] sm:$0xf] %v960
      %1089 = vst [vmem:[%s210 + $0x14] sm:$0xf] %v961
      %1090 = vst [vmem:[%s210 + $0x18] sm:$0xf] %v962
      %1091 = vst [vmem:[%s210 + $0x1c] sm:$0xf] %v963
      %1092 = vst [vmem:[%s210 + $0x20] sm:$0xf] %v964
      %1093 = vst [vmem:[%s210 + $0x24] sm:$0xf] %v965
      %1094 = vst [vmem:[%s210 + $0x28] sm:$0xf] %v966
      %1095 = vst [vmem:[%s210 + $0x2c] sm:$0xf] %v967
      %1096 = vst [vmem:[%s210 + $0x30] sm:$0xf] %v968
      %1097 = vst [vmem:[%s210 + $0x34] sm:$0xf] %v969
      %1098 = vst [vmem:[%s210 + $0x38] sm:$0xf] %v970
      %1099 = vst [vmem:[%s210 + $0x3c] sm:$0xf] %v971
      %1100 = vst [vmem:[%s210 + $0x40] sm:$0xf] %v972
      %1101 = vst [vmem:[%s210 + $0x44] sm:$0xf] %v973
      %1102 = vst [vmem:[%s210 + $0x48] sm:$0xf] %v974
      %1103 = vst [vmem:[%s210 + $0x4c] sm:$0xf] %v975
      %1104 = vst [vmem:[%s210 + $0x50] sm:$0xf] %v976
      %1105 = vst [vmem:[%s210 + $0x54] sm:$0xf] %v977
      %1106 = vst [vmem:[%s210 + $0x58] sm:$0xf] %v978
      %1107 = vst [vmem:[%s210 + $0x5c] sm:$0xf] %v979
      %1108 = vst [vmem:[%s210 + $0x60] sm:$0xf] %v980
      %1109 = vst [vmem:[%s210 + $0x64] sm:$0xf] %v981
      %1110 = vst [vmem:[%s210 + $0x68] sm:$0xf] %v982
      %1111 = vst [vmem:[%s210 + $0x6c] sm:$0xf] %v983
      %1112 = vst [vmem:[%s210 + $0x70] sm:$0xf] %v984
      %1113 = vst [vmem:[%s210 + $0x74] sm:$0xf] %v985
      %1114 = vst [vmem:[%s210 + $0x78] sm:$0xf] %v986
      %1115 = vst [vmem:[%s210 + $0x7c] sm:$0xf] %v987
      %1116 = vst [vmem:[%s210 + $0x80] sm:$0xf] %v988
      %1117 = vst [vmem:[%s210 + $0x84] sm:$0xf] %v989
      %1118 = vst [vmem:[%s210 + $0x88] sm:$0xf] %v990
      %1119 = vst [vmem:[%s210 + $0x8c] sm:$0xf] %v991
      %1120 = vst [vmem:[%s210 + $0x90] sm:$0xf] %v992
      %1121 = vst [vmem:[%s210 + $0x94] sm:$0xf] %v993
      %1122 = vst [vmem:[%s210 + $0x98] sm:$0xf] %v994
      %1123 = vst [vmem:[%s210 + $0x9c] sm:$0xf] %v995
      %1124 = vst [vmem:[%s210 + $0xa0] sm:$0xf] %v996
      %1125 = vst [vmem:[%s210 + $0xa4] sm:$0xf] %v997
      %1126 = vst [vmem:[%s210 + $0xa8] sm:$0xf] %v998
      %1127 = vst [vmem:[%s210 + $0xac] sm:$0xf] %v999
      %1128 = vst [vmem:[%s210 + $0xb0] sm:$0xf] %v1000
      %1129 = vst [vmem:[%s210 + $0xb4] sm:$0xf] %v1001
      %1130 = vst [vmem:[%s210 + $0xb8] sm:$0xf] %v1002
      %1131 = vst [vmem:[%s210 + $0xbc] sm:$0xf] %v1003
      %1132 = vst [vmem:[%s210 + $0xc0] sm:$0xf] %v1004
      %1133 = vst [vmem:[%s210 + $0xc4] sm:$0xf] %v1005
      %1134 = vst [vmem:[%s210 + $0xc8] sm:$0xf] %v1006
      %1135 = vst [vmem:[%s210 + $0xcc] sm:$0xf] %v1007
      %1136 = vst [vmem:[%s210 + $0xd0] sm:$0xf] %v1008
      %1137 = vst [vmem:[%s210 + $0xd4] sm:$0xf] %v1009
      %1138 = vst [vmem:[%s210 + $0xd8] sm:$0xf] %v1010
      %1139 = vst [vmem:[%s210 + $0xdc] sm:$0xf] %v1011
      %1140 = vst [vmem:[%s210 + $0xe0] sm:$0xf] %v1012
      %1141 = vst [vmem:[%s210 + $0xe4] sm:$0xf] %v1013
      %1142 = vst [vmem:[%s210 + $0xe8] sm:$0xf] %v1014
      %1143 = vst [vmem:[%s210 + $0xec] sm:$0xf] %v1015
      %1144 = vst [vmem:[%s210 + $0xf0] sm:$0xf] %v1016
      %1145 = vst [vmem:[%s210 + $0xf4] sm:$0xf] %v1017
      %1146 = vst [vmem:[%s210 + $0xf8] sm:$0xf] %v1018
      %1147 = vst [vmem:[%s210 + $0xfc] sm:$0xf] %v1019
      %v1148 = vadd.f32 %v574, %v577
      %v1149 = vadd.f32 %v1148, %v582
      %v1150 = vadd.f32 %v1149, %v585
      %v1151 = vadd.f32 %v1150, %v590
      %v1152 = vadd.f32 %v1151, %v593
      %v1153 = vadd.f32 %v1152, %v598
      %v1154 = vadd.f32 %v1153, %v601
      %v1155 = vadd.f32 %v1154, %v606
      %v1156 = vadd.f32 %v1155, %v609
      %v1157 = vadd.f32 %v1156, %v614
      %v1158 = vadd.f32 %v1157, %v617
      %v1159 = vadd.f32 %v1158, %v622
      %v1160 = vadd.f32 %v1159, %v625
      %v1161 = vadd.f32 %v1160, %v630
      %v1162 = vadd.f32 %v1161, %v633
      %v1163 = vadd.f32 %v1162, %v638
      %v1164 = vadd.f32 %v1163, %v641
      %v1165 = vadd.f32 %v1164, %v646
      %v1166 = vadd.f32 %v1165, %v649
      %v1167 = vadd.f32 %v1166, %v654
      %v1168 = vadd.f32 %v1167, %v657
      %v1169 = vadd.f32 %v1168, %v662
      %v1170 = vadd.f32 %v1169, %v665
      %v1171 = vadd.f32 %v1170, %v670
      %v1172 = vadd.f32 %v1171, %v673
      %v1173 = vadd.f32 %v1172, %v678
      %v1174 = vadd.f32 %v1173, %v681
      %v1175 = vadd.f32 %v1174, %v686
      %v1176 = vadd.f32 %v1175, %v689
      %v1177 = vadd.f32 %v1176, %v694
      %v1178 = vadd.f32 %v1177, %v697
      %v1179 = vadd.f32 %v1178, %v702
      %v1180 = vadd.f32 %v1179, %v705
      %v1181 = vadd.f32 %v1180, %v710
      %v1182 = vadd.f32 %v1181, %v713
      %v1183 = vadd.f32 %v1182, %v718
      %v1184 = vadd.f32 %v1183, %v721
      %v1185 = vadd.f32 %v1184, %v726
      %v1186 = vadd.f32 %v1185, %v729
      %v1187 = vadd.f32 %v1186, %v734
      %v1188 = vadd.f32 %v1187, %v737
      %v1189 = vadd.f32 %v1188, %v742
      %v1190 = vadd.f32 %v1189, %v745
      %v1191 = vadd.f32 %v1190, %v750
      %v1192 = vadd.f32 %v1191, %v753
      %v1193 = vadd.f32 %v1192, %v758
      %v1194 = vadd.f32 %v1193, %v761
      %v1195 = vadd.f32 %v1194, %v766
      %v1196 = vadd.f32 %v1195, %v769
      %v1197 = vadd.f32 %v1196, %v774
      %v1198 = vadd.f32 %v1197, %v777
      %v1199 = vadd.f32 %v1198, %v782
      %v1200 = vadd.f32 %v1199, %v785
      %v1201 = vadd.f32 %v1200, %v790
      %v1202 = vadd.f32 %v1201, %v793
      %v1203 = vadd.f32 %v1202, %v798
      %v1204 = vadd.f32 %v1203, %v801
      %v1205 = vadd.f32 %v1204, %v806
      %v1206 = vadd.f32 %v1205, %v809
      %v1207 = vadd.f32 %v1206, %v814
      %v1208 = vadd.f32 %v1207, %v817
      %v1209 = vadd.f32 %v1208, %v822
      %v1210 = vadd.f32 %v1209, %v825
      %v1211 = vrot.slane %v1210, 4
      %v1212 = vadd.f32 %v1210, %v1211
      %v1213 = vrot.slane %v1212, 2
      %v1214 = vadd.f32 %v1212, %v1213
      %v1215 = vrot.slane %v1214, 1
      %v1216 = vadd.f32 %v1214, %v1215
      %1217 = vst [vmem:[%s214] sm:$0x1] %v1216
      %v1218 = vmul.f32 %v574, %v574
      %v1219 = vmul.f32 %v577, %v577
      %v1220 = vmul.f32 %v582, %v582
      %v1221 = vmul.f32 %v585, %v585
      %v1222 = vmul.f32 %v590, %v590
      %v1223 = vmul.f32 %v593, %v593
      %v1224 = vmul.f32 %v598, %v598
      %v1225 = vmul.f32 %v601, %v601
      %v1226 = vmul.f32 %v606, %v606
      %v1227 = vmul.f32 %v609, %v609
      %v1228 = vmul.f32 %v614, %v614
      %v1229 = vmul.f32 %v617, %v617
      %v1230 = vmul.f32 %v622, %v622
      %v1231 = vmul.f32 %v625, %v625
      %v1232 = vmul.f32 %v630, %v630
      %v1233 = vmul.f32 %v633, %v633
      %v1234 = vmul.f32 %v638, %v638
      %v1235 = vmul.f32 %v641, %v641
      %v1236 = vmul.f32 %v646, %v646
      %v1237 = vmul.f32 %v649, %v649
      %v1238 = vmul.f32 %v654, %v654
      %v1239 = vmul.f32 %v657, %v657
      %v1240 = vmul.f32 %v662, %v662
      %v1241 = vmul.f32 %v665, %v665
      %v1242 = vmul.f32 %v670, %v670
      %v1243 = vmul.f32 %v673, %v673
      %v1244 = vmul.f32 %v678, %v678
      %v1245 = vmul.f32 %v681, %v681
      %v1246 = vmul.f32 %v686, %v686
      %v1247 = vmul.f32 %v689, %v689
      %v1248 = vmul.f32 %v694, %v694
      %v1249 = vmul.f32 %v697, %v697
      %v1250 = vmul.f32 %v702, %v702
      %v1251 = vmul.f32 %v705, %v705
      %v1252 = vmul.f32 %v710, %v710
      %v1253 = vmul.f32 %v713, %v713
      %v1254 = vmul.f32 %v718, %v718
      %v1255 = vmul.f32 %v721, %v721
      %v1256 = vmul.f32 %v726, %v726
      %v1257 = vmul.f32 %v729, %v729
      %v1258 = vmul.f32 %v734, %v734
      %v1259 = vmul.f32 %v737, %v737
      %v1260 = vmul.f32 %v742, %v742
      %v1261 = vmul.f32 %v745, %v745
      %v1262 = vmul.f32 %v750, %v750
      %v1263 = vmul.f32 %v753, %v753
      %v1264 = vmul.f32 %v758, %v758
      %v1265 = vmul.f32 %v761, %v761
      %v1266 = vmul.f32 %v766, %v766
      %v1267 = vmul.f32 %v769, %v769
      %v1268 = vmul.f32 %v774, %v774
      %v1269 = vmul.f32 %v777, %v777
      %v1270 = vmul.f32 %v782, %v782
      %v1271 = vmul.f32 %v785, %v785
      %v1272 = vmul.f32 %v790, %v790
      %v1273 = vmul.f32 %v793, %v793
      %v1274 = vmul.f32 %v798, %v798
      %v1275 = vmul.f32 %v801, %v801
      %v1276 = vmul.f32 %v806, %v806
      %v1277 = vmul.f32 %v809, %v809
      %v1278 = vmul.f32 %v814, %v814
      %v1279 = vmul.f32 %v817, %v817
      %v1280 = vmul.f32 %v822, %v822
      %v1281 = vmul.f32 %v825, %v825
      %v1282 = vadd.f32 %v1218, %v1219
      %v1283 = vadd.f32 %v1282, %v1220
      %v1284 = vadd.f32 %v1283, %v1221
      %v1285 = vadd.f32 %v1284, %v1222
      %v1286 = vadd.f32 %v1285, %v1223
      %v1287 = vadd.f32 %v1286, %v1224
      %v1288 = vadd.f32 %v1287, %v1225
      %v1289 = vadd.f32 %v1288, %v1226
      %v1290 = vadd.f32 %v1289, %v1227
      %v1291 = vadd.f32 %v1290, %v1228
      %v1292 = vadd.f32 %v1291, %v1229
      %v1293 = vadd.f32 %v1292, %v1230
      %v1294 = vadd.f32 %v1293, %v1231
      %v1295 = vadd.f32 %v1294, %v1232
      %v1296 = vadd.f32 %v1295, %v1233
      %v1297 = vadd.f32 %v1296, %v1234
      %v1298 = vadd.f32 %v1297, %v1235
      %v1299 = vadd.f32 %v1298, %v1236
      %v1300 = vadd.f32 %v1299, %v1237
      %v1301 = vadd.f32 %v1300, %v1238
      %v1302 = vadd.f32 %v1301, %v1239
      %v1303 = vadd.f32 %v1302, %v1240
      %v1304 = vadd.f32 %v1303, %v1241
      %v1305 = vadd.f32 %v1304, %v1242
      %v1306 = vadd.f32 %v1305, %v1243
      %v1307 = vadd.f32 %v1306, %v1244
      %v1308 = vadd.f32 %v1307, %v1245
      %v1309 = vadd.f32 %v1308, %v1246
      %v1310 = vadd.f32 %v1309, %v1247
      %v1311 = vadd.f32 %v1310, %v1248
      %v1312 = vadd.f32 %v1311, %v1249
      %v1313 = vadd.f32 %v1312, %v1250
      %v1314 = vadd.f32 %v1313, %v1251
      %v1315 = vadd.f32 %v1314, %v1252
      %v1316 = vadd.f32 %v1315, %v1253
      %v1317 = vadd.f32 %v1316, %v1254
      %v1318 = vadd.f32 %v1317, %v1255
      %v1319 = vadd.f32 %v1318, %v1256
      %v1320 = vadd.f32 %v1319, %v1257
      %v1321 = vadd.f32 %v1320, %v1258
      %v1322 = vadd.f32 %v1321, %v1259
      %v1323 = vadd.f32 %v1322, %v1260
      %v1324 = vadd.f32 %v1323, %v1261
      %v1325 = vadd.f32 %v1324, %v1262
      %v1326 = vadd.f32 %v1325, %v1263
      %v1327 = vadd.f32 %v1326, %v1264
      %v1328 = vadd.f32 %v1327, %v1265
      %v1329 = vadd.f32 %v1328, %v1266
      %v1330 = vadd.f32 %v1329, %v1267
      %v1331 = vadd.f32 %v1330, %v1268
      %v1332 = vadd.f32 %v1331, %v1269
      %v1333 = vadd.f32 %v1332, %v1270
      %v1334 = vadd.f32 %v1333, %v1271
      %v1335 = vadd.f32 %v1334, %v1272
      %v1336 = vadd.f32 %v1335, %v1273
      %v1337 = vadd.f32 %v1336, %v1274
      %v1338 = vadd.f32 %v1337, %v1275
      %v1339 = vadd.f32 %v1338, %v1276
      %v1340 = vadd.f32 %v1339, %v1277
      %v1341 = vadd.f32 %v1340, %v1278
      %v1342 = vadd.f32 %v1341, %v1279
      %v1343 = vadd.f32 %v1342, %v1280
      %v1344 = vadd.f32 %v1343, %v1281
      %v1345 = vrot.slane %v1344, 4
      %v1346 = vadd.f32 %v1344, %v1345
      %v1347 = vrot.slane %v1346, 2
      %v1348 = vadd.f32 %v1346, %v1347
      %v1349 = vrot.slane %v1348, 1
      %v1350 = vadd.f32 %v1348, %v1349
      %1351 = vst [vmem:[%s217] sm:$0x1] %v1350
      %s1352 = smul.u32 64, %s16
      %p1353 = scmp.lt.s32.totalorder %s1352, 255
      %s1354 = scalar_select %p1353, %s1352, 255
      %s1355 = smul.addr %s1354, 4
      %s1356 = scalar_lea.vmem %s2, %s1355
      %p1357 = scmp.lt.s32.totalorder %s16, 3
      %s1358 = scalar_select %p1357, %s16, 3
      %s1359 = scalar_lea.vmem %s3, %s1358
      %p1360 = scmp.lt.s32.totalorder %s16, 3
      %s1361 = scalar_select %p1360, %s16, 3
      %s1362 = scalar_lea.vmem %s4, %s1361
      // Predicated region
      $region29: #{_lambda_.15} parent=27 // pred_check
        %p1363 = pneg %p81
      $region30: #{_lambda_.15} parent=27 // pred_check_branch
        %1365 = sbr.rel (%p1363) target = $region32
      $region31: #{_lambda_.15} parent=27 // pred_region
        %s1366 = smul.u32 64, %s16
      $region32: #{_lambda_.15} parent=27 // pred_fallthru
        _
      // Predicated region
      $region33: #{_lambda_.15} parent=27 // pred_check
        %p1367 = pneg %p107
      $region34: #{_lambda_.15} parent=27 // pred_check_branch
        %1369 = sbr.rel (%p1367) target = $region36
      $region35: #{_lambda_.15} parent=27 // pred_region
        _
      $region36: #{_lambda_.15} parent=27 // pred_fallthru
        _
      // Predicated region
      $region37: #{_lambda_.15} parent=27 // pred_check
        %p1370 = pneg %p133
      $region38: #{_lambda_.15} parent=27 // pred_check_branch
        %1372 = sbr.rel (%p1370) target = $region40
      $region39: #{_lambda_.15} parent=27 // pred_region
        _
      $region40: #{_lambda_.15} parent=27 // pred_fallthru
        _
    $region28: #{_lambda_.15} parent=5 // pred_fallthru
      _
    %p1373 = scmp.le.s32.totalorder 2, %s11
    // Predicated region
    $region41: #{_lambda_.15} parent=5 // pred_check
      %p1374 = pneg %p1373
    $region42: #{_lambda_.15} parent=5 // pred_check_branch
      %1376 = sbr.rel (%p1374) target = $region44
    $region43: #{_lambda_.15} parent=5 // pred_region
      %s1377 = ssub.s32 %s11, 2
      // Predicated region
      $region45: #{_lambda_.15} parent=43 // pred_check
        %p1378 = pneg %p87
      $region46: #{_lambda_.15} parent=43 // pred_check_branch
        %1380 = sbr.rel (%p1378) target = $region48
      $region47: #{_lambda_.15} parent=43 // pred_region
        %s1381 = smul.u32 64, %s17
        %p1382 = scmp.lt.s32.totalorder %s1381, 255
        %s1383 = scalar_select %p1382, %s1381, 255
        %s1384 = smul.addr %s1383, 4
        %s1385 = scalar_lea.vmem %s2, %s1384
      $region48: #{_lambda_.15} parent=43 // pred_fallthru
        _
      // Predicated region
      $region49: #{_lambda_.15} parent=43 // pred_check
        %p1386 = pneg %p113
      $region50: #{_lambda_.15} parent=43 // pred_check_branch
        %1388 = sbr.rel (%p1386) target = $region52
      $region51: #{_lambda_.15} parent=43 // pred_region
        %p1389 = scmp.lt.s32.totalorder %s17, 3
        %s1390 = scalar_select %p1389, %s17, 3
        %s1391 = scalar_lea.vmem %s3, %s1390
      $region52: #{_lambda_.15} parent=43 // pred_fallthru
        _
      // Predicated region
      $region53: #{_lambda_.15} parent=43 // pred_check
        %p1392 = pneg %p139
      $region54: #{_lambda_.15} parent=43 // pred_check_branch
        %1394 = sbr.rel (%p1392) target = $region56
      $region55: #{_lambda_.15} parent=43 // pred_region
        %p1395 = scmp.lt.s32.totalorder %s17, 3
        %s1396 = scalar_select %p1395, %s17, 3
        %s1397 = scalar_lea.vmem %s4, %s1396
      $region56: #{_lambda_.15} parent=43 // pred_fallthru
        _
    $region44: #{_lambda_.15} parent=5 // pred_fallthru
      _
  $region6: #{_lambda_.15} parent=0 // loop_footer
    %s15 = sadd.s32 1, %s11
  $region7: #{_lambda_.15} parent=0 // loop_footer_branch
    %10 = sbr.rel target = $region3
  $region8: #{_lambda_.15} parent=0 // loop_exit
    _

// kernel: _lambda_.16
$region0: #{_lambda_.16}
  #allocation0 [shape = 'u32[]', space=smem, size = 0x4, offset = 0x4, fixed_abs, tag = 'smem constant byte address 0x4 - core index']
  #allocation1 [shape = 'u32[144,128]{1,0:T(1,128)}', space=vmem, size = 0x12000, scoped, tag = 'internal scratch']
  %s0 = inlined_call_operand.vmem [shape: f32[1,128], index: 0, kind: input, shape index: {}]
  %s1 = inlined_call_operand.vmem [shape: f32[1,128], index: 1, kind: input, shape index: {}]
  %s2 = inlined_call_operand.vmem [shape: bf16[2048,128], index: 2, kind: input, shape index: {}]
  %s3 = inlined_call_operand.vmem [shape: bf16[2048,128], index: 3, kind: output, shape index: {}]
  %s4 = sld [smem:[#allocation0]]
  $region45: #{_lambda_.16} parent=0
    _
  %s6 = ssub.s32 1, %s4
  %s7 = scalar_select 0, %s6, %s4
  loop: start=0, step=1, limit=6
  $region2: #{_lambda_.16} parent=0 // loop_pre_header
    _
  $region3: #{_lambda_.16} parent=0 // loop_header
    %s9 = sphi 0, %s13
    %p10 = scmp.ge.s32.totalorder %s9, 6
    %s17 = sphi 0, %s17
    %s19 = sphi 0, %s17
    %s20 = sphi 0, %s19
    %s34 = sphi 0, %s20
    %s38 = sphi 0, %s38
    %s40 = sphi 0, %s38
    %s41 = sphi 0, %s40
    %s55 = sphi 0, %s41
    %s61 = sphi 0, %s63
    %s64 = sphi 0, %s61
    %s65 = sphi 0, %s64
    %s81 = sphi 0, %s65
    %s87 = sphi 0, %s89
    %s90 = sphi 0, %s87
    %s91 = sphi 0, %s90
    %s107 = sphi 0, %s91
  $region4: #{_lambda_.16} parent=0 // loop_header_branch
    %12 = sbr.rel (%p10) target = $region8
  $region5: #{_lambda_.16} parent=0 // loop_body
    %s14 = ssub.s32 %s9, 1
    %s15 = ssub.s32 %s9, 2
    %s16 = sadd.s32 %s9, 1
    %s18 = sadd.s32 %s17, 1
    %p21 = scmp.eq.s32.totalorder %s9, 3
    %p22 = scmp.ne.s32.totalorder %s17, %s19
    %p23 = scmp.eq.s32.totalorder %s9, 0
    %p24 = por %p22, %p23
    %p25 = scmp.ne.s32.totalorder %s17, %s19
    %p26 = scmp.eq.s32.totalorder %s14, 3
    %p27 = por %p25, %p26
    %p28 = scmp.ne.s32.totalorder %s19, %s20
    %p29 = scmp.eq.s32.totalorder %s14, 0
    %p30 = por %p28, %p29
    %p31 = scmp.ne.s32.totalorder %s19, %s20
    %p32 = scmp.eq.s32.totalorder %s15, 3
    %p33 = por %p31, %p32
    %p35 = scmp.ne.s32.totalorder %s20, %s34
    %p36 = scmp.eq.s32.totalorder %s15, 0
    %p37 = por %p35, %p36
    %s39 = sadd.s32 %s38, 1
    %p42 = scmp.eq.s32.totalorder %s9, 3
    %p43 = scmp.ne.s32.totalorder %s38, %s40
    %p44 = scmp.eq.s32.totalorder %s9, 0
    %p45 = por %p43, %p44
    %p46 = scmp.ne.s32.totalorder %s38, %s40
    %p47 = scmp.eq.s32.totalorder %s14, 3
    %p48 = por %p46, %p47
    %p49 = scmp.ne.s32.totalorder %s40, %s41
    %p50 = scmp.eq.s32.totalorder %s14, 0
    %p51 = por %p49, %p50
    %p52 = scmp.ne.s32.totalorder %s40, %s41
    %p53 = scmp.eq.s32.totalorder %s15, 3
    %p54 = por %p52, %p53
    %p56 = scmp.ne.s32.totalorder %s41, %s55
    %p57 = scmp.eq.s32.totalorder %s15, 0
    %p58 = por %p56, %p57
    %s59 = ssub.s32 %s9, %s16
    %p60 = scmp.eq.s32.totalorder %s59, 0
    %s62 = sadd.s32 %s61, 1
    %s63 = scalar_select %p60, %s61, %s62
    %p66 = pneg %p60
    %p67 = scmp.eq.s32.totalorder %s9, 3
    %p68 = por %p66, %p67
    %p69 = scmp.ne.s32.totalorder %s61, %s64
    %p70 = scmp.eq.s32.totalorder %s9, 0
    %p71 = por %p69, %p70
    %p72 = scmp.ne.s32.totalorder %s61, %s64
    %p73 = scmp.eq.s32.totalorder %s14, 3
    %p74 = por %p72, %p73
    %p75 = scmp.ne.s32.totalorder %s64, %s65
    %p76 = scmp.eq.s32.totalorder %s14, 0
    %p77 = por %p75, %p76
    %p78 = scmp.ne.s32.totalorder %s64, %s65
    %p79 = scmp.eq.s32.totalorder %s15, 3
    %p80 = por %p78, %p79
    %p82 = scmp.ne.s32.totalorder %s65, %s81
    %p83 = scmp.eq.s32.totalorder %s15, 0
    %p84 = por %p82, %p83
    %s85 = ssub.s32 %s9, %s16
    %p86 = scmp.eq.s32.totalorder %s85, 0
    %s88 = sadd.s32 %s87, 1
    %s89 = scalar_select %p86, %s87, %s88
    %p92 = pneg %p86
    %p93 = scmp.eq.s32.totalorder %s9, 3
    %p94 = por %p92, %p93
    %p95 = scmp.ne.s32.totalorder %s87, %s90
    %p96 = scmp.eq.s32.totalorder %s9, 0
    %p97 = por %p95, %p96
    %p98 = scmp.ne.s32.totalorder %s87, %s90
    %p99 = scmp.eq.s32.totalorder %s14, 3
    %p100 = por %p98, %p99
    %p101 = scmp.ne.s32.totalorder %s90, %s91
    %p102 = scmp.eq.s32.totalorder %s14, 0
    %p103 = por %p101, %p102
    %p104 = scmp.ne.s32.totalorder %s90, %s91
    %p105 = scmp.eq.s32.totalorder %s15, 3
    %p106 = por %p104, %p105
    %p108 = scmp.ne.s32.totalorder %s91, %s107
    %p109 = scmp.eq.s32.totalorder %s15, 0
    %p110 = por %p108, %p109
    %p111 = scmp.le.s32.totalorder 1, %s9
    %p112 = scmp.lt.s32.totalorder %s9, 5
    %p113 = pnand %p111, %p112
    %p114 = pneg %p113
    // Predicated region
    $region9: #{_lambda_.16} parent=5 // pred_check
      _
    $region10: #{_lambda_.16} parent=5 // pred_check_branch
      %116 = sbr.rel (%p113) target = $region12
    $region11: #{_lambda_.16} parent=5 // pred_region
      %s117 = ssub.s32 %s9, 1
      // Predicated region
      $region13: #{_lambda_.16} parent=11 // pred_check
        %p118 = pneg %p30
      $region14: #{_lambda_.16} parent=11 // pred_check_branch
        %120 = sbr.rel (%p118) target = $region16
      $region15: #{_lambda_.16} parent=11 // pred_region
        _
      $region16: #{_lambda_.16} parent=11 // pred_fallthru
        _
      // Predicated region
      $region17: #{_lambda_.16} parent=11 // pred_check
        %p121 = pneg %p51
      $region18: #{_lambda_.16} parent=11 // pred_check_branch
        %123 = sbr.rel (%p121) target = $region20
      $region19: #{_lambda_.16} parent=11 // pred_region
        _
      $region20: #{_lambda_.16} parent=11 // pred_fallthru
        _
    $region12: #{_lambda_.16} parent=5 // pred_fallthru
      _
    %p124 = scmp.lt.s32.totalorder %s9, 4
    // Predicated region
    $region21: #{_lambda_.16} parent=5 // pred_check
      %p125 = pneg %p124
    $region22: #{_lambda_.16} parent=5 // pred_check_branch
      %127 = sbr.rel (%p125) target = $region24
    $region23: #{_lambda_.16} parent=5 // pred_region
      // Predicated region
      $region25: #{_lambda_.16} parent=23 // pred_check
        %p128 = pneg %p71
      $region26: #{_lambda_.16} parent=23 // pred_check_branch
        %130 = sbr.rel (%p128) target = $region28
      $region27: #{_lambda_.16} parent=23 // pred_region
        %s131 = smul.u32 64, %s9
        %p132 = scmp.lt.s32.totalorder %s131, 255
        %s133 = scalar_select %p132, %s131, 255
        %s134 = smul.addr %s133, 4
        %s135 = scalar_lea.vmem %s2, %s134
        %s136 = smul.u32 64, %s9
      $region28: #{_lambda_.16} parent=23 // pred_fallthru
        _
    $region24: #{_lambda_.16} parent=5 // pred_fallthru
      _
    %p137 = scmp.le.s32.totalorder 1, %s9
    %p138 = scmp.lt.s32.totalorder %s9, 5
    %p139 = pnand %p137, %p138
    %p140 = pneg %p139
    // Predicated region
    $region29: #{_lambda_.16} parent=5 // pred_check
      _
    $region30: #{_lambda_.16} parent=5 // pred_check_branch
      %142 = sbr.rel (%p139) target = $region32
    $region31: #{_lambda_.16} parent=5 // pred_region
      %s143 = ssub.s32 %s9, 1
      %p144 = pneg %p30
      %p145 = pneg %p27
      %p146 = pneg %p51
      %p147 = pneg %p48
      %s148 = smul.u32 64, %s14
      %p149 = scmp.lt.s32.totalorder %s148, 255
      %s150 = scalar_select %p149, %s148, 255
      %s151 = smul.addr %s150, 4
      %s152 = scalar_lea.vmem %s2, %s151
      %p153 = pneg %p77
      %p154 = pneg %p74
      %p155 = pneg %p103
      %p156 = pneg %p100
      %s157 = smul.u32 64, %s14
      %p158 = scmp.lt.s32.totalorder %s157, 255
      %s159 = scalar_select %p158, %s157, 255
      %s160 = smul.addr %s159, 4
      %s161 = scalar_lea.vmem %s3, %s160
      %s162 = smul.u32 64, %s14
      %p163 = scmp.lt.s32.totalorder %s162, 255
      %s164 = scalar_select %p163, %s162, 255
      %s165 = smul.addr %s164, 4
      %s166 = scalar_lea.vmem %s2, %s165
      %s167 = smul.u32 64, %s14
      %s168 = smul.u32 64, %s14
      %p169 = scmp.lt.s32.totalorder %s168, 255
      %s170 = scalar_select %p169, %s168, 255
      %s171 = smul.addr %s170, 4
      %s172 = scalar_lea.vmem %s3, %s171
      %s173 = smul.u32 64, %s14
      %v174 = vld [vmem:[%s166] sm:$0xf]
      %v175 = vld [vmem:[%s166 + $0x4] sm:$0xf]
      %v176 = vld [vmem:[%s166 + $0x8] sm:$0xf]
      %v177 = vld [vmem:[%s166 + $0xc] sm:$0xf]
      %v178 = vld [vmem:[%s166 + $0x10] sm:$0xf]
      %v179 = vld [vmem:[%s166 + $0x14] sm:$0xf]
      %v180 = vld [vmem:[%s166 + $0x18] sm:$0xf]
      %v181 = vld [vmem:[%s166 + $0x1c] sm:$0xf]
      %v182 = vld [vmem:[%s166 + $0x20] sm:$0xf]
      %v183 = vld [vmem:[%s166 + $0x24] sm:$0xf]
      %v184 = vld [vmem:[%s166 + $0x28] sm:$0xf]
      %v185 = vld [vmem:[%s166 + $0x2c] sm:$0xf]
      %v186 = vld [vmem:[%s166 + $0x30] sm:$0xf]
      %v187 = vld [vmem:[%s166 + $0x34] sm:$0xf]
      %v188 = vld [vmem:[%s166 + $0x38] sm:$0xf]
      %v189 = vld [vmem:[%s166 + $0x3c] sm:$0xf]
      %v190 = vld [vmem:[%s166 + $0x40] sm:$0xf]
      %v191 = vld [vmem:[%s166 + $0x44] sm:$0xf]
      %v192 = vld [vmem:[%s166 + $0x48] sm:$0xf]
      %v193 = vld [vmem:[%s166 + $0x4c] sm:$0xf]
      %v194 = vld [vmem:[%s166 + $0x50] sm:$0xf]
      %v195 = vld [vmem:[%s166 + $0x54] sm:$0xf]
      %v196 = vld [vmem:[%s166 + $0x58] sm:$0xf]
      %v197 = vld [vmem:[%s166 + $0x5c] sm:$0xf]
      %v198 = vld [vmem:[%s166 + $0x60] sm:$0xf]
      %v199 = vld [vmem:[%s166 + $0x64] sm:$0xf]
      %v200 = vld [vmem:[%s166 + $0x68] sm:$0xf]
      %v201 = vld [vmem:[%s166 + $0x6c] sm:$0xf]
      %v202 = vld [vmem:[%s166 + $0x70] sm:$0xf]
      %v203 = vld [vmem:[%s166 + $0x74] sm:$0xf]
      %v204 = vld [vmem:[%s166 + $0x78] sm:$0xf]
      %v205 = vld [vmem:[%s166 + $0x7c] sm:$0xf]
      %v206 = vld [vmem:[%s166 + $0x80] sm:$0xf]
      %v207 = vld [vmem:[%s166 + $0x84] sm:$0xf]
      %v208 = vld [vmem:[%s166 + $0x88] sm:$0xf]
      %v209 = vld [vmem:[%s166 + $0x8c] sm:$0xf]
      %v210 = vld [vmem:[%s166 + $0x90] sm:$0xf]
      %v211 = vld [vmem:[%s166 + $0x94] sm:$0xf]
      %v212 = vld [vmem:[%s166 + $0x98] sm:$0xf]
      %v213 = vld [vmem:[%s166 + $0x9c] sm:$0xf]
      %v214 = vld [vmem:[%s166 + $0xa0] sm:$0xf]
      %v215 = vld [vmem:[%s166 + $0xa4] sm:$0xf]
      %v216 = vld [vmem:[%s166 + $0xa8] sm:$0xf]
      %v217 = vld [vmem:[%s166 + $0xac] sm:$0xf]
      %v218 = vld [vmem:[%s166 + $0xb0] sm:$0xf]
      %v219 = vld [vmem:[%s166 + $0xb4] sm:$0xf]
      %v220 = vld [vmem:[%s166 + $0xb8] sm:$0xf]
      %v221 = vld [vmem:[%s166 + $0xbc] sm:$0xf]
      %v222 = vld [vmem:[%s166 + $0xc0] sm:$0xf]
      %v223 = vld [vmem:[%s166 + $0xc4] sm:$0xf]
      %v224 = vld [vmem:[%s166 + $0xc8] sm:$0xf]
      %v225 = vld [vmem:[%s166 + $0xcc] sm:$0xf]
      %v226 = vld [vmem:[%s166 + $0xd0] sm:$0xf]
      %v227 = vld [vmem:[%s166 + $0xd4] sm:$0xf]
      %v228 = vld [vmem:[%s166 + $0xd8] sm:$0xf]
      %v229 = vld [vmem:[%s166 + $0xdc] sm:$0xf]
      %v230 = vld [vmem:[%s166 + $0xe0] sm:$0xf]
      %v231 = vld [vmem:[%s166 + $0xe4] sm:$0xf]
      %v232 = vld [vmem:[%s166 + $0xe8] sm:$0xf]
      %v233 = vld [vmem:[%s166 + $0xec] sm:$0xf]
      %v234 = vld [vmem:[%s166 + $0xf0] sm:$0xf]
      %v235 = vld [vmem:[%s166 + $0xf4] sm:$0xf]
      %v236 = vld [vmem:[%s166 + $0xf8] sm:$0xf]
      %v237 = vld [vmem:[%s166 + $0xfc] sm:$0xf]
      %v238 = vunpack.c.l.bf16 %v174
      %v239 = vunpack.c.l.bf16 %v175
      %v240 = vunpack.c.l.bf16 %v176
      %v241 = vunpack.c.l.bf16 %v177
      %v242 = vunpack.c.l.bf16 %v178
      %v243 = vunpack.c.l.bf16 %v179
      %v244 = vunpack.c.l.bf16 %v180
      %v245 = vunpack.c.l.bf16 %v181
      %v246 = vunpack.c.l.bf16 %v182
      %v247 = vunpack.c.l.bf16 %v183
      %v248 = vunpack.c.l.bf16 %v184
      %v249 = vunpack.c.l.bf16 %v185
      %v250 = vunpack.c.l.bf16 %v186
      %v251 = vunpack.c.l.bf16 %v187
      %v252 = vunpack.c.l.bf16 %v188
      %v253 = vunpack.c.l.bf16 %v189
      %v254 = vunpack.c.l.bf16 %v190
      %v255 = vunpack.c.l.bf16 %v191
      %v256 = vunpack.c.l.bf16 %v192
      %v257 = vunpack.c.l.bf16 %v193
      %v258 = vunpack.c.l.bf16 %v194
      %v259 = vunpack.c.l.bf16 %v195
      %v260 = vunpack.c.l.bf16 %v196
      %v261 = vunpack.c.l.bf16 %v197
      %v262 = vunpack.c.l.bf16 %v198
      %v263 = vunpack.c.l.bf16 %v199
      %v264 = vunpack.c.l.bf16 %v200
      %v265 = vunpack.c.l.bf16 %v201
      %v266 = vunpack.c.l.bf16 %v202
      %v267 = vunpack.c.l.bf16 %v203
      %v268 = vunpack.c.l.bf16 %v204
      %v269 = vunpack.c.l.bf16 %v205
      %v270 = vunpack.c.l.bf16 %v206
      %v271 = vunpack.c.l.bf16 %v207
      %v272 = vunpack.c.l.bf16 %v208
      %v273 = vunpack.c.l.bf16 %v209
      %v274 = vunpack.c.l.bf16 %v210
      %v275 = vunpack.c.l.bf16 %v211
      %v276 = vunpack.c.l.bf16 %v212
      %v277 = vunpack.c.l.bf16 %v213
      %v278 = vunpack.c.l.bf16 %v214
      %v279 = vunpack.c.l.bf16 %v215
      %v280 = vunpack.c.l.bf16 %v216
      %v281 = vunpack.c.l.bf16 %v217
      %v282 = vunpack.c.l.bf16 %v218
      %v283 = vunpack.c.l.bf16 %v219
      %v284 = vunpack.c.l.bf16 %v220
      %v285 = vunpack.c.l.bf16 %v221
      %v286 = vunpack.c.l.bf16 %v222
      %v287 = vunpack.c.l.bf16 %v223
      %v288 = vunpack.c.l.bf16 %v224
      %v289 = vunpack.c.l.bf16 %v225
      %v290 = vunpack.c.l.bf16 %v226
      %v291 = vunpack.c.l.bf16 %v227
      %v292 = vunpack.c.l.bf16 %v228
      %v293 = vunpack.c.l.bf16 %v229
      %v294 = vunpack.c.l.bf16 %v230
      %v295 = vunpack.c.l.bf16 %v231
      %v296 = vunpack.c.l.bf16 %v232
      %v297 = vunpack.c.l.bf16 %v233
      %v298 = vunpack.c.l.bf16 %v234
      %v299 = vunpack.c.l.bf16 %v235
      %v300 = vunpack.c.l.bf16 %v236
      %v301 = vunpack.c.l.bf16 %v237
      %v302 = vld [vmem:[%s0] sm:$0x1]
      %v304 = vlaneseq
      %v305 = vshrl.u32 %v304, 7
      %v306 = vsub.s32 0, %v305
      %v307 = vrot.slane %v302, %v306
      %v309 = vmul.f32 %v238, %v307
      %v310 = vmul.f32 %v239, %v307
      %v311 = vmul.f32 %v240, %v307
      %v312 = vmul.f32 %v241, %v307
      %v313 = vmul.f32 %v242, %v307
      %v314 = vmul.f32 %v243, %v307
      %v315 = vmul.f32 %v244, %v307
      %v316 = vmul.f32 %v245, %v307
      %v317 = vmul.f32 %v246, %v307
      %v318 = vmul.f32 %v247, %v307
      %v319 = vmul.f32 %v248, %v307
      %v320 = vmul.f32 %v249, %v307
      %v321 = vmul.f32 %v250, %v307
      %v322 = vmul.f32 %v251, %v307
      %v323 = vmul.f32 %v252, %v307
      %v324 = vmul.f32 %v253, %v307
      %v325 = vmul.f32 %v254, %v307
      %v326 = vmul.f32 %v255, %v307
      %v327 = vmul.f32 %v256, %v307
      %v328 = vmul.f32 %v257, %v307
      %v329 = vmul.f32 %v258, %v307
      %v330 = vmul.f32 %v259, %v307
      %v331 = vmul.f32 %v260, %v307
      %v332 = vmul.f32 %v261, %v307
      %v333 = vmul.f32 %v262, %v307
      %v334 = vmul.f32 %v263, %v307
      %v335 = vmul.f32 %v264, %v307
      %v336 = vmul.f32 %v265, %v307
      %v337 = vmul.f32 %v266, %v307
      %v338 = vmul.f32 %v267, %v307
      %v339 = vmul.f32 %v268, %v307
      %v340 = vmul.f32 %v269, %v307
      %v341 = vmul.f32 %v270, %v307
      %v342 = vmul.f32 %v271, %v307
      %v343 = vmul.f32 %v272, %v307
      %v344 = vmul.f32 %v273, %v307
      %v345 = vmul.f32 %v274, %v307
      %v346 = vmul.f32 %v275, %v307
      %v347 = vmul.f32 %v276, %v307
      %v348 = vmul.f32 %v277, %v307
      %v349 = vmul.f32 %v278, %v307
      %v350 = vmul.f32 %v279, %v307
      %v351 = vmul.f32 %v280, %v307
      %v352 = vmul.f32 %v281, %v307
      %v353 = vmul.f32 %v282, %v307
      %v354 = vmul.f32 %v283, %v307
      %v355 = vmul.f32 %v284, %v307
      %v356 = vmul.f32 %v285, %v307
      %v357 = vmul.f32 %v286, %v307
      %v358 = vmul.f32 %v287, %v307
      %v359 = vmul.f32 %v288, %v307
      %v360 = vmul.f32 %v289, %v307
      %v361 = vmul.f32 %v290, %v307
      %v362 = vmul.f32 %v291, %v307
      %v363 = vmul.f32 %v292, %v307
      %v364 = vmul.f32 %v293, %v307
      %v365 = vmul.f32 %v294, %v307
      %v366 = vmul.f32 %v295, %v307
      %v367 = vmul.f32 %v296, %v307
      %v368 = vmul.f32 %v297, %v307
      %v369 = vmul.f32 %v298, %v307
      %v370 = vmul.f32 %v299, %v307
      %v371 = vmul.f32 %v300, %v307
      %v372 = vmul.f32 %v301, %v307
      %v373 = vld [vmem:[%s1] sm:$0x1]
      %v375 = vlaneseq
      %v376 = vshrl.u32 %v375, 7
      %v377 = vsub.s32 0, %v376
      %v378 = vrot.slane %v373, %v377
      %v380 = vadd.f32 %v309, %v378
      %v381 = vadd.f32 %v310, %v378
      %v382 = vadd.f32 %v311, %v378
      %v383 = vadd.f32 %v312, %v378
      %v384 = vadd.f32 %v313, %v378
      %v385 = vadd.f32 %v314, %v378
      %v386 = vadd.f32 %v315, %v378
      %v387 = vadd.f32 %v316, %v378
      %v388 = vadd.f32 %v317, %v378
      %v389 = vadd.f32 %v318, %v378
      %v390 = vadd.f32 %v319, %v378
      %v391 = vadd.f32 %v320, %v378
      %v392 = vadd.f32 %v321, %v378
      %v393 = vadd.f32 %v322, %v378
      %v394 = vadd.f32 %v323, %v378
      %v395 = vadd.f32 %v324, %v378
      %v396 = vadd.f32 %v325, %v378
      %v397 = vadd.f32 %v326, %v378
      %v398 = vadd.f32 %v327, %v378
      %v399 = vadd.f32 %v328, %v378
      %v400 = vadd.f32 %v329, %v378
      %v401 = vadd.f32 %v330, %v378
      %v402 = vadd.f32 %v331, %v378
      %v403 = vadd.f32 %v332, %v378
      %v404 = vadd.f32 %v333, %v378
      %v405 = vadd.f32 %v334, %v378
      %v406 = vadd.f32 %v335, %v378
      %v407 = vadd.f32 %v336, %v378
      %v408 = vadd.f32 %v337, %v378
      %v409 = vadd.f32 %v338, %v378
      %v410 = vadd.f32 %v339, %v378
      %v411 = vadd.f32 %v340, %v378
      %v412 = vadd.f32 %v341, %v378
      %v413 = vadd.f32 %v342, %v378
      %v414 = vadd.f32 %v343, %v378
      %v415 = vadd.f32 %v344, %v378
      %v416 = vadd.f32 %v345, %v378
      %v417 = vadd.f32 %v346, %v378
      %v418 = vadd.f32 %v347, %v378
      %v419 = vadd.f32 %v348, %v378
      %v420 = vadd.f32 %v349, %v378
      %v421 = vadd.f32 %v350, %v378
      %v422 = vadd.f32 %v351, %v378
      %v423 = vadd.f32 %v352, %v378
      %v424 = vadd.f32 %v353, %v378
      %v425 = vadd.f32 %v354, %v378
      %v426 = vadd.f32 %v355, %v378
      %v427 = vadd.f32 %v356, %v378
      %v428 = vadd.f32 %v357, %v378
      %v429 = vadd.f32 %v358, %v378
      %v430 = vadd.f32 %v359, %v378
      %v431 = vadd.f32 %v360, %v378
      %v432 = vadd.f32 %v361, %v378
      %v433 = vadd.f32 %v362, %v378
      %v434 = vadd.f32 %v363, %v378
      %v435 = vadd.f32 %v364, %v378
      %v436 = vadd.f32 %v365, %v378
      %v437 = vadd.f32 %v366, %v378
      %v438 = vadd.f32 %v367, %v378
      %v439 = vadd.f32 %v368, %v378
      %v440 = vadd.f32 %v369, %v378
      %v441 = vadd.f32 %v370, %v378
      %v442 = vadd.f32 %v371, %v378
      %v443 = vadd.f32 %v372, %v378
      %v444 = vmax.f32 %v380, 0.0
      %v445 = vmax.f32 %v381, 0.0
      %v446 = vmax.f32 %v382, 0.0
      %v447 = vmax.f32 %v383, 0.0
      %v448 = vmax.f32 %v384, 0.0
      %v449 = vmax.f32 %v385, 0.0
      %v450 = vmax.f32 %v386, 0.0
      %v451 = vmax.f32 %v387, 0.0
      %v452 = vmax.f32 %v388, 0.0
      %v453 = vmax.f32 %v389, 0.0
      %v454 = vmax.f32 %v390, 0.0
      %v455 = vmax.f32 %v391, 0.0
      %v456 = vmax.f32 %v392, 0.0
      %v457 = vmax.f32 %v393, 0.0
      %v458 = vmax.f32 %v394, 0.0
      %v459 = vmax.f32 %v395, 0.0
      %v460 = vmax.f32 %v396, 0.0
      %v461 = vmax.f32 %v397, 0.0
      %v462 = vmax.f32 %v398, 0.0
      %v463 = vmax.f32 %v399, 0.0
      %v464 = vmax.f32 %v400, 0.0
      %v465 = vmax.f32 %v401, 0.0
      %v466 = vmax.f32 %v402, 0.0
      %v467 = vmax.f32 %v403, 0.0
      %v468 = vmax.f32 %v404, 0.0
      %v469 = vmax.f32 %v405, 0.0
      %v470 = vmax.f32 %v406, 0.0
      %v471 = vmax.f32 %v407, 0.0
      %v472 = vmax.f32 %v408, 0.0
      %v473 = vmax.f32 %v409, 0.0
      %v474 = vmax.f32 %v410, 0.0
      %v475 = vmax.f32 %v411, 0.0
      %v476 = vmax.f32 %v412, 0.0
      %v477 = vmax.f32 %v413, 0.0
      %v478 = vmax.f32 %v414, 0.0
      %v479 = vmax.f32 %v415, 0.0
      %v480 = vmax.f32 %v416, 0.0
      %v481 = vmax.f32 %v417, 0.0
      %v482 = vmax.f32 %v418, 0.0
      %v483 = vmax.f32 %v419, 0.0
      %v484 = vmax.f32 %v420, 0.0
      %v485 = vmax.f32 %v421, 0.0
      %v486 = vmax.f32 %v422, 0.0
      %v487 = vmax.f32 %v423, 0.0
      %v488 = vmax.f32 %v424, 0.0
      %v489 = vmax.f32 %v425, 0.0
      %v490 = vmax.f32 %v426, 0.0
      %v491 = vmax.f32 %v427, 0.0
      %v492 = vmax.f32 %v428, 0.0
      %v493 = vmax.f32 %v429, 0.0
      %v494 = vmax.f32 %v430, 0.0
      %v495 = vmax.f32 %v431, 0.0
      %v496 = vmax.f32 %v432, 0.0
      %v497 = vmax.f32 %v433, 0.0
      %v498 = vmax.f32 %v434, 0.0
      %v499 = vmax.f32 %v435, 0.0
      %v500 = vmax.f32 %v436, 0.0
      %v501 = vmax.f32 %v437, 0.0
      %v502 = vmax.f32 %v438, 0.0
      %v503 = vmax.f32 %v439, 0.0
      %v504 = vmax.f32 %v440, 0.0
      %v505 = vmax.f32 %v441, 0.0
      %v506 = vmax.f32 %v442, 0.0
      %v507 = vmax.f32 %v443, 0.0
      %v508 = vpack.c.bf16 %v445, %v444
      %v509 = vpack.c.bf16 %v447, %v446
      %v510 = vpack.c.bf16 %v449, %v448
      %v511 = vpack.c.bf16 %v451, %v450
      %v512 = vpack.c.bf16 %v453, %v452
      %v513 = vpack.c.bf16 %v455, %v454
      %v514 = vpack.c.bf16 %v457, %v456
      %v515 = vpack.c.bf16 %v459, %v458
      %v516 = vpack.c.bf16 %v461, %v460
      %v517 = vpack.c.bf16 %v463, %v462
      %v518 = vpack.c.bf16 %v465, %v464
      %v519 = vpack.c.bf16 %v467, %v466
      %v520 = vpack.c.bf16 %v469, %v468
      %v521 = vpack.c.bf16 %v471, %v470
      %v522 = vpack.c.bf16 %v473, %v472
      %v523 = vpack.c.bf16 %v475, %v474
      %v524 = vpack.c.bf16 %v477, %v476
      %v525 = vpack.c.bf16 %v479, %v478
      %v526 = vpack.c.bf16 %v481, %v480
      %v527 = vpack.c.bf16 %v483, %v482
      %v528 = vpack.c.bf16 %v485, %v484
      %v529 = vpack.c.bf16 %v487, %v486
      %v530 = vpack.c.bf16 %v489, %v488
      %v531 = vpack.c.bf16 %v491, %v490
      %v532 = vpack.c.bf16 %v493, %v492
      %v533 = vpack.c.bf16 %v495, %v494
      %v534 = vpack.c.bf16 %v497, %v496
      %v535 = vpack.c.bf16 %v499, %v498
      %v536 = vpack.c.bf16 %v501, %v500
      %v537 = vpack.c.bf16 %v503, %v502
      %v538 = vpack.c.bf16 %v505, %v504
      %v539 = vpack.c.bf16 %v507, %v506
      %v572 = vunpack.c.l.b16 %v508
      %v573 = vunpack.c.h.b16 %v508
      %v574 = vunpack.c.l.b16 %v509
      %v575 = vunpack.c.h.b16 %v509
      %v576 = vunpack.c.l.b16 %v510
      %v577 = vunpack.c.h.b16 %v510
      %v578 = vunpack.c.l.b16 %v511
      %v579 = vunpack.c.h.b16 %v511
      %v580 = vunpack.c.l.b16 %v512
      %v581 = vunpack.c.h.b16 %v512
      %v582 = vunpack.c.l.b16 %v513
      %v583 = vunpack.c.h.b16 %v513
      %v584 = vunpack.c.l.b16 %v514
      %v585 = vunpack.c.h.b16 %v514
      %v586 = vunpack.c.l.b16 %v515
      %v587 = vunpack.c.h.b16 %v515
      %v588 = vunpack.c.l.b16 %v516
      %v589 = vunpack.c.h.b16 %v516
      %v590 = vunpack.c.l.b16 %v517
      %v591 = vunpack.c.h.b16 %v517
      %v592 = vunpack.c.l.b16 %v518
      %v593 = vunpack.c.h.b16 %v518
      %v594 = vunpack.c.l.b16 %v519
      %v595 = vunpack.c.h.b16 %v519
      %v596 = vunpack.c.l.b16 %v520
      %v597 = vunpack.c.h.b16 %v520
      %v598 = vunpack.c.l.b16 %v521
      %v599 = vunpack.c.h.b16 %v521
      %v600 = vunpack.c.l.b16 %v522
      %v601 = vunpack.c.h.b16 %v522
      %v602 = vunpack.c.l.b16 %v523
      %v603 = vunpack.c.h.b16 %v523
      %v604 = vunpack.c.l.b16 %v524
      %v605 = vunpack.c.h.b16 %v524
      %v606 = vunpack.c.l.b16 %v525
      %v607 = vunpack.c.h.b16 %v525
      %v608 = vunpack.c.l.b16 %v526
      %v609 = vunpack.c.h.b16 %v526
      %v610 = vunpack.c.l.b16 %v527
      %v611 = vunpack.c.h.b16 %v527
      %v612 = vunpack.c.l.b16 %v528
      %v613 = vunpack.c.h.b16 %v528
      %v614 = vunpack.c.l.b16 %v529
      %v615 = vunpack.c.h.b16 %v529
      %v616 = vunpack.c.l.b16 %v530
      %v617 = vunpack.c.h.b16 %v530
      %v618 = vunpack.c.l.b16 %v531
      %v619 = vunpack.c.h.b16 %v531
      %v620 = vunpack.c.l.b16 %v532
      %v621 = vunpack.c.h.b16 %v532
      %v622 = vunpack.c.l.b16 %v533
      %v623 = vunpack.c.h.b16 %v533
      %v624 = vunpack.c.l.b16 %v534
      %v625 = vunpack.c.h.b16 %v534
      %v626 = vunpack.c.l.b16 %v535
      %v627 = vunpack.c.h.b16 %v535
      %v628 = vunpack.c.l.b16 %v536
      %v629 = vunpack.c.h.b16 %v536
      %v630 = vunpack.c.l.b16 %v537
      %v631 = vunpack.c.h.b16 %v537
      %v632 = vunpack.c.l.b16 %v538
      %v633 = vunpack.c.h.b16 %v538
      %v634 = vunpack.c.l.b16 %v539
      %v635 = vunpack.c.h.b16 %v539
      %v636 = vpack.c.b16 %v572, %v572
      %v637 = vpack.c.b16 %v573, %v573
      %v638 = vpack.c.b16 %v574, %v574
      %v639 = vpack.c.b16 %v575, %v575
      %v640 = vpack.c.b16 %v576, %v576
      %v641 = vpack.c.b16 %v577, %v577
      %v642 = vpack.c.b16 %v578, %v578
      %v643 = vpack.c.b16 %v579, %v579
      %v644 = vpack.c.b16 %v580, %v580
      %v645 = vpack.c.b16 %v581, %v581
      %v646 = vpack.c.b16 %v582, %v582
      %v647 = vpack.c.b16 %v583, %v583
      %v648 = vpack.c.b16 %v584, %v584
      %v649 = vpack.c.b16 %v585, %v585
      %v650 = vpack.c.b16 %v586, %v586
      %v651 = vpack.c.b16 %v587, %v587
      %v652 = vpack.c.b16 %v588, %v588
      %v653 = vpack.c.b16 %v589, %v589
      %v654 = vpack.c.b16 %v590, %v590
      %v655 = vpack.c.b16 %v591, %v591
      %v656 = vpack.c.b16 %v592, %v592
      %v657 = vpack.c.b16 %v593, %v593
      %v658 = vpack.c.b16 %v594, %v594
      %v659 = vpack.c.b16 %v595, %v595
      %v660 = vpack.c.b16 %v596, %v596
      %v661 = vpack.c.b16 %v597, %v597
      %v662 = vpack.c.b16 %v598, %v598
      %v663 = vpack.c.b16 %v599, %v599
      %v664 = vpack.c.b16 %v600, %v600
      %v665 = vpack.c.b16 %v601, %v601
      %v666 = vpack.c.b16 %v602, %v602
      %v667 = vpack.c.b16 %v603, %v603
      %v668 = vpack.c.b16 %v604, %v604
      %v669 = vpack.c.b16 %v605, %v605
      %v670 = vpack.c.b16 %v606, %v606
      %v671 = vpack.c.b16 %v607, %v607
      %v672 = vpack.c.b16 %v608, %v608
      %v673 = vpack.c.b16 %v609, %v609
      %v674 = vpack.c.b16 %v610, %v610
      %v675 = vpack.c.b16 %v611, %v611
      %v676 = vpack.c.b16 %v612, %v612
      %v677 = vpack.c.b16 %v613, %v613
      %v678 = vpack.c.b16 %v614, %v614
      %v679 = vpack.c.b16 %v615, %v615
      %v680 = vpack.c.b16 %v616, %v616
      %v681 = vpack.c.b16 %v617, %v617
      %v682 = vpack.c.b16 %v618, %v618
      %v683 = vpack.c.b16 %v619, %v619
      %v684 = vpack.c.b16 %v620, %v620
      %v685 = vpack.c.b16 %v621, %v621
      %v686 = vpack.c.b16 %v622, %v622
      %v687 = vpack.c.b16 %v623, %v623
      %v688 = vpack.c.b16 %v624, %v624
      %v689 = vpack.c.b16 %v625, %v625
      %v690 = vpack.c.b16 %v626, %v626
      %v691 = vpack.c.b16 %v627, %v627
      %v692 = vpack.c.b16 %v628, %v628
      %v693 = vpack.c.b16 %v629, %v629
      %v694 = vpack.c.b16 %v630, %v630
      %v695 = vpack.c.b16 %v631, %v631
      %v696 = vpack.c.b16 %v632, %v632
      %v697 = vpack.c.b16 %v633, %v633
      %v698 = vpack.c.b16 %v634, %v634
      %v699 = vpack.c.b16 %v635, %v635
      %764 = vst [vmem:[%s172] sm:$0xf] %v636
      %765 = vst [vmem:[%s172 + $0x4] sm:$0xf] %v637
      %766 = vst [vmem:[%s172 + $0x8] sm:$0xf] %v638
      %767 = vst [vmem:[%s172 + $0xc] sm:$0xf] %v639
      %768 = vst [vmem:[%s172 + $0x10] sm:$0xf] %v640
      %769 = vst [vmem:[%s172 + $0x14] sm:$0xf] %v641
      %770 = vst [vmem:[%s172 + $0x18] sm:$0xf] %v642
      %771 = vst [vmem:[%s172 + $0x1c] sm:$0xf] %v643
      %772 = vst [vmem:[%s172 + $0x20] sm:$0xf] %v644
      %773 = vst [vmem:[%s172 + $0x24] sm:$0xf] %v645
      %774 = vst [vmem:[%s172 + $0x28] sm:$0xf] %v646
      %775 = vst [vmem:[%s172 + $0x2c] sm:$0xf] %v647
      %776 = vst [vmem:[%s172 + $0x30] sm:$0xf] %v648
      %777 = vst [vmem:[%s172 + $0x34] sm:$0xf] %v649
      %778 = vst [vmem:[%s172 + $0x38] sm:$0xf] %v650
      %779 = vst [vmem:[%s172 + $0x3c] sm:$0xf] %v651
      %780 = vst [vmem:[%s172 + $0x40] sm:$0xf] %v652
      %781 = vst [vmem:[%s172 + $0x44] sm:$0xf] %v653
      %782 = vst [vmem:[%s172 + $0x48] sm:$0xf] %v654
      %783 = vst [vmem:[%s172 + $0x4c] sm:$0xf] %v655
      %784 = vst [vmem:[%s172 + $0x50] sm:$0xf] %v656
      %785 = vst [vmem:[%s172 + $0x54] sm:$0xf] %v657
      %786 = vst [vmem:[%s172 + $0x58] sm:$0xf] %v658
      %787 = vst [vmem:[%s172 + $0x5c] sm:$0xf] %v659
      %788 = vst [vmem:[%s172 + $0x60] sm:$0xf] %v660
      %789 = vst [vmem:[%s172 + $0x64] sm:$0xf] %v661
      %790 = vst [vmem:[%s172 + $0x68] sm:$0xf] %v662
      %791 = vst [vmem:[%s172 + $0x6c] sm:$0xf] %v663
      %792 = vst [vmem:[%s172 + $0x70] sm:$0xf] %v664
      %793 = vst [vmem:[%s172 + $0x74] sm:$0xf] %v665
      %794 = vst [vmem:[%s172 + $0x78] sm:$0xf] %v666
      %795 = vst [vmem:[%s172 + $0x7c] sm:$0xf] %v667
      %796 = vst [vmem:[%s172 + $0x80] sm:$0xf] %v668
      %797 = vst [vmem:[%s172 + $0x84] sm:$0xf] %v669
      %798 = vst [vmem:[%s172 + $0x88] sm:$0xf] %v670
      %799 = vst [vmem:[%s172 + $0x8c] sm:$0xf] %v671
      %800 = vst [vmem:[%s172 + $0x90] sm:$0xf] %v672
      %801 = vst [vmem:[%s172 + $0x94] sm:$0xf] %v673
      %802 = vst [vmem:[%s172 + $0x98] sm:$0xf] %v674
      %803 = vst [vmem:[%s172 + $0x9c] sm:$0xf] %v675
      %804 = vst [vmem:[%s172 + $0xa0] sm:$0xf] %v676
      %805 = vst [vmem:[%s172 + $0xa4] sm:$0xf] %v677
      %806 = vst [vmem:[%s172 + $0xa8] sm:$0xf] %v678
      %807 = vst [vmem:[%s172 + $0xac] sm:$0xf] %v679
      %808 = vst [vmem:[%s172 + $0xb0] sm:$0xf] %v680
      %809 = vst [vmem:[%s172 + $0xb4] sm:$0xf] %v681
      %810 = vst [vmem:[%s172 + $0xb8] sm:$0xf] %v682
      %811 = vst [vmem:[%s172 + $0xbc] sm:$0xf] %v683
      %812 = vst [vmem:[%s172 + $0xc0] sm:$0xf] %v684
      %813 = vst [vmem:[%s172 + $0xc4] sm:$0xf] %v685
      %814 = vst [vmem:[%s172 + $0xc8] sm:$0xf] %v686
      %815 = vst [vmem:[%s172 + $0xcc] sm:$0xf] %v687
      %816 = vst [vmem:[%s172 + $0xd0] sm:$0xf] %v688
      %817 = vst [vmem:[%s172 + $0xd4] sm:$0xf] %v689
      %818 = vst [vmem:[%s172 + $0xd8] sm:$0xf] %v690
      %819 = vst [vmem:[%s172 + $0xdc] sm:$0xf] %v691
      %820 = vst [vmem:[%s172 + $0xe0] sm:$0xf] %v692
      %821 = vst [vmem:[%s172 + $0xe4] sm:$0xf] %v693
      %822 = vst [vmem:[%s172 + $0xe8] sm:$0xf] %v694
      %823 = vst [vmem:[%s172 + $0xec] sm:$0xf] %v695
      %824 = vst [vmem:[%s172 + $0xf0] sm:$0xf] %v696
      %825 = vst [vmem:[%s172 + $0xf4] sm:$0xf] %v697
      %826 = vst [vmem:[%s172 + $0xf8] sm:$0xf] %v698
      %827 = vst [vmem:[%s172 + $0xfc] sm:$0xf] %v699
      %s828 = smul.u32 64, %s14
      %p829 = scmp.lt.s32.totalorder %s828, 255
      %s830 = scalar_select %p829, %s828, 255
      %s831 = smul.addr %s830, 4
      %s832 = scalar_lea.vmem %s3, %s831
      // Predicated region
      $region33: #{_lambda_.16} parent=31 // pred_check
        %p833 = pneg %p100
      $region34: #{_lambda_.16} parent=31 // pred_check_branch
        %835 = sbr.rel (%p833) target = $region36
      $region35: #{_lambda_.16} parent=31 // pred_region
        %s836 = smul.u32 64, %s14
      $region36: #{_lambda_.16} parent=31 // pred_fallthru
        _
    $region32: #{_lambda_.16} parent=5 // pred_fallthru
      _
    %p837 = scmp.le.s32.totalorder 2, %s9
    // Predicated region
    $region37: #{_lambda_.16} parent=5 // pred_check
      %p838 = pneg %p837
    $region38: #{_lambda_.16} parent=5 // pred_check_branch
      %840 = sbr.rel (%p838) target = $region40
    $region39: #{_lambda_.16} parent=5 // pred_region
      %s841 = ssub.s32 %s9, 2
      // Predicated region
      $region41: #{_lambda_.16} parent=39 // pred_check
        %p842 = pneg %p106
      $region42: #{_lambda_.16} parent=39 // pred_check_branch
        %844 = sbr.rel (%p842) target = $region44
      $region43: #{_lambda_.16} parent=39 // pred_region
        %s845 = smul.u32 64, %s15
        %p846 = scmp.lt.s32.totalorder %s845, 255
        %s847 = scalar_select %p846, %s845, 255
        %s848 = smul.addr %s847, 4
        %s849 = scalar_lea.vmem %s3, %s848
      $region44: #{_lambda_.16} parent=39 // pred_fallthru
        _
    $region40: #{_lambda_.16} parent=5 // pred_fallthru
      _
  $region6: #{_lambda_.16} parent=0 // loop_footer
    %s13 = sadd.s32 1, %s9
  $region7: #{_lambda_.16} parent=0 // loop_footer_branch
    %8 = sbr.rel target = $region3
  $region8: #{_lambda_.16} parent=0 // loop_exit
    _

// kernel: _lambda_.20
$region0: #{_lambda_.20}
  #allocation0 [shape = 'u32[]', space=smem, size = 0x4, offset = 0x4, fixed_abs, tag = 'smem constant byte address 0x4 - core index']
  #allocation1 [shape = 'u32[144,128]{1,0:T(1,128)}', space=vmem, size = 0x12000, scoped, tag = 'internal scratch']
  %s0 = inlined_call_operand.vmem [shape: f32[1,128], index: 0, kind: input, shape index: {}]
  %s1 = inlined_call_operand.vmem [shape: f32[1,128], index: 1, kind: input, shape index: {}]
  %s2 = inlined_call_operand.vmem [shape: bf16[2048,128], index: 2, kind: input, shape index: {}]
  %s3 = inlined_call_operand.vmem [shape: bf16[2048,128], index: 3, kind: input, shape index: {}]
  %s4 = inlined_call_operand.vmem [shape: bf16[2048,128], index: 4, kind: output, shape index: {}]
  %s5 = sld [smem:[#allocation0]]
  $region49: #{_lambda_.20} parent=0
    _
  %s7 = ssub.s32 1, %s5
  %s8 = scalar_select 0, %s7, %s5
  loop: start=0, step=1, limit=6
  $region2: #{_lambda_.20} parent=0 // loop_pre_header
    _
  $region3: #{_lambda_.20} parent=0 // loop_header
    %s10 = sphi 0, %s14
    %p11 = scmp.ge.s32.totalorder %s10, 6
    %s18 = sphi 0, %s18
    %s20 = sphi 0, %s18
    %s21 = sphi 0, %s20
    %s35 = sphi 0, %s21
    %s39 = sphi 0, %s39
    %s41 = sphi 0, %s39
    %s42 = sphi 0, %s41
    %s56 = sphi 0, %s42
    %s62 = sphi 0, %s64
    %s65 = sphi 0, %s62
    %s66 = sphi 0, %s65
    %s82 = sphi 0, %s66
    %s88 = sphi 0, %s90
    %s91 = sphi 0, %s88
    %s92 = sphi 0, %s91
    %s108 = sphi 0, %s92
    %s114 = sphi 0, %s116
    %s117 = sphi 0, %s114
    %s118 = sphi 0, %s117
    %s134 = sphi 0, %s118
  $region4: #{_lambda_.20} parent=0 // loop_header_branch
    %13 = sbr.rel (%p11) target = $region8
  $region5: #{_lambda_.20} parent=0 // loop_body
    %s15 = ssub.s32 %s10, 1
    %s16 = ssub.s32 %s10, 2
    %s17 = sadd.s32 %s10, 1
    %s19 = sadd.s32 %s18, 1
    %p22 = scmp.eq.s32.totalorder %s10, 3
    %p23 = scmp.ne.s32.totalorder %s18, %s20
    %p24 = scmp.eq.s32.totalorder %s10, 0
    %p25 = por %p23, %p24
    %p26 = scmp.ne.s32.totalorder %s18, %s20
    %p27 = scmp.eq.s32.totalorder %s15, 3
    %p28 = por %p26, %p27
    %p29 = scmp.ne.s32.totalorder %s20, %s21
    %p30 = scmp.eq.s32.totalorder %s15, 0
    %p31 = por %p29, %p30
    %p32 = scmp.ne.s32.totalorder %s20, %s21
    %p33 = scmp.eq.s32.totalorder %s16, 3
    %p34 = por %p32, %p33
    %p36 = scmp.ne.s32.totalorder %s21, %s35
    %p37 = scmp.eq.s32.totalorder %s16, 0
    %p38 = por %p36, %p37
    %s40 = sadd.s32 %s39, 1
    %p43 = scmp.eq.s32.totalorder %s10, 3
    %p44 = scmp.ne.s32.totalorder %s39, %s41
    %p45 = scmp.eq.s32.totalorder %s10, 0
    %p46 = por %p44, %p45
    %p47 = scmp.ne.s32.totalorder %s39, %s41
    %p48 = scmp.eq.s32.totalorder %s15, 3
    %p49 = por %p47, %p48
    %p50 = scmp.ne.s32.totalorder %s41, %s42
    %p51 = scmp.eq.s32.totalorder %s15, 0
    %p52 = por %p50, %p51
    %p53 = scmp.ne.s32.totalorder %s41, %s42
    %p54 = scmp.eq.s32.totalorder %s16, 3
    %p55 = por %p53, %p54
    %p57 = scmp.ne.s32.totalorder %s42, %s56
    %p58 = scmp.eq.s32.totalorder %s16, 0
    %p59 = por %p57, %p58
    %s60 = ssub.s32 %s10, %s17
    %p61 = scmp.eq.s32.totalorder %s60, 0
    %s63 = sadd.s32 %s62, 1
    %s64 = scalar_select %p61, %s62, %s63
    %p67 = pneg %p61
    %p68 = scmp.eq.s32.totalorder %s10, 3
    %p69 = por %p67, %p68
    %p70 = scmp.ne.s32.totalorder %s62, %s65
    %p71 = scmp.eq.s32.totalorder %s10, 0
    %p72 = por %p70, %p71
    %p73 = scmp.ne.s32.totalorder %s62, %s65
    %p74 = scmp.eq.s32.totalorder %s15, 3
    %p75 = por %p73, %p74
    %p76 = scmp.ne.s32.totalorder %s65, %s66
    %p77 = scmp.eq.s32.totalorder %s15, 0
    %p78 = por %p76, %p77
    %p79 = scmp.ne.s32.totalorder %s65, %s66
    %p80 = scmp.eq.s32.totalorder %s16, 3
    %p81 = por %p79, %p80
    %p83 = scmp.ne.s32.totalorder %s66, %s82
    %p84 = scmp.eq.s32.totalorder %s16, 0
    %p85 = por %p83, %p84
    %s86 = ssub.s32 %s10, %s17
    %p87 = scmp.eq.s32.totalorder %s86, 0
    %s89 = sadd.s32 %s88, 1
    %s90 = scalar_select %p87, %s88, %s89
    %p93 = pneg %p87
    %p94 = scmp.eq.s32.totalorder %s10, 3
    %p95 = por %p93, %p94
    %p96 = scmp.ne.s32.totalorder %s88, %s91
    %p97 = scmp.eq.s32.totalorder %s10, 0
    %p98 = por %p96, %p97
    %p99 = scmp.ne.s32.totalorder %s88, %s91
    %p100 = scmp.eq.s32.totalorder %s15, 3
    %p101 = por %p99, %p100
    %p102 = scmp.ne.s32.totalorder %s91, %s92
    %p103 = scmp.eq.s32.totalorder %s15, 0
    %p104 = por %p102, %p103
    %p105 = scmp.ne.s32.totalorder %s91, %s92
    %p106 = scmp.eq.s32.totalorder %s16, 3
    %p107 = por %p105, %p106
    %p109 = scmp.ne.s32.totalorder %s92, %s108
    %p110 = scmp.eq.s32.totalorder %s16, 0
    %p111 = por %p109, %p110
    %s112 = ssub.s32 %s10, %s17
    %p113 = scmp.eq.s32.totalorder %s112, 0
    %s115 = sadd.s32 %s114, 1
    %s116 = scalar_select %p113, %s114, %s115
    %p119 = pneg %p113
    %p120 = scmp.eq.s32.totalorder %s10, 3
    %p121 = por %p119, %p120
    %p122 = scmp.ne.s32.totalorder %s114, %s117
    %p123 = scmp.eq.s32.totalorder %s10, 0
    %p124 = por %p122, %p123
    %p125 = scmp.ne.s32.totalorder %s114, %s117
    %p126 = scmp.eq.s32.totalorder %s15, 3
    %p127 = por %p125, %p126
    %p128 = scmp.ne.s32.totalorder %s117, %s118
    %p129 = scmp.eq.s32.totalorder %s15, 0
    %p130 = por %p128, %p129
    %p131 = scmp.ne.s32.totalorder %s117, %s118
    %p132 = scmp.eq.s32.totalorder %s16, 3
    %p133 = por %p131, %p132
    %p135 = scmp.ne.s32.totalorder %s118, %s134
    %p136 = scmp.eq.s32.totalorder %s16, 0
    %p137 = por %p135, %p136
    %p138 = scmp.le.s32.totalorder 1, %s10
    %p139 = scmp.lt.s32.totalorder %s10, 5
    %p140 = pnand %p138, %p139
    %p141 = pneg %p140
    // Predicated region
    $region9: #{_lambda_.20} parent=5 // pred_check
      _
    $region10: #{_lambda_.20} parent=5 // pred_check_branch
      %143 = sbr.rel (%p140) target = $region12
    $region11: #{_lambda_.20} parent=5 // pred_region
      %s144 = ssub.s32 %s10, 1
      // Predicated region
      $region13: #{_lambda_.20} parent=11 // pred_check
        %p145 = pneg %p31
      $region14: #{_lambda_.20} parent=11 // pred_check_branch
        %147 = sbr.rel (%p145) target = $region16
      $region15: #{_lambda_.20} parent=11 // pred_region
        _
      $region16: #{_lambda_.20} parent=11 // pred_fallthru
        _
      // Predicated region
      $region17: #{_lambda_.20} parent=11 // pred_check
        %p148 = pneg %p52
      $region18: #{_lambda_.20} parent=11 // pred_check_branch
        %150 = sbr.rel (%p148) target = $region20
      $region19: #{_lambda_.20} parent=11 // pred_region
        _
      $region20: #{_lambda_.20} parent=11 // pred_fallthru
        _
    $region12: #{_lambda_.20} parent=5 // pred_fallthru
      _
    %p151 = scmp.lt.s32.totalorder %s10, 4
    // Predicated region
    $region21: #{_lambda_.20} parent=5 // pred_check
      %p152 = pneg %p151
    $region22: #{_lambda_.20} parent=5 // pred_check_branch
      %154 = sbr.rel (%p152) target = $region24
    $region23: #{_lambda_.20} parent=5 // pred_region
      // Predicated region
      $region25: #{_lambda_.20} parent=23 // pred_check
        %p155 = pneg %p72
      $region26: #{_lambda_.20} parent=23 // pred_check_branch
        %157 = sbr.rel (%p155) target = $region28
      $region27: #{_lambda_.20} parent=23 // pred_region
        %s158 = smul.u32 64, %s10
        %p159 = scmp.lt.s32.totalorder %s158, 255
        %s160 = scalar_select %p159, %s158, 255
        %s161 = smul.addr %s160, 4
        %s162 = scalar_lea.vmem %s2, %s161
        %s163 = smul.u32 64, %s10
      $region28: #{_lambda_.20} parent=23 // pred_fallthru
        _
      // Predicated region
      $region29: #{_lambda_.20} parent=23 // pred_check
        %p164 = pneg %p98
      $region30: #{_lambda_.20} parent=23 // pred_check_branch
        %166 = sbr.rel (%p164) target = $region32
      $region31: #{_lambda_.20} parent=23 // pred_region
        %s167 = smul.u32 64, %s10
        %p168 = scmp.lt.s32.totalorder %s167, 255
        %s169 = scalar_select %p168, %s167, 255
        %s170 = smul.addr %s169, 4
        %s171 = scalar_lea.vmem %s3, %s170
        %s172 = smul.u32 64, %s10
      $region32: #{_lambda_.20} parent=23 // pred_fallthru
        _
    $region24: #{_lambda_.20} parent=5 // pred_fallthru
      _
    %p173 = scmp.le.s32.totalorder 1, %s10
    %p174 = scmp.lt.s32.totalorder %s10, 5
    %p175 = pnand %p173, %p174
    %p176 = pneg %p175
    // Predicated region
    $region33: #{_lambda_.20} parent=5 // pred_check
      _
    $region34: #{_lambda_.20} parent=5 // pred_check_branch
      %178 = sbr.rel (%p175) target = $region36
    $region35: #{_lambda_.20} parent=5 // pred_region
      %s179 = ssub.s32 %s10, 1
      %p180 = pneg %p31
      %p181 = pneg %p28
      %p182 = pneg %p52
      %p183 = pneg %p49
      %s184 = smul.u32 64, %s15
      %p185 = scmp.lt.s32.totalorder %s184, 255
      %s186 = scalar_select %p185, %s184, 255
      %s187 = smul.addr %s186, 4
      %s188 = scalar_lea.vmem %s2, %s187
      %p189 = pneg %p78
      %p190 = pneg %p75
      %s191 = smul.u32 64, %s15
      %p192 = scmp.lt.s32.totalorder %s191, 255
      %s193 = scalar_select %p192, %s191, 255
      %s194 = smul.addr %s193, 4
      %s195 = scalar_lea.vmem %s3, %s194
      %p196 = pneg %p104
      %p197 = pneg %p101
      %p198 = pneg %p130
      %p199 = pneg %p127
      %s200 = smul.u32 64, %s15
      %p201 = scmp.lt.s32.totalorder %s200, 255
      %s202 = scalar_select %p201, %s200, 255
      %s203 = smul.addr %s202, 4
      %s204 = scalar_lea.vmem %s4, %s203
      %s205 = smul.u32 64, %s15
      %p206 = scmp.lt.s32.totalorder %s205, 255
      %s207 = scalar_select %p206, %s205, 255
      %s208 = smul.addr %s207, 4
      %s209 = scalar_lea.vmem %s2, %s208
      %s210 = smul.u32 64, %s15
      %s211 = smul.u32 64, %s15
      %p212 = scmp.lt.s32.totalorder %s211, 255
      %s213 = scalar_select %p212, %s211, 255
      %s214 = smul.addr %s213, 4
      %s215 = scalar_lea.vmem %s3, %s214
      %s216 = smul.u32 64, %s15
      %s217 = smul.u32 64, %s15
      %p218 = scmp.lt.s32.totalorder %s217, 255
      %s219 = scalar_select %p218, %s217, 255
      %s220 = smul.addr %s219, 4
      %s221 = scalar_lea.vmem %s4, %s220
      %s222 = smul.u32 64, %s15
      %v223 = vld [vmem:[%s209] sm:$0xf]
      %v224 = vld [vmem:[%s209 + $0x4] sm:$0xf]
      %v225 = vld [vmem:[%s209 + $0x8] sm:$0xf]
      %v226 = vld [vmem:[%s209 + $0xc] sm:$0xf]
      %v227 = vld [vmem:[%s209 + $0x10] sm:$0xf]
      %v228 = vld [vmem:[%s209 + $0x14] sm:$0xf]
      %v229 = vld [vmem:[%s209 + $0x18] sm:$0xf]
      %v230 = vld [vmem:[%s209 + $0x1c] sm:$0xf]
      %v231 = vld [vmem:[%s209 + $0x20] sm:$0xf]
      %v232 = vld [vmem:[%s209 + $0x24] sm:$0xf]
      %v233 = vld [vmem:[%s209 + $0x28] sm:$0xf]
      %v234 = vld [vmem:[%s209 + $0x2c] sm:$0xf]
      %v235 = vld [vmem:[%s209 + $0x30] sm:$0xf]
      %v236 = vld [vmem:[%s209 + $0x34] sm:$0xf]
      %v237 = vld [vmem:[%s209 + $0x38] sm:$0xf]
      %v238 = vld [vmem:[%s209 + $0x3c] sm:$0xf]
      %v239 = vld [vmem:[%s209 + $0x40] sm:$0xf]
      %v240 = vld [vmem:[%s209 + $0x44] sm:$0xf]
      %v241 = vld [vmem:[%s209 + $0x48] sm:$0xf]
      %v242 = vld [vmem:[%s209 + $0x4c] sm:$0xf]
      %v243 = vld [vmem:[%s209 + $0x50] sm:$0xf]
      %v244 = vld [vmem:[%s209 + $0x54] sm:$0xf]
      %v245 = vld [vmem:[%s209 + $0x58] sm:$0xf]
      %v246 = vld [vmem:[%s209 + $0x5c] sm:$0xf]
      %v247 = vld [vmem:[%s209 + $0x60] sm:$0xf]
      %v248 = vld [vmem:[%s209 + $0x64] sm:$0xf]
      %v249 = vld [vmem:[%s209 + $0x68] sm:$0xf]
      %v250 = vld [vmem:[%s209 + $0x6c] sm:$0xf]
      %v251 = vld [vmem:[%s209 + $0x70] sm:$0xf]
      %v252 = vld [vmem:[%s209 + $0x74] sm:$0xf]
      %v253 = vld [vmem:[%s209 + $0x78] sm:$0xf]
      %v254 = vld [vmem:[%s209 + $0x7c] sm:$0xf]
      %v255 = vld [vmem:[%s209 + $0x80] sm:$0xf]
      %v256 = vld [vmem:[%s209 + $0x84] sm:$0xf]
      %v257 = vld [vmem:[%s209 + $0x88] sm:$0xf]
      %v258 = vld [vmem:[%s209 + $0x8c] sm:$0xf]
      %v259 = vld [vmem:[%s209 + $0x90] sm:$0xf]
      %v260 = vld [vmem:[%s209 + $0x94] sm:$0xf]
      %v261 = vld [vmem:[%s209 + $0x98] sm:$0xf]
      %v262 = vld [vmem:[%s209 + $0x9c] sm:$0xf]
      %v263 = vld [vmem:[%s209 + $0xa0] sm:$0xf]
      %v264 = vld [vmem:[%s209 + $0xa4] sm:$0xf]
      %v265 = vld [vmem:[%s209 + $0xa8] sm:$0xf]
      %v266 = vld [vmem:[%s209 + $0xac] sm:$0xf]
      %v267 = vld [vmem:[%s209 + $0xb0] sm:$0xf]
      %v268 = vld [vmem:[%s209 + $0xb4] sm:$0xf]
      %v269 = vld [vmem:[%s209 + $0xb8] sm:$0xf]
      %v270 = vld [vmem:[%s209 + $0xbc] sm:$0xf]
      %v271 = vld [vmem:[%s209 + $0xc0] sm:$0xf]
      %v272 = vld [vmem:[%s209 + $0xc4] sm:$0xf]
      %v273 = vld [vmem:[%s209 + $0xc8] sm:$0xf]
      %v274 = vld [vmem:[%s209 + $0xcc] sm:$0xf]
      %v275 = vld [vmem:[%s209 + $0xd0] sm:$0xf]
      %v276 = vld [vmem:[%s209 + $0xd4] sm:$0xf]
      %v277 = vld [vmem:[%s209 + $0xd8] sm:$0xf]
      %v278 = vld [vmem:[%s209 + $0xdc] sm:$0xf]
      %v279 = vld [vmem:[%s209 + $0xe0] sm:$0xf]
      %v280 = vld [vmem:[%s209 + $0xe4] sm:$0xf]
      %v281 = vld [vmem:[%s209 + $0xe8] sm:$0xf]
      %v282 = vld [vmem:[%s209 + $0xec] sm:$0xf]
      %v283 = vld [vmem:[%s209 + $0xf0] sm:$0xf]
      %v284 = vld [vmem:[%s209 + $0xf4] sm:$0xf]
      %v285 = vld [vmem:[%s209 + $0xf8] sm:$0xf]
      %v286 = vld [vmem:[%s209 + $0xfc] sm:$0xf]
      %v287 = vunpack.c.l.bf16 %v223
      %v288 = vunpack.c.l.bf16 %v224
      %v289 = vunpack.c.l.bf16 %v225
      %v290 = vunpack.c.l.bf16 %v226
      %v291 = vunpack.c.l.bf16 %v227
      %v292 = vunpack.c.l.bf16 %v228
      %v293 = vunpack.c.l.bf16 %v229
      %v294 = vunpack.c.l.bf16 %v230
      %v295 = vunpack.c.l.bf16 %v231
      %v296 = vunpack.c.l.bf16 %v232
      %v297 = vunpack.c.l.bf16 %v233
      %v298 = vunpack.c.l.bf16 %v234
      %v299 = vunpack.c.l.bf16 %v235
      %v300 = vunpack.c.l.bf16 %v236
      %v301 = vunpack.c.l.bf16 %v237
      %v302 = vunpack.c.l.bf16 %v238
      %v303 = vunpack.c.l.bf16 %v239
      %v304 = vunpack.c.l.bf16 %v240
      %v305 = vunpack.c.l.bf16 %v241
      %v306 = vunpack.c.l.bf16 %v242
      %v307 = vunpack.c.l.bf16 %v243
      %v308 = vunpack.c.l.bf16 %v244
      %v309 = vunpack.c.l.bf16 %v245
      %v310 = vunpack.c.l.bf16 %v246
      %v311 = vunpack.c.l.bf16 %v247
      %v312 = vunpack.c.l.bf16 %v248
      %v313 = vunpack.c.l.bf16 %v249
      %v314 = vunpack.c.l.bf16 %v250
      %v315 = vunpack.c.l.bf16 %v251
      %v316 = vunpack.c.l.bf16 %v252
      %v317 = vunpack.c.l.bf16 %v253
      %v318 = vunpack.c.l.bf16 %v254
      %v319 = vunpack.c.l.bf16 %v255
      %v320 = vunpack.c.l.bf16 %v256
      %v321 = vunpack.c.l.bf16 %v257
      %v322 = vunpack.c.l.bf16 %v258
      %v323 = vunpack.c.l.bf16 %v259
      %v324 = vunpack.c.l.bf16 %v260
      %v325 = vunpack.c.l.bf16 %v261
      %v326 = vunpack.c.l.bf16 %v262
      %v327 = vunpack.c.l.bf16 %v263
      %v328 = vunpack.c.l.bf16 %v264
      %v329 = vunpack.c.l.bf16 %v265
      %v330 = vunpack.c.l.bf16 %v266
      %v331 = vunpack.c.l.bf16 %v267
      %v332 = vunpack.c.l.bf16 %v268
      %v333 = vunpack.c.l.bf16 %v269
      %v334 = vunpack.c.l.bf16 %v270
      %v335 = vunpack.c.l.bf16 %v271
      %v336 = vunpack.c.l.bf16 %v272
      %v337 = vunpack.c.l.bf16 %v273
      %v338 = vunpack.c.l.bf16 %v274
      %v339 = vunpack.c.l.bf16 %v275
      %v340 = vunpack.c.l.bf16 %v276
      %v341 = vunpack.c.l.bf16 %v277
      %v342 = vunpack.c.l.bf16 %v278
      %v343 = vunpack.c.l.bf16 %v279
      %v344 = vunpack.c.l.bf16 %v280
      %v345 = vunpack.c.l.bf16 %v281
      %v346 = vunpack.c.l.bf16 %v282
      %v347 = vunpack.c.l.bf16 %v283
      %v348 = vunpack.c.l.bf16 %v284
      %v349 = vunpack.c.l.bf16 %v285
      %v350 = vunpack.c.l.bf16 %v286
      %v351 = vld [vmem:[%s0] sm:$0x1]
      %v353 = vlaneseq
      %v354 = vshrl.u32 %v353, 7
      %v355 = vsub.s32 0, %v354
      %v356 = vrot.slane %v351, %v355
      %v358 = vmul.f32 %v287, %v356
      %v359 = vmul.f32 %v288, %v356
      %v360 = vmul.f32 %v289, %v356
      %v361 = vmul.f32 %v290, %v356
      %v362 = vmul.f32 %v291, %v356
      %v363 = vmul.f32 %v292, %v356
      %v364 = vmul.f32 %v293, %v356
      %v365 = vmul.f32 %v294, %v356
      %v366 = vmul.f32 %v295, %v356
      %v367 = vmul.f32 %v296, %v356
      %v368 = vmul.f32 %v297, %v356
      %v369 = vmul.f32 %v298, %v356
      %v370 = vmul.f32 %v299, %v356
      %v371 = vmul.f32 %v300, %v356
      %v372 = vmul.f32 %v301, %v356
      %v373 = vmul.f32 %v302, %v356
      %v374 = vmul.f32 %v303, %v356
      %v375 = vmul.f32 %v304, %v356
      %v376 = vmul.f32 %v305, %v356
      %v377 = vmul.f32 %v306, %v356
      %v378 = vmul.f32 %v307, %v356
      %v379 = vmul.f32 %v308, %v356
      %v380 = vmul.f32 %v309, %v356
      %v381 = vmul.f32 %v310, %v356
      %v382 = vmul.f32 %v311, %v356
      %v383 = vmul.f32 %v312, %v356
      %v384 = vmul.f32 %v313, %v356
      %v385 = vmul.f32 %v314, %v356
      %v386 = vmul.f32 %v315, %v356
      %v387 = vmul.f32 %v316, %v356
      %v388 = vmul.f32 %v317, %v356
      %v389 = vmul.f32 %v318, %v356
      %v390 = vmul.f32 %v319, %v356
      %v391 = vmul.f32 %v320, %v356
      %v392 = vmul.f32 %v321, %v356
      %v393 = vmul.f32 %v322, %v356
      %v394 = vmul.f32 %v323, %v356
      %v395 = vmul.f32 %v324, %v356
      %v396 = vmul.f32 %v325, %v356
      %v397 = vmul.f32 %v326, %v356
      %v398 = vmul.f32 %v327, %v356
      %v399 = vmul.f32 %v328, %v356
      %v400 = vmul.f32 %v329, %v356
      %v401 = vmul.f32 %v330, %v356
      %v402 = vmul.f32 %v331, %v356
      %v403 = vmul.f32 %v332, %v356
      %v404 = vmul.f32 %v333, %v356
      %v405 = vmul.f32 %v334, %v356
      %v406 = vmul.f32 %v335, %v356
      %v407 = vmul.f32 %v336, %v356
      %v408 = vmul.f32 %v337, %v356
      %v409 = vmul.f32 %v338, %v356
      %v410 = vmul.f32 %v339, %v356
      %v411 = vmul.f32 %v340, %v356
      %v412 = vmul.f32 %v341, %v356
      %v413 = vmul.f32 %v342, %v356
      %v414 = vmul.f32 %v343, %v356
      %v415 = vmul.f32 %v344, %v356
      %v416 = vmul.f32 %v345, %v356
      %v417 = vmul.f32 %v346, %v356
      %v418 = vmul.f32 %v347, %v356
      %v419 = vmul.f32 %v348, %v356
      %v420 = vmul.f32 %v349, %v356
      %v421 = vmul.f32 %v350, %v356
      %v422 = vld [vmem:[%s1] sm:$0x1]
      %v424 = vlaneseq
      %v425 = vshrl.u32 %v424, 7
      %v426 = vsub.s32 0, %v425
      %v427 = vrot.slane %v422, %v426
      %v429 = vadd.f32 %v358, %v427
      %v430 = vadd.f32 %v359, %v427
      %v431 = vadd.f32 %v360, %v427
      %v432 = vadd.f32 %v361, %v427
      %v433 = vadd.f32 %v362, %v427
      %v434 = vadd.f32 %v363, %v427
      %v435 = vadd.f32 %v364, %v427
      %v436 = vadd.f32 %v365, %v427
      %v437 = vadd.f32 %v366, %v427
      %v438 = vadd.f32 %v367, %v427
      %v439 = vadd.f32 %v368, %v427
      %v440 = vadd.f32 %v369, %v427
      %v441 = vadd.f32 %v370, %v427
      %v442 = vadd.f32 %v371, %v427
      %v443 = vadd.f32 %v372, %v427
      %v444 = vadd.f32 %v373, %v427
      %v445 = vadd.f32 %v374, %v427
      %v446 = vadd.f32 %v375, %v427
      %v447 = vadd.f32 %v376, %v427
      %v448 = vadd.f32 %v377, %v427
      %v449 = vadd.f32 %v378, %v427
      %v450 = vadd.f32 %v379, %v427
      %v451 = vadd.f32 %v380, %v427
      %v452 = vadd.f32 %v381, %v427
      %v453 = vadd.f32 %v382, %v427
      %v454 = vadd.f32 %v383, %v427
      %v455 = vadd.f32 %v384, %v427
      %v456 = vadd.f32 %v385, %v427
      %v457 = vadd.f32 %v386, %v427
      %v458 = vadd.f32 %v387, %v427
      %v459 = vadd.f32 %v388, %v427
      %v460 = vadd.f32 %v389, %v427
      %v461 = vadd.f32 %v390, %v427
      %v462 = vadd.f32 %v391, %v427
      %v463 = vadd.f32 %v392, %v427
      %v464 = vadd.f32 %v393, %v427
      %v465 = vadd.f32 %v394, %v427
      %v466 = vadd.f32 %v395, %v427
      %v467 = vadd.f32 %v396, %v427
      %v468 = vadd.f32 %v397, %v427
      %v469 = vadd.f32 %v398, %v427
      %v470 = vadd.f32 %v399, %v427
      %v471 = vadd.f32 %v400, %v427
      %v472 = vadd.f32 %v401, %v427
      %v473 = vadd.f32 %v402, %v427
      %v474 = vadd.f32 %v403, %v427
      %v475 = vadd.f32 %v404, %v427
      %v476 = vadd.f32 %v405, %v427
      %v477 = vadd.f32 %v406, %v427
      %v478 = vadd.f32 %v407, %v427
      %v479 = vadd.f32 %v408, %v427
      %v480 = vadd.f32 %v409, %v427
      %v481 = vadd.f32 %v410, %v427
      %v482 = vadd.f32 %v411, %v427
      %v483 = vadd.f32 %v412, %v427
      %v484 = vadd.f32 %v413, %v427
      %v485 = vadd.f32 %v414, %v427
      %v486 = vadd.f32 %v415, %v427
      %v487 = vadd.f32 %v416, %v427
      %v488 = vadd.f32 %v417, %v427
      %v489 = vadd.f32 %v418, %v427
      %v490 = vadd.f32 %v419, %v427
      %v491 = vadd.f32 %v420, %v427
      %v492 = vadd.f32 %v421, %v427
      %v493 = vld [vmem:[%s215] sm:$0xf]
      %v494 = vld [vmem:[%s215 + $0x4] sm:$0xf]
      %v495 = vld [vmem:[%s215 + $0x8] sm:$0xf]
      %v496 = vld [vmem:[%s215 + $0xc] sm:$0xf]
      %v497 = vld [vmem:[%s215 + $0x10] sm:$0xf]
      %v498 = vld [vmem:[%s215 + $0x14] sm:$0xf]
      %v499 = vld [vmem:[%s215 + $0x18] sm:$0xf]
      %v500 = vld [vmem:[%s215 + $0x1c] sm:$0xf]
      %v501 = vld [vmem:[%s215 + $0x20] sm:$0xf]
      %v502 = vld [vmem:[%s215 + $0x24] sm:$0xf]
      %v503 = vld [vmem:[%s215 + $0x28] sm:$0xf]
      %v504 = vld [vmem:[%s215 + $0x2c] sm:$0xf]
      %v505 = vld [vmem:[%s215 + $0x30] sm:$0xf]
      %v506 = vld [vmem:[%s215 + $0x34] sm:$0xf]
      %v507 = vld [vmem:[%s215 + $0x38] sm:$0xf]
      %v508 = vld [vmem:[%s215 + $0x3c] sm:$0xf]
      %v509 = vld [vmem:[%s215 + $0x40] sm:$0xf]
      %v510 = vld [vmem:[%s215 + $0x44] sm:$0xf]
      %v511 = vld [vmem:[%s215 + $0x48] sm:$0xf]
      %v512 = vld [vmem:[%s215 + $0x4c] sm:$0xf]
      %v513 = vld [vmem:[%s215 + $0x50] sm:$0xf]
      %v514 = vld [vmem:[%s215 + $0x54] sm:$0xf]
      %v515 = vld [vmem:[%s215 + $0x58] sm:$0xf]
      %v516 = vld [vmem:[%s215 + $0x5c] sm:$0xf]
      %v517 = vld [vmem:[%s215 + $0x60] sm:$0xf]
      %v518 = vld [vmem:[%s215 + $0x64] sm:$0xf]
      %v519 = vld [vmem:[%s215 + $0x68] sm:$0xf]
      %v520 = vld [vmem:[%s215 + $0x6c] sm:$0xf]
      %v521 = vld [vmem:[%s215 + $0x70] sm:$0xf]
      %v522 = vld [vmem:[%s215 + $0x74] sm:$0xf]
      %v523 = vld [vmem:[%s215 + $0x78] sm:$0xf]
      %v524 = vld [vmem:[%s215 + $0x7c] sm:$0xf]
      %v525 = vld [vmem:[%s215 + $0x80] sm:$0xf]
      %v526 = vld [vmem:[%s215 + $0x84] sm:$0xf]
      %v527 = vld [vmem:[%s215 + $0x88] sm:$0xf]
      %v528 = vld [vmem:[%s215 + $0x8c] sm:$0xf]
      %v529 = vld [vmem:[%s215 + $0x90] sm:$0xf]
      %v530 = vld [vmem:[%s215 + $0x94] sm:$0xf]
      %v531 = vld [vmem:[%s215 + $0x98] sm:$0xf]
      %v532 = vld [vmem:[%s215 + $0x9c] sm:$0xf]
      %v533 = vld [vmem:[%s215 + $0xa0] sm:$0xf]
      %v534 = vld [vmem:[%s215 + $0xa4] sm:$0xf]
      %v535 = vld [vmem:[%s215 + $0xa8] sm:$0xf]
      %v536 = vld [vmem:[%s215 + $0xac] sm:$0xf]
      %v537 = vld [vmem:[%s215 + $0xb0] sm:$0xf]
      %v538 = vld [vmem:[%s215 + $0xb4] sm:$0xf]
      %v539 = vld [vmem:[%s215 + $0xb8] sm:$0xf]
      %v540 = vld [vmem:[%s215 + $0xbc] sm:$0xf]
      %v541 = vld [vmem:[%s215 + $0xc0] sm:$0xf]
      %v542 = vld [vmem:[%s215 + $0xc4] sm:$0xf]
      %v543 = vld [vmem:[%s215 + $0xc8] sm:$0xf]
      %v544 = vld [vmem:[%s215 + $0xcc] sm:$0xf]
      %v545 = vld [vmem:[%s215 + $0xd0] sm:$0xf]
      %v546 = vld [vmem:[%s215 + $0xd4] sm:$0xf]
      %v547 = vld [vmem:[%s215 + $0xd8] sm:$0xf]
      %v548 = vld [vmem:[%s215 + $0xdc] sm:$0xf]
      %v549 = vld [vmem:[%s215 + $0xe0] sm:$0xf]
      %v550 = vld [vmem:[%s215 + $0xe4] sm:$0xf]
      %v551 = vld [vmem:[%s215 + $0xe8] sm:$0xf]
      %v552 = vld [vmem:[%s215 + $0xec] sm:$0xf]
      %v553 = vld [vmem:[%s215 + $0xf0] sm:$0xf]
      %v554 = vld [vmem:[%s215 + $0xf4] sm:$0xf]
      %v555 = vld [vmem:[%s215 + $0xf8] sm:$0xf]
      %v556 = vld [vmem:[%s215 + $0xfc] sm:$0xf]
      %v557 = vunpack.c.l.bf16 %v493
      %v558 = vunpack.c.l.bf16 %v494
      %v559 = vunpack.c.l.bf16 %v495
      %v560 = vunpack.c.l.bf16 %v496
      %v561 = vunpack.c.l.bf16 %v497
      %v562 = vunpack.c.l.bf16 %v498
      %v563 = vunpack.c.l.bf16 %v499
      %v564 = vunpack.c.l.bf16 %v500
      %v565 = vunpack.c.l.bf16 %v501
      %v566 = vunpack.c.l.bf16 %v502
      %v567 = vunpack.c.l.bf16 %v503
      %v568 = vunpack.c.l.bf16 %v504
      %v569 = vunpack.c.l.bf16 %v505
      %v570 = vunpack.c.l.bf16 %v506
      %v571 = vunpack.c.l.bf16 %v507
      %v572 = vunpack.c.l.bf16 %v508
      %v573 = vunpack.c.l.bf16 %v509
      %v574 = vunpack.c.l.bf16 %v510
      %v575 = vunpack.c.l.bf16 %v511
      %v576 = vunpack.c.l.bf16 %v512
      %v577 = vunpack.c.l.bf16 %v513
      %v578 = vunpack.c.l.bf16 %v514
      %v579 = vunpack.c.l.bf16 %v515
      %v580 = vunpack.c.l.bf16 %v516
      %v581 = vunpack.c.l.bf16 %v517
      %v582 = vunpack.c.l.bf16 %v518
      %v583 = vunpack.c.l.bf16 %v519
      %v584 = vunpack.c.l.bf16 %v520
      %v585 = vunpack.c.l.bf16 %v521
      %v586 = vunpack.c.l.bf16 %v522
      %v587 = vunpack.c.l.bf16 %v523
      %v588 = vunpack.c.l.bf16 %v524
      %v589 = vunpack.c.l.bf16 %v525
      %v590 = vunpack.c.l.bf16 %v526
      %v591 = vunpack.c.l.bf16 %v527
      %v592 = vunpack.c.l.bf16 %v528
      %v593 = vunpack.c.l.bf16 %v529
      %v594 = vunpack.c.l.bf16 %v530
      %v595 = vunpack.c.l.bf16 %v531
      %v596 = vunpack.c.l.bf16 %v532
      %v597 = vunpack.c.l.bf16 %v533
      %v598 = vunpack.c.l.bf16 %v534
      %v599 = vunpack.c.l.bf16 %v535
      %v600 = vunpack.c.l.bf16 %v536
      %v601 = vunpack.c.l.bf16 %v537
      %v602 = vunpack.c.l.bf16 %v538
      %v603 = vunpack.c.l.bf16 %v539
      %v604 = vunpack.c.l.bf16 %v540
      %v605 = vunpack.c.l.bf16 %v541
      %v606 = vunpack.c.l.bf16 %v542
      %v607 = vunpack.c.l.bf16 %v543
      %v608 = vunpack.c.l.bf16 %v544
      %v609 = vunpack.c.l.bf16 %v545
      %v610 = vunpack.c.l.bf16 %v546
      %v611 = vunpack.c.l.bf16 %v547
      %v612 = vunpack.c.l.bf16 %v548
      %v613 = vunpack.c.l.bf16 %v549
      %v614 = vunpack.c.l.bf16 %v550
      %v615 = vunpack.c.l.bf16 %v551
      %v616 = vunpack.c.l.bf16 %v552
      %v617 = vunpack.c.l.bf16 %v553
      %v618 = vunpack.c.l.bf16 %v554
      %v619 = vunpack.c.l.bf16 %v555
      %v620 = vunpack.c.l.bf16 %v556
      %v621 = vadd.f32 %v429, %v557
      %v622 = vadd.f32 %v430, %v558
      %v623 = vadd.f32 %v431, %v559
      %v624 = vadd.f32 %v432, %v560
      %v625 = vadd.f32 %v433, %v561
      %v626 = vadd.f32 %v434, %v562
      %v627 = vadd.f32 %v435, %v563
      %v628 = vadd.f32 %v436, %v564
      %v629 = vadd.f32 %v437, %v565
      %v630 = vadd.f32 %v438, %v566
      %v631 = vadd.f32 %v439, %v567
      %v632 = vadd.f32 %v440, %v568
      %v633 = vadd.f32 %v441, %v569
      %v634 = vadd.f32 %v442, %v570
      %v635 = vadd.f32 %v443, %v571
      %v636 = vadd.f32 %v444, %v572
      %v637 = vadd.f32 %v445, %v573
      %v638 = vadd.f32 %v446, %v574
      %v639 = vadd.f32 %v447, %v575
      %v640 = vadd.f32 %v448, %v576
      %v641 = vadd.f32 %v449, %v577
      %v642 = vadd.f32 %v450, %v578
      %v643 = vadd.f32 %v451, %v579
      %v644 = vadd.f32 %v452, %v580
      %v645 = vadd.f32 %v453, %v581
      %v646 = vadd.f32 %v454, %v582
      %v647 = vadd.f32 %v455, %v583
      %v648 = vadd.f32 %v456, %v584
      %v649 = vadd.f32 %v457, %v585
      %v650 = vadd.f32 %v458, %v586
      %v651 = vadd.f32 %v459, %v587
      %v652 = vadd.f32 %v460, %v588
      %v653 = vadd.f32 %v461, %v589
      %v654 = vadd.f32 %v462, %v590
      %v655 = vadd.f32 %v463, %v591
      %v656 = vadd.f32 %v464, %v592
      %v657 = vadd.f32 %v465, %v593
      %v658 = vadd.f32 %v466, %v594
      %v659 = vadd.f32 %v467, %v595
      %v660 = vadd.f32 %v468, %v596
      %v661 = vadd.f32 %v469, %v597
      %v662 = vadd.f32 %v470, %v598
      %v663 = vadd.f32 %v471, %v599
      %v664 = vadd.f32 %v472, %v600
      %v665 = vadd.f32 %v473, %v601
      %v666 = vadd.f32 %v474, %v602
      %v667 = vadd.f32 %v475, %v603
      %v668 = vadd.f32 %v476, %v604
      %v669 = vadd.f32 %v477, %v605
      %v670 = vadd.f32 %v478, %v606
      %v671 = vadd.f32 %v479, %v607
      %v672 = vadd.f32 %v480, %v608
      %v673 = vadd.f32 %v481, %v609
      %v674 = vadd.f32 %v482, %v610
      %v675 = vadd.f32 %v483, %v611
      %v676 = vadd.f32 %v484, %v612
      %v677 = vadd.f32 %v485, %v613
      %v678 = vadd.f32 %v486, %v614
      %v679 = vadd.f32 %v487, %v615
      %v680 = vadd.f32 %v488, %v616
      %v681 = vadd.f32 %v489, %v617
      %v682 = vadd.f32 %v490, %v618
      %v683 = vadd.f32 %v491, %v619
      %v684 = vadd.f32 %v492, %v620
      %v685 = vmax.f32 %v621, 0.0
      %v686 = vmax.f32 %v622, 0.0
      %v687 = vmax.f32 %v623, 0.0
      %v688 = vmax.f32 %v624, 0.0
      %v689 = vmax.f32 %v625, 0.0
      %v690 = vmax.f32 %v626, 0.0
      %v691 = vmax.f32 %v627, 0.0
      %v692 = vmax.f32 %v628, 0.0
      %v693 = vmax.f32 %v629, 0.0
      %v694 = vmax.f32 %v630, 0.0
      %v695 = vmax.f32 %v631, 0.0
      %v696 = vmax.f32 %v632, 0.0
      %v697 = vmax.f32 %v633, 0.0
      %v698 = vmax.f32 %v634, 0.0
      %v699 = vmax.f32 %v635, 0.0
      %v700 = vmax.f32 %v636, 0.0
      %v701 = vmax.f32 %v637, 0.0
      %v702 = vmax.f32 %v638, 0.0
      %v703 = vmax.f32 %v639, 0.0
      %v704 = vmax.f32 %v640, 0.0
      %v705 = vmax.f32 %v641, 0.0
      %v706 = vmax.f32 %v642, 0.0
      %v707 = vmax.f32 %v643, 0.0
      %v708 = vmax.f32 %v644, 0.0
      %v709 = vmax.f32 %v645, 0.0
      %v710 = vmax.f32 %v646, 0.0
      %v711 = vmax.f32 %v647, 0.0
      %v712 = vmax.f32 %v648, 0.0
      %v713 = vmax.f32 %v649, 0.0
      %v714 = vmax.f32 %v650, 0.0
      %v715 = vmax.f32 %v651, 0.0
      %v716 = vmax.f32 %v652, 0.0
      %v717 = vmax.f32 %v653, 0.0
      %v718 = vmax.f32 %v654, 0.0
      %v719 = vmax.f32 %v655, 0.0
      %v720 = vmax.f32 %v656, 0.0
      %v721 = vmax.f32 %v657, 0.0
      %v722 = vmax.f32 %v658, 0.0
      %v723 = vmax.f32 %v659, 0.0
      %v724 = vmax.f32 %v660, 0.0
      %v725 = vmax.f32 %v661, 0.0
      %v726 = vmax.f32 %v662, 0.0
      %v727 = vmax.f32 %v663, 0.0
      %v728 = vmax.f32 %v664, 0.0
      %v729 = vmax.f32 %v665, 0.0
      %v730 = vmax.f32 %v666, 0.0
      %v731 = vmax.f32 %v667, 0.0
      %v732 = vmax.f32 %v668, 0.0
      %v733 = vmax.f32 %v669, 0.0
      %v734 = vmax.f32 %v670, 0.0
      %v735 = vmax.f32 %v671, 0.0
      %v736 = vmax.f32 %v672, 0.0
      %v737 = vmax.f32 %v673, 0.0
      %v738 = vmax.f32 %v674, 0.0
      %v739 = vmax.f32 %v675, 0.0
      %v740 = vmax.f32 %v676, 0.0
      %v741 = vmax.f32 %v677, 0.0
      %v742 = vmax.f32 %v678, 0.0
      %v743 = vmax.f32 %v679, 0.0
      %v744 = vmax.f32 %v680, 0.0
      %v745 = vmax.f32 %v681, 0.0
      %v746 = vmax.f32 %v682, 0.0
      %v747 = vmax.f32 %v683, 0.0
      %v748 = vmax.f32 %v684, 0.0
      %v749 = vpack.c.bf16 %v686, %v685
      %v750 = vpack.c.bf16 %v688, %v687
      %v751 = vpack.c.bf16 %v690, %v689
      %v752 = vpack.c.bf16 %v692, %v691
      %v753 = vpack.c.bf16 %v694, %v693
      %v754 = vpack.c.bf16 %v696, %v695
      %v755 = vpack.c.bf16 %v698, %v697
      %v756 = vpack.c.bf16 %v700, %v699
      %v757 = vpack.c.bf16 %v702, %v701
      %v758 = vpack.c.bf16 %v704, %v703
      %v759 = vpack.c.bf16 %v706, %v705
      %v760 = vpack.c.bf16 %v708, %v707
      %v761 = vpack.c.bf16 %v710, %v709
      %v762 = vpack.c.bf16 %v712, %v711
      %v763 = vpack.c.bf16 %v714, %v713
      %v764 = vpack.c.bf16 %v716, %v715
      %v765 = vpack.c.bf16 %v718, %v717
      %v766 = vpack.c.bf16 %v720, %v719
      %v767 = vpack.c.bf16 %v722, %v721
      %v768 = vpack.c.bf16 %v724, %v723
      %v769 = vpack.c.bf16 %v726, %v725
      %v770 = vpack.c.bf16 %v728, %v727
      %v771 = vpack.c.bf16 %v730, %v729
      %v772 = vpack.c.bf16 %v732, %v731
      %v773 = vpack.c.bf16 %v734, %v733
      %v774 = vpack.c.bf16 %v736, %v735
      %v775 = vpack.c.bf16 %v738, %v737
      %v776 = vpack.c.bf16 %v740, %v739
      %v777 = vpack.c.bf16 %v742, %v741
      %v778 = vpack.c.bf16 %v744, %v743
      %v779 = vpack.c.bf16 %v746, %v745
      %v780 = vpack.c.bf16 %v748, %v747
      %v813 = vunpack.c.l.b16 %v749
      %v814 = vunpack.c.h.b16 %v749
      %v815 = vunpack.c.l.b16 %v750
      %v816 = vunpack.c.h.b16 %v750
      %v817 = vunpack.c.l.b16 %v751
      %v818 = vunpack.c.h.b16 %v751
      %v819 = vunpack.c.l.b16 %v752
      %v820 = vunpack.c.h.b16 %v752
      %v821 = vunpack.c.l.b16 %v753
      %v822 = vunpack.c.h.b16 %v753
      %v823 = vunpack.c.l.b16 %v754
      %v824 = vunpack.c.h.b16 %v754
      %v825 = vunpack.c.l.b16 %v755
      %v826 = vunpack.c.h.b16 %v755
      %v827 = vunpack.c.l.b16 %v756
      %v828 = vunpack.c.h.b16 %v756
      %v829 = vunpack.c.l.b16 %v757
      %v830 = vunpack.c.h.b16 %v757
      %v831 = vunpack.c.l.b16 %v758
      %v832 = vunpack.c.h.b16 %v758
      %v833 = vunpack.c.l.b16 %v759
      %v834 = vunpack.c.h.b16 %v759
      %v835 = vunpack.c.l.b16 %v760
      %v836 = vunpack.c.h.b16 %v760
      %v837 = vunpack.c.l.b16 %v761
      %v838 = vunpack.c.h.b16 %v761
      %v839 = vunpack.c.l.b16 %v762
      %v840 = vunpack.c.h.b16 %v762
      %v841 = vunpack.c.l.b16 %v763
      %v842 = vunpack.c.h.b16 %v763
      %v843 = vunpack.c.l.b16 %v764
      %v844 = vunpack.c.h.b16 %v764
      %v845 = vunpack.c.l.b16 %v765
      %v846 = vunpack.c.h.b16 %v765
      %v847 = vunpack.c.l.b16 %v766
      %v848 = vunpack.c.h.b16 %v766
      %v849 = vunpack.c.l.b16 %v767
      %v850 = vunpack.c.h.b16 %v767
      %v851 = vunpack.c.l.b16 %v768
      %v852 = vunpack.c.h.b16 %v768
      %v853 = vunpack.c.l.b16 %v769
      %v854 = vunpack.c.h.b16 %v769
      %v855 = vunpack.c.l.b16 %v770
      %v856 = vunpack.c.h.b16 %v770
      %v857 = vunpack.c.l.b16 %v771
      %v858 = vunpack.c.h.b16 %v771
      %v859 = vunpack.c.l.b16 %v772
      %v860 = vunpack.c.h.b16 %v772
      %v861 = vunpack.c.l.b16 %v773
      %v862 = vunpack.c.h.b16 %v773
      %v863 = vunpack.c.l.b16 %v774
      %v864 = vunpack.c.h.b16 %v774
      %v865 = vunpack.c.l.b16 %v775
      %v866 = vunpack.c.h.b16 %v775
      %v867 = vunpack.c.l.b16 %v776
      %v868 = vunpack.c.h.b16 %v776
      %v869 = vunpack.c.l.b16 %v777
      %v870 = vunpack.c.h.b16 %v777
      %v871 = vunpack.c.l.b16 %v778
      %v872 = vunpack.c.h.b16 %v778
      %v873 = vunpack.c.l.b16 %v779
      %v874 = vunpack.c.h.b16 %v779
      %v875 = vunpack.c.l.b16 %v780
      %v876 = vunpack.c.h.b16 %v780
      %v877 = vpack.c.b16 %v813, %v813
      %v878 = vpack.c.b16 %v814, %v814
      %v879 = vpack.c.b16 %v815, %v815
      %v880 = vpack.c.b16 %v816, %v816
      %v881 = vpack.c.b16 %v817, %v817
      %v882 = vpack.c.b16 %v818, %v818
      %v883 = vpack.c.b16 %v819, %v819
      %v884 = vpack.c.b16 %v820, %v820
      %v885 = vpack.c.b16 %v821, %v821
      %v886 = vpack.c.b16 %v822, %v822
      %v887 = vpack.c.b16 %v823, %v823
      %v888 = vpack.c.b16 %v824, %v824
      %v889 = vpack.c.b16 %v825, %v825
      %v890 = vpack.c.b16 %v826, %v826
      %v891 = vpack.c.b16 %v827, %v827
      %v892 = vpack.c.b16 %v828, %v828
      %v893 = vpack.c.b16 %v829, %v829
      %v894 = vpack.c.b16 %v830, %v830
      %v895 = vpack.c.b16 %v831, %v831
      %v896 = vpack.c.b16 %v832, %v832
      %v897 = vpack.c.b16 %v833, %v833
      %v898 = vpack.c.b16 %v834, %v834
      %v899 = vpack.c.b16 %v835, %v835
      %v900 = vpack.c.b16 %v836, %v836
      %v901 = vpack.c.b16 %v837, %v837
      %v902 = vpack.c.b16 %v838, %v838
      %v903 = vpack.c.b16 %v839, %v839
      %v904 = vpack.c.b16 %v840, %v840
      %v905 = vpack.c.b16 %v841, %v841
      %v906 = vpack.c.b16 %v842, %v842
      %v907 = vpack.c.b16 %v843, %v843
      %v908 = vpack.c.b16 %v844, %v844
      %v909 = vpack.c.b16 %v845, %v845
      %v910 = vpack.c.b16 %v846, %v846
      %v911 = vpack.c.b16 %v847, %v847
      %v912 = vpack.c.b16 %v848, %v848
      %v913 = vpack.c.b16 %v849, %v849
      %v914 = vpack.c.b16 %v850, %v850
      %v915 = vpack.c.b16 %v851, %v851
      %v916 = vpack.c.b16 %v852, %v852
      %v917 = vpack.c.b16 %v853, %v853
      %v918 = vpack.c.b16 %v854, %v854
      %v919 = vpack.c.b16 %v855, %v855
      %v920 = vpack.c.b16 %v856, %v856
      %v921 = vpack.c.b16 %v857, %v857
      %v922 = vpack.c.b16 %v858, %v858
      %v923 = vpack.c.b16 %v859, %v859
      %v924 = vpack.c.b16 %v860, %v860
      %v925 = vpack.c.b16 %v861, %v861
      %v926 = vpack.c.b16 %v862, %v862
      %v927 = vpack.c.b16 %v863, %v863
      %v928 = vpack.c.b16 %v864, %v864
      %v929 = vpack.c.b16 %v865, %v865
      %v930 = vpack.c.b16 %v866, %v866
      %v931 = vpack.c.b16 %v867, %v867
      %v932 = vpack.c.b16 %v868, %v868
      %v933 = vpack.c.b16 %v869, %v869
      %v934 = vpack.c.b16 %v870, %v870
      %v935 = vpack.c.b16 %v871, %v871
      %v936 = vpack.c.b16 %v872, %v872
      %v937 = vpack.c.b16 %v873, %v873
      %v938 = vpack.c.b16 %v874, %v874
      %v939 = vpack.c.b16 %v875, %v875
      %v940 = vpack.c.b16 %v876, %v876
      %1005 = vst [vmem:[%s221] sm:$0xf] %v877
      %1006 = vst [vmem:[%s221 + $0x4] sm:$0xf] %v878
      %1007 = vst [vmem:[%s221 + $0x8] sm:$0xf] %v879
      %1008 = vst [vmem:[%s221 + $0xc] sm:$0xf] %v880
      %1009 = vst [vmem:[%s221 + $0x10] sm:$0xf] %v881
      %1010 = vst [vmem:[%s221 + $0x14] sm:$0xf] %v882
      %1011 = vst [vmem:[%s221 + $0x18] sm:$0xf] %v883
      %1012 = vst [vmem:[%s221 + $0x1c] sm:$0xf] %v884
      %1013 = vst [vmem:[%s221 + $0x20] sm:$0xf] %v885
      %1014 = vst [vmem:[%s221 + $0x24] sm:$0xf] %v886
      %1015 = vst [vmem:[%s221 + $0x28] sm:$0xf] %v887
      %1016 = vst [vmem:[%s221 + $0x2c] sm:$0xf] %v888
      %1017 = vst [vmem:[%s221 + $0x30] sm:$0xf] %v889
      %1018 = vst [vmem:[%s221 + $0x34] sm:$0xf] %v890
      %1019 = vst [vmem:[%s221 + $0x38] sm:$0xf] %v891
      %1020 = vst [vmem:[%s221 + $0x3c] sm:$0xf] %v892
      %1021 = vst [vmem:[%s221 + $0x40] sm:$0xf] %v893
      %1022 = vst [vmem:[%s221 + $0x44] sm:$0xf] %v894
      %1023 = vst [vmem:[%s221 + $0x48] sm:$0xf] %v895
      %1024 = vst [vmem:[%s221 + $0x4c] sm:$0xf] %v896
      %1025 = vst [vmem:[%s221 + $0x50] sm:$0xf] %v897
      %1026 = vst [vmem:[%s221 + $0x54] sm:$0xf] %v898
      %1027 = vst [vmem:[%s221 + $0x58] sm:$0xf] %v899
      %1028 = vst [vmem:[%s221 + $0x5c] sm:$0xf] %v900
      %1029 = vst [vmem:[%s221 + $0x60] sm:$0xf] %v901
      %1030 = vst [vmem:[%s221 + $0x64] sm:$0xf] %v902
      %1031 = vst [vmem:[%s221 + $0x68] sm:$0xf] %v903
      %1032 = vst [vmem:[%s221 + $0x6c] sm:$0xf] %v904
      %1033 = vst [vmem:[%s221 + $0x70] sm:$0xf] %v905
      %1034 = vst [vmem:[%s221 + $0x74] sm:$0xf] %v906
      %1035 = vst [vmem:[%s221 + $0x78] sm:$0xf] %v907
      %1036 = vst [vmem:[%s221 + $0x7c] sm:$0xf] %v908
      %1037 = vst [vmem:[%s221 + $0x80] sm:$0xf] %v909
      %1038 = vst [vmem:[%s221 + $0x84] sm:$0xf] %v910
      %1039 = vst [vmem:[%s221 + $0x88] sm:$0xf] %v911
      %1040 = vst [vmem:[%s221 + $0x8c] sm:$0xf] %v912
      %1041 = vst [vmem:[%s221 + $0x90] sm:$0xf] %v913
      %1042 = vst [vmem:[%s221 + $0x94] sm:$0xf] %v914
      %1043 = vst [vmem:[%s221 + $0x98] sm:$0xf] %v915
      %1044 = vst [vmem:[%s221 + $0x9c] sm:$0xf] %v916
      %1045 = vst [vmem:[%s221 + $0xa0] sm:$0xf] %v917
      %1046 = vst [vmem:[%s221 + $0xa4] sm:$0xf] %v918
      %1047 = vst [vmem:[%s221 + $0xa8] sm:$0xf] %v919
      %1048 = vst [vmem:[%s221 + $0xac] sm:$0xf] %v920
      %1049 = vst [vmem:[%s221 + $0xb0] sm:$0xf] %v921
      %1050 = vst [vmem:[%s221 + $0xb4] sm:$0xf] %v922
      %1051 = vst [vmem:[%s221 + $0xb8] sm:$0xf] %v923
      %1052 = vst [vmem:[%s221 + $0xbc] sm:$0xf] %v924
      %1053 = vst [vmem:[%s221 + $0xc0] sm:$0xf] %v925
      %1054 = vst [vmem:[%s221 + $0xc4] sm:$0xf] %v926
      %1055 = vst [vmem:[%s221 + $0xc8] sm:$0xf] %v927
      %1056 = vst [vmem:[%s221 + $0xcc] sm:$0xf] %v928
      %1057 = vst [vmem:[%s221 + $0xd0] sm:$0xf] %v929
      %1058 = vst [vmem:[%s221 + $0xd4] sm:$0xf] %v930
      %1059 = vst [vmem:[%s221 + $0xd8] sm:$0xf] %v931
      %1060 = vst [vmem:[%s221 + $0xdc] sm:$0xf] %v932
      %1061 = vst [vmem:[%s221 + $0xe0] sm:$0xf] %v933
      %1062 = vst [vmem:[%s221 + $0xe4] sm:$0xf] %v934
      %1063 = vst [vmem:[%s221 + $0xe8] sm:$0xf] %v935
      %1064 = vst [vmem:[%s221 + $0xec] sm:$0xf] %v936
      %1065 = vst [vmem:[%s221 + $0xf0] sm:$0xf] %v937
      %1066 = vst [vmem:[%s221 + $0xf4] sm:$0xf] %v938
      %1067 = vst [vmem:[%s221 + $0xf8] sm:$0xf] %v939
      %1068 = vst [vmem:[%s221 + $0xfc] sm:$0xf] %v940
      %s1069 = smul.u32 64, %s15
      %p1070 = scmp.lt.s32.totalorder %s1069, 255
      %s1071 = scalar_select %p1070, %s1069, 255
      %s1072 = smul.addr %s1071, 4
      %s1073 = scalar_lea.vmem %s4, %s1072
      // Predicated region
      $region37: #{_lambda_.20} parent=35 // pred_check
        %p1074 = pneg %p127
      $region38: #{_lambda_.20} parent=35 // pred_check_branch
        %1076 = sbr.rel (%p1074) target = $region40
      $region39: #{_lambda_.20} parent=35 // pred_region
        %s1077 = smul.u32 64, %s15
      $region40: #{_lambda_.20} parent=35 // pred_fallthru
        _
    $region36: #{_lambda_.20} parent=5 // pred_fallthru
      _
    %p1078 = scmp.le.s32.totalorder 2, %s10
    // Predicated region
    $region41: #{_lambda_.20} parent=5 // pred_check
      %p1079 = pneg %p1078
    $region42: #{_lambda_.20} parent=5 // pred_check_branch
      %1081 = sbr.rel (%p1079) target = $region44
    $region43: #{_lambda_.20} parent=5 // pred_region
      %s1082 = ssub.s32 %s10, 2
      // Predicated region
      $region45: #{_lambda_.20} parent=43 // pred_check
        %p1083 = pneg %p133
      $region46: #{_lambda_.20} parent=43 // pred_check_branch
        %1085 = sbr.rel (%p1083) target = $region48
      $region47: #{_lambda_.20} parent=43 // pred_region
        %s1086 = smul.u32 64, %s16
        %p1087 = scmp.lt.s32.totalorder %s1086, 255
        %s1088 = scalar_select %p1087, %s1086, 255
        %s1089 = smul.addr %s1088, 4
        %s1090 = scalar_lea.vmem %s4, %s1089
      $region48: #{_lambda_.20} parent=43 // pred_fallthru
        _
    $region44: #{_lambda_.20} parent=5 // pred_fallthru
      _
  $region6: #{_lambda_.20} parent=0 // loop_footer
    %s14 = sadd.s32 1, %s10
  $region7: #{_lambda_.20} parent=0 // loop_footer_branch
    %9 = sbr.rel target = $region3
  $region8: #{_lambda_.20} parent=0 // loop_exit
    _

// kernel: _lambda_.22
$region0: #{_lambda_.22}
  #allocation0 [shape = 'u32[]', space=smem, size = 0x4, offset = 0x4, fixed_abs, tag = 'smem constant byte address 0x4 - core index']
  #allocation1 [shape = 'u32[144,128]{1,0:T(1,128)}', space=vmem, size = 0x12000, scoped, tag = 'internal scratch']
  %s0 = inlined_call_operand.vmem [shape: bf16[512,128], index: 0, kind: input, shape index: {}]
  %s1 = inlined_call_operand.vmem [shape: bf16[128,128], index: 1, kind: input, shape index: {}]
  %s2 = inlined_call_operand.vmem [shape: f32[1,128], index: 2, kind: input, shape index: {}]
  %s3 = inlined_call_operand.vmem [shape: f32[1,128], index: 3, kind: input, shape index: {}]
  %s4 = inlined_call_operand.vmem [shape: bf16[512,128], index: 4, kind: output, shape index: {}]
  %s5 = sld [smem:[#allocation0]]
  $region26: #{_lambda_.22} parent=0
    _
  %s7 = ssub.s32 1, %s5
  %s8 = scalar_select 0, %s7, %s5
  // Predicated region
  $region2: #{_lambda_.22} parent=0 // pred_check
    _
  $region3: #{_lambda_.22} parent=0 // pred_check_branch
    %10 = sbr.rel (0) target = $region5
  $region4: #{_lambda_.22} parent=0 // pred_region
    _
  $region5: #{_lambda_.22} parent=0 // pred_fallthru
    _
  // Predicated region
  $region6: #{_lambda_.22} parent=0 // pred_check
    _
  $region7: #{_lambda_.22} parent=0 // pred_check_branch
    %12 = sbr.rel (0) target = $region9
  $region8: #{_lambda_.22} parent=0 // pred_region
    _
  $region9: #{_lambda_.22} parent=0 // pred_fallthru
    _
  // Predicated region
  $region10: #{_lambda_.22} parent=0 // pred_check
    _
  $region11: #{_lambda_.22} parent=0 // pred_check_branch
    %14 = sbr.rel (0) target = $region13
  $region12: #{_lambda_.22} parent=0 // pred_region
    _
  $region13: #{_lambda_.22} parent=0 // pred_fallthru
    _
  // Predicated region
  $region14: #{_lambda_.22} parent=0 // pred_check
    _
  $region15: #{_lambda_.22} parent=0 // pred_check_branch
    %16 = sbr.rel (0) target = $region17
  $region16: #{_lambda_.22} parent=0 // pred_region
    _
  $region17: #{_lambda_.22} parent=0 // pred_fallthru
    _
  %v18 = vld [vmem:[%s0] sm:$0xf]
  %v19 = vld [vmem:[%s0 + $0x4] sm:$0xf]
  %v20 = vld [vmem:[%s0 + $0x8] sm:$0xf]
  %v21 = vld [vmem:[%s0 + $0xc] sm:$0xf]
  %v22 = vld [vmem:[%s0 + $0x10] sm:$0xf]
  %v23 = vld [vmem:[%s0 + $0x14] sm:$0xf]
  %v24 = vld [vmem:[%s0 + $0x18] sm:$0xf]
  %v25 = vld [vmem:[%s0 + $0x1c] sm:$0xf]
  %v26 = vld [vmem:[%s0 + $0x20] sm:$0xf]
  %v27 = vld [vmem:[%s0 + $0x24] sm:$0xf]
  %v28 = vld [vmem:[%s0 + $0x28] sm:$0xf]
  %v29 = vld [vmem:[%s0 + $0x2c] sm:$0xf]
  %v30 = vld [vmem:[%s0 + $0x30] sm:$0xf]
  %v31 = vld [vmem:[%s0 + $0x34] sm:$0xf]
  %v32 = vld [vmem:[%s0 + $0x38] sm:$0xf]
  %v33 = vld [vmem:[%s0 + $0x3c] sm:$0xf]
  %v34 = vld [vmem:[%s0 + $0x40] sm:$0xf]
  %v35 = vld [vmem:[%s0 + $0x44] sm:$0xf]
  %v36 = vld [vmem:[%s0 + $0x48] sm:$0xf]
  %v37 = vld [vmem:[%s0 + $0x4c] sm:$0xf]
  %v38 = vld [vmem:[%s0 + $0x50] sm:$0xf]
  %v39 = vld [vmem:[%s0 + $0x54] sm:$0xf]
  %v40 = vld [vmem:[%s0 + $0x58] sm:$0xf]
  %v41 = vld [vmem:[%s0 + $0x5c] sm:$0xf]
  %v42 = vld [vmem:[%s0 + $0x60] sm:$0xf]
  %v43 = vld [vmem:[%s0 + $0x64] sm:$0xf]
  %v44 = vld [vmem:[%s0 + $0x68] sm:$0xf]
  %v45 = vld [vmem:[%s0 + $0x6c] sm:$0xf]
  %v46 = vld [vmem:[%s0 + $0x70] sm:$0xf]
  %v47 = vld [vmem:[%s0 + $0x74] sm:$0xf]
  %v48 = vld [vmem:[%s0 + $0x78] sm:$0xf]
  %v49 = vld [vmem:[%s0 + $0x7c] sm:$0xf]
  %v50 = vld [vmem:[%s0 + $0x80] sm:$0xf]
  %v51 = vld [vmem:[%s0 + $0x84] sm:$0xf]
  %v52 = vld [vmem:[%s0 + $0x88] sm:$0xf]
  %v53 = vld [vmem:[%s0 + $0x8c] sm:$0xf]
  %v54 = vld [vmem:[%s0 + $0x90] sm:$0xf]
  %v55 = vld [vmem:[%s0 + $0x94] sm:$0xf]
  %v56 = vld [vmem:[%s0 + $0x98] sm:$0xf]
  %v57 = vld [vmem:[%s0 + $0x9c] sm:$0xf]
  %v58 = vld [vmem:[%s0 + $0xa0] sm:$0xf]
  %v59 = vld [vmem:[%s0 + $0xa4] sm:$0xf]
  %v60 = vld [vmem:[%s0 + $0xa8] sm:$0xf]
  %v61 = vld [vmem:[%s0 + $0xac] sm:$0xf]
  %v62 = vld [vmem:[%s0 + $0xb0] sm:$0xf]
  %v63 = vld [vmem:[%s0 + $0xb4] sm:$0xf]
  %v64 = vld [vmem:[%s0 + $0xb8] sm:$0xf]
  %v65 = vld [vmem:[%s0 + $0xbc] sm:$0xf]
  %v66 = vld [vmem:[%s0 + $0xc0] sm:$0xf]
  %v67 = vld [vmem:[%s0 + $0xc4] sm:$0xf]
  %v68 = vld [vmem:[%s0 + $0xc8] sm:$0xf]
  %v69 = vld [vmem:[%s0 + $0xcc] sm:$0xf]
  %v70 = vld [vmem:[%s0 + $0xd0] sm:$0xf]
  %v71 = vld [vmem:[%s0 + $0xd4] sm:$0xf]
  %v72 = vld [vmem:[%s0 + $0xd8] sm:$0xf]
  %v73 = vld [vmem:[%s0 + $0xdc] sm:$0xf]
  %v74 = vld [vmem:[%s0 + $0xe0] sm:$0xf]
  %v75 = vld [vmem:[%s0 + $0xe4] sm:$0xf]
  %v76 = vld [vmem:[%s0 + $0xe8] sm:$0xf]
  %v77 = vld [vmem:[%s0 + $0xec] sm:$0xf]
  %v78 = vld [vmem:[%s0 + $0xf0] sm:$0xf]
  %v79 = vld [vmem:[%s0 + $0xf4] sm:$0xf]
  %v80 = vld [vmem:[%s0 + $0xf8] sm:$0xf]
  %v81 = vld [vmem:[%s0 + $0xfc] sm:$0xf]
  %v82 = vld [vmem:[%s1] sm:$0xf]
  %v83 = vld [vmem:[%s1 + $0x4] sm:$0xf]
  %v84 = vld [vmem:[%s1 + $0x8] sm:$0xf]
  %v85 = vld [vmem:[%s1 + $0xc] sm:$0xf]
  %v86 = vld [vmem:[%s1 + $0x10] sm:$0xf]
  %v87 = vld [vmem:[%s1 + $0x14] sm:$0xf]
  %v88 = vld [vmem:[%s1 + $0x18] sm:$0xf]
  %v89 = vld [vmem:[%s1 + $0x1c] sm:$0xf]
  %v90 = vld [vmem:[%s1 + $0x20] sm:$0xf]
  %v91 = vld [vmem:[%s1 + $0x24] sm:$0xf]
  %v92 = vld [vmem:[%s1 + $0x28] sm:$0xf]
  %v93 = vld [vmem:[%s1 + $0x2c] sm:$0xf]
  %v94 = vld [vmem:[%s1 + $0x30] sm:$0xf]
  %v95 = vld [vmem:[%s1 + $0x34] sm:$0xf]
  %v96 = vld [vmem:[%s1 + $0x38] sm:$0xf]
  %v97 = vld [vmem:[%s1 + $0x3c] sm:$0xf]
  %v162 = vunpack.c.l.b16 %v18
  %v163 = vunpack.c.l.b16 %v19
  %v164 = vunpack.c.l.b16 %v20
  %v165 = vunpack.c.l.b16 %v21
  %v166 = vunpack.c.l.b16 %v22
  %v167 = vunpack.c.l.b16 %v23
  %v168 = vunpack.c.l.b16 %v24
  %v169 = vunpack.c.l.b16 %v25
  %v170 = vunpack.c.l.b16 %v26
  %v171 = vunpack.c.l.b16 %v27
  %v172 = vunpack.c.l.b16 %v28
  %v173 = vunpack.c.l.b16 %v29
  %v174 = vunpack.c.l.b16 %v30
  %v175 = vunpack.c.l.b16 %v31
  %v176 = vunpack.c.l.b16 %v32
  %v177 = vunpack.c.l.b16 %v33
  %v178 = vunpack.c.l.b16 %v34
  %v179 = vunpack.c.l.b16 %v35
  %v180 = vunpack.c.l.b16 %v36
  %v181 = vunpack.c.l.b16 %v37
  %v182 = vunpack.c.l.b16 %v38
  %v183 = vunpack.c.l.b16 %v39
  %v184 = vunpack.c.l.b16 %v40
  %v185 = vunpack.c.l.b16 %v41
  %v186 = vunpack.c.l.b16 %v42
  %v187 = vunpack.c.l.b16 %v43
  %v188 = vunpack.c.l.b16 %v44
  %v189 = vunpack.c.l.b16 %v45
  %v190 = vunpack.c.l.b16 %v46
  %v191 = vunpack.c.l.b16 %v47
  %v192 = vunpack.c.l.b16 %v48
  %v193 = vunpack.c.l.b16 %v49
  %v194 = vunpack.c.l.b16 %v50
  %v195 = vunpack.c.l.b16 %v51
  %v196 = vunpack.c.l.b16 %v52
  %v197 = vunpack.c.l.b16 %v53
  %v198 = vunpack.c.l.b16 %v54
  %v199 = vunpack.c.l.b16 %v55
  %v200 = vunpack.c.l.b16 %v56
  %v201 = vunpack.c.l.b16 %v57
  %v202 = vunpack.c.l.b16 %v58
  %v203 = vunpack.c.l.b16 %v59
  %v204 = vunpack.c.l.b16 %v60
  %v205 = vunpack.c.l.b16 %v61
  %v206 = vunpack.c.l.b16 %v62
  %v207 = vunpack.c.l.b16 %v63
  %v208 = vunpack.c.l.b16 %v64
  %v209 = vunpack.c.l.b16 %v65
  %v210 = vunpack.c.l.b16 %v66
  %v211 = vunpack.c.l.b16 %v67
  %v212 = vunpack.c.l.b16 %v68
  %v213 = vunpack.c.l.b16 %v69
  %v214 = vunpack.c.l.b16 %v70
  %v215 = vunpack.c.l.b16 %v71
  %v216 = vunpack.c.l.b16 %v72
  %v217 = vunpack.c.l.b16 %v73
  %v218 = vunpack.c.l.b16 %v74
  %v219 = vunpack.c.l.b16 %v75
  %v220 = vunpack.c.l.b16 %v76
  %v221 = vunpack.c.l.b16 %v77
  %v222 = vunpack.c.l.b16 %v78
  %v223 = vunpack.c.l.b16 %v79
  %v224 = vunpack.c.l.b16 %v80
  %v225 = vunpack.c.l.b16 %v81
  %v226 = vpack.c.b16 %v163, %v162
  %v227 = vpack.c.b16 %v165, %v164
  %v228 = vpack.c.b16 %v167, %v166
  %v229 = vpack.c.b16 %v169, %v168
  %v230 = vpack.c.b16 %v171, %v170
  %v231 = vpack.c.b16 %v173, %v172
  %v232 = vpack.c.b16 %v175, %v174
  %v233 = vpack.c.b16 %v177, %v176
  %v234 = vpack.c.b16 %v179, %v178
  %v235 = vpack.c.b16 %v181, %v180
  %v236 = vpack.c.b16 %v183, %v182
  %v237 = vpack.c.b16 %v185, %v184
  %v238 = vpack.c.b16 %v187, %v186
  %v239 = vpack.c.b16 %v189, %v188
  %v240 = vpack.c.b16 %v191, %v190
  %v241 = vpack.c.b16 %v193, %v192
  %v242 = vpack.c.b16 %v195, %v194
  %v243 = vpack.c.b16 %v197, %v196
  %v244 = vpack.c.b16 %v199, %v198
  %v245 = vpack.c.b16 %v201, %v200
  %v246 = vpack.c.b16 %v203, %v202
  %v247 = vpack.c.b16 %v205, %v204
  %v248 = vpack.c.b16 %v207, %v206
  %v249 = vpack.c.b16 %v209, %v208
  %v250 = vpack.c.b16 %v211, %v210
  %v251 = vpack.c.b16 %v213, %v212
  %v252 = vpack.c.b16 %v215, %v214
  %v253 = vpack.c.b16 %v217, %v216
  %v254 = vpack.c.b16 %v219, %v218
  %v255 = vpack.c.b16 %v221, %v220
  %v256 = vpack.c.b16 %v223, %v222
  %v257 = vpack.c.b16 %v225, %v224
  %v306 = vunpack.c.l.b16 %v82
  %v307 = vunpack.c.l.b16 %v83
  %v308 = vunpack.c.l.b16 %v84
  %v309 = vunpack.c.l.b16 %v85
  %v310 = vunpack.c.l.b16 %v86
  %v311 = vunpack.c.l.b16 %v87
  %v312 = vunpack.c.l.b16 %v88
  %v313 = vunpack.c.l.b16 %v89
  %v314 = vunpack.c.l.b16 %v90
  %v315 = vunpack.c.l.b16 %v91
  %v316 = vunpack.c.l.b16 %v92
  %v317 = vunpack.c.l.b16 %v93
  %v318 = vunpack.c.l.b16 %v94
  %v319 = vunpack.c.l.b16 %v95
  %v320 = vunpack.c.l.b16 %v96
  %v321 = vunpack.c.l.b16 %v97
  %v322 = vpack.c.b16 %v307, %v306
  %v323 = vpack.c.b16 %v309, %v308
  %v324 = vpack.c.b16 %v311, %v310
  %v325 = vpack.c.b16 %v313, %v312
  %v326 = vpack.c.b16 %v315, %v314
  %v327 = vpack.c.b16 %v317, %v316
  %v328 = vpack.c.b16 %v319, %v318
  %v329 = vpack.c.b16 %v321, %v320
  %338 = vmatprep.subr.bf16.mxu0 0
  %339 = vmatpush1.bf16.msra.mxu0 %v322
  %340 = vmatprep.subr.bf16.mxu0 0
  %341 = vmatpush1.bf16.msra.mxu0 %v323
  %342 = vmatprep.subr.bf16.mxu0 0
  %343 = vmatpush1.bf16.msra.mxu0 %v324
  %344 = vmatprep.subr.bf16.mxu0 0
  %345 = vmatpush1.bf16.msra.mxu0 %v325
  %346 = vmatprep.subr.bf16.mxu0 0
  %347 = vmatpush1.bf16.msra.mxu0 %v326
  %348 = vmatprep.subr.bf16.mxu0 0
  %349 = vmatpush1.bf16.msra.mxu0 %v327
  %350 = vmatprep.subr.bf16.mxu0 0
  %351 = vmatpush1.bf16.msra.mxu0 %v328
  %352 = vmatprep.subr.bf16.mxu0 0
  %353 = vmatpush1.bf16.msra.mxu0 %v329
  %354 = vmatprep.subr.bf16.mxu0 0
  %355 = vmatpush1.bf16.msra.mxu0 0
  %356 = vmatprep.subr.bf16.mxu0 0
  %357 = vmatpush1.bf16.msra.mxu0 0
  %358 = vmatprep.subr.bf16.mxu0 0
  %359 = vmatpush1.bf16.msra.mxu0 0
  %360 = vmatprep.subr.bf16.mxu0 0
  %361 = vmatpush1.bf16.msra.mxu0 0
  %362 = vmatprep.subr.bf16.mxu0 0
  %363 = vmatpush1.bf16.msra.mxu0 0
  %364 = vmatprep.subr.bf16.mxu0 0
  %365 = vmatpush1.bf16.msra.mxu0 0
  %366 = vmatprep.subr.bf16.mxu0 0
  %367 = vmatpush1.bf16.msra.mxu0 0
  %368 = vmatprep.subr.bf16.mxu0 0
  %369 = vmatpush1.bf16.msra.mxu0 0
  %370 = vmatprep.mubr.bf16.mxu0 0
  %371 = vmatmul.mubr.bf16.gmra.mrb[0].mxu0 %v226
  %v372 = vpop.f32.mrb[0].mxu0
  %v373 = vadd.f32 0.0, %v372
  %v374 = vpop.f32.mrb[0].mxu0
  %v375 = vpop.f32.mrb[0].mxu0
  %v376 = vadd.f32 0.0, %v375
  %v377 = vpop.f32.mrb[0].mxu0
  %378 = vmatprep.mubr.bf16.mxu0 0
  %379 = vmatmul.mubr.bf16.gmra.mrb[0].mxu0 %v227
  %v380 = vpop.f32.mrb[0].mxu0
  %v381 = vadd.f32 0.0, %v380
  %v382 = vpop.f32.mrb[0].mxu0
  %v383 = vpop.f32.mrb[0].mxu0
  %v384 = vadd.f32 0.0, %v383
  %v385 = vpop.f32.mrb[0].mxu0
  %386 = vmatprep.mubr.bf16.mxu0 0
  %387 = vmatmul.mubr.bf16.gmra.mrb[0].mxu0 %v228
  %v388 = vpop.f32.mrb[0].mxu0
  %v389 = vadd.f32 0.0, %v388
  %v390 = vpop.f32.mrb[0].mxu0
  %v391 = vpop.f32.mrb[0].mxu0
  %v392 = vadd.f32 0.0, %v391
  %v393 = vpop.f32.mrb[0].mxu0
  %394 = vmatprep.mubr.bf16.mxu0 0
  %395 = vmatmul.mubr.bf16.gmra.mrb[0].mxu0 %v229
  %v396 = vpop.f32.mrb[0].mxu0
  %v397 = vadd.f32 0.0, %v396
  %v398 = vpop.f32.mrb[0].mxu0
  %v399 = vpop.f32.mrb[0].mxu0
  %v400 = vadd.f32 0.0, %v399
  %v401 = vpop.f32.mrb[0].mxu0
  %402 = vmatprep.mubr.bf16.mxu0 0
  %403 = vmatmul.mubr.bf16.gmra.mrb[0].mxu0 %v230
  %v404 = vpop.f32.mrb[0].mxu0
  %v405 = vadd.f32 0.0, %v404
  %v406 = vpop.f32.mrb[0].mxu0
  %v407 = vpop.f32.mrb[0].mxu0
  %v408 = vadd.f32 0.0, %v407
  %v409 = vpop.f32.mrb[0].mxu0
  %410 = vmatprep.mubr.bf16.mxu0 0
  %411 = vmatmul.mubr.bf16.gmra.mrb[0].mxu0 %v231
  %v412 = vpop.f32.mrb[0].mxu0
  %v413 = vadd.f32 0.0, %v412
  %v414 = vpop.f32.mrb[0].mxu0
  %v415 = vpop.f32.mrb[0].mxu0
  %v416 = vadd.f32 0.0, %v415
  %v417 = vpop.f32.mrb[0].mxu0
  %418 = vmatprep.mubr.bf16.mxu0 0
  %419 = vmatmul.mubr.bf16.gmra.mrb[0].mxu0 %v232
  %v420 = vpop.f32.mrb[0].mxu0
  %v421 = vadd.f32 0.0, %v420
  %v422 = vpop.f32.mrb[0].mxu0
  %v423 = vpop.f32.mrb[0].mxu0
  %v424 = vadd.f32 0.0, %v423
  %v425 = vpop.f32.mrb[0].mxu0
  %426 = vmatprep.mubr.bf16.mxu0 0
  %427 = vmatmul.mubr.bf16.gmra.mrb[0].mxu0 %v233
  %v428 = vpop.f32.mrb[0].mxu0
  %v429 = vadd.f32 0.0, %v428
  %v430 = vpop.f32.mrb[0].mxu0
  %v431 = vpop.f32.mrb[0].mxu0
  %v432 = vadd.f32 0.0, %v431
  %v433 = vpop.f32.mrb[0].mxu0
  %434 = vmatprep.mubr.bf16.mxu0 0
  %435 = vmatmul.mubr.bf16.gmra.mrb[0].mxu0 %v234
  %v436 = vpop.f32.mrb[0].mxu0
  %v437 = vadd.f32 0.0, %v436
  %v438 = vpop.f32.mrb[0].mxu0
  %v439 = vpop.f32.mrb[0].mxu0
  %v440 = vadd.f32 0.0, %v439
  %v441 = vpop.f32.mrb[0].mxu0
  %442 = vmatprep.mubr.bf16.mxu0 0
  %443 = vmatmul.mubr.bf16.gmra.mrb[0].mxu0 %v235
  %v444 = vpop.f32.mrb[0].mxu0
  %v445 = vadd.f32 0.0, %v444
  %v446 = vpop.f32.mrb[0].mxu0
  %v447 = vpop.f32.mrb[0].mxu0
  %v448 = vadd.f32 0.0, %v447
  %v449 = vpop.f32.mrb[0].mxu0
  %450 = vmatprep.mubr.bf16.mxu0 0
  %451 = vmatmul.mubr.bf16.gmra.mrb[0].mxu0 %v236
  %v452 = vpop.f32.mrb[0].mxu0
  %v453 = vadd.f32 0.0, %v452
  %v454 = vpop.f32.mrb[0].mxu0
  %v455 = vpop.f32.mrb[0].mxu0
  %v456 = vadd.f32 0.0, %v455
  %v457 = vpop.f32.mrb[0].mxu0
  %458 = vmatprep.mubr.bf16.mxu0 0
  %459 = vmatmul.mubr.bf16.gmra.mrb[0].mxu0 %v237
  %v460 = vpop.f32.mrb[0].mxu0
  %v461 = vadd.f32 0.0, %v460
  %v462 = vpop.f32.mrb[0].mxu0
  %v463 = vpop.f32.mrb[0].mxu0
  %v464 = vadd.f32 0.0, %v463
  %v465 = vpop.f32.mrb[0].mxu0
  %466 = vmatprep.mubr.bf16.mxu0 0
  %467 = vmatmul.mubr.bf16.gmra.mrb[0].mxu0 %v238
  %v468 = vpop.f32.mrb[0].mxu0
  %v469 = vadd.f32 0.0, %v468
  %v470 = vpop.f32.mrb[0].mxu0
  %v471 = vpop.f32.mrb[0].mxu0
  %v472 = vadd.f32 0.0, %v471
  %v473 = vpop.f32.mrb[0].mxu0
  %474 = vmatprep.mubr.bf16.mxu0 0
  %475 = vmatmul.mubr.bf16.gmra.mrb[0].mxu0 %v239
  %v476 = vpop.f32.mrb[0].mxu0
  %v477 = vadd.f32 0.0, %v476
  %v478 = vpop.f32.mrb[0].mxu0
  %v479 = vpop.f32.mrb[0].mxu0
  %v480 = vadd.f32 0.0, %v479
  %v481 = vpop.f32.mrb[0].mxu0
  %482 = vmatprep.mubr.bf16.mxu0 0
  %483 = vmatmul.mubr.bf16.gmra.mrb[0].mxu0 %v240
  %v484 = vpop.f32.mrb[0].mxu0
  %v485 = vadd.f32 0.0, %v484
  %v486 = vpop.f32.mrb[0].mxu0
  %v487 = vpop.f32.mrb[0].mxu0
  %v488 = vadd.f32 0.0, %v487
  %v489 = vpop.f32.mrb[0].mxu0
  %490 = vmatprep.mubr.bf16.mxu0 0
  %491 = vmatmul.mubr.bf16.gmra.mrb[0].mxu0 %v241
  %v492 = vpop.f32.mrb[0].mxu0
  %v493 = vadd.f32 0.0, %v492
  %v494 = vpop.f32.mrb[0].mxu0
  %v495 = vpop.f32.mrb[0].mxu0
  %v496 = vadd.f32 0.0, %v495
  %v497 = vpop.f32.mrb[0].mxu0
  %498 = vmatprep.mubr.bf16.mxu0 0
  %499 = vmatmul.mubr.bf16.gmra.mrb[0].mxu0 %v242
  %v500 = vpop.f32.mrb[0].mxu0
  %v501 = vadd.f32 0.0, %v500
  %v502 = vpop.f32.mrb[0].mxu0
  %v503 = vpop.f32.mrb[0].mxu0
  %v504 = vadd.f32 0.0, %v503
  %v505 = vpop.f32.mrb[0].mxu0
  %506 = vmatprep.mubr.bf16.mxu0 0
  %507 = vmatmul.mubr.bf16.gmra.mrb[0].mxu0 %v243
  %v508 = vpop.f32.mrb[0].mxu0
  %v509 = vadd.f32 0.0, %v508
  %v510 = vpop.f32.mrb[0].mxu0
  %v511 = vpop.f32.mrb[0].mxu0
  %v512 = vadd.f32 0.0, %v511
  %v513 = vpop.f32.mrb[0].mxu0
  %514 = vmatprep.mubr.bf16.mxu0 0
  %515 = vmatmul.mubr.bf16.gmra.mrb[0].mxu0 %v244
  %v516 = vpop.f32.mrb[0].mxu0
  %v517 = vadd.f32 0.0, %v516
  %v518 = vpop.f32.mrb[0].mxu0
  %v519 = vpop.f32.mrb[0].mxu0
  %v520 = vadd.f32 0.0, %v519
  %v521 = vpop.f32.mrb[0].mxu0
  %522 = vmatprep.mubr.bf16.mxu0 0
  %523 = vmatmul.mubr.bf16.gmra.mrb[0].mxu0 %v245
  %v524 = vpop.f32.mrb[0].mxu0
  %v525 = vadd.f32 0.0, %v524
  %v526 = vpop.f32.mrb[0].mxu0
  %v527 = vpop.f32.mrb[0].mxu0
  %v528 = vadd.f32 0.0, %v527
  %v529 = vpop.f32.mrb[0].mxu0
  %530 = vmatprep.mubr.bf16.mxu0 0
  %531 = vmatmul.mubr.bf16.gmra.mrb[0].mxu0 %v246
  %v532 = vpop.f32.mrb[0].mxu0
  %v533 = vadd.f32 0.0, %v532
  %v534 = vpop.f32.mrb[0].mxu0
  %v535 = vpop.f32.mrb[0].mxu0
  %v536 = vadd.f32 0.0, %v535
  %v537 = vpop.f32.mrb[0].mxu0
  %538 = vmatprep.mubr.bf16.mxu0 0
  %539 = vmatmul.mubr.bf16.gmra.mrb[0].mxu0 %v247
  %v540 = vpop.f32.mrb[0].mxu0
  %v541 = vadd.f32 0.0, %v540
  %v542 = vpop.f32.mrb[0].mxu0
  %v543 = vpop.f32.mrb[0].mxu0
  %v544 = vadd.f32 0.0, %v543
  %v545 = vpop.f32.mrb[0].mxu0
  %546 = vmatprep.mubr.bf16.mxu0 0
  %547 = vmatmul.mubr.bf16.gmra.mrb[0].mxu0 %v248
  %v548 = vpop.f32.mrb[0].mxu0
  %v549 = vadd.f32 0.0, %v548
  %v550 = vpop.f32.mrb[0].mxu0
  %v551 = vpop.f32.mrb[0].mxu0
  %v552 = vadd.f32 0.0, %v551
  %v553 = vpop.f32.mrb[0].mxu0
  %554 = vmatprep.mubr.bf16.mxu0 0
  %555 = vmatmul.mubr.bf16.gmra.mrb[0].mxu0 %v249
  %v556 = vpop.f32.mrb[0].mxu0
  %v557 = vadd.f32 0.0, %v556
  %v558 = vpop.f32.mrb[0].mxu0
  %v559 = vpop.f32.mrb[0].mxu0
  %v560 = vadd.f32 0.0, %v559
  %v561 = vpop.f32.mrb[0].mxu0
  %562 = vmatprep.mubr.bf16.mxu0 0
  %563 = vmatmul.mubr.bf16.gmra.mrb[0].mxu0 %v250
  %v564 = vpop.f32.mrb[0].mxu0
  %v565 = vadd.f32 0.0, %v564
  %v566 = vpop.f32.mrb[0].mxu0
  %v567 = vpop.f32.mrb[0].mxu0
  %v568 = vadd.f32 0.0, %v567
  %v569 = vpop.f32.mrb[0].mxu0
  %570 = vmatprep.mubr.bf16.mxu0 0
  %571 = vmatmul.mubr.bf16.gmra.mrb[0].mxu0 %v251
  %v572 = vpop.f32.mrb[0].mxu0
  %v573 = vadd.f32 0.0, %v572
  %v574 = vpop.f32.mrb[0].mxu0
  %v575 = vpop.f32.mrb[0].mxu0
  %v576 = vadd.f32 0.0, %v575
  %v577 = vpop.f32.mrb[0].mxu0
  %578 = vmatprep.mubr.bf16.mxu0 0
  %579 = vmatmul.mubr.bf16.gmra.mrb[0].mxu0 %v252
  %v580 = vpop.f32.mrb[0].mxu0
  %v581 = vadd.f32 0.0, %v580
  %v582 = vpop.f32.mrb[0].mxu0
  %v583 = vpop.f32.mrb[0].mxu0
  %v584 = vadd.f32 0.0, %v583
  %v585 = vpop.f32.mrb[0].mxu0
  %586 = vmatprep.mubr.bf16.mxu0 0
  %587 = vmatmul.mubr.bf16.gmra.mrb[0].mxu0 %v253
  %v588 = vpop.f32.mrb[0].mxu0
  %v589 = vadd.f32 0.0, %v588
  %v590 = vpop.f32.mrb[0].mxu0
  %v591 = vpop.f32.mrb[0].mxu0
  %v592 = vadd.f32 0.0, %v591
  %v593 = vpop.f32.mrb[0].mxu0
  %594 = vmatprep.mubr.bf16.mxu0 0
  %595 = vmatmul.mubr.bf16.gmra.mrb[0].mxu0 %v254
  %v596 = vpop.f32.mrb[0].mxu0
  %v597 = vadd.f32 0.0, %v596
  %v598 = vpop.f32.mrb[0].mxu0
  %v599 = vpop.f32.mrb[0].mxu0
  %v600 = vadd.f32 0.0, %v599
  %v601 = vpop.f32.mrb[0].mxu0
  %602 = vmatprep.mubr.bf16.mxu0 0
  %603 = vmatmul.mubr.bf16.gmra.mrb[0].mxu0 %v255
  %v604 = vpop.f32.mrb[0].mxu0
  %v605 = vadd.f32 0.0, %v604
  %v606 = vpop.f32.mrb[0].mxu0
  %v607 = vpop.f32.mrb[0].mxu0
  %v608 = vadd.f32 0.0, %v607
  %v609 = vpop.f32.mrb[0].mxu0
  %610 = vmatprep.mubr.bf16.mxu0 0
  %611 = vmatmul.mubr.bf16.gmra.mrb[0].mxu0 %v256
  %v612 = vpop.f32.mrb[0].mxu0
  %v613 = vadd.f32 0.0, %v612
  %v614 = vpop.f32.mrb[0].mxu0
  %v615 = vpop.f32.mrb[0].mxu0
  %v616 = vadd.f32 0.0, %v615
  %v617 = vpop.f32.mrb[0].mxu0
  %618 = vmatprep.mubr.bf16.mxu0 0
  %619 = vmatmul.mubr.bf16.gmra.mrb[0].mxu0 %v257
  %v620 = vpop.f32.mrb[0].mxu0
  %v621 = vadd.f32 0.0, %v620
  %v622 = vpop.f32.mrb[0].mxu0
  %v623 = vpop.f32.mrb[0].mxu0
  %v624 = vadd.f32 0.0, %v623
  %v625 = vpop.f32.mrb[0].mxu0
  %626 = vdwg.mxu0
  %v627 = vadd.f32 %v373, %v376
  %v628 = vadd.f32 %v627, %v381
  %v629 = vadd.f32 %v628, %v384
  %v630 = vadd.f32 %v629, %v389
  %v631 = vadd.f32 %v630, %v392
  %v632 = vadd.f32 %v631, %v397
  %v633 = vadd.f32 %v632, %v400
  %v634 = vadd.f32 %v633, %v405
  %v635 = vadd.f32 %v634, %v408
  %v636 = vadd.f32 %v635, %v413
  %v637 = vadd.f32 %v636, %v416
  %v638 = vadd.f32 %v637, %v421
  %v639 = vadd.f32 %v638, %v424
  %v640 = vadd.f32 %v639, %v429
  %v641 = vadd.f32 %v640, %v432
  %v642 = vadd.f32 %v641, %v437
  %v643 = vadd.f32 %v642, %v440
  %v644 = vadd.f32 %v643, %v445
  %v645 = vadd.f32 %v644, %v448
  %v646 = vadd.f32 %v645, %v453
  %v647 = vadd.f32 %v646, %v456
  %v648 = vadd.f32 %v647, %v461
  %v649 = vadd.f32 %v648, %v464
  %v650 = vadd.f32 %v649, %v469
  %v651 = vadd.f32 %v650, %v472
  %v652 = vadd.f32 %v651, %v477
  %v653 = vadd.f32 %v652, %v480
  %v654 = vadd.f32 %v653, %v485
  %v655 = vadd.f32 %v654, %v488
  %v656 = vadd.f32 %v655, %v493
  %v657 = vadd.f32 %v656, %v496
  %v658 = vadd.f32 %v657, %v501
  %v659 = vadd.f32 %v658, %v504
  %v660 = vadd.f32 %v659, %v509
  %v661 = vadd.f32 %v660, %v512
  %v662 = vadd.f32 %v661, %v517
  %v663 = vadd.f32 %v662, %v520
  %v664 = vadd.f32 %v663, %v525
  %v665 = vadd.f32 %v664, %v528
  %v666 = vadd.f32 %v665, %v533
  %v667 = vadd.f32 %v666, %v536
  %v668 = vadd.f32 %v667, %v541
  %v669 = vadd.f32 %v668, %v544
  %v670 = vadd.f32 %v669, %v549
  %v671 = vadd.f32 %v670, %v552
  %v672 = vadd.f32 %v671, %v557
  %v673 = vadd.f32 %v672, %v560
  %v674 = vadd.f32 %v673, %v565
  %v675 = vadd.f32 %v674, %v568
  %v676 = vadd.f32 %v675, %v573
  %v677 = vadd.f32 %v676, %v576
  %v678 = vadd.f32 %v677, %v581
  %v679 = vadd.f32 %v678, %v584
  %v680 = vadd.f32 %v679, %v589
  %v681 = vadd.f32 %v680, %v592
  %v682 = vadd.f32 %v681, %v597
  %v683 = vadd.f32 %v682, %v600
  %v684 = vadd.f32 %v683, %v605
  %v685 = vadd.f32 %v684, %v608
  %v686 = vadd.f32 %v685, %v613
  %v687 = vadd.f32 %v686, %v616
  %v688 = vadd.f32 %v687, %v621
  %v689 = vadd.f32 %v688, %v624
  %v690 = vrot.slane %v689, 4
  %v691 = vadd.f32 %v689, %v690
  %v692 = vrot.slane %v691, 2
  %v693 = vadd.f32 %v691, %v692
  %v694 = vrot.slane %v693, 1
  %v695 = vadd.f32 %v693, %v694
  %v696 = vmul.f32 %v695, 0.001953125
  %v697 = vmul.f32 %v373, %v373
  %v698 = vmul.f32 %v376, %v376
  %v699 = vmul.f32 %v381, %v381
  %v700 = vmul.f32 %v384, %v384
  %v701 = vmul.f32 %v389, %v389
  %v702 = vmul.f32 %v392, %v392
  %v703 = vmul.f32 %v397, %v397
  %v704 = vmul.f32 %v400, %v400
  %v705 = vmul.f32 %v405, %v405
  %v706 = vmul.f32 %v408, %v408
  %v707 = vmul.f32 %v413, %v413
  %v708 = vmul.f32 %v416, %v416
  %v709 = vmul.f32 %v421, %v421
  %v710 = vmul.f32 %v424, %v424
  %v711 = vmul.f32 %v429, %v429
  %v712 = vmul.f32 %v432, %v432
  %v713 = vmul.f32 %v437, %v437
  %v714 = vmul.f32 %v440, %v440
  %v715 = vmul.f32 %v445, %v445
  %v716 = vmul.f32 %v448, %v448
  %v717 = vmul.f32 %v453, %v453
  %v718 = vmul.f32 %v456, %v456
  %v719 = vmul.f32 %v461, %v461
  %v720 = vmul.f32 %v464, %v464
  %v721 = vmul.f32 %v469, %v469
  %v722 = vmul.f32 %v472, %v472
  %v723 = vmul.f32 %v477, %v477
  %v724 = vmul.f32 %v480, %v480
  %v725 = vmul.f32 %v485, %v485
  %v726 = vmul.f32 %v488, %v488
  %v727 = vmul.f32 %v493, %v493
  %v728 = vmul.f32 %v496, %v496
  %v729 = vmul.f32 %v501, %v501
  %v730 = vmul.f32 %v504, %v504
  %v731 = vmul.f32 %v509, %v509
  %v732 = vmul.f32 %v512, %v512
  %v733 = vmul.f32 %v517, %v517
  %v734 = vmul.f32 %v520, %v520
  %v735 = vmul.f32 %v525, %v525
  %v736 = vmul.f32 %v528, %v528
  %v737 = vmul.f32 %v533, %v533
  %v738 = vmul.f32 %v536, %v536
  %v739 = vmul.f32 %v541, %v541
  %v740 = vmul.f32 %v544, %v544
  %v741 = vmul.f32 %v549, %v549
  %v742 = vmul.f32 %v552, %v552
  %v743 = vmul.f32 %v557, %v557
  %v744 = vmul.f32 %v560, %v560
  %v745 = vmul.f32 %v565, %v565
  %v746 = vmul.f32 %v568, %v568
  %v747 = vmul.f32 %v573, %v573
  %v748 = vmul.f32 %v576, %v576
  %v749 = vmul.f32 %v581, %v581
  %v750 = vmul.f32 %v584, %v584
  %v751 = vmul.f32 %v589, %v589
  %v752 = vmul.f32 %v592, %v592
  %v753 = vmul.f32 %v597, %v597
  %v754 = vmul.f32 %v600, %v600
  %v755 = vmul.f32 %v605, %v605
  %v756 = vmul.f32 %v608, %v608
  %v757 = vmul.f32 %v613, %v613
  %v758 = vmul.f32 %v616, %v616
  %v759 = vmul.f32 %v621, %v621
  %v760 = vmul.f32 %v624, %v624
  %v761 = vadd.f32 %v697, %v698
  %v762 = vadd.f32 %v761, %v699
  %v763 = vadd.f32 %v762, %v700
  %v764 = vadd.f32 %v763, %v701
  %v765 = vadd.f32 %v764, %v702
  %v766 = vadd.f32 %v765, %v703
  %v767 = vadd.f32 %v766, %v704
  %v768 = vadd.f32 %v767, %v705
  %v769 = vadd.f32 %v768, %v706
  %v770 = vadd.f32 %v769, %v707
  %v771 = vadd.f32 %v770, %v708
  %v772 = vadd.f32 %v771, %v709
  %v773 = vadd.f32 %v772, %v710
  %v774 = vadd.f32 %v773, %v711
  %v775 = vadd.f32 %v774, %v712
  %v776 = vadd.f32 %v775, %v713
  %v777 = vadd.f32 %v776, %v714
  %v778 = vadd.f32 %v777, %v715
  %v779 = vadd.f32 %v778, %v716
  %v780 = vadd.f32 %v779, %v717
  %v781 = vadd.f32 %v780, %v718
  %v782 = vadd.f32 %v781, %v719
  %v783 = vadd.f32 %v782, %v720
  %v784 = vadd.f32 %v783, %v721
  %v785 = vadd.f32 %v784, %v722
  %v786 = vadd.f32 %v785, %v723
  %v787 = vadd.f32 %v786, %v724
  %v788 = vadd.f32 %v787, %v725
  %v789 = vadd.f32 %v788, %v726
  %v790 = vadd.f32 %v789, %v727
  %v791 = vadd.f32 %v790, %v728
  %v792 = vadd.f32 %v791, %v729
  %v793 = vadd.f32 %v792, %v730
  %v794 = vadd.f32 %v793, %v731
  %v795 = vadd.f32 %v794, %v732
  %v796 = vadd.f32 %v795, %v733
  %v797 = vadd.f32 %v796, %v734
  %v798 = vadd.f32 %v797, %v735
  %v799 = vadd.f32 %v798, %v736
  %v800 = vadd.f32 %v799, %v737
  %v801 = vadd.f32 %v800, %v738
  %v802 = vadd.f32 %v801, %v739
  %v803 = vadd.f32 %v802, %v740
  %v804 = vadd.f32 %v803, %v741
  %v805 = vadd.f32 %v804, %v742
  %v806 = vadd.f32 %v805, %v743
  %v807 = vadd.f32 %v806, %v744
  %v808 = vadd.f32 %v807, %v745
  %v809 = vadd.f32 %v808, %v746
  %v810 = vadd.f32 %v809, %v747
  %v811 = vadd.f32 %v810, %v748
  %v812 = vadd.f32 %v811, %v749
  %v813 = vadd.f32 %v812, %v750
  %v814 = vadd.f32 %v813, %v751
  %v815 = vadd.f32 %v814, %v752
  %v816 = vadd.f32 %v815, %v753
  %v817 = vadd.f32 %v816, %v754
  %v818 = vadd.f32 %v817, %v755
  %v819 = vadd.f32 %v818, %v756
  %v820 = vadd.f32 %v819, %v757
  %v821 = vadd.f32 %v820, %v758
  %v822 = vadd.f32 %v821, %v759
  %v823 = vadd.f32 %v822, %v760
  %v824 = vrot.slane %v823, 4
  %v825 = vadd.f32 %v823, %v824
  %v826 = vrot.slane %v825, 2
  %v827 = vadd.f32 %v825, %v826
  %v828 = vrot.slane %v827, 1
  %v829 = vadd.f32 %v827, %v828
  %v830 = vmul.f32 %v829, 0.001953125
  %v831 = vmul.f32 %v696, %v696
  %v832 = vsub.f32 %v830, %v831
  %v833 = vmax.f32 %v832, 0.0
  %v834 = vld [vmem:[%s2] sm:$0x1]
  %v835 = vadd.f32 %v833, 1e-05
  %v836 = vrsqrt.pop %v835
  %v837 = vmul.f32 %v834, %v836
  %v838 = vld [vmem:[%s3] sm:$0x1]
  %v839 = vmul.f32 %v696, %v837
  %v840 = vsub.f32 %v838, %v839
  %v842 = vlaneseq
  %v843 = vshrl.u32 %v842, 7
  %v844 = vsub.s32 0, %v843
  %v845 = vrot.slane %v837, %v844
  %v847 = vmul.f32 %v373, %v845
  %v848 = vmul.f32 %v376, %v845
  %v849 = vmul.f32 %v381, %v845
  %v850 = vmul.f32 %v384, %v845
  %v851 = vmul.f32 %v389, %v845
  %v852 = vmul.f32 %v392, %v845
  %v853 = vmul.f32 %v397, %v845
  %v854 = vmul.f32 %v400, %v845
  %v855 = vmul.f32 %v405, %v845
  %v856 = vmul.f32 %v408, %v845
  %v857 = vmul.f32 %v413, %v845
  %v858 = vmul.f32 %v416, %v845
  %v859 = vmul.f32 %v421, %v845
  %v860 = vmul.f32 %v424, %v845
  %v861 = vmul.f32 %v429, %v845
  %v862 = vmul.f32 %v432, %v845
  %v863 = vmul.f32 %v437, %v845
  %v864 = vmul.f32 %v440, %v845
  %v865 = vmul.f32 %v445, %v845
  %v866 = vmul.f32 %v448, %v845
  %v867 = vmul.f32 %v453, %v845
  %v868 = vmul.f32 %v456, %v845
  %v869 = vmul.f32 %v461, %v845
  %v870 = vmul.f32 %v464, %v845
  %v871 = vmul.f32 %v469, %v845
  %v872 = vmul.f32 %v472, %v845
  %v873 = vmul.f32 %v477, %v845
  %v874 = vmul.f32 %v480, %v845
  %v875 = vmul.f32 %v485, %v845
  %v876 = vmul.f32 %v488, %v845
  %v877 = vmul.f32 %v493, %v845
  %v878 = vmul.f32 %v496, %v845
  %v879 = vmul.f32 %v501, %v845
  %v880 = vmul.f32 %v504, %v845
  %v881 = vmul.f32 %v509, %v845
  %v882 = vmul.f32 %v512, %v845
  %v883 = vmul.f32 %v517, %v845
  %v884 = vmul.f32 %v520, %v845
  %v885 = vmul.f32 %v525, %v845
  %v886 = vmul.f32 %v528, %v845
  %v887 = vmul.f32 %v533, %v845
  %v888 = vmul.f32 %v536, %v845
  %v889 = vmul.f32 %v541, %v845
  %v890 = vmul.f32 %v544, %v845
  %v891 = vmul.f32 %v549, %v845
  %v892 = vmul.f32 %v552, %v845
  %v893 = vmul.f32 %v557, %v845
  %v894 = vmul.f32 %v560, %v845
  %v895 = vmul.f32 %v565, %v845
  %v896 = vmul.f32 %v568, %v845
  %v897 = vmul.f32 %v573, %v845
  %v898 = vmul.f32 %v576, %v845
  %v899 = vmul.f32 %v581, %v845
  %v900 = vmul.f32 %v584, %v845
  %v901 = vmul.f32 %v589, %v845
  %v902 = vmul.f32 %v592, %v845
  %v903 = vmul.f32 %v597, %v845
  %v904 = vmul.f32 %v600, %v845
  %v905 = vmul.f32 %v605, %v845
  %v906 = vmul.f32 %v608, %v845
  %v907 = vmul.f32 %v613, %v845
  %v908 = vmul.f32 %v616, %v845
  %v909 = vmul.f32 %v621, %v845
  %v910 = vmul.f32 %v624, %v845
  %v912 = vlaneseq
  %v913 = vshrl.u32 %v912, 7
  %v914 = vsub.s32 0, %v913
  %v915 = vrot.slane %v840, %v914
  %v917 = vadd.f32 %v847, %v915
  %v918 = vadd.f32 %v848, %v915
  %v919 = vadd.f32 %v849, %v915
  %v920 = vadd.f32 %v850, %v915
  %v921 = vadd.f32 %v851, %v915
  %v922 = vadd.f32 %v852, %v915
  %v923 = vadd.f32 %v853, %v915
  %v924 = vadd.f32 %v854, %v915
  %v925 = vadd.f32 %v855, %v915
  %v926 = vadd.f32 %v856, %v915
  %v927 = vadd.f32 %v857, %v915
  %v928 = vadd.f32 %v858, %v915
  %v929 = vadd.f32 %v859, %v915
  %v930 = vadd.f32 %v860, %v915
  %v931 = vadd.f32 %v861, %v915
  %v932 = vadd.f32 %v862, %v915
  %v933 = vadd.f32 %v863, %v915
  %v934 = vadd.f32 %v864, %v915
  %v935 = vadd.f32 %v865, %v915
  %v936 = vadd.f32 %v866, %v915
  %v937 = vadd.f32 %v867, %v915
  %v938 = vadd.f32 %v868, %v915
  %v939 = vadd.f32 %v869, %v915
  %v940 = vadd.f32 %v870, %v915
  %v941 = vadd.f32 %v871, %v915
  %v942 = vadd.f32 %v872, %v915
  %v943 = vadd.f32 %v873, %v915
  %v944 = vadd.f32 %v874, %v915
  %v945 = vadd.f32 %v875, %v915
  %v946 = vadd.f32 %v876, %v915
  %v947 = vadd.f32 %v877, %v915
  %v948 = vadd.f32 %v878, %v915
  %v949 = vadd.f32 %v879, %v915
  %v950 = vadd.f32 %v880, %v915
  %v951 = vadd.f32 %v881, %v915
  %v952 = vadd.f32 %v882, %v915
  %v953 = vadd.f32 %v883, %v915
  %v954 = vadd.f32 %v884, %v915
  %v955 = vadd.f32 %v885, %v915
  %v956 = vadd.f32 %v886, %v915
  %v957 = vadd.f32 %v887, %v915
  %v958 = vadd.f32 %v888, %v915
  %v959 = vadd.f32 %v889, %v915
  %v960 = vadd.f32 %v890, %v915
  %v961 = vadd.f32 %v891, %v915
  %v962 = vadd.f32 %v892, %v915
  %v963 = vadd.f32 %v893, %v915
  %v964 = vadd.f32 %v894, %v915
  %v965 = vadd.f32 %v895, %v915
  %v966 = vadd.f32 %v896, %v915
  %v967 = vadd.f32 %v897, %v915
  %v968 = vadd.f32 %v898, %v915
  %v969 = vadd.f32 %v899, %v915
  %v970 = vadd.f32 %v900, %v915
  %v971 = vadd.f32 %v901, %v915
  %v972 = vadd.f32 %v902, %v915
  %v973 = vadd.f32 %v903, %v915
  %v974 = vadd.f32 %v904, %v915
  %v975 = vadd.f32 %v905, %v915
  %v976 = vadd.f32 %v906, %v915
  %v977 = vadd.f32 %v907, %v915
  %v978 = vadd.f32 %v908, %v915
  %v979 = vadd.f32 %v909, %v915
  %v980 = vadd.f32 %v910, %v915
  %v981 = vmax.f32 %v917, 0.0
  %v982 = vmax.f32 %v918, 0.0
  %v983 = vmax.f32 %v919, 0.0
  %v984 = vmax.f32 %v920, 0.0
  %v985 = vmax.f32 %v921, 0.0
  %v986 = vmax.f32 %v922, 0.0
  %v987 = vmax.f32 %v923, 0.0
  %v988 = vmax.f32 %v924, 0.0
  %v989 = vmax.f32 %v925, 0.0
  %v990 = vmax.f32 %v926, 0.0
  %v991 = vmax.f32 %v927, 0.0
  %v992 = vmax.f32 %v928, 0.0
  %v993 = vmax.f32 %v929, 0.0
  %v994 = vmax.f32 %v930, 0.0
  %v995 = vmax.f32 %v931, 0.0
  %v996 = vmax.f32 %v932, 0.0
  %v997 = vmax.f32 %v933, 0.0
  %v998 = vmax.f32 %v934, 0.0
  %v999 = vmax.f32 %v935, 0.0
  %v1000 = vmax.f32 %v936, 0.0
  %v1001 = vmax.f32 %v937, 0.0
  %v1002 = vmax.f32 %v938, 0.0
  %v1003 = vmax.f32 %v939, 0.0
  %v1004 = vmax.f32 %v940, 0.0
  %v1005 = vmax.f32 %v941, 0.0
  %v1006 = vmax.f32 %v942, 0.0
  %v1007 = vmax.f32 %v943, 0.0
  %v1008 = vmax.f32 %v944, 0.0
  %v1009 = vmax.f32 %v945, 0.0
  %v1010 = vmax.f32 %v946, 0.0
  %v1011 = vmax.f32 %v947, 0.0
  %v1012 = vmax.f32 %v948, 0.0
  %v1013 = vmax.f32 %v949, 0.0
  %v1014 = vmax.f32 %v950, 0.0
  %v1015 = vmax.f32 %v951, 0.0
  %v1016 = vmax.f32 %v952, 0.0
  %v1017 = vmax.f32 %v953, 0.0
  %v1018 = vmax.f32 %v954, 0.0
  %v1019 = vmax.f32 %v955, 0.0
  %v1020 = vmax.f32 %v956, 0.0
  %v1021 = vmax.f32 %v957, 0.0
  %v1022 = vmax.f32 %v958, 0.0
  %v1023 = vmax.f32 %v959, 0.0
  %v1024 = vmax.f32 %v960, 0.0
  %v1025 = vmax.f32 %v961, 0.0
  %v1026 = vmax.f32 %v962, 0.0
  %v1027 = vmax.f32 %v963, 0.0
  %v1028 = vmax.f32 %v964, 0.0
  %v1029 = vmax.f32 %v965, 0.0
  %v1030 = vmax.f32 %v966, 0.0
  %v1031 = vmax.f32 %v967, 0.0
  %v1032 = vmax.f32 %v968, 0.0
  %v1033 = vmax.f32 %v969, 0.0
  %v1034 = vmax.f32 %v970, 0.0
  %v1035 = vmax.f32 %v971, 0.0
  %v1036 = vmax.f32 %v972, 0.0
  %v1037 = vmax.f32 %v973, 0.0
  %v1038 = vmax.f32 %v974, 0.0
  %v1039 = vmax.f32 %v975, 0.0
  %v1040 = vmax.f32 %v976, 0.0
  %v1041 = vmax.f32 %v977, 0.0
  %v1042 = vmax.f32 %v978, 0.0
  %v1043 = vmax.f32 %v979, 0.0
  %v1044 = vmax.f32 %v980, 0.0
  %v1045 = vpack.c.bf16 %v982, %v981
  %v1046 = vpack.c.bf16 %v984, %v983
  %v1047 = vpack.c.bf16 %v986, %v985
  %v1048 = vpack.c.bf16 %v988, %v987
  %v1049 = vpack.c.bf16 %v990, %v989
  %v1050 = vpack.c.bf16 %v992, %v991
  %v1051 = vpack.c.bf16 %v994, %v993
  %v1052 = vpack.c.bf16 %v996, %v995
  %v1053 = vpack.c.bf16 %v998, %v997
  %v1054 = vpack.c.bf16 %v1000, %v999
  %v1055 = vpack.c.bf16 %v1002, %v1001
  %v1056 = vpack.c.bf16 %v1004, %v1003
  %v1057 = vpack.c.bf16 %v1006, %v1005
  %v1058 = vpack.c.bf16 %v1008, %v1007
  %v1059 = vpack.c.bf16 %v1010, %v1009
  %v1060 = vpack.c.bf16 %v1012, %v1011
  %v1061 = vpack.c.bf16 %v1014, %v1013
  %v1062 = vpack.c.bf16 %v1016, %v1015
  %v1063 = vpack.c.bf16 %v1018, %v1017
  %v1064 = vpack.c.bf16 %v1020, %v1019
  %v1065 = vpack.c.bf16 %v1022, %v1021
  %v1066 = vpack.c.bf16 %v1024, %v1023
  %v1067 = vpack.c.bf16 %v1026, %v1025
  %v1068 = vpack.c.bf16 %v1028, %v1027
  %v1069 = vpack.c.bf16 %v1030, %v1029
  %v1070 = vpack.c.bf16 %v1032, %v1031
  %v1071 = vpack.c.bf16 %v1034, %v1033
  %v1072 = vpack.c.bf16 %v1036, %v1035
  %v1073 = vpack.c.bf16 %v1038, %v1037
  %v1074 = vpack.c.bf16 %v1040, %v1039
  %v1075 = vpack.c.bf16 %v1042, %v1041
  %v1076 = vpack.c.bf16 %v1044, %v1043
  %v1109 = vunpack.c.l.b16 %v1045
  %v1110 = vunpack.c.h.b16 %v1045
  %v1111 = vunpack.c.l.b16 %v1046
  %v1112 = vunpack.c.h.b16 %v1046
  %v1113 = vunpack.c.l.b16 %v1047
  %v1114 = vunpack.c.h.b16 %v1047
  %v1115 = vunpack.c.l.b16 %v1048
  %v1116 = vunpack.c.h.b16 %v1048
  %v1117 = vunpack.c.l.b16 %v1049
  %v1118 = vunpack.c.h.b16 %v1049
  %v1119 = vunpack.c.l.b16 %v1050
  %v1120 = vunpack.c.h.b16 %v1050
  %v1121 = vunpack.c.l.b16 %v1051
  %v1122 = vunpack.c.h.b16 %v1051
  %v1123 = vunpack.c.l.b16 %v1052
  %v1124 = vunpack.c.h.b16 %v1052
  %v1125 = vunpack.c.l.b16 %v1053
  %v1126 = vunpack.c.h.b16 %v1053
  %v1127 = vunpack.c.l.b16 %v1054
  %v1128 = vunpack.c.h.b16 %v1054
  %v1129 = vunpack.c.l.b16 %v1055
  %v1130 = vunpack.c.h.b16 %v1055
  %v1131 = vunpack.c.l.b16 %v1056
  %v1132 = vunpack.c.h.b16 %v1056
  %v1133 = vunpack.c.l.b16 %v1057
  %v1134 = vunpack.c.h.b16 %v1057
  %v1135 = vunpack.c.l.b16 %v1058
  %v1136 = vunpack.c.h.b16 %v1058
  %v1137 = vunpack.c.l.b16 %v1059
  %v1138 = vunpack.c.h.b16 %v1059
  %v1139 = vunpack.c.l.b16 %v1060
  %v1140 = vunpack.c.h.b16 %v1060
  %v1141 = vunpack.c.l.b16 %v1061
  %v1142 = vunpack.c.h.b16 %v1061
  %v1143 = vunpack.c.l.b16 %v1062
  %v1144 = vunpack.c.h.b16 %v1062
  %v1145 = vunpack.c.l.b16 %v1063
  %v1146 = vunpack.c.h.b16 %v1063
  %v1147 = vunpack.c.l.b16 %v1064
  %v1148 = vunpack.c.h.b16 %v1064
  %v1149 = vunpack.c.l.b16 %v1065
  %v1150 = vunpack.c.h.b16 %v1065
  %v1151 = vunpack.c.l.b16 %v1066
  %v1152 = vunpack.c.h.b16 %v1066
  %v1153 = vunpack.c.l.b16 %v1067
  %v1154 = vunpack.c.h.b16 %v1067
  %v1155 = vunpack.c.l.b16 %v1068
  %v1156 = vunpack.c.h.b16 %v1068
  %v1157 = vunpack.c.l.b16 %v1069
  %v1158 = vunpack.c.h.b16 %v1069
  %v1159 = vunpack.c.l.b16 %v1070
  %v1160 = vunpack.c.h.b16 %v1070
  %v1161 = vunpack.c.l.b16 %v1071
  %v1162 = vunpack.c.h.b16 %v1071
  %v1163 = vunpack.c.l.b16 %v1072
  %v1164 = vunpack.c.h.b16 %v1072
  %v1165 = vunpack.c.l.b16 %v1073
  %v1166 = vunpack.c.h.b16 %v1073
  %v1167 = vunpack.c.l.b16 %v1074
  %v1168 = vunpack.c.h.b16 %v1074
  %v1169 = vunpack.c.l.b16 %v1075
  %v1170 = vunpack.c.h.b16 %v1075
  %v1171 = vunpack.c.l.b16 %v1076
  %v1172 = vunpack.c.h.b16 %v1076
  %v1173 = vpack.c.b16 %v1109, %v1109
  %v1174 = vpack.c.b16 %v1110, %v1110
  %v1175 = vpack.c.b16 %v1111, %v1111
  %v1176 = vpack.c.b16 %v1112, %v1112
  %v1177 = vpack.c.b16 %v1113, %v1113
  %v1178 = vpack.c.b16 %v1114, %v1114
  %v1179 = vpack.c.b16 %v1115, %v1115
  %v1180 = vpack.c.b16 %v1116, %v1116
  %v1181 = vpack.c.b16 %v1117, %v1117
  %v1182 = vpack.c.b16 %v1118, %v1118
  %v1183 = vpack.c.b16 %v1119, %v1119
  %v1184 = vpack.c.b16 %v1120, %v1120
  %v1185 = vpack.c.b16 %v1121, %v1121
  %v1186 = vpack.c.b16 %v1122, %v1122
  %v1187 = vpack.c.b16 %v1123, %v1123
  %v1188 = vpack.c.b16 %v1124, %v1124
  %v1189 = vpack.c.b16 %v1125, %v1125
  %v1190 = vpack.c.b16 %v1126, %v1126
  %v1191 = vpack.c.b16 %v1127, %v1127
  %v1192 = vpack.c.b16 %v1128, %v1128
  %v1193 = vpack.c.b16 %v1129, %v1129
  %v1194 = vpack.c.b16 %v1130, %v1130
  %v1195 = vpack.c.b16 %v1131, %v1131
  %v1196 = vpack.c.b16 %v1132, %v1132
  %v1197 = vpack.c.b16 %v1133, %v1133
  %v1198 = vpack.c.b16 %v1134, %v1134
  %v1199 = vpack.c.b16 %v1135, %v1135
  %v1200 = vpack.c.b16 %v1136, %v1136
  %v1201 = vpack.c.b16 %v1137, %v1137
  %v1202 = vpack.c.b16 %v1138, %v1138
  %v1203 = vpack.c.b16 %v1139, %v1139
  %v1204 = vpack.c.b16 %v1140, %v1140
  %v1205 = vpack.c.b16 %v1141, %v1141
  %v1206 = vpack.c.b16 %v1142, %v1142
  %v1207 = vpack.c.b16 %v1143, %v1143
  %v1208 = vpack.c.b16 %v1144, %v1144
  %v1209 = vpack.c.b16 %v1145, %v1145
  %v1210 = vpack.c.b16 %v1146, %v1146
  %v1211 = vpack.c.b16 %v1147, %v1147
  %v1212 = vpack.c.b16 %v1148, %v1148
  %v1213 = vpack.c.b16 %v1149, %v1149
  %v1214 = vpack.c.b16 %v1150, %v1150
  %v1215 = vpack.c.b16 %v1151, %v1151
  %v1216 = vpack.c.b16 %v1152, %v1152
  %v1217 = vpack.c.b16 %v1153, %v1153
  %v1218 = vpack.c.b16 %v1154, %v1154
  %v1219 = vpack.c.b16 %v1155, %v1155
  %v1220 = vpack.c.b16 %v1156, %v1156
  %v1221 = vpack.c.b16 %v1157, %v1157
  %v1222 = vpack.c.b16 %v1158, %v1158
  %v1223 = vpack.c.b16 %v1159, %v1159
  %v1224 = vpack.c.b16 %v1160, %v1160
  %v1225 = vpack.c.b16 %v1161, %v1161
  %v1226 = vpack.c.b16 %v1162, %v1162
  %v1227 = vpack.c.b16 %v1163, %v1163
  %v1228 = vpack.c.b16 %v1164, %v1164
  %v1229 = vpack.c.b16 %v1165, %v1165
  %v1230 = vpack.c.b16 %v1166, %v1166
  %v1231 = vpack.c.b16 %v1167, %v1167
  %v1232 = vpack.c.b16 %v1168, %v1168
  %v1233 = vpack.c.b16 %v1169, %v1169
  %v1234 = vpack.c.b16 %v1170, %v1170
  %v1235 = vpack.c.b16 %v1171, %v1171
  %v1236 = vpack.c.b16 %v1172, %v1172
  %1301 = vst [vmem:[%s4] sm:$0xf] %v1173
  %1302 = vst [vmem:[%s4 + $0x4] sm:$0xf] %v1174
  %1303 = vst [vmem:[%s4 + $0x8] sm:$0xf] %v1175
  %1304 = vst [vmem:[%s4 + $0xc] sm:$0xf] %v1176
  %1305 = vst [vmem:[%s4 + $0x10] sm:$0xf] %v1177
  %1306 = vst [vmem:[%s4 + $0x14] sm:$0xf] %v1178
  %1307 = vst [vmem:[%s4 + $0x18] sm:$0xf] %v1179
  %1308 = vst [vmem:[%s4 + $0x1c] sm:$0xf] %v1180
  %1309 = vst [vmem:[%s4 + $0x20] sm:$0xf] %v1181
  %1310 = vst [vmem:[%s4 + $0x24] sm:$0xf] %v1182
  %1311 = vst [vmem:[%s4 + $0x28] sm:$0xf] %v1183
  %1312 = vst [vmem:[%s4 + $0x2c] sm:$0xf] %v1184
  %1313 = vst [vmem:[%s4 + $0x30] sm:$0xf] %v1185
  %1314 = vst [vmem:[%s4 + $0x34] sm:$0xf] %v1186
  %1315 = vst [vmem:[%s4 + $0x38] sm:$0xf] %v1187
  %1316 = vst [vmem:[%s4 + $0x3c] sm:$0xf] %v1188
  %1317 = vst [vmem:[%s4 + $0x40] sm:$0xf] %v1189
  %1318 = vst [vmem:[%s4 + $0x44] sm:$0xf] %v1190
  %1319 = vst [vmem:[%s4 + $0x48] sm:$0xf] %v1191
  %1320 = vst [vmem:[%s4 + $0x4c] sm:$0xf] %v1192
  %1321 = vst [vmem:[%s4 + $0x50] sm:$0xf] %v1193
  %1322 = vst [vmem:[%s4 + $0x54] sm:$0xf] %v1194
  %1323 = vst [vmem:[%s4 + $0x58] sm:$0xf] %v1195
  %1324 = vst [vmem:[%s4 + $0x5c] sm:$0xf] %v1196
  %1325 = vst [vmem:[%s4 + $0x60] sm:$0xf] %v1197
  %1326 = vst [vmem:[%s4 + $0x64] sm:$0xf] %v1198
  %1327 = vst [vmem:[%s4 + $0x68] sm:$0xf] %v1199
  %1328 = vst [vmem:[%s4 + $0x6c] sm:$0xf] %v1200
  %1329 = vst [vmem:[%s4 + $0x70] sm:$0xf] %v1201
  %1330 = vst [vmem:[%s4 + $0x74] sm:$0xf] %v1202
  %1331 = vst [vmem:[%s4 + $0x78] sm:$0xf] %v1203
  %1332 = vst [vmem:[%s4 + $0x7c] sm:$0xf] %v1204
  %1333 = vst [vmem:[%s4 + $0x80] sm:$0xf] %v1205
  %1334 = vst [vmem:[%s4 + $0x84] sm:$0xf] %v1206
  %1335 = vst [vmem:[%s4 + $0x88] sm:$0xf] %v1207
  %1336 = vst [vmem:[%s4 + $0x8c] sm:$0xf] %v1208
  %1337 = vst [vmem:[%s4 + $0x90] sm:$0xf] %v1209
  %1338 = vst [vmem:[%s4 + $0x94] sm:$0xf] %v1210
  %1339 = vst [vmem:[%s4 + $0x98] sm:$0xf] %v1211
  %1340 = vst [vmem:[%s4 + $0x9c] sm:$0xf] %v1212
  %1341 = vst [vmem:[%s4 + $0xa0] sm:$0xf] %v1213
  %1342 = vst [vmem:[%s4 + $0xa4] sm:$0xf] %v1214
  %1343 = vst [vmem:[%s4 + $0xa8] sm:$0xf] %v1215
  %1344 = vst [vmem:[%s4 + $0xac] sm:$0xf] %v1216
  %1345 = vst [vmem:[%s4 + $0xb0] sm:$0xf] %v1217
  %1346 = vst [vmem:[%s4 + $0xb4] sm:$0xf] %v1218
  %1347 = vst [vmem:[%s4 + $0xb8] sm:$0xf] %v1219
  %1348 = vst [vmem:[%s4 + $0xbc] sm:$0xf] %v1220
  %1349 = vst [vmem:[%s4 + $0xc0] sm:$0xf] %v1221
  %1350 = vst [vmem:[%s4 + $0xc4] sm:$0xf] %v1222
  %1351 = vst [vmem:[%s4 + $0xc8] sm:$0xf] %v1223
  %1352 = vst [vmem:[%s4 + $0xcc] sm:$0xf] %v1224
  %1353 = vst [vmem:[%s4 + $0xd0] sm:$0xf] %v1225
  %1354 = vst [vmem:[%s4 + $0xd4] sm:$0xf] %v1226
  %1355 = vst [vmem:[%s4 + $0xd8] sm:$0xf] %v1227
  %1356 = vst [vmem:[%s4 + $0xdc] sm:$0xf] %v1228
  %1357 = vst [vmem:[%s4 + $0xe0] sm:$0xf] %v1229
  %1358 = vst [vmem:[%s4 + $0xe4] sm:$0xf] %v1230
  %1359 = vst [vmem:[%s4 + $0xe8] sm:$0xf] %v1231
  %1360 = vst [vmem:[%s4 + $0xec] sm:$0xf] %v1232
  %1361 = vst [vmem:[%s4 + $0xf0] sm:$0xf] %v1233
  %1362 = vst [vmem:[%s4 + $0xf4] sm:$0xf] %v1234
  %1363 = vst [vmem:[%s4 + $0xf8] sm:$0xf] %v1235
  %1364 = vst [vmem:[%s4 + $0xfc] sm:$0xf] %v1236
  // Predicated region
  $region18: #{_lambda_.22} parent=0 // pred_check
    _
  $region19: #{_lambda_.22} parent=0 // pred_check_branch
    %1366 = sbr.rel (0) target = $region21
  $region20: #{_lambda_.22} parent=0 // pred_region
    _
  $region21: #{_lambda_.22} parent=0 // pred_fallthru
    _
  // Predicated region
  $region22: #{_lambda_.22} parent=0 // pred_check
    _
  $region23: #{_lambda_.22} parent=0 // pred_check_branch
    %1368 = sbr.rel (0) target = $region25
  $region24: #{_lambda_.22} parent=0 // pred_region
    _
  $region25: #{_lambda_.22} parent=0 // pred_fallthru
    _

// kernel: _lambda_.21
$region0: #{_lambda_.21}
  #allocation0 [shape = 'u32[]', space=smem, size = 0x4, offset = 0x4, fixed_abs, tag = 'smem constant byte address 0x4 - core index']
  #allocation1 [shape = 'u32[144,128]{1,0:T(1,128)}', space=vmem, size = 0x12000, scoped, tag = 'internal scratch']
  %s0 = inlined_call_operand.vmem [shape: bf16[512,128], index: 0, kind: input, shape index: {}]
  %s1 = inlined_call_operand.vmem [shape: bf16[128,128], index: 1, kind: input, shape index: {}]
  %s2 = inlined_call_operand.vmem [shape: f32[1,128], index: 2, kind: input, shape index: {}]
  %s3 = inlined_call_operand.vmem [shape: f32[1,128], index: 3, kind: input, shape index: {}]
  %s4 = inlined_call_operand.vmem [shape: bf16[512,128], index: 4, kind: output, shape index: {}]
  %s5 = sld [smem:[#allocation0]]
  $region26: #{_lambda_.21} parent=0
    _
  %s7 = ssub.s32 1, %s5
  %s8 = scalar_select 0, %s7, %s5
  // Predicated region
  $region2: #{_lambda_.21} parent=0 // pred_check
    _
  $region3: #{_lambda_.21} parent=0 // pred_check_branch
    %10 = sbr.rel (0) target = $region5
  $region4: #{_lambda_.21} parent=0 // pred_region
    _
  $region5: #{_lambda_.21} parent=0 // pred_fallthru
    _
  // Predicated region
  $region6: #{_lambda_.21} parent=0 // pred_check
    _
  $region7: #{_lambda_.21} parent=0 // pred_check_branch
    %12 = sbr.rel (0) target = $region9
  $region8: #{_lambda_.21} parent=0 // pred_region
    _
  $region9: #{_lambda_.21} parent=0 // pred_fallthru
    _
  // Predicated region
  $region10: #{_lambda_.21} parent=0 // pred_check
    _
  $region11: #{_lambda_.21} parent=0 // pred_check_branch
    %14 = sbr.rel (0) target = $region13
  $region12: #{_lambda_.21} parent=0 // pred_region
    _
  $region13: #{_lambda_.21} parent=0 // pred_fallthru
    _
  // Predicated region
  $region14: #{_lambda_.21} parent=0 // pred_check
    _
  $region15: #{_lambda_.21} parent=0 // pred_check_branch
    %16 = sbr.rel (0) target = $region17
  $region16: #{_lambda_.21} parent=0 // pred_region
    _
  $region17: #{_lambda_.21} parent=0 // pred_fallthru
    _
  %v18 = vld [vmem:[%s0] sm:$0xf]
  %v19 = vld [vmem:[%s0 + $0x4] sm:$0xf]
  %v20 = vld [vmem:[%s0 + $0x8] sm:$0xf]
  %v21 = vld [vmem:[%s0 + $0xc] sm:$0xf]
  %v22 = vld [vmem:[%s0 + $0x10] sm:$0xf]
  %v23 = vld [vmem:[%s0 + $0x14] sm:$0xf]
  %v24 = vld [vmem:[%s0 + $0x18] sm:$0xf]
  %v25 = vld [vmem:[%s0 + $0x1c] sm:$0xf]
  %v26 = vld [vmem:[%s0 + $0x20] sm:$0xf]
  %v27 = vld [vmem:[%s0 + $0x24] sm:$0xf]
  %v28 = vld [vmem:[%s0 + $0x28] sm:$0xf]
  %v29 = vld [vmem:[%s0 + $0x2c] sm:$0xf]
  %v30 = vld [vmem:[%s0 + $0x30] sm:$0xf]
  %v31 = vld [vmem:[%s0 + $0x34] sm:$0xf]
  %v32 = vld [vmem:[%s0 + $0x38] sm:$0xf]
  %v33 = vld [vmem:[%s0 + $0x3c] sm:$0xf]
  %v34 = vld [vmem:[%s0 + $0x40] sm:$0xf]
  %v35 = vld [vmem:[%s0 + $0x44] sm:$0xf]
  %v36 = vld [vmem:[%s0 + $0x48] sm:$0xf]
  %v37 = vld [vmem:[%s0 + $0x4c] sm:$0xf]
  %v38 = vld [vmem:[%s0 + $0x50] sm:$0xf]
  %v39 = vld [vmem:[%s0 + $0x54] sm:$0xf]
  %v40 = vld [vmem:[%s0 + $0x58] sm:$0xf]
  %v41 = vld [vmem:[%s0 + $0x5c] sm:$0xf]
  %v42 = vld [vmem:[%s0 + $0x60] sm:$0xf]
  %v43 = vld [vmem:[%s0 + $0x64] sm:$0xf]
  %v44 = vld [vmem:[%s0 + $0x68] sm:$0xf]
  %v45 = vld [vmem:[%s0 + $0x6c] sm:$0xf]
  %v46 = vld [vmem:[%s0 + $0x70] sm:$0xf]
  %v47 = vld [vmem:[%s0 + $0x74] sm:$0xf]
  %v48 = vld [vmem:[%s0 + $0x78] sm:$0xf]
  %v49 = vld [vmem:[%s0 + $0x7c] sm:$0xf]
  %v50 = vld [vmem:[%s0 + $0x80] sm:$0xf]
  %v51 = vld [vmem:[%s0 + $0x84] sm:$0xf]
  %v52 = vld [vmem:[%s0 + $0x88] sm:$0xf]
  %v53 = vld [vmem:[%s0 + $0x8c] sm:$0xf]
  %v54 = vld [vmem:[%s0 + $0x90] sm:$0xf]
  %v55 = vld [vmem:[%s0 + $0x94] sm:$0xf]
  %v56 = vld [vmem:[%s0 + $0x98] sm:$0xf]
  %v57 = vld [vmem:[%s0 + $0x9c] sm:$0xf]
  %v58 = vld [vmem:[%s0 + $0xa0] sm:$0xf]
  %v59 = vld [vmem:[%s0 + $0xa4] sm:$0xf]
  %v60 = vld [vmem:[%s0 + $0xa8] sm:$0xf]
  %v61 = vld [vmem:[%s0 + $0xac] sm:$0xf]
  %v62 = vld [vmem:[%s0 + $0xb0] sm:$0xf]
  %v63 = vld [vmem:[%s0 + $0xb4] sm:$0xf]
  %v64 = vld [vmem:[%s0 + $0xb8] sm:$0xf]
  %v65 = vld [vmem:[%s0 + $0xbc] sm:$0xf]
  %v66 = vld [vmem:[%s0 + $0xc0] sm:$0xf]
  %v67 = vld [vmem:[%s0 + $0xc4] sm:$0xf]
  %v68 = vld [vmem:[%s0 + $0xc8] sm:$0xf]
  %v69 = vld [vmem:[%s0 + $0xcc] sm:$0xf]
  %v70 = vld [vmem:[%s0 + $0xd0] sm:$0xf]
  %v71 = vld [vmem:[%s0 + $0xd4] sm:$0xf]
  %v72 = vld [vmem:[%s0 + $0xd8] sm:$0xf]
  %v73 = vld [vmem:[%s0 + $0xdc] sm:$0xf]
  %v74 = vld [vmem:[%s0 + $0xe0] sm:$0xf]
  %v75 = vld [vmem:[%s0 + $0xe4] sm:$0xf]
  %v76 = vld [vmem:[%s0 + $0xe8] sm:$0xf]
  %v77 = vld [vmem:[%s0 + $0xec] sm:$0xf]
  %v78 = vld [vmem:[%s0 + $0xf0] sm:$0xf]
  %v79 = vld [vmem:[%s0 + $0xf4] sm:$0xf]
  %v80 = vld [vmem:[%s0 + $0xf8] sm:$0xf]
  %v81 = vld [vmem:[%s0 + $0xfc] sm:$0xf]
  %v82 = vld [vmem:[%s1] sm:$0xf]
  %v83 = vld [vmem:[%s1 + $0x4] sm:$0xf]
  %v84 = vld [vmem:[%s1 + $0x8] sm:$0xf]
  %v85 = vld [vmem:[%s1 + $0xc] sm:$0xf]
  %v86 = vld [vmem:[%s1 + $0x10] sm:$0xf]
  %v87 = vld [vmem:[%s1 + $0x14] sm:$0xf]
  %v88 = vld [vmem:[%s1 + $0x18] sm:$0xf]
  %v89 = vld [vmem:[%s1 + $0x1c] sm:$0xf]
  %v90 = vld [vmem:[%s1 + $0x20] sm:$0xf]
  %v91 = vld [vmem:[%s1 + $0x24] sm:$0xf]
  %v92 = vld [vmem:[%s1 + $0x28] sm:$0xf]
  %v93 = vld [vmem:[%s1 + $0x2c] sm:$0xf]
  %v94 = vld [vmem:[%s1 + $0x30] sm:$0xf]
  %v95 = vld [vmem:[%s1 + $0x34] sm:$0xf]
  %v96 = vld [vmem:[%s1 + $0x38] sm:$0xf]
  %v97 = vld [vmem:[%s1 + $0x3c] sm:$0xf]
  %v162 = vunpack.c.l.b16 %v18
  %v163 = vunpack.c.l.b16 %v19
  %v164 = vunpack.c.l.b16 %v20
  %v165 = vunpack.c.l.b16 %v21
  %v166 = vunpack.c.l.b16 %v22
  %v167 = vunpack.c.l.b16 %v23
  %v168 = vunpack.c.l.b16 %v24
  %v169 = vunpack.c.l.b16 %v25
  %v170 = vunpack.c.l.b16 %v26
  %v171 = vunpack.c.l.b16 %v27
  %v172 = vunpack.c.l.b16 %v28
  %v173 = vunpack.c.l.b16 %v29
  %v174 = vunpack.c.l.b16 %v30
  %v175 = vunpack.c.l.b16 %v31
  %v176 = vunpack.c.l.b16 %v32
  %v177 = vunpack.c.l.b16 %v33
  %v178 = vunpack.c.l.b16 %v34
  %v179 = vunpack.c.l.b16 %v35
  %v180 = vunpack.c.l.b16 %v36
  %v181 = vunpack.c.l.b16 %v37
  %v182 = vunpack.c.l.b16 %v38
  %v183 = vunpack.c.l.b16 %v39
  %v184 = vunpack.c.l.b16 %v40
  %v185 = vunpack.c.l.b16 %v41
  %v186 = vunpack.c.l.b16 %v42
  %v187 = vunpack.c.l.b16 %v43
  %v188 = vunpack.c.l.b16 %v44
  %v189 = vunpack.c.l.b16 %v45
  %v190 = vunpack.c.l.b16 %v46
  %v191 = vunpack.c.l.b16 %v47
  %v192 = vunpack.c.l.b16 %v48
  %v193 = vunpack.c.l.b16 %v49
  %v194 = vunpack.c.l.b16 %v50
  %v195 = vunpack.c.l.b16 %v51
  %v196 = vunpack.c.l.b16 %v52
  %v197 = vunpack.c.l.b16 %v53
  %v198 = vunpack.c.l.b16 %v54
  %v199 = vunpack.c.l.b16 %v55
  %v200 = vunpack.c.l.b16 %v56
  %v201 = vunpack.c.l.b16 %v57
  %v202 = vunpack.c.l.b16 %v58
  %v203 = vunpack.c.l.b16 %v59
  %v204 = vunpack.c.l.b16 %v60
  %v205 = vunpack.c.l.b16 %v61
  %v206 = vunpack.c.l.b16 %v62
  %v207 = vunpack.c.l.b16 %v63
  %v208 = vunpack.c.l.b16 %v64
  %v209 = vunpack.c.l.b16 %v65
  %v210 = vunpack.c.l.b16 %v66
  %v211 = vunpack.c.l.b16 %v67
  %v212 = vunpack.c.l.b16 %v68
  %v213 = vunpack.c.l.b16 %v69
  %v214 = vunpack.c.l.b16 %v70
  %v215 = vunpack.c.l.b16 %v71
  %v216 = vunpack.c.l.b16 %v72
  %v217 = vunpack.c.l.b16 %v73
  %v218 = vunpack.c.l.b16 %v74
  %v219 = vunpack.c.l.b16 %v75
  %v220 = vunpack.c.l.b16 %v76
  %v221 = vunpack.c.l.b16 %v77
  %v222 = vunpack.c.l.b16 %v78
  %v223 = vunpack.c.l.b16 %v79
  %v224 = vunpack.c.l.b16 %v80
  %v225 = vunpack.c.l.b16 %v81
  %v226 = vpack.c.b16 %v163, %v162
  %v227 = vpack.c.b16 %v165, %v164
  %v228 = vpack.c.b16 %v167, %v166
  %v229 = vpack.c.b16 %v169, %v168
  %v230 = vpack.c.b16 %v171, %v170
  %v231 = vpack.c.b16 %v173, %v172
  %v232 = vpack.c.b16 %v175, %v174
  %v233 = vpack.c.b16 %v177, %v176
  %v234 = vpack.c.b16 %v179, %v178
  %v235 = vpack.c.b16 %v181, %v180
  %v236 = vpack.c.b16 %v183, %v182
  %v237 = vpack.c.b16 %v185, %v184
  %v238 = vpack.c.b16 %v187, %v186
  %v239 = vpack.c.b16 %v189, %v188
  %v240 = vpack.c.b16 %v191, %v190
  %v241 = vpack.c.b16 %v193, %v192
  %v242 = vpack.c.b16 %v195, %v194
  %v243 = vpack.c.b16 %v197, %v196
  %v244 = vpack.c.b16 %v199, %v198
  %v245 = vpack.c.b16 %v201, %v200
  %v246 = vpack.c.b16 %v203, %v202
  %v247 = vpack.c.b16 %v205, %v204
  %v248 = vpack.c.b16 %v207, %v206
  %v249 = vpack.c.b16 %v209, %v208
  %v250 = vpack.c.b16 %v211, %v210
  %v251 = vpack.c.b16 %v213, %v212
  %v252 = vpack.c.b16 %v215, %v214
  %v253 = vpack.c.b16 %v217, %v216
  %v254 = vpack.c.b16 %v219, %v218
  %v255 = vpack.c.b16 %v221, %v220
  %v256 = vpack.c.b16 %v223, %v222
  %v257 = vpack.c.b16 %v225, %v224
  %v306 = vunpack.c.l.b16 %v82
  %v307 = vunpack.c.l.b16 %v83
  %v308 = vunpack.c.l.b16 %v84
  %v309 = vunpack.c.l.b16 %v85
  %v310 = vunpack.c.l.b16 %v86
  %v311 = vunpack.c.l.b16 %v87
  %v312 = vunpack.c.l.b16 %v88
  %v313 = vunpack.c.l.b16 %v89
  %v314 = vunpack.c.l.b16 %v90
  %v315 = vunpack.c.l.b16 %v91
  %v316 = vunpack.c.l.b16 %v92
  %v317 = vunpack.c.l.b16 %v93
  %v318 = vunpack.c.l.b16 %v94
  %v319 = vunpack.c.l.b16 %v95
  %v320 = vunpack.c.l.b16 %v96
  %v321 = vunpack.c.l.b16 %v97
  %v322 = vpack.c.b16 %v307, %v306
  %v323 = vpack.c.b16 %v309, %v308
  %v324 = vpack.c.b16 %v311, %v310
  %v325 = vpack.c.b16 %v313, %v312
  %v326 = vpack.c.b16 %v315, %v314
  %v327 = vpack.c.b16 %v317, %v316
  %v328 = vpack.c.b16 %v319, %v318
  %v329 = vpack.c.b16 %v321, %v320
  %338 = vmatprep.subr.bf16.mxu0 0
  %339 = vmatpush1.bf16.msra.mxu0 %v322
  %340 = vmatprep.subr.bf16.mxu0 0
  %341 = vmatpush1.bf16.msra.mxu0 %v323
  %342 = vmatprep.subr.bf16.mxu0 0
  %343 = vmatpush1.bf16.msra.mxu0 %v324
  %344 = vmatprep.subr.bf16.mxu0 0
  %345 = vmatpush1.bf16.msra.mxu0 %v325
  %346 = vmatprep.subr.bf16.mxu0 0
  %347 = vmatpush1.bf16.msra.mxu0 %v326
  %348 = vmatprep.subr.bf16.mxu0 0
  %349 = vmatpush1.bf16.msra.mxu0 %v327
  %350 = vmatprep.subr.bf16.mxu0 0
  %351 = vmatpush1.bf16.msra.mxu0 %v328
  %352 = vmatprep.subr.bf16.mxu0 0
  %353 = vmatpush1.bf16.msra.mxu0 %v329
  %354 = vmatprep.subr.bf16.mxu0 0
  %355 = vmatpush1.bf16.msra.mxu0 0
  %356 = vmatprep.subr.bf16.mxu0 0
  %357 = vmatpush1.bf16.msra.mxu0 0
  %358 = vmatprep.subr.bf16.mxu0 0
  %359 = vmatpush1.bf16.msra.mxu0 0
  %360 = vmatprep.subr.bf16.mxu0 0
  %361 = vmatpush1.bf16.msra.mxu0 0
  %362 = vmatprep.subr.bf16.mxu0 0
  %363 = vmatpush1.bf16.msra.mxu0 0
  %364 = vmatprep.subr.bf16.mxu0 0
  %365 = vmatpush1.bf16.msra.mxu0 0
  %366 = vmatprep.subr.bf16.mxu0 0
  %367 = vmatpush1.bf16.msra.mxu0 0
  %368 = vmatprep.subr.bf16.mxu0 0
  %369 = vmatpush1.bf16.msra.mxu0 0
  %370 = vmatprep.mubr.bf16.mxu0 0
  %371 = vmatmul.mubr.bf16.gmra.mrb[0].mxu0 %v226
  %v372 = vpop.f32.mrb[0].mxu0
  %v373 = vadd.f32 0.0, %v372
  %v374 = vpop.f32.mrb[0].mxu0
  %v375 = vpop.f32.mrb[0].mxu0
  %v376 = vadd.f32 0.0, %v375
  %v377 = vpop.f32.mrb[0].mxu0
  %378 = vmatprep.mubr.bf16.mxu0 0
  %379 = vmatmul.mubr.bf16.gmra.mrb[0].mxu0 %v227
  %v380 = vpop.f32.mrb[0].mxu0
  %v381 = vadd.f32 0.0, %v380
  %v382 = vpop.f32.mrb[0].mxu0
  %v383 = vpop.f32.mrb[0].mxu0
  %v384 = vadd.f32 0.0, %v383
  %v385 = vpop.f32.mrb[0].mxu0
  %386 = vmatprep.mubr.bf16.mxu0 0
  %387 = vmatmul.mubr.bf16.gmra.mrb[0].mxu0 %v228
  %v388 = vpop.f32.mrb[0].mxu0
  %v389 = vadd.f32 0.0, %v388
  %v390 = vpop.f32.mrb[0].mxu0
  %v391 = vpop.f32.mrb[0].mxu0
  %v392 = vadd.f32 0.0, %v391
  %v393 = vpop.f32.mrb[0].mxu0
  %394 = vmatprep.mubr.bf16.mxu0 0
  %395 = vmatmul.mubr.bf16.gmra.mrb[0].mxu0 %v229
  %v396 = vpop.f32.mrb[0].mxu0
  %v397 = vadd.f32 0.0, %v396
  %v398 = vpop.f32.mrb[0].mxu0
  %v399 = vpop.f32.mrb[0].mxu0
  %v400 = vadd.f32 0.0, %v399
  %v401 = vpop.f32.mrb[0].mxu0
  %402 = vmatprep.mubr.bf16.mxu0 0
  %403 = vmatmul.mubr.bf16.gmra.mrb[0].mxu0 %v230
  %v404 = vpop.f32.mrb[0].mxu0
  %v405 = vadd.f32 0.0, %v404
  %v406 = vpop.f32.mrb[0].mxu0
  %v407 = vpop.f32.mrb[0].mxu0
  %v408 = vadd.f32 0.0, %v407
  %v409 = vpop.f32.mrb[0].mxu0
  %410 = vmatprep.mubr.bf16.mxu0 0
  %411 = vmatmul.mubr.bf16.gmra.mrb[0].mxu0 %v231
  %v412 = vpop.f32.mrb[0].mxu0
  %v413 = vadd.f32 0.0, %v412
  %v414 = vpop.f32.mrb[0].mxu0
  %v415 = vpop.f32.mrb[0].mxu0
  %v416 = vadd.f32 0.0, %v415
  %v417 = vpop.f32.mrb[0].mxu0
  %418 = vmatprep.mubr.bf16.mxu0 0
  %419 = vmatmul.mubr.bf16.gmra.mrb[0].mxu0 %v232
  %v420 = vpop.f32.mrb[0].mxu0
  %v421 = vadd.f32 0.0, %v420
  %v422 = vpop.f32.mrb[0].mxu0
  %v423 = vpop.f32.mrb[0].mxu0
  %v424 = vadd.f32 0.0, %v423
  %v425 = vpop.f32.mrb[0].mxu0
  %426 = vmatprep.mubr.bf16.mxu0 0
  %427 = vmatmul.mubr.bf16.gmra.mrb[0].mxu0 %v233
  %v428 = vpop.f32.mrb[0].mxu0
  %v429 = vadd.f32 0.0, %v428
  %v430 = vpop.f32.mrb[0].mxu0
  %v431 = vpop.f32.mrb[0].mxu0
  %v432 = vadd.f32 0.0, %v431
  %v433 = vpop.f32.mrb[0].mxu0
  %434 = vmatprep.mubr.bf16.mxu0 0
  %435 = vmatmul.mubr.bf16.gmra.mrb[0].mxu0 %v234
  %v436 = vpop.f32.mrb[0].mxu0
  %v437 = vadd.f32 0.0, %v436
  %v438 = vpop.f32.mrb[0].mxu0
  %v439 = vpop.f32.mrb[0].mxu0
  %v440 = vadd.f32 0.0, %v439
  %v441 = vpop.f32.mrb[0].mxu0
  %442 = vmatprep.mubr.bf16.mxu0 0
  %443 = vmatmul.mubr.bf16.gmra.mrb[0].mxu0 %v235
  %v444 = vpop.f32.mrb[0].mxu0
  %v445 = vadd.f32 0.0, %v444
  %v446 = vpop.f32.mrb[0].mxu0
  %v447 = vpop.f32.mrb[0].mxu0
  %v448 = vadd.f32 0.0, %v447
  %v449 = vpop.f32.mrb[0].mxu0
  %450 = vmatprep.mubr.bf16.mxu0 0
  %451 = vmatmul.mubr.bf16.gmra.mrb[0].mxu0 %v236
  %v452 = vpop.f32.mrb[0].mxu0
  %v453 = vadd.f32 0.0, %v452
  %v454 = vpop.f32.mrb[0].mxu0
  %v455 = vpop.f32.mrb[0].mxu0
  %v456 = vadd.f32 0.0, %v455
  %v457 = vpop.f32.mrb[0].mxu0
  %458 = vmatprep.mubr.bf16.mxu0 0
  %459 = vmatmul.mubr.bf16.gmra.mrb[0].mxu0 %v237
  %v460 = vpop.f32.mrb[0].mxu0
  %v461 = vadd.f32 0.0, %v460
  %v462 = vpop.f32.mrb[0].mxu0
  %v463 = vpop.f32.mrb[0].mxu0
  %v464 = vadd.f32 0.0, %v463
  %v465 = vpop.f32.mrb[0].mxu0
  %466 = vmatprep.mubr.bf16.mxu0 0
  %467 = vmatmul.mubr.bf16.gmra.mrb[0].mxu0 %v238
  %v468 = vpop.f32.mrb[0].mxu0
  %v469 = vadd.f32 0.0, %v468
  %v470 = vpop.f32.mrb[0].mxu0
  %v471 = vpop.f32.mrb[0].mxu0
  %v472 = vadd.f32 0.0, %v471
  %v473 = vpop.f32.mrb[0].mxu0
  %474 = vmatprep.mubr.bf16.mxu0 0
  %475 = vmatmul.mubr.bf16.gmra.mrb[0].mxu0 %v239
  %v476 = vpop.f32.mrb[0].mxu0
  %v477 = vadd.f32 0.0, %v476
  %v478 = vpop.f32.mrb[0].mxu0
  %v479 = vpop.f32.mrb[0].mxu0
  %v480 = vadd.f32 0.0, %v479
  %v481 = vpop.f32.mrb[0].mxu0
  %482 = vmatprep.mubr.bf16.mxu0 0
  %483 = vmatmul.mubr.bf16.gmra.mrb[0].mxu0 %v240
  %v484 = vpop.f32.mrb[0].mxu0
  %v485 = vadd.f32 0.0, %v484
  %v486 = vpop.f32.mrb[0].mxu0
  %v487 = vpop.f32.mrb[0].mxu0
  %v488 = vadd.f32 0.0, %v487
  %v489 = vpop.f32.mrb[0].mxu0
  %490 = vmatprep.mubr.bf16.mxu0 0
  %491 = vmatmul.mubr.bf16.gmra.mrb[0].mxu0 %v241
  %v492 = vpop.f32.mrb[0].mxu0
  %v493 = vadd.f32 0.0, %v492
  %v494 = vpop.f32.mrb[0].mxu0
  %v495 = vpop.f32.mrb[0].mxu0
  %v496 = vadd.f32 0.0, %v495
  %v497 = vpop.f32.mrb[0].mxu0
  %498 = vmatprep.mubr.bf16.mxu0 0
  %499 = vmatmul.mubr.bf16.gmra.mrb[0].mxu0 %v242
  %v500 = vpop.f32.mrb[0].mxu0
  %v501 = vadd.f32 0.0, %v500
  %v502 = vpop.f32.mrb[0].mxu0
  %v503 = vpop.f32.mrb[0].mxu0
  %v504 = vadd.f32 0.0, %v503
  %v505 = vpop.f32.mrb[0].mxu0
  %506 = vmatprep.mubr.bf16.mxu0 0
  %507 = vmatmul.mubr.bf16.gmra.mrb[0].mxu0 %v243
  %v508 = vpop.f32.mrb[0].mxu0
  %v509 = vadd.f32 0.0, %v508
  %v510 = vpop.f32.mrb[0].mxu0
  %v511 = vpop.f32.mrb[0].mxu0
  %v512 = vadd.f32 0.0, %v511
  %v513 = vpop.f32.mrb[0].mxu0
  %514 = vmatprep.mubr.bf16.mxu0 0
  %515 = vmatmul.mubr.bf16.gmra.mrb[0].mxu0 %v244
  %v516 = vpop.f32.mrb[0].mxu0
  %v517 = vadd.f32 0.0, %v516
  %v518 = vpop.f32.mrb[0].mxu0
  %v519 = vpop.f32.mrb[0].mxu0
  %v520 = vadd.f32 0.0, %v519
  %v521 = vpop.f32.mrb[0].mxu0
  %522 = vmatprep.mubr.bf16.mxu0 0
  %523 = vmatmul.mubr.bf16.gmra.mrb[0].mxu0 %v245
  %v524 = vpop.f32.mrb[0].mxu0
  %v525 = vadd.f32 0.0, %v524
  %v526 = vpop.f32.mrb[0].mxu0
  %v527 = vpop.f32.mrb[0].mxu0
  %v528 = vadd.f32 0.0, %v527
  %v529 = vpop.f32.mrb[0].mxu0
  %530 = vmatprep.mubr.bf16.mxu0 0
  %531 = vmatmul.mubr.bf16.gmra.mrb[0].mxu0 %v246
  %v532 = vpop.f32.mrb[0].mxu0
  %v533 = vadd.f32 0.0, %v532
  %v534 = vpop.f32.mrb[0].mxu0
  %v535 = vpop.f32.mrb[0].mxu0
  %v536 = vadd.f32 0.0, %v535
  %v537 = vpop.f32.mrb[0].mxu0
  %538 = vmatprep.mubr.bf16.mxu0 0
  %539 = vmatmul.mubr.bf16.gmra.mrb[0].mxu0 %v247
  %v540 = vpop.f32.mrb[0].mxu0
  %v541 = vadd.f32 0.0, %v540
  %v542 = vpop.f32.mrb[0].mxu0
  %v543 = vpop.f32.mrb[0].mxu0
  %v544 = vadd.f32 0.0, %v543
  %v545 = vpop.f32.mrb[0].mxu0
  %546 = vmatprep.mubr.bf16.mxu0 0
  %547 = vmatmul.mubr.bf16.gmra.mrb[0].mxu0 %v248
  %v548 = vpop.f32.mrb[0].mxu0
  %v549 = vadd.f32 0.0, %v548
  %v550 = vpop.f32.mrb[0].mxu0
  %v551 = vpop.f32.mrb[0].mxu0
  %v552 = vadd.f32 0.0, %v551
  %v553 = vpop.f32.mrb[0].mxu0
  %554 = vmatprep.mubr.bf16.mxu0 0
  %555 = vmatmul.mubr.bf16.gmra.mrb[0].mxu0 %v249
  %v556 = vpop.f32.mrb[0].mxu0
  %v557 = vadd.f32 0.0, %v556
  %v558 = vpop.f32.mrb[0].mxu0
  %v559 = vpop.f32.mrb[0].mxu0
  %v560 = vadd.f32 0.0, %v559
  %v561 = vpop.f32.mrb[0].mxu0
  %562 = vmatprep.mubr.bf16.mxu0 0
  %563 = vmatmul.mubr.bf16.gmra.mrb[0].mxu0 %v250
  %v564 = vpop.f32.mrb[0].mxu0
  %v565 = vadd.f32 0.0, %v564
  %v566 = vpop.f32.mrb[0].mxu0
  %v567 = vpop.f32.mrb[0].mxu0
  %v568 = vadd.f32 0.0, %v567
  %v569 = vpop.f32.mrb[0].mxu0
  %570 = vmatprep.mubr.bf16.mxu0 0
  %571 = vmatmul.mubr.bf16.gmra.mrb[0].mxu0 %v251
  %v572 = vpop.f32.mrb[0].mxu0
  %v573 = vadd.f32 0.0, %v572
  %v574 = vpop.f32.mrb[0].mxu0
  %v575 = vpop.f32.mrb[0].mxu0
  %v576 = vadd.f32 0.0, %v575
  %v577 = vpop.f32.mrb[0].mxu0
  %578 = vmatprep.mubr.bf16.mxu0 0
  %579 = vmatmul.mubr.bf16.gmra.mrb[0].mxu0 %v252
  %v580 = vpop.f32.mrb[0].mxu0
  %v581 = vadd.f32 0.0, %v580
  %v582 = vpop.f32.mrb[0].mxu0
  %v583 = vpop.f32.mrb[0].mxu0
  %v584 = vadd.f32 0.0, %v583
  %v585 = vpop.f32.mrb[0].mxu0
  %586 = vmatprep.mubr.bf16.mxu0 0
  %587 = vmatmul.mubr.bf16.gmra.mrb[0].mxu0 %v253
  %v588 = vpop.f32.mrb[0].mxu0
  %v589 = vadd.f32 0.0, %v588
  %v590 = vpop.f32.mrb[0].mxu0
  %v591 = vpop.f32.mrb[0].mxu0
  %v592 = vadd.f32 0.0, %v591
  %v593 = vpop.f32.mrb[0].mxu0
  %594 = vmatprep.mubr.bf16.mxu0 0
  %595 = vmatmul.mubr.bf16.gmra.mrb[0].mxu0 %v254
  %v596 = vpop.f32.mrb[0].mxu0
  %v597 = vadd.f32 0.0, %v596
  %v598 = vpop.f32.mrb[0].mxu0
  %v599 = vpop.f32.mrb[0].mxu0
  %v600 = vadd.f32 0.0, %v599
  %v601 = vpop.f32.mrb[0].mxu0
  %602 = vmatprep.mubr.bf16.mxu0 0
  %603 = vmatmul.mubr.bf16.gmra.mrb[0].mxu0 %v255
  %v604 = vpop.f32.mrb[0].mxu0
  %v605 = vadd.f32 0.0, %v604
  %v606 = vpop.f32.mrb[0].mxu0
  %v607 = vpop.f32.mrb[0].mxu0
  %v608 = vadd.f32 0.0, %v607
  %v609 = vpop.f32.mrb[0].mxu0
  %610 = vmatprep.mubr.bf16.mxu0 0
  %611 = vmatmul.mubr.bf16.gmra.mrb[0].mxu0 %v256
  %v612 = vpop.f32.mrb[0].mxu0
  %v613 = vadd.f32 0.0, %v612
  %v614 = vpop.f32.mrb[0].mxu0
  %v615 = vpop.f32.mrb[0].mxu0
  %v616 = vadd.f32 0.0, %v615
  %v617 = vpop.f32.mrb[0].mxu0
  %618 = vmatprep.mubr.bf16.mxu0 0
  %619 = vmatmul.mubr.bf16.gmra.mrb[0].mxu0 %v257
  %v620 = vpop.f32.mrb[0].mxu0
  %v621 = vadd.f32 0.0, %v620
  %v622 = vpop.f32.mrb[0].mxu0
  %v623 = vpop.f32.mrb[0].mxu0
  %v624 = vadd.f32 0.0, %v623
  %v625 = vpop.f32.mrb[0].mxu0
  %626 = vdwg.mxu0
  %v627 = vadd.f32 %v373, %v376
  %v628 = vadd.f32 %v627, %v381
  %v629 = vadd.f32 %v628, %v384
  %v630 = vadd.f32 %v629, %v389
  %v631 = vadd.f32 %v630, %v392
  %v632 = vadd.f32 %v631, %v397
  %v633 = vadd.f32 %v632, %v400
  %v634 = vadd.f32 %v633, %v405
  %v635 = vadd.f32 %v634, %v408
  %v636 = vadd.f32 %v635, %v413
  %v637 = vadd.f32 %v636, %v416
  %v638 = vadd.f32 %v637, %v421
  %v639 = vadd.f32 %v638, %v424
  %v640 = vadd.f32 %v639, %v429
  %v641 = vadd.f32 %v640, %v432
  %v642 = vadd.f32 %v641, %v437
  %v643 = vadd.f32 %v642, %v440
  %v644 = vadd.f32 %v643, %v445
  %v645 = vadd.f32 %v644, %v448
  %v646 = vadd.f32 %v645, %v453
  %v647 = vadd.f32 %v646, %v456
  %v648 = vadd.f32 %v647, %v461
  %v649 = vadd.f32 %v648, %v464
  %v650 = vadd.f32 %v649, %v469
  %v651 = vadd.f32 %v650, %v472
  %v652 = vadd.f32 %v651, %v477
  %v653 = vadd.f32 %v652, %v480
  %v654 = vadd.f32 %v653, %v485
  %v655 = vadd.f32 %v654, %v488
  %v656 = vadd.f32 %v655, %v493
  %v657 = vadd.f32 %v656, %v496
  %v658 = vadd.f32 %v657, %v501
  %v659 = vadd.f32 %v658, %v504
  %v660 = vadd.f32 %v659, %v509
  %v661 = vadd.f32 %v660, %v512
  %v662 = vadd.f32 %v661, %v517
  %v663 = vadd.f32 %v662, %v520
  %v664 = vadd.f32 %v663, %v525
  %v665 = vadd.f32 %v664, %v528
  %v666 = vadd.f32 %v665, %v533
  %v667 = vadd.f32 %v666, %v536
  %v668 = vadd.f32 %v667, %v541
  %v669 = vadd.f32 %v668, %v544
  %v670 = vadd.f32 %v669, %v549
  %v671 = vadd.f32 %v670, %v552
  %v672 = vadd.f32 %v671, %v557
  %v673 = vadd.f32 %v672, %v560
  %v674 = vadd.f32 %v673, %v565
  %v675 = vadd.f32 %v674, %v568
  %v676 = vadd.f32 %v675, %v573
  %v677 = vadd.f32 %v676, %v576
  %v678 = vadd.f32 %v677, %v581
  %v679 = vadd.f32 %v678, %v584
  %v680 = vadd.f32 %v679, %v589
  %v681 = vadd.f32 %v680, %v592
  %v682 = vadd.f32 %v681, %v597
  %v683 = vadd.f32 %v682, %v600
  %v684 = vadd.f32 %v683, %v605
  %v685 = vadd.f32 %v684, %v608
  %v686 = vadd.f32 %v685, %v613
  %v687 = vadd.f32 %v686, %v616
  %v688 = vadd.f32 %v687, %v621
  %v689 = vadd.f32 %v688, %v624
  %v690 = vrot.slane %v689, 4
  %v691 = vadd.f32 %v689, %v690
  %v692 = vrot.slane %v691, 2
  %v693 = vadd.f32 %v691, %v692
  %v694 = vrot.slane %v693, 1
  %v695 = vadd.f32 %v693, %v694
  %v696 = vmul.f32 %v695, 0.001953125
  %v697 = vmul.f32 %v373, %v373
  %v698 = vmul.f32 %v376, %v376
  %v699 = vmul.f32 %v381, %v381
  %v700 = vmul.f32 %v384, %v384
  %v701 = vmul.f32 %v389, %v389
  %v702 = vmul.f32 %v392, %v392
  %v703 = vmul.f32 %v397, %v397
  %v704 = vmul.f32 %v400, %v400
  %v705 = vmul.f32 %v405, %v405
  %v706 = vmul.f32 %v408, %v408
  %v707 = vmul.f32 %v413, %v413
  %v708 = vmul.f32 %v416, %v416
  %v709 = vmul.f32 %v421, %v421
  %v710 = vmul.f32 %v424, %v424
  %v711 = vmul.f32 %v429, %v429
  %v712 = vmul.f32 %v432, %v432
  %v713 = vmul.f32 %v437, %v437
  %v714 = vmul.f32 %v440, %v440
  %v715 = vmul.f32 %v445, %v445
  %v716 = vmul.f32 %v448, %v448
  %v717 = vmul.f32 %v453, %v453
  %v718 = vmul.f32 %v456, %v456
  %v719 = vmul.f32 %v461, %v461
  %v720 = vmul.f32 %v464, %v464
  %v721 = vmul.f32 %v469, %v469
  %v722 = vmul.f32 %v472, %v472
  %v723 = vmul.f32 %v477, %v477
  %v724 = vmul.f32 %v480, %v480
  %v725 = vmul.f32 %v485, %v485
  %v726 = vmul.f32 %v488, %v488
  %v727 = vmul.f32 %v493, %v493
  %v728 = vmul.f32 %v496, %v496
  %v729 = vmul.f32 %v501, %v501
  %v730 = vmul.f32 %v504, %v504
  %v731 = vmul.f32 %v509, %v509
  %v732 = vmul.f32 %v512, %v512
  %v733 = vmul.f32 %v517, %v517
  %v734 = vmul.f32 %v520, %v520
  %v735 = vmul.f32 %v525, %v525
  %v736 = vmul.f32 %v528, %v528
  %v737 = vmul.f32 %v533, %v533
  %v738 = vmul.f32 %v536, %v536
  %v739 = vmul.f32 %v541, %v541
  %v740 = vmul.f32 %v544, %v544
  %v741 = vmul.f32 %v549, %v549
  %v742 = vmul.f32 %v552, %v552
  %v743 = vmul.f32 %v557, %v557
  %v744 = vmul.f32 %v560, %v560
  %v745 = vmul.f32 %v565, %v565
  %v746 = vmul.f32 %v568, %v568
  %v747 = vmul.f32 %v573, %v573
  %v748 = vmul.f32 %v576, %v576
  %v749 = vmul.f32 %v581, %v581
  %v750 = vmul.f32 %v584, %v584
  %v751 = vmul.f32 %v589, %v589
  %v752 = vmul.f32 %v592, %v592
  %v753 = vmul.f32 %v597, %v597
  %v754 = vmul.f32 %v600, %v600
  %v755 = vmul.f32 %v605, %v605
  %v756 = vmul.f32 %v608, %v608
  %v757 = vmul.f32 %v613, %v613
  %v758 = vmul.f32 %v616, %v616
  %v759 = vmul.f32 %v621, %v621
  %v760 = vmul.f32 %v624, %v624
  %v761 = vadd.f32 %v697, %v698
  %v762 = vadd.f32 %v761, %v699
  %v763 = vadd.f32 %v762, %v700
  %v764 = vadd.f32 %v763, %v701
  %v765 = vadd.f32 %v764, %v702
  %v766 = vadd.f32 %v765, %v703
  %v767 = vadd.f32 %v766, %v704
  %v768 = vadd.f32 %v767, %v705
  %v769 = vadd.f32 %v768, %v706
  %v770 = vadd.f32 %v769, %v707
  %v771 = vadd.f32 %v770, %v708
  %v772 = vadd.f32 %v771, %v709
  %v773 = vadd.f32 %v772, %v710
  %v774 = vadd.f32 %v773, %v711
  %v775 = vadd.f32 %v774, %v712
  %v776 = vadd.f32 %v775, %v713
  %v777 = vadd.f32 %v776, %v714
  %v778 = vadd.f32 %v777, %v715
  %v779 = vadd.f32 %v778, %v716
  %v780 = vadd.f32 %v779, %v717
  %v781 = vadd.f32 %v780, %v718
  %v782 = vadd.f32 %v781, %v719
  %v783 = vadd.f32 %v782, %v720
  %v784 = vadd.f32 %v783, %v721
  %v785 = vadd.f32 %v784, %v722
  %v786 = vadd.f32 %v785, %v723
  %v787 = vadd.f32 %v786, %v724
  %v788 = vadd.f32 %v787, %v725
  %v789 = vadd.f32 %v788, %v726
  %v790 = vadd.f32 %v789, %v727
  %v791 = vadd.f32 %v790, %v728
  %v792 = vadd.f32 %v791, %v729
  %v793 = vadd.f32 %v792, %v730
  %v794 = vadd.f32 %v793, %v731
  %v795 = vadd.f32 %v794, %v732
  %v796 = vadd.f32 %v795, %v733
  %v797 = vadd.f32 %v796, %v734
  %v798 = vadd.f32 %v797, %v735
  %v799 = vadd.f32 %v798, %v736
  %v800 = vadd.f32 %v799, %v737
  %v801 = vadd.f32 %v800, %v738
  %v802 = vadd.f32 %v801, %v739
  %v803 = vadd.f32 %v802, %v740
  %v804 = vadd.f32 %v803, %v741
  %v805 = vadd.f32 %v804, %v742
  %v806 = vadd.f32 %v805, %v743
  %v807 = vadd.f32 %v806, %v744
  %v808 = vadd.f32 %v807, %v745
  %v809 = vadd.f32 %v808, %v746
  %v810 = vadd.f32 %v809, %v747
  %v811 = vadd.f32 %v810, %v748
  %v812 = vadd.f32 %v811, %v749
  %v813 = vadd.f32 %v812, %v750
  %v814 = vadd.f32 %v813, %v751
  %v815 = vadd.f32 %v814, %v752
  %v816 = vadd.f32 %v815, %v753
  %v817 = vadd.f32 %v816, %v754
  %v818 = vadd.f32 %v817, %v755
  %v819 = vadd.f32 %v818, %v756
  %v820 = vadd.f32 %v819, %v757
  %v821 = vadd.f32 %v820, %v758
  %v822 = vadd.f32 %v821, %v759
  %v823 = vadd.f32 %v822, %v760
  %v824 = vrot.slane %v823, 4
  %v825 = vadd.f32 %v823, %v824
  %v826 = vrot.slane %v825, 2
  %v827 = vadd.f32 %v825, %v826
  %v828 = vrot.slane %v827, 1
  %v829 = vadd.f32 %v827, %v828
  %v830 = vmul.f32 %v829, 0.001953125
  %v831 = vmul.f32 %v696, %v696
  %v832 = vsub.f32 %v830, %v831
  %v833 = vmax.f32 %v832, 0.0
  %v834 = vld [vmem:[%s2] sm:$0x1]
  %v835 = vadd.f32 %v833, 1e-05
  %v836 = vrsqrt.pop %v835
  %v837 = vmul.f32 %v834, %v836
  %v838 = vld [vmem:[%s3] sm:$0x1]
  %v839 = vmul.f32 %v696, %v837
  %v840 = vsub.f32 %v838, %v839
  %v842 = vlaneseq
  %v843 = vshrl.u32 %v842, 7
  %v844 = vsub.s32 0, %v843
  %v845 = vrot.slane %v837, %v844
  %v847 = vmul.f32 %v373, %v845
  %v848 = vmul.f32 %v376, %v845
  %v849 = vmul.f32 %v381, %v845
  %v850 = vmul.f32 %v384, %v845
  %v851 = vmul.f32 %v389, %v845
  %v852 = vmul.f32 %v392, %v845
  %v853 = vmul.f32 %v397, %v845
  %v854 = vmul.f32 %v400, %v845
  %v855 = vmul.f32 %v405, %v845
  %v856 = vmul.f32 %v408, %v845
  %v857 = vmul.f32 %v413, %v845
  %v858 = vmul.f32 %v416, %v845
  %v859 = vmul.f32 %v421, %v845
  %v860 = vmul.f32 %v424, %v845
  %v861 = vmul.f32 %v429, %v845
  %v862 = vmul.f32 %v432, %v845
  %v863 = vmul.f32 %v437, %v845
  %v864 = vmul.f32 %v440, %v845
  %v865 = vmul.f32 %v445, %v845
  %v866 = vmul.f32 %v448, %v845
  %v867 = vmul.f32 %v453, %v845
  %v868 = vmul.f32 %v456, %v845
  %v869 = vmul.f32 %v461, %v845
  %v870 = vmul.f32 %v464, %v845
  %v871 = vmul.f32 %v469, %v845
  %v872 = vmul.f32 %v472, %v845
  %v873 = vmul.f32 %v477, %v845
  %v874 = vmul.f32 %v480, %v845
  %v875 = vmul.f32 %v485, %v845
  %v876 = vmul.f32 %v488, %v845
  %v877 = vmul.f32 %v493, %v845
  %v878 = vmul.f32 %v496, %v845
  %v879 = vmul.f32 %v501, %v845
  %v880 = vmul.f32 %v504, %v845
  %v881 = vmul.f32 %v509, %v845
  %v882 = vmul.f32 %v512, %v845
  %v883 = vmul.f32 %v517, %v845
  %v884 = vmul.f32 %v520, %v845
  %v885 = vmul.f32 %v525, %v845
  %v886 = vmul.f32 %v528, %v845
  %v887 = vmul.f32 %v533, %v845
  %v888 = vmul.f32 %v536, %v845
  %v889 = vmul.f32 %v541, %v845
  %v890 = vmul.f32 %v544, %v845
  %v891 = vmul.f32 %v549, %v845
  %v892 = vmul.f32 %v552, %v845
  %v893 = vmul.f32 %v557, %v845
  %v894 = vmul.f32 %v560, %v845
  %v895 = vmul.f32 %v565, %v845
  %v896 = vmul.f32 %v568, %v845
  %v897 = vmul.f32 %v573, %v845
  %v898 = vmul.f32 %v576, %v845
  %v899 = vmul.f32 %v581, %v845
  %v900 = vmul.f32 %v584, %v845
  %v901 = vmul.f32 %v589, %v845
  %v902 = vmul.f32 %v592, %v845
  %v903 = vmul.f32 %v597, %v845
  %v904 = vmul.f32 %v600, %v845
  %v905 = vmul.f32 %v605, %v845
  %v906 = vmul.f32 %v608, %v845
  %v907 = vmul.f32 %v613, %v845
  %v908 = vmul.f32 %v616, %v845
  %v909 = vmul.f32 %v621, %v845
  %v910 = vmul.f32 %v624, %v845
  %v912 = vlaneseq
  %v913 = vshrl.u32 %v912, 7
  %v914 = vsub.s32 0, %v913
  %v915 = vrot.slane %v840, %v914
  %v917 = vadd.f32 %v847, %v915
  %v918 = vadd.f32 %v848, %v915
  %v919 = vadd.f32 %v849, %v915
  %v920 = vadd.f32 %v850, %v915
  %v921 = vadd.f32 %v851, %v915
  %v922 = vadd.f32 %v852, %v915
  %v923 = vadd.f32 %v853, %v915
  %v924 = vadd.f32 %v854, %v915
  %v925 = vadd.f32 %v855, %v915
  %v926 = vadd.f32 %v856, %v915
  %v927 = vadd.f32 %v857, %v915
  %v928 = vadd.f32 %v858, %v915
  %v929 = vadd.f32 %v859, %v915
  %v930 = vadd.f32 %v860, %v915
  %v931 = vadd.f32 %v861, %v915
  %v932 = vadd.f32 %v862, %v915
  %v933 = vadd.f32 %v863, %v915
  %v934 = vadd.f32 %v864, %v915
  %v935 = vadd.f32 %v865, %v915
  %v936 = vadd.f32 %v866, %v915
  %v937 = vadd.f32 %v867, %v915
  %v938 = vadd.f32 %v868, %v915
  %v939 = vadd.f32 %v869, %v915
  %v940 = vadd.f32 %v870, %v915
  %v941 = vadd.f32 %v871, %v915
  %v942 = vadd.f32 %v872, %v915
  %v943 = vadd.f32 %v873, %v915
  %v944 = vadd.f32 %v874, %v915
  %v945 = vadd.f32 %v875, %v915
  %v946 = vadd.f32 %v876, %v915
  %v947 = vadd.f32 %v877, %v915
  %v948 = vadd.f32 %v878, %v915
  %v949 = vadd.f32 %v879, %v915
  %v950 = vadd.f32 %v880, %v915
  %v951 = vadd.f32 %v881, %v915
  %v952 = vadd.f32 %v882, %v915
  %v953 = vadd.f32 %v883, %v915
  %v954 = vadd.f32 %v884, %v915
  %v955 = vadd.f32 %v885, %v915
  %v956 = vadd.f32 %v886, %v915
  %v957 = vadd.f32 %v887, %v915
  %v958 = vadd.f32 %v888, %v915
  %v959 = vadd.f32 %v889, %v915
  %v960 = vadd.f32 %v890, %v915
  %v961 = vadd.f32 %v891, %v915
  %v962 = vadd.f32 %v892, %v915
  %v963 = vadd.f32 %v893, %v915
  %v964 = vadd.f32 %v894, %v915
  %v965 = vadd.f32 %v895, %v915
  %v966 = vadd.f32 %v896, %v915
  %v967 = vadd.f32 %v897, %v915
  %v968 = vadd.f32 %v898, %v915
  %v969 = vadd.f32 %v899, %v915
  %v970 = vadd.f32 %v900, %v915
  %v971 = vadd.f32 %v901, %v915
  %v972 = vadd.f32 %v902, %v915
  %v973 = vadd.f32 %v903, %v915
  %v974 = vadd.f32 %v904, %v915
  %v975 = vadd.f32 %v905, %v915
  %v976 = vadd.f32 %v906, %v915
  %v977 = vadd.f32 %v907, %v915
  %v978 = vadd.f32 %v908, %v915
  %v979 = vadd.f32 %v909, %v915
  %v980 = vadd.f32 %v910, %v915
  %v981 = vpack.c.bf16 %v918, %v917
  %v982 = vpack.c.bf16 %v920, %v919
  %v983 = vpack.c.bf16 %v922, %v921
  %v984 = vpack.c.bf16 %v924, %v923
  %v985 = vpack.c.bf16 %v926, %v925
  %v986 = vpack.c.bf16 %v928, %v927
  %v987 = vpack.c.bf16 %v930, %v929
  %v988 = vpack.c.bf16 %v932, %v931
  %v989 = vpack.c.bf16 %v934, %v933
  %v990 = vpack.c.bf16 %v936, %v935
  %v991 = vpack.c.bf16 %v938, %v937
  %v992 = vpack.c.bf16 %v940, %v939
  %v993 = vpack.c.bf16 %v942, %v941
  %v994 = vpack.c.bf16 %v944, %v943
  %v995 = vpack.c.bf16 %v946, %v945
  %v996 = vpack.c.bf16 %v948, %v947
  %v997 = vpack.c.bf16 %v950, %v949
  %v998 = vpack.c.bf16 %v952, %v951
  %v999 = vpack.c.bf16 %v954, %v953
  %v1000 = vpack.c.bf16 %v956, %v955
  %v1001 = vpack.c.bf16 %v958, %v957
  %v1002 = vpack.c.bf16 %v960, %v959
  %v1003 = vpack.c.bf16 %v962, %v961
  %v1004 = vpack.c.bf16 %v964, %v963
  %v1005 = vpack.c.bf16 %v966, %v965
  %v1006 = vpack.c.bf16 %v968, %v967
  %v1007 = vpack.c.bf16 %v970, %v969
  %v1008 = vpack.c.bf16 %v972, %v971
  %v1009 = vpack.c.bf16 %v974, %v973
  %v1010 = vpack.c.bf16 %v976, %v975
  %v1011 = vpack.c.bf16 %v978, %v977
  %v1012 = vpack.c.bf16 %v980, %v979
  %v1045 = vunpack.c.l.b16 %v981
  %v1046 = vunpack.c.h.b16 %v981
  %v1047 = vunpack.c.l.b16 %v982
  %v1048 = vunpack.c.h.b16 %v982
  %v1049 = vunpack.c.l.b16 %v983
  %v1050 = vunpack.c.h.b16 %v983
  %v1051 = vunpack.c.l.b16 %v984
  %v1052 = vunpack.c.h.b16 %v984
  %v1053 = vunpack.c.l.b16 %v985
  %v1054 = vunpack.c.h.b16 %v985
  %v1055 = vunpack.c.l.b16 %v986
  %v1056 = vunpack.c.h.b16 %v986
  %v1057 = vunpack.c.l.b16 %v987
  %v1058 = vunpack.c.h.b16 %v987
  %v1059 = vunpack.c.l.b16 %v988
  %v1060 = vunpack.c.h.b16 %v988
  %v1061 = vunpack.c.l.b16 %v989
  %v1062 = vunpack.c.h.b16 %v989
  %v1063 = vunpack.c.l.b16 %v990
  %v1064 = vunpack.c.h.b16 %v990
  %v1065 = vunpack.c.l.b16 %v991
  %v1066 = vunpack.c.h.b16 %v991
  %v1067 = vunpack.c.l.b16 %v992
  %v1068 = vunpack.c.h.b16 %v992
  %v1069 = vunpack.c.l.b16 %v993
  %v1070 = vunpack.c.h.b16 %v993
  %v1071 = vunpack.c.l.b16 %v994
  %v1072 = vunpack.c.h.b16 %v994
  %v1073 = vunpack.c.l.b16 %v995
  %v1074 = vunpack.c.h.b16 %v995
  %v1075 = vunpack.c.l.b16 %v996
  %v1076 = vunpack.c.h.b16 %v996
  %v1077 = vunpack.c.l.b16 %v997
  %v1078 = vunpack.c.h.b16 %v997
  %v1079 = vunpack.c.l.b16 %v998
  %v1080 = vunpack.c.h.b16 %v998
  %v1081 = vunpack.c.l.b16 %v999
  %v1082 = vunpack.c.h.b16 %v999
  %v1083 = vunpack.c.l.b16 %v1000
  %v1084 = vunpack.c.h.b16 %v1000
  %v1085 = vunpack.c.l.b16 %v1001
  %v1086 = vunpack.c.h.b16 %v1001
  %v1087 = vunpack.c.l.b16 %v1002
  %v1088 = vunpack.c.h.b16 %v1002
  %v1089 = vunpack.c.l.b16 %v1003
  %v1090 = vunpack.c.h.b16 %v1003
  %v1091 = vunpack.c.l.b16 %v1004
  %v1092 = vunpack.c.h.b16 %v1004
  %v1093 = vunpack.c.l.b16 %v1005
  %v1094 = vunpack.c.h.b16 %v1005
  %v1095 = vunpack.c.l.b16 %v1006
  %v1096 = vunpack.c.h.b16 %v1006
  %v1097 = vunpack.c.l.b16 %v1007
  %v1098 = vunpack.c.h.b16 %v1007
  %v1099 = vunpack.c.l.b16 %v1008
  %v1100 = vunpack.c.h.b16 %v1008
  %v1101 = vunpack.c.l.b16 %v1009
  %v1102 = vunpack.c.h.b16 %v1009
  %v1103 = vunpack.c.l.b16 %v1010
  %v1104 = vunpack.c.h.b16 %v1010
  %v1105 = vunpack.c.l.b16 %v1011
  %v1106 = vunpack.c.h.b16 %v1011
  %v1107 = vunpack.c.l.b16 %v1012
  %v1108 = vunpack.c.h.b16 %v1012
  %v1109 = vpack.c.b16 %v1045, %v1045
  %v1110 = vpack.c.b16 %v1046, %v1046
  %v1111 = vpack.c.b16 %v1047, %v1047
  %v1112 = vpack.c.b16 %v1048, %v1048
  %v1113 = vpack.c.b16 %v1049, %v1049
  %v1114 = vpack.c.b16 %v1050, %v1050
  %v1115 = vpack.c.b16 %v1051, %v1051
  %v1116 = vpack.c.b16 %v1052, %v1052
  %v1117 = vpack.c.b16 %v1053, %v1053
  %v1118 = vpack.c.b16 %v1054, %v1054
  %v1119 = vpack.c.b16 %v1055, %v1055
  %v1120 = vpack.c.b16 %v1056, %v1056
  %v1121 = vpack.c.b16 %v1057, %v1057
  %v1122 = vpack.c.b16 %v1058, %v1058
  %v1123 = vpack.c.b16 %v1059, %v1059
  %v1124 = vpack.c.b16 %v1060, %v1060
  %v1125 = vpack.c.b16 %v1061, %v1061
  %v1126 = vpack.c.b16 %v1062, %v1062
  %v1127 = vpack.c.b16 %v1063, %v1063
  %v1128 = vpack.c.b16 %v1064, %v1064
  %v1129 = vpack.c.b16 %v1065, %v1065
  %v1130 = vpack.c.b16 %v1066, %v1066
  %v1131 = vpack.c.b16 %v1067, %v1067
  %v1132 = vpack.c.b16 %v1068, %v1068
  %v1133 = vpack.c.b16 %v1069, %v1069
  %v1134 = vpack.c.b16 %v1070, %v1070
  %v1135 = vpack.c.b16 %v1071, %v1071
  %v1136 = vpack.c.b16 %v1072, %v1072
  %v1137 = vpack.c.b16 %v1073, %v1073
  %v1138 = vpack.c.b16 %v1074, %v1074
  %v1139 = vpack.c.b16 %v1075, %v1075
  %v1140 = vpack.c.b16 %v1076, %v1076
  %v1141 = vpack.c.b16 %v1077, %v1077
  %v1142 = vpack.c.b16 %v1078, %v1078
  %v1143 = vpack.c.b16 %v1079, %v1079
  %v1144 = vpack.c.b16 %v1080, %v1080
  %v1145 = vpack.c.b16 %v1081, %v1081
  %v1146 = vpack.c.b16 %v1082, %v1082
  %v1147 = vpack.c.b16 %v1083, %v1083
  %v1148 = vpack.c.b16 %v1084, %v1084
  %v1149 = vpack.c.b16 %v1085, %v1085
  %v1150 = vpack.c.b16 %v1086, %v1086
  %v1151 = vpack.c.b16 %v1087, %v1087
  %v1152 = vpack.c.b16 %v1088, %v1088
  %v1153 = vpack.c.b16 %v1089, %v1089
  %v1154 = vpack.c.b16 %v1090, %v1090
  %v1155 = vpack.c.b16 %v1091, %v1091
  %v1156 = vpack.c.b16 %v1092, %v1092
  %v1157 = vpack.c.b16 %v1093, %v1093
  %v1158 = vpack.c.b16 %v1094, %v1094
  %v1159 = vpack.c.b16 %v1095, %v1095
  %v1160 = vpack.c.b16 %v1096, %v1096
  %v1161 = vpack.c.b16 %v1097, %v1097
  %v1162 = vpack.c.b16 %v1098, %v1098
  %v1163 = vpack.c.b16 %v1099, %v1099
  %v1164 = vpack.c.b16 %v1100, %v1100
  %v1165 = vpack.c.b16 %v1101, %v1101
  %v1166 = vpack.c.b16 %v1102, %v1102
  %v1167 = vpack.c.b16 %v1103, %v1103
  %v1168 = vpack.c.b16 %v1104, %v1104
  %v1169 = vpack.c.b16 %v1105, %v1105
  %v1170 = vpack.c.b16 %v1106, %v1106
  %v1171 = vpack.c.b16 %v1107, %v1107
  %v1172 = vpack.c.b16 %v1108, %v1108
  %1237 = vst [vmem:[%s4] sm:$0xf] %v1109
  %1238 = vst [vmem:[%s4 + $0x4] sm:$0xf] %v1110
  %1239 = vst [vmem:[%s4 + $0x8] sm:$0xf] %v1111
  %1240 = vst [vmem:[%s4 + $0xc] sm:$0xf] %v1112
  %1241 = vst [vmem:[%s4 + $0x10] sm:$0xf] %v1113
  %1242 = vst [vmem:[%s4 + $0x14] sm:$0xf] %v1114
  %1243 = vst [vmem:[%s4 + $0x18] sm:$0xf] %v1115
  %1244 = vst [vmem:[%s4 + $0x1c] sm:$0xf] %v1116
  %1245 = vst [vmem:[%s4 + $0x20] sm:$0xf] %v1117
  %1246 = vst [vmem:[%s4 + $0x24] sm:$0xf] %v1118
  %1247 = vst [vmem:[%s4 + $0x28] sm:$0xf] %v1119
  %1248 = vst [vmem:[%s4 + $0x2c] sm:$0xf] %v1120
  %1249 = vst [vmem:[%s4 + $0x30] sm:$0xf] %v1121
  %1250 = vst [vmem:[%s4 + $0x34] sm:$0xf] %v1122
  %1251 = vst [vmem:[%s4 + $0x38] sm:$0xf] %v1123
  %1252 = vst [vmem:[%s4 + $0x3c] sm:$0xf] %v1124
  %1253 = vst [vmem:[%s4 + $0x40] sm:$0xf] %v1125
  %1254 = vst [vmem:[%s4 + $0x44] sm:$0xf] %v1126
  %1255 = vst [vmem:[%s4 + $0x48] sm:$0xf] %v1127
  %1256 = vst [vmem:[%s4 + $0x4c] sm:$0xf] %v1128
  %1257 = vst [vmem:[%s4 + $0x50] sm:$0xf] %v1129
  %1258 = vst [vmem:[%s4 + $0x54] sm:$0xf] %v1130
  %1259 = vst [vmem:[%s4 + $0x58] sm:$0xf] %v1131
  %1260 = vst [vmem:[%s4 + $0x5c] sm:$0xf] %v1132
  %1261 = vst [vmem:[%s4 + $0x60] sm:$0xf] %v1133
  %1262 = vst [vmem:[%s4 + $0x64] sm:$0xf] %v1134
  %1263 = vst [vmem:[%s4 + $0x68] sm:$0xf] %v1135
  %1264 = vst [vmem:[%s4 + $0x6c] sm:$0xf] %v1136
  %1265 = vst [vmem:[%s4 + $0x70] sm:$0xf] %v1137
  %1266 = vst [vmem:[%s4 + $0x74] sm:$0xf] %v1138
  %1267 = vst [vmem:[%s4 + $0x78] sm:$0xf] %v1139
  %1268 = vst [vmem:[%s4 + $0x7c] sm:$0xf] %v1140
  %1269 = vst [vmem:[%s4 + $0x80] sm:$0xf] %v1141
  %1270 = vst [vmem:[%s4 + $0x84] sm:$0xf] %v1142
  %1271 = vst [vmem:[%s4 + $0x88] sm:$0xf] %v1143
  %1272 = vst [vmem:[%s4 + $0x8c] sm:$0xf] %v1144
  %1273 = vst [vmem:[%s4 + $0x90] sm:$0xf] %v1145
  %1274 = vst [vmem:[%s4 + $0x94] sm:$0xf] %v1146
  %1275 = vst [vmem:[%s4 + $0x98] sm:$0xf] %v1147
  %1276 = vst [vmem:[%s4 + $0x9c] sm:$0xf] %v1148
  %1277 = vst [vmem:[%s4 + $0xa0] sm:$0xf] %v1149
  %1278 = vst [vmem:[%s4 + $0xa4] sm:$0xf] %v1150
  %1279 = vst [vmem:[%s4 + $0xa8] sm:$0xf] %v1151
  %1280 = vst [vmem:[%s4 + $0xac] sm:$0xf] %v1152
  %1281 = vst [vmem:[%s4 + $0xb0] sm:$0xf] %v1153
  %1282 = vst [vmem:[%s4 + $0xb4] sm:$0xf] %v1154
  %1283 = vst [vmem:[%s4 + $0xb8] sm:$0xf] %v1155
  %1284 = vst [vmem:[%s4 + $0xbc] sm:$0xf] %v1156
  %1285 = vst [vmem:[%s4 + $0xc0] sm:$0xf] %v1157
  %1286 = vst [vmem:[%s4 + $0xc4] sm:$0xf] %v1158
  %1287 = vst [vmem:[%s4 + $0xc8] sm:$0xf] %v1159
  %1288 = vst [vmem:[%s4 + $0xcc] sm:$0xf] %v1160
  %1289 = vst [vmem:[%s4 + $0xd0] sm:$0xf] %v1161
  %1290 = vst [vmem:[%s4 + $0xd4] sm:$0xf] %v1162
  %1291 = vst [vmem:[%s4 + $0xd8] sm:$0xf] %v1163
  %1292 = vst [vmem:[%s4 + $0xdc] sm:$0xf] %v1164
  %1293 = vst [vmem:[%s4 + $0xe0] sm:$0xf] %v1165
  %1294 = vst [vmem:[%s4 + $0xe4] sm:$0xf] %v1166
  %1295 = vst [vmem:[%s4 + $0xe8] sm:$0xf] %v1167
  %1296 = vst [vmem:[%s4 + $0xec] sm:$0xf] %v1168
  %1297 = vst [vmem:[%s4 + $0xf0] sm:$0xf] %v1169
  %1298 = vst [vmem:[%s4 + $0xf4] sm:$0xf] %v1170
  %1299 = vst [vmem:[%s4 + $0xf8] sm:$0xf] %v1171
  %1300 = vst [vmem:[%s4 + $0xfc] sm:$0xf] %v1172
  // Predicated region
  $region18: #{_lambda_.21} parent=0 // pred_check
    _
  $region19: #{_lambda_.21} parent=0 // pred_check_branch
    %1302 = sbr.rel (0) target = $region21
  $region20: #{_lambda_.21} parent=0 // pred_region
    _
  $region21: #{_lambda_.21} parent=0 // pred_fallthru
    _
  // Predicated region
  $region22: #{_lambda_.21} parent=0 // pred_check
    _
  $region23: #{_lambda_.21} parent=0 // pred_check_branch
    %1304 = sbr.rel (0) target = $region25
  $region24: #{_lambda_.21} parent=0 // pred_region
    _
  $region25: #{_lambda_.21} parent=0 // pred_fallthru
    _

// kernel: _lambda_.23
$region0: #{_lambda_.23}
  #allocation0 [shape = 'u32[]', space=smem, size = 0x4, offset = 0x4, fixed_abs, tag = 'smem constant byte address 0x4 - core index']
  #allocation1 [shape = 'u32[144,128]{1,0:T(1,128)}', space=vmem, size = 0x12000, scoped, tag = 'internal scratch']
  %s0 = inlined_call_operand.vmem [shape: bf16[512,256], index: 0, kind: input, shape index: {}]
  %s1 = inlined_call_operand.vmem [shape: bf16[256,128], index: 1, kind: input, shape index: {}]
  %s2 = inlined_call_operand.vmem [shape: f32[1,128], index: 2, kind: input, shape index: {}]
  %s3 = inlined_call_operand.vmem [shape: f32[1,128], index: 3, kind: input, shape index: {}]
  %s4 = inlined_call_operand.vmem [shape: bf16[512,128], index: 4, kind: input, shape index: {}]
  %s5 = inlined_call_operand.vmem [shape: bf16[512,128], index: 5, kind: output, shape index: {}]
  %s6 = sld [smem:[#allocation0]]
  $region30: #{_lambda_.23} parent=0
    _
  %s8 = ssub.s32 1, %s6
  %s9 = scalar_select 0, %s8, %s6
  // Predicated region
  $region2: #{_lambda_.23} parent=0 // pred_check
    _
  $region3: #{_lambda_.23} parent=0 // pred_check_branch
    %11 = sbr.rel (0) target = $region5
  $region4: #{_lambda_.23} parent=0 // pred_region
    _
  $region5: #{_lambda_.23} parent=0 // pred_fallthru
    _
  // Predicated region
  $region6: #{_lambda_.23} parent=0 // pred_check
    _
  $region7: #{_lambda_.23} parent=0 // pred_check_branch
    %13 = sbr.rel (0) target = $region9
  $region8: #{_lambda_.23} parent=0 // pred_region
    _
  $region9: #{_lambda_.23} parent=0 // pred_fallthru
    _
  // Predicated region
  $region10: #{_lambda_.23} parent=0 // pred_check
    _
  $region11: #{_lambda_.23} parent=0 // pred_check_branch
    %15 = sbr.rel (0) target = $region13
  $region12: #{_lambda_.23} parent=0 // pred_region
    _
  $region13: #{_lambda_.23} parent=0 // pred_fallthru
    _
  // Predicated region
  $region14: #{_lambda_.23} parent=0 // pred_check
    _
  $region15: #{_lambda_.23} parent=0 // pred_check_branch
    %17 = sbr.rel (0) target = $region17
  $region16: #{_lambda_.23} parent=0 // pred_region
    _
  $region17: #{_lambda_.23} parent=0 // pred_fallthru
    _
  // Predicated region
  $region18: #{_lambda_.23} parent=0 // pred_check
    _
  $region19: #{_lambda_.23} parent=0 // pred_check_branch
    %19 = sbr.rel (0) target = $region21
  $region20: #{_lambda_.23} parent=0 // pred_region
    _
  $region21: #{_lambda_.23} parent=0 // pred_fallthru
    _
  %v21 = vld [vmem:[%s0] sm:$0xff]
  %v22 = vld [vmem:[%s0 + $0x8] sm:$0xff]
  %v23 = vld [vmem:[%s0 + $0x10] sm:$0xff]
  %v24 = vld [vmem:[%s0 + $0x18] sm:$0xff]
  %v25 = vld [vmem:[%s0 + $0x20] sm:$0xff]
  %v26 = vld [vmem:[%s0 + $0x28] sm:$0xff]
  %v27 = vld [vmem:[%s0 + $0x30] sm:$0xff]
  %v28 = vld [vmem:[%s0 + $0x38] sm:$0xff]
  %v29 = vld [vmem:[%s0 + $0x40] sm:$0xff]
  %v30 = vld [vmem:[%s0 + $0x48] sm:$0xff]
  %v31 = vld [vmem:[%s0 + $0x50] sm:$0xff]
  %v32 = vld [vmem:[%s0 + $0x58] sm:$0xff]
  %v33 = vld [vmem:[%s0 + $0x60] sm:$0xff]
  %v34 = vld [vmem:[%s0 + $0x68] sm:$0xff]
  %v35 = vld [vmem:[%s0 + $0x70] sm:$0xff]
  %v36 = vld [vmem:[%s0 + $0x78] sm:$0xff]
  %v37 = vld [vmem:[%s0 + $0x80] sm:$0xff]
  %v38 = vld [vmem:[%s0 + $0x88] sm:$0xff]
  %v39 = vld [vmem:[%s0 + $0x90] sm:$0xff]
  %v40 = vld [vmem:[%s0 + $0x98] sm:$0xff]
  %v41 = vld [vmem:[%s0 + $0xa0] sm:$0xff]
  %v42 = vld [vmem:[%s0 + $0xa8] sm:$0xff]
  %v43 = vld [vmem:[%s0 + $0xb0] sm:$0xff]
  %v44 = vld [vmem:[%s0 + $0xb8] sm:$0xff]
  %v45 = vld [vmem:[%s0 + $0xc0] sm:$0xff]
  %v46 = vld [vmem:[%s0 + $0xc8] sm:$0xff]
  %v47 = vld [vmem:[%s0 + $0xd0] sm:$0xff]
  %v48 = vld [vmem:[%s0 + $0xd8] sm:$0xff]
  %v49 = vld [vmem:[%s0 + $0xe0] sm:$0xff]
  %v50 = vld [vmem:[%s0 + $0xe8] sm:$0xff]
  %v51 = vld [vmem:[%s0 + $0xf0] sm:$0xff]
  %v52 = vld [vmem:[%s0 + $0xf8] sm:$0xff]
  %v53 = vld [vmem:[%s0 + $0x100] sm:$0xff]
  %v54 = vld [vmem:[%s0 + $0x108] sm:$0xff]
  %v55 = vld [vmem:[%s0 + $0x110] sm:$0xff]
  %v56 = vld [vmem:[%s0 + $0x118] sm:$0xff]
  %v57 = vld [vmem:[%s0 + $0x120] sm:$0xff]
  %v58 = vld [vmem:[%s0 + $0x128] sm:$0xff]
  %v59 = vld [vmem:[%s0 + $0x130] sm:$0xff]
  %v60 = vld [vmem:[%s0 + $0x138] sm:$0xff]
  %v61 = vld [vmem:[%s0 + $0x140] sm:$0xff]
  %v62 = vld [vmem:[%s0 + $0x148] sm:$0xff]
  %v63 = vld [vmem:[%s0 + $0x150] sm:$0xff]
  %v64 = vld [vmem:[%s0 + $0x158] sm:$0xff]
  %v65 = vld [vmem:[%s0 + $0x160] sm:$0xff]
  %v66 = vld [vmem:[%s0 + $0x168] sm:$0xff]
  %v67 = vld [vmem:[%s0 + $0x170] sm:$0xff]
  %v68 = vld [vmem:[%s0 + $0x178] sm:$0xff]
  %v69 = vld [vmem:[%s0 + $0x180] sm:$0xff]
  %v70 = vld [vmem:[%s0 + $0x188] sm:$0xff]
  %v71 = vld [vmem:[%s0 + $0x190] sm:$0xff]
  %v72 = vld [vmem:[%s0 + $0x198] sm:$0xff]
  %v73 = vld [vmem:[%s0 + $0x1a0] sm:$0xff]
  %v74 = vld [vmem:[%s0 + $0x1a8] sm:$0xff]
  %v75 = vld [vmem:[%s0 + $0x1b0] sm:$0xff]
  %v76 = vld [vmem:[%s0 + $0x1b8] sm:$0xff]
  %v77 = vld [vmem:[%s0 + $0x1c0] sm:$0xff]
  %v78 = vld [vmem:[%s0 + $0x1c8] sm:$0xff]
  %v79 = vld [vmem:[%s0 + $0x1d0] sm:$0xff]
  %v80 = vld [vmem:[%s0 + $0x1d8] sm:$0xff]
  %v81 = vld [vmem:[%s0 + $0x1e0] sm:$0xff]
  %v82 = vld [vmem:[%s0 + $0x1e8] sm:$0xff]
  %v83 = vld [vmem:[%s0 + $0x1f0] sm:$0xff]
  %v84 = vld [vmem:[%s0 + $0x1f8] sm:$0xff]
  %v85 = vld [vmem:[%s1] sm:$0xf]
  %v86 = vld [vmem:[%s1 + $0x4] sm:$0xf]
  %v87 = vld [vmem:[%s1 + $0x8] sm:$0xf]
  %v88 = vld [vmem:[%s1 + $0xc] sm:$0xf]
  %v89 = vld [vmem:[%s1 + $0x10] sm:$0xf]
  %v90 = vld [vmem:[%s1 + $0x14] sm:$0xf]
  %v91 = vld [vmem:[%s1 + $0x18] sm:$0xf]
  %v92 = vld [vmem:[%s1 + $0x1c] sm:$0xf]
  %v93 = vld [vmem:[%s1 + $0x20] sm:$0xf]
  %v94 = vld [vmem:[%s1 + $0x24] sm:$0xf]
  %v95 = vld [vmem:[%s1 + $0x28] sm:$0xf]
  %v96 = vld [vmem:[%s1 + $0x2c] sm:$0xf]
  %v97 = vld [vmem:[%s1 + $0x30] sm:$0xf]
  %v98 = vld [vmem:[%s1 + $0x34] sm:$0xf]
  %v99 = vld [vmem:[%s1 + $0x38] sm:$0xf]
  %v100 = vld [vmem:[%s1 + $0x3c] sm:$0xf]
  %v101 = vld [vmem:[%s1 + $0x40] sm:$0xf]
  %v102 = vld [vmem:[%s1 + $0x44] sm:$0xf]
  %v103 = vld [vmem:[%s1 + $0x48] sm:$0xf]
  %v104 = vld [vmem:[%s1 + $0x4c] sm:$0xf]
  %v105 = vld [vmem:[%s1 + $0x50] sm:$0xf]
  %v106 = vld [vmem:[%s1 + $0x54] sm:$0xf]
  %v107 = vld [vmem:[%s1 + $0x58] sm:$0xf]
  %v108 = vld [vmem:[%s1 + $0x5c] sm:$0xf]
  %v109 = vld [vmem:[%s1 + $0x60] sm:$0xf]
  %v110 = vld [vmem:[%s1 + $0x64] sm:$0xf]
  %v111 = vld [vmem:[%s1 + $0x68] sm:$0xf]
  %v112 = vld [vmem:[%s1 + $0x6c] sm:$0xf]
  %v113 = vld [vmem:[%s1 + $0x70] sm:$0xf]
  %v114 = vld [vmem:[%s1 + $0x74] sm:$0xf]
  %v115 = vld [vmem:[%s1 + $0x78] sm:$0xf]
  %v116 = vld [vmem:[%s1 + $0x7c] sm:$0xf]
  %v181 = vunpack.c.l.b16 %v21
  %v182 = vunpack.c.h.b16 %v21
  %v183 = vunpack.c.l.b16 %v22
  %v184 = vunpack.c.h.b16 %v22
  %v185 = vunpack.c.l.b16 %v23
  %v186 = vunpack.c.h.b16 %v23
  %v187 = vunpack.c.l.b16 %v24
  %v188 = vunpack.c.h.b16 %v24
  %v189 = vunpack.c.l.b16 %v25
  %v190 = vunpack.c.h.b16 %v25
  %v191 = vunpack.c.l.b16 %v26
  %v192 = vunpack.c.h.b16 %v26
  %v193 = vunpack.c.l.b16 %v27
  %v194 = vunpack.c.h.b16 %v27
  %v195 = vunpack.c.l.b16 %v28
  %v196 = vunpack.c.h.b16 %v28
  %v197 = vunpack.c.l.b16 %v29
  %v198 = vunpack.c.h.b16 %v29
  %v199 = vunpack.c.l.b16 %v30
  %v200 = vunpack.c.h.b16 %v30
  %v201 = vunpack.c.l.b16 %v31
  %v202 = vunpack.c.h.b16 %v31
  %v203 = vunpack.c.l.b16 %v32
  %v204 = vunpack.c.h.b16 %v32
  %v205 = vunpack.c.l.b16 %v33
  %v206 = vunpack.c.h.b16 %v33
  %v207 = vunpack.c.l.b16 %v34
  %v208 = vunpack.c.h.b16 %v34
  %v209 = vunpack.c.l.b16 %v35
  %v210 = vunpack.c.h.b16 %v35
  %v211 = vunpack.c.l.b16 %v36
  %v212 = vunpack.c.h.b16 %v36
  %v213 = vunpack.c.l.b16 %v37
  %v214 = vunpack.c.h.b16 %v37
  %v215 = vunpack.c.l.b16 %v38
  %v216 = vunpack.c.h.b16 %v38
  %v217 = vunpack.c.l.b16 %v39
  %v218 = vunpack.c.h.b16 %v39
  %v219 = vunpack.c.l.b16 %v40
  %v220 = vunpack.c.h.b16 %v40
  %v221 = vunpack.c.l.b16 %v41
  %v222 = vunpack.c.h.b16 %v41
  %v223 = vunpack.c.l.b16 %v42
  %v224 = vunpack.c.h.b16 %v42
  %v225 = vunpack.c.l.b16 %v43
  %v226 = vunpack.c.h.b16 %v43
  %v227 = vunpack.c.l.b16 %v44
  %v228 = vunpack.c.h.b16 %v44
  %v229 = vunpack.c.l.b16 %v45
  %v230 = vunpack.c.h.b16 %v45
  %v231 = vunpack.c.l.b16 %v46
  %v232 = vunpack.c.h.b16 %v46
  %v233 = vunpack.c.l.b16 %v47
  %v234 = vunpack.c.h.b16 %v47
  %v235 = vunpack.c.l.b16 %v48
  %v236 = vunpack.c.h.b16 %v48
  %v237 = vunpack.c.l.b16 %v49
  %v238 = vunpack.c.h.b16 %v49
  %v239 = vunpack.c.l.b16 %v50
  %v240 = vunpack.c.h.b16 %v50
  %v241 = vunpack.c.l.b16 %v51
  %v242 = vunpack.c.h.b16 %v51
  %v243 = vunpack.c.l.b16 %v52
  %v244 = vunpack.c.h.b16 %v52
  %v245 = vunpack.c.l.b16 %v53
  %v246 = vunpack.c.h.b16 %v53
  %v247 = vunpack.c.l.b16 %v54
  %v248 = vunpack.c.h.b16 %v54
  %v249 = vunpack.c.l.b16 %v55
  %v250 = vunpack.c.h.b16 %v55
  %v251 = vunpack.c.l.b16 %v56
  %v252 = vunpack.c.h.b16 %v56
  %v253 = vunpack.c.l.b16 %v57
  %v254 = vunpack.c.h.b16 %v57
  %v255 = vunpack.c.l.b16 %v58
  %v256 = vunpack.c.h.b16 %v58
  %v257 = vunpack.c.l.b16 %v59
  %v258 = vunpack.c.h.b16 %v59
  %v259 = vunpack.c.l.b16 %v60
  %v260 = vunpack.c.h.b16 %v60
  %v261 = vunpack.c.l.b16 %v61
  %v262 = vunpack.c.h.b16 %v61
  %v263 = vunpack.c.l.b16 %v62
  %v264 = vunpack.c.h.b16 %v62
  %v265 = vunpack.c.l.b16 %v63
  %v266 = vunpack.c.h.b16 %v63
  %v267 = vunpack.c.l.b16 %v64
  %v268 = vunpack.c.h.b16 %v64
  %v269 = vunpack.c.l.b16 %v65
  %v270 = vunpack.c.h.b16 %v65
  %v271 = vunpack.c.l.b16 %v66
  %v272 = vunpack.c.h.b16 %v66
  %v273 = vunpack.c.l.b16 %v67
  %v274 = vunpack.c.h.b16 %v67
  %v275 = vunpack.c.l.b16 %v68
  %v276 = vunpack.c.h.b16 %v68
  %v277 = vunpack.c.l.b16 %v69
  %v278 = vunpack.c.h.b16 %v69
  %v279 = vunpack.c.l.b16 %v70
  %v280 = vunpack.c.h.b16 %v70
  %v281 = vunpack.c.l.b16 %v71
  %v282 = vunpack.c.h.b16 %v71
  %v283 = vunpack.c.l.b16 %v72
  %v284 = vunpack.c.h.b16 %v72
  %v285 = vunpack.c.l.b16 %v73
  %v286 = vunpack.c.h.b16 %v73
  %v287 = vunpack.c.l.b16 %v74
  %v288 = vunpack.c.h.b16 %v74
  %v289 = vunpack.c.l.b16 %v75
  %v290 = vunpack.c.h.b16 %v75
  %v291 = vunpack.c.l.b16 %v76
  %v292 = vunpack.c.h.b16 %v76
  %v293 = vunpack.c.l.b16 %v77
  %v294 = vunpack.c.h.b16 %v77
  %v295 = vunpack.c.l.b16 %v78
  %v296 = vunpack.c.h.b16 %v78
  %v297 = vunpack.c.l.b16 %v79
  %v298 = vunpack.c.h.b16 %v79
  %v299 = vunpack.c.l.b16 %v80
  %v300 = vunpack.c.h.b16 %v80
  %v301 = vunpack.c.l.b16 %v81
  %v302 = vunpack.c.h.b16 %v81
  %v303 = vunpack.c.l.b16 %v82
  %v304 = vunpack.c.h.b16 %v82
  %v305 = vunpack.c.l.b16 %v83
  %v306 = vunpack.c.h.b16 %v83
  %v307 = vunpack.c.l.b16 %v84
  %v308 = vunpack.c.h.b16 %v84
  %v309 = vpack.c.b16 %v183, %v181
  %v310 = vpack.c.b16 %v184, %v182
  %v311 = vpack.c.b16 %v187, %v185
  %v312 = vpack.c.b16 %v188, %v186
  %v313 = vpack.c.b16 %v191, %v189
  %v314 = vpack.c.b16 %v192, %v190
  %v315 = vpack.c.b16 %v195, %v193
  %v316 = vpack.c.b16 %v196, %v194
  %v317 = vpack.c.b16 %v199, %v197
  %v318 = vpack.c.b16 %v200, %v198
  %v319 = vpack.c.b16 %v203, %v201
  %v320 = vpack.c.b16 %v204, %v202
  %v321 = vpack.c.b16 %v207, %v205
  %v322 = vpack.c.b16 %v208, %v206
  %v323 = vpack.c.b16 %v211, %v209
  %v324 = vpack.c.b16 %v212, %v210
  %v325 = vpack.c.b16 %v215, %v213
  %v326 = vpack.c.b16 %v216, %v214
  %v327 = vpack.c.b16 %v219, %v217
  %v328 = vpack.c.b16 %v220, %v218
  %v329 = vpack.c.b16 %v223, %v221
  %v330 = vpack.c.b16 %v224, %v222
  %v331 = vpack.c.b16 %v227, %v225
  %v332 = vpack.c.b16 %v228, %v226
  %v333 = vpack.c.b16 %v231, %v229
  %v334 = vpack.c.b16 %v232, %v230
  %v335 = vpack.c.b16 %v235, %v233
  %v336 = vpack.c.b16 %v236, %v234
  %v337 = vpack.c.b16 %v239, %v237
  %v338 = vpack.c.b16 %v240, %v238
  %v339 = vpack.c.b16 %v243, %v241
  %v340 = vpack.c.b16 %v244, %v242
  %v341 = vpack.c.b16 %v247, %v245
  %v342 = vpack.c.b16 %v248, %v246
  %v343 = vpack.c.b16 %v251, %v249
  %v344 = vpack.c.b16 %v252, %v250
  %v345 = vpack.c.b16 %v255, %v253
  %v346 = vpack.c.b16 %v256, %v254
  %v347 = vpack.c.b16 %v259, %v257
  %v348 = vpack.c.b16 %v260, %v258
  %v349 = vpack.c.b16 %v263, %v261
  %v350 = vpack.c.b16 %v264, %v262
  %v351 = vpack.c.b16 %v267, %v265
  %v352 = vpack.c.b16 %v268, %v266
  %v353 = vpack.c.b16 %v271, %v269
  %v354 = vpack.c.b16 %v272, %v270
  %v355 = vpack.c.b16 %v275, %v273
  %v356 = vpack.c.b16 %v276, %v274
  %v357 = vpack.c.b16 %v279, %v277
  %v358 = vpack.c.b16 %v280, %v278
  %v359 = vpack.c.b16 %v283, %v281
  %v360 = vpack.c.b16 %v284, %v282
  %v361 = vpack.c.b16 %v287, %v285
  %v362 = vpack.c.b16 %v288, %v286
  %v363 = vpack.c.b16 %v291, %v289
  %v364 = vpack.c.b16 %v292, %v290
  %v365 = vpack.c.b16 %v295, %v293
  %v366 = vpack.c.b16 %v296, %v294
  %v367 = vpack.c.b16 %v299, %v297
  %v368 = vpack.c.b16 %v300, %v298
  %v369 = vpack.c.b16 %v303, %v301
  %v370 = vpack.c.b16 %v304, %v302
  %v371 = vpack.c.b16 %v307, %v305
  %v372 = vpack.c.b16 %v308, %v306
  %v469 = vunpack.c.l.b16 %v85
  %v470 = vunpack.c.l.b16 %v86
  %v471 = vunpack.c.l.b16 %v87
  %v472 = vunpack.c.l.b16 %v88
  %v473 = vunpack.c.l.b16 %v89
  %v474 = vunpack.c.l.b16 %v90
  %v475 = vunpack.c.l.b16 %v91
  %v476 = vunpack.c.l.b16 %v92
  %v477 = vunpack.c.l.b16 %v93
  %v478 = vunpack.c.l.b16 %v94
  %v479 = vunpack.c.l.b16 %v95
  %v480 = vunpack.c.l.b16 %v96
  %v481 = vunpack.c.l.b16 %v97
  %v482 = vunpack.c.l.b16 %v98
  %v483 = vunpack.c.l.b16 %v99
  %v484 = vunpack.c.l.b16 %v100
  %v485 = vunpack.c.l.b16 %v101
  %v486 = vunpack.c.l.b16 %v102
  %v487 = vunpack.c.l.b16 %v103
  %v488 = vunpack.c.l.b16 %v104
  %v489 = vunpack.c.l.b16 %v105
  %v490 = vunpack.c.l.b16 %v106
  %v491 = vunpack.c.l.b16 %v107
  %v492 = vunpack.c.l.b16 %v108
  %v493 = vunpack.c.l.b16 %v109
  %v494 = vunpack.c.l.b16 %v110
  %v495 = vunpack.c.l.b16 %v111
  %v496 = vunpack.c.l.b16 %v112
  %v497 = vunpack.c.l.b16 %v113
  %v498 = vunpack.c.l.b16 %v114
  %v499 = vunpack.c.l.b16 %v115
  %v500 = vunpack.c.l.b16 %v116
  %v501 = vpack.c.b16 %v470, %v469
  %v502 = vpack.c.b16 %v472, %v471
  %v503 = vpack.c.b16 %v474, %v473
  %v504 = vpack.c.b16 %v476, %v475
  %v505 = vpack.c.b16 %v478, %v477
  %v506 = vpack.c.b16 %v480, %v479
  %v507 = vpack.c.b16 %v482, %v481
  %v508 = vpack.c.b16 %v484, %v483
  %v509 = vpack.c.b16 %v486, %v485
  %v510 = vpack.c.b16 %v488, %v487
  %v511 = vpack.c.b16 %v490, %v489
  %v512 = vpack.c.b16 %v492, %v491
  %v513 = vpack.c.b16 %v494, %v493
  %v514 = vpack.c.b16 %v496, %v495
  %v515 = vpack.c.b16 %v498, %v497
  %v516 = vpack.c.b16 %v500, %v499
  %533 = vmatprep.subr.bf16.mxu0 0
  %534 = vmatpush1.bf16.msra.mxu0 %v501
  %535 = vmatprep.subr.bf16.mxu0 0
  %536 = vmatpush1.bf16.msra.mxu0 %v502
  %537 = vmatprep.subr.bf16.mxu0 0
  %538 = vmatpush1.bf16.msra.mxu0 %v503
  %539 = vmatprep.subr.bf16.mxu0 0
  %540 = vmatpush1.bf16.msra.mxu0 %v504
  %541 = vmatprep.subr.bf16.mxu0 0
  %542 = vmatpush1.bf16.msra.mxu0 %v505
  %543 = vmatprep.subr.bf16.mxu0 0
  %544 = vmatpush1.bf16.msra.mxu0 %v506
  %545 = vmatprep.subr.bf16.mxu0 0
  %546 = vmatpush1.bf16.msra.mxu0 %v507
  %547 = vmatprep.subr.bf16.mxu0 0
  %548 = vmatpush1.bf16.msra.mxu0 %v508
  %549 = vmatprep.subr.bf16.mxu0 0
  %550 = vmatpush1.bf16.msra.mxu0 %v509
  %551 = vmatprep.subr.bf16.mxu0 0
  %552 = vmatpush1.bf16.msra.mxu0 %v510
  %553 = vmatprep.subr.bf16.mxu0 0
  %554 = vmatpush1.bf16.msra.mxu0 %v511
  %555 = vmatprep.subr.bf16.mxu0 0
  %556 = vmatpush1.bf16.msra.mxu0 %v512
  %557 = vmatprep.subr.bf16.mxu0 0
  %558 = vmatpush1.bf16.msra.mxu0 %v513
  %559 = vmatprep.subr.bf16.mxu0 0
  %560 = vmatpush1.bf16.msra.mxu0 %v514
  %561 = vmatprep.subr.bf16.mxu0 0
  %562 = vmatpush1.bf16.msra.mxu0 %v515
  %563 = vmatprep.subr.bf16.mxu0 0
  %564 = vmatpush1.bf16.msra.mxu0 %v516
  %565 = vmatprep.mubr.bf16.mxu0 %v310
  %566 = vmatmul.mubr.bf16.gmra.mrb[0].mxu0 %v309
  %v567 = vpop.f32.mrb[0].mxu0
  %v568 = vadd.f32 0.0, %v567
  %v569 = vpop.f32.mrb[0].mxu0
  %v570 = vpop.f32.mrb[0].mxu0
  %v571 = vadd.f32 0.0, %v570
  %v572 = vpop.f32.mrb[0].mxu0
  %573 = vmatprep.mubr.bf16.mxu0 %v312
  %574 = vmatmul.mubr.bf16.gmra.mrb[0].mxu0 %v311
  %v575 = vpop.f32.mrb[0].mxu0
  %v576 = vadd.f32 0.0, %v575
  %v577 = vpop.f32.mrb[0].mxu0
  %v578 = vpop.f32.mrb[0].mxu0
  %v579 = vadd.f32 0.0, %v578
  %v580 = vpop.f32.mrb[0].mxu0
  %581 = vmatprep.mubr.bf16.mxu0 %v314
  %582 = vmatmul.mubr.bf16.gmra.mrb[0].mxu0 %v313
  %v583 = vpop.f32.mrb[0].mxu0
  %v584 = vadd.f32 0.0, %v583
  %v585 = vpop.f32.mrb[0].mxu0
  %v586 = vpop.f32.mrb[0].mxu0
  %v587 = vadd.f32 0.0, %v586
  %v588 = vpop.f32.mrb[0].mxu0
  %589 = vmatprep.mubr.bf16.mxu0 %v316
  %590 = vmatmul.mubr.bf16.gmra.mrb[0].mxu0 %v315
  %v591 = vpop.f32.mrb[0].mxu0
  %v592 = vadd.f32 0.0, %v591
  %v593 = vpop.f32.mrb[0].mxu0
  %v594 = vpop.f32.mrb[0].mxu0
  %v595 = vadd.f32 0.0, %v594
  %v596 = vpop.f32.mrb[0].mxu0
  %597 = vmatprep.mubr.bf16.mxu0 %v318
  %598 = vmatmul.mubr.bf16.gmra.mrb[0].mxu0 %v317
  %v599 = vpop.f32.mrb[0].mxu0
  %v600 = vadd.f32 0.0, %v599
  %v601 = vpop.f32.mrb[0].mxu0
  %v602 = vpop.f32.mrb[0].mxu0
  %v603 = vadd.f32 0.0, %v602
  %v604 = vpop.f32.mrb[0].mxu0
  %605 = vmatprep.mubr.bf16.mxu0 %v320
  %606 = vmatmul.mubr.bf16.gmra.mrb[0].mxu0 %v319
  %v607 = vpop.f32.mrb[0].mxu0
  %v608 = vadd.f32 0.0, %v607
  %v609 = vpop.f32.mrb[0].mxu0
  %v610 = vpop.f32.mrb[0].mxu0
  %v611 = vadd.f32 0.0, %v610
  %v612 = vpop.f32.mrb[0].mxu0
  %613 = vmatprep.mubr.bf16.mxu0 %v322
  %614 = vmatmul.mubr.bf16.gmra.mrb[0].mxu0 %v321
  %v615 = vpop.f32.mrb[0].mxu0
  %v616 = vadd.f32 0.0, %v615
  %v617 = vpop.f32.mrb[0].mxu0
  %v618 = vpop.f32.mrb[0].mxu0
  %v619 = vadd.f32 0.0, %v618
  %v620 = vpop.f32.mrb[0].mxu0
  %621 = vmatprep.mubr.bf16.mxu0 %v324
  %622 = vmatmul.mubr.bf16.gmra.mrb[0].mxu0 %v323
  %v623 = vpop.f32.mrb[0].mxu0
  %v624 = vadd.f32 0.0, %v623
  %v625 = vpop.f32.mrb[0].mxu0
  %v626 = vpop.f32.mrb[0].mxu0
  %v627 = vadd.f32 0.0, %v626
  %v628 = vpop.f32.mrb[0].mxu0
  %629 = vmatprep.mubr.bf16.mxu0 %v326
  %630 = vmatmul.mubr.bf16.gmra.mrb[0].mxu0 %v325
  %v631 = vpop.f32.mrb[0].mxu0
  %v632 = vadd.f32 0.0, %v631
  %v633 = vpop.f32.mrb[0].mxu0
  %v634 = vpop.f32.mrb[0].mxu0
  %v635 = vadd.f32 0.0, %v634
  %v636 = vpop.f32.mrb[0].mxu0
  %637 = vmatprep.mubr.bf16.mxu0 %v328
  %638 = vmatmul.mubr.bf16.gmra.mrb[0].mxu0 %v327
  %v639 = vpop.f32.mrb[0].mxu0
  %v640 = vadd.f32 0.0, %v639
  %v641 = vpop.f32.mrb[0].mxu0
  %v642 = vpop.f32.mrb[0].mxu0
  %v643 = vadd.f32 0.0, %v642
  %v644 = vpop.f32.mrb[0].mxu0
  %645 = vmatprep.mubr.bf16.mxu0 %v330
  %646 = vmatmul.mubr.bf16.gmra.mrb[0].mxu0 %v329
  %v647 = vpop.f32.mrb[0].mxu0
  %v648 = vadd.f32 0.0, %v647
  %v649 = vpop.f32.mrb[0].mxu0
  %v650 = vpop.f32.mrb[0].mxu0
  %v651 = vadd.f32 0.0, %v650
  %v652 = vpop.f32.mrb[0].mxu0
  %653 = vmatprep.mubr.bf16.mxu0 %v332
  %654 = vmatmul.mubr.bf16.gmra.mrb[0].mxu0 %v331
  %v655 = vpop.f32.mrb[0].mxu0
  %v656 = vadd.f32 0.0, %v655
  %v657 = vpop.f32.mrb[0].mxu0
  %v658 = vpop.f32.mrb[0].mxu0
  %v659 = vadd.f32 0.0, %v658
  %v660 = vpop.f32.mrb[0].mxu0
  %661 = vmatprep.mubr.bf16.mxu0 %v334
  %662 = vmatmul.mubr.bf16.gmra.mrb[0].mxu0 %v333
  %v663 = vpop.f32.mrb[0].mxu0
  %v664 = vadd.f32 0.0, %v663
  %v665 = vpop.f32.mrb[0].mxu0
  %v666 = vpop.f32.mrb[0].mxu0
  %v667 = vadd.f32 0.0, %v666
  %v668 = vpop.f32.mrb[0].mxu0
  %669 = vmatprep.mubr.bf16.mxu0 %v336
  %670 = vmatmul.mubr.bf16.gmra.mrb[0].mxu0 %v335
  %v671 = vpop.f32.mrb[0].mxu0
  %v672 = vadd.f32 0.0, %v671
  %v673 = vpop.f32.mrb[0].mxu0
  %v674 = vpop.f32.mrb[0].mxu0
  %v675 = vadd.f32 0.0, %v674
  %v676 = vpop.f32.mrb[0].mxu0
  %677 = vmatprep.mubr.bf16.mxu0 %v338
  %678 = vmatmul.mubr.bf16.gmra.mrb[0].mxu0 %v337
  %v679 = vpop.f32.mrb[0].mxu0
  %v680 = vadd.f32 0.0, %v679
  %v681 = vpop.f32.mrb[0].mxu0
  %v682 = vpop.f32.mrb[0].mxu0
  %v683 = vadd.f32 0.0, %v682
  %v684 = vpop.f32.mrb[0].mxu0
  %685 = vmatprep.mubr.bf16.mxu0 %v340
  %686 = vmatmul.mubr.bf16.gmra.mrb[0].mxu0 %v339
  %v687 = vpop.f32.mrb[0].mxu0
  %v688 = vadd.f32 0.0, %v687
  %v689 = vpop.f32.mrb[0].mxu0
  %v690 = vpop.f32.mrb[0].mxu0
  %v691 = vadd.f32 0.0, %v690
  %v692 = vpop.f32.mrb[0].mxu0
  %693 = vmatprep.mubr.bf16.mxu0 %v342
  %694 = vmatmul.mubr.bf16.gmra.mrb[0].mxu0 %v341
  %v695 = vpop.f32.mrb[0].mxu0
  %v696 = vadd.f32 0.0, %v695
  %v697 = vpop.f32.mrb[0].mxu0
  %v698 = vpop.f32.mrb[0].mxu0
  %v699 = vadd.f32 0.0, %v698
  %v700 = vpop.f32.mrb[0].mxu0
  %701 = vmatprep.mubr.bf16.mxu0 %v344
  %702 = vmatmul.mubr.bf16.gmra.mrb[0].mxu0 %v343
  %v703 = vpop.f32.mrb[0].mxu0
  %v704 = vadd.f32 0.0, %v703
  %v705 = vpop.f32.mrb[0].mxu0
  %v706 = vpop.f32.mrb[0].mxu0
  %v707 = vadd.f32 0.0, %v706
  %v708 = vpop.f32.mrb[0].mxu0
  %709 = vmatprep.mubr.bf16.mxu0 %v346
  %710 = vmatmul.mubr.bf16.gmra.mrb[0].mxu0 %v345
  %v711 = vpop.f32.mrb[0].mxu0
  %v712 = vadd.f32 0.0, %v711
  %v713 = vpop.f32.mrb[0].mxu0
  %v714 = vpop.f32.mrb[0].mxu0
  %v715 = vadd.f32 0.0, %v714
  %v716 = vpop.f32.mrb[0].mxu0
  %717 = vmatprep.mubr.bf16.mxu0 %v348
  %718 = vmatmul.mubr.bf16.gmra.mrb[0].mxu0 %v347
  %v719 = vpop.f32.mrb[0].mxu0
  %v720 = vadd.f32 0.0, %v719
  %v721 = vpop.f32.mrb[0].mxu0
  %v722 = vpop.f32.mrb[0].mxu0
  %v723 = vadd.f32 0.0, %v722
  %v724 = vpop.f32.mrb[0].mxu0
  %725 = vmatprep.mubr.bf16.mxu0 %v350
  %726 = vmatmul.mubr.bf16.gmra.mrb[0].mxu0 %v349
  %v727 = vpop.f32.mrb[0].mxu0
  %v728 = vadd.f32 0.0, %v727
  %v729 = vpop.f32.mrb[0].mxu0
  %v730 = vpop.f32.mrb[0].mxu0
  %v731 = vadd.f32 0.0, %v730
  %v732 = vpop.f32.mrb[0].mxu0
  %733 = vmatprep.mubr.bf16.mxu0 %v352
  %734 = vmatmul.mubr.bf16.gmra.mrb[0].mxu0 %v351
  %v735 = vpop.f32.mrb[0].mxu0
  %v736 = vadd.f32 0.0, %v735
  %v737 = vpop.f32.mrb[0].mxu0
  %v738 = vpop.f32.mrb[0].mxu0
  %v739 = vadd.f32 0.0, %v738
  %v740 = vpop.f32.mrb[0].mxu0
  %741 = vmatprep.mubr.bf16.mxu0 %v354
  %742 = vmatmul.mubr.bf16.gmra.mrb[0].mxu0 %v353
  %v743 = vpop.f32.mrb[0].mxu0
  %v744 = vadd.f32 0.0, %v743
  %v745 = vpop.f32.mrb[0].mxu0
  %v746 = vpop.f32.mrb[0].mxu0
  %v747 = vadd.f32 0.0, %v746
  %v748 = vpop.f32.mrb[0].mxu0
  %749 = vmatprep.mubr.bf16.mxu0 %v356
  %750 = vmatmul.mubr.bf16.gmra.mrb[0].mxu0 %v355
  %v751 = vpop.f32.mrb[0].mxu0
  %v752 = vadd.f32 0.0, %v751
  %v753 = vpop.f32.mrb[0].mxu0
  %v754 = vpop.f32.mrb[0].mxu0
  %v755 = vadd.f32 0.0, %v754
  %v756 = vpop.f32.mrb[0].mxu0
  %757 = vmatprep.mubr.bf16.mxu0 %v358
  %758 = vmatmul.mubr.bf16.gmra.mrb[0].mxu0 %v357
  %v759 = vpop.f32.mrb[0].mxu0
  %v760 = vadd.f32 0.0, %v759
  %v761 = vpop.f32.mrb[0].mxu0
  %v762 = vpop.f32.mrb[0].mxu0
  %v763 = vadd.f32 0.0, %v762
  %v764 = vpop.f32.mrb[0].mxu0
  %765 = vmatprep.mubr.bf16.mxu0 %v360
  %766 = vmatmul.mubr.bf16.gmra.mrb[0].mxu0 %v359
  %v767 = vpop.f32.mrb[0].mxu0
  %v768 = vadd.f32 0.0, %v767
  %v769 = vpop.f32.mrb[0].mxu0
  %v770 = vpop.f32.mrb[0].mxu0
  %v771 = vadd.f32 0.0, %v770
  %v772 = vpop.f32.mrb[0].mxu0
  %773 = vmatprep.mubr.bf16.mxu0 %v362
  %774 = vmatmul.mubr.bf16.gmra.mrb[0].mxu0 %v361
  %v775 = vpop.f32.mrb[0].mxu0
  %v776 = vadd.f32 0.0, %v775
  %v777 = vpop.f32.mrb[0].mxu0
  %v778 = vpop.f32.mrb[0].mxu0
  %v779 = vadd.f32 0.0, %v778
  %v780 = vpop.f32.mrb[0].mxu0
  %781 = vmatprep.mubr.bf16.mxu0 %v364
  %782 = vmatmul.mubr.bf16.gmra.mrb[0].mxu0 %v363
  %v783 = vpop.f32.mrb[0].mxu0
  %v784 = vadd.f32 0.0, %v783
  %v785 = vpop.f32.mrb[0].mxu0
  %v786 = vpop.f32.mrb[0].mxu0
  %v787 = vadd.f32 0.0, %v786
  %v788 = vpop.f32.mrb[0].mxu0
  %789 = vmatprep.mubr.bf16.mxu0 %v366
  %790 = vmatmul.mubr.bf16.gmra.mrb[0].mxu0 %v365
  %v791 = vpop.f32.mrb[0].mxu0
  %v792 = vadd.f32 0.0, %v791
  %v793 = vpop.f32.mrb[0].mxu0
  %v794 = vpop.f32.mrb[0].mxu0
  %v795 = vadd.f32 0.0, %v794
  %v796 = vpop.f32.mrb[0].mxu0
  %797 = vmatprep.mubr.bf16.mxu0 %v368
  %798 = vmatmul.mubr.bf16.gmra.mrb[0].mxu0 %v367
  %v799 = vpop.f32.mrb[0].mxu0
  %v800 = vadd.f32 0.0, %v799
  %v801 = vpop.f32.mrb[0].mxu0
  %v802 = vpop.f32.mrb[0].mxu0
  %v803 = vadd.f32 0.0, %v802
  %v804 = vpop.f32.mrb[0].mxu0
  %805 = vmatprep.mubr.bf16.mxu0 %v370
  %806 = vmatmul.mubr.bf16.gmra.mrb[0].mxu0 %v369
  %v807 = vpop.f32.mrb[0].mxu0
  %v808 = vadd.f32 0.0, %v807
  %v809 = vpop.f32.mrb[0].mxu0
  %v810 = vpop.f32.mrb[0].mxu0
  %v811 = vadd.f32 0.0, %v810
  %v812 = vpop.f32.mrb[0].mxu0
  %813 = vmatprep.mubr.bf16.mxu0 %v372
  %814 = vmatmul.mubr.bf16.gmra.mrb[0].mxu0 %v371
  %v815 = vpop.f32.mrb[0].mxu0
  %v816 = vadd.f32 0.0, %v815
  %v817 = vpop.f32.mrb[0].mxu0
  %v818 = vpop.f32.mrb[0].mxu0
  %v819 = vadd.f32 0.0, %v818
  %v820 = vpop.f32.mrb[0].mxu0
  %821 = vdwg.mxu0
  %v822 = vadd.f32 %v568, %v571
  %v823 = vadd.f32 %v822, %v576
  %v824 = vadd.f32 %v823, %v579
  %v825 = vadd.f32 %v824, %v584
  %v826 = vadd.f32 %v825, %v587
  %v827 = vadd.f32 %v826, %v592
  %v828 = vadd.f32 %v827, %v595
  %v829 = vadd.f32 %v828, %v600
  %v830 = vadd.f32 %v829, %v603
  %v831 = vadd.f32 %v830, %v608
  %v832 = vadd.f32 %v831, %v611
  %v833 = vadd.f32 %v832, %v616
  %v834 = vadd.f32 %v833, %v619
  %v835 = vadd.f32 %v834, %v624
  %v836 = vadd.f32 %v835, %v627
  %v837 = vadd.f32 %v836, %v632
  %v838 = vadd.f32 %v837, %v635
  %v839 = vadd.f32 %v838, %v640
  %v840 = vadd.f32 %v839, %v643
  %v841 = vadd.f32 %v840, %v648
  %v842 = vadd.f32 %v841, %v651
  %v843 = vadd.f32 %v842, %v656
  %v844 = vadd.f32 %v843, %v659
  %v845 = vadd.f32 %v844, %v664
  %v846 = vadd.f32 %v845, %v667
  %v847 = vadd.f32 %v846, %v672
  %v848 = vadd.f32 %v847, %v675
  %v849 = vadd.f32 %v848, %v680
  %v850 = vadd.f32 %v849, %v683
  %v851 = vadd.f32 %v850, %v688
  %v852 = vadd.f32 %v851, %v691
  %v853 = vadd.f32 %v852, %v696
  %v854 = vadd.f32 %v853, %v699
  %v855 = vadd.f32 %v854, %v704
  %v856 = vadd.f32 %v855, %v707
  %v857 = vadd.f32 %v856, %v712
  %v858 = vadd.f32 %v857, %v715
  %v859 = vadd.f32 %v858, %v720
  %v860 = vadd.f32 %v859, %v723
  %v861 = vadd.f32 %v860, %v728
  %v862 = vadd.f32 %v861, %v731
  %v863 = vadd.f32 %v862, %v736
  %v864 = vadd.f32 %v863, %v739
  %v865 = vadd.f32 %v864, %v744
  %v866 = vadd.f32 %v865, %v747
  %v867 = vadd.f32 %v866, %v752
  %v868 = vadd.f32 %v867, %v755
  %v869 = vadd.f32 %v868, %v760
  %v870 = vadd.f32 %v869, %v763
  %v871 = vadd.f32 %v870, %v768
  %v872 = vadd.f32 %v871, %v771
  %v873 = vadd.f32 %v872, %v776
  %v874 = vadd.f32 %v873, %v779
  %v875 = vadd.f32 %v874, %v784
  %v876 = vadd.f32 %v875, %v787
  %v877 = vadd.f32 %v876, %v792
  %v878 = vadd.f32 %v877, %v795
  %v879 = vadd.f32 %v878, %v800
  %v880 = vadd.f32 %v879, %v803
  %v881 = vadd.f32 %v880, %v808
  %v882 = vadd.f32 %v881, %v811
  %v883 = vadd.f32 %v882, %v816
  %v884 = vadd.f32 %v883, %v819
  %v885 = vrot.slane %v884, 4
  %v886 = vadd.f32 %v884, %v885
  %v887 = vrot.slane %v886, 2
  %v888 = vadd.f32 %v886, %v887
  %v889 = vrot.slane %v888, 1
  %v890 = vadd.f32 %v888, %v889
  %v891 = vmul.f32 %v890, 0.001953125
  %v892 = vmul.f32 %v568, %v568
  %v893 = vmul.f32 %v571, %v571
  %v894 = vmul.f32 %v576, %v576
  %v895 = vmul.f32 %v579, %v579
  %v896 = vmul.f32 %v584, %v584
  %v897 = vmul.f32 %v587, %v587
  %v898 = vmul.f32 %v592, %v592
  %v899 = vmul.f32 %v595, %v595
  %v900 = vmul.f32 %v600, %v600
  %v901 = vmul.f32 %v603, %v603
  %v902 = vmul.f32 %v608, %v608
  %v903 = vmul.f32 %v611, %v611
  %v904 = vmul.f32 %v616, %v616
  %v905 = vmul.f32 %v619, %v619
  %v906 = vmul.f32 %v624, %v624
  %v907 = vmul.f32 %v627, %v627
  %v908 = vmul.f32 %v632, %v632
  %v909 = vmul.f32 %v635, %v635
  %v910 = vmul.f32 %v640, %v640
  %v911 = vmul.f32 %v643, %v643
  %v912 = vmul.f32 %v648, %v648
  %v913 = vmul.f32 %v651, %v651
  %v914 = vmul.f32 %v656, %v656
  %v915 = vmul.f32 %v659, %v659
  %v916 = vmul.f32 %v664, %v664
  %v917 = vmul.f32 %v667, %v667
  %v918 = vmul.f32 %v672, %v672
  %v919 = vmul.f32 %v675, %v675
  %v920 = vmul.f32 %v680, %v680
  %v921 = vmul.f32 %v683, %v683
  %v922 = vmul.f32 %v688, %v688
  %v923 = vmul.f32 %v691, %v691
  %v924 = vmul.f32 %v696, %v696
  %v925 = vmul.f32 %v699, %v699
  %v926 = vmul.f32 %v704, %v704
  %v927 = vmul.f32 %v707, %v707
  %v928 = vmul.f32 %v712, %v712
  %v929 = vmul.f32 %v715, %v715
  %v930 = vmul.f32 %v720, %v720
  %v931 = vmul.f32 %v723, %v723
  %v932 = vmul.f32 %v728, %v728
  %v933 = vmul.f32 %v731, %v731
  %v934 = vmul.f32 %v736, %v736
  %v935 = vmul.f32 %v739, %v739
  %v936 = vmul.f32 %v744, %v744
  %v937 = vmul.f32 %v747, %v747
  %v938 = vmul.f32 %v752, %v752
  %v939 = vmul.f32 %v755, %v755
  %v940 = vmul.f32 %v760, %v760
  %v941 = vmul.f32 %v763, %v763
  %v942 = vmul.f32 %v768, %v768
  %v943 = vmul.f32 %v771, %v771
  %v944 = vmul.f32 %v776, %v776
  %v945 = vmul.f32 %v779, %v779
  %v946 = vmul.f32 %v784, %v784
  %v947 = vmul.f32 %v787, %v787
  %v948 = vmul.f32 %v792, %v792
  %v949 = vmul.f32 %v795, %v795
  %v950 = vmul.f32 %v800, %v800
  %v951 = vmul.f32 %v803, %v803
  %v952 = vmul.f32 %v808, %v808
  %v953 = vmul.f32 %v811, %v811
  %v954 = vmul.f32 %v816, %v816
  %v955 = vmul.f32 %v819, %v819
  %v956 = vadd.f32 %v892, %v893
  %v957 = vadd.f32 %v956, %v894
  %v958 = vadd.f32 %v957, %v895
  %v959 = vadd.f32 %v958, %v896
  %v960 = vadd.f32 %v959, %v897
  %v961 = vadd.f32 %v960, %v898
  %v962 = vadd.f32 %v961, %v899
  %v963 = vadd.f32 %v962, %v900
  %v964 = vadd.f32 %v963, %v901
  %v965 = vadd.f32 %v964, %v902
  %v966 = vadd.f32 %v965, %v903
  %v967 = vadd.f32 %v966, %v904
  %v968 = vadd.f32 %v967, %v905
  %v969 = vadd.f32 %v968, %v906
  %v970 = vadd.f32 %v969, %v907
  %v971 = vadd.f32 %v970, %v908
  %v972 = vadd.f32 %v971, %v909
  %v973 = vadd.f32 %v972, %v910
  %v974 = vadd.f32 %v973, %v911
  %v975 = vadd.f32 %v974, %v912
  %v976 = vadd.f32 %v975, %v913
  %v977 = vadd.f32 %v976, %v914
  %v978 = vadd.f32 %v977, %v915
  %v979 = vadd.f32 %v978, %v916
  %v980 = vadd.f32 %v979, %v917
  %v981 = vadd.f32 %v980, %v918
  %v982 = vadd.f32 %v981, %v919
  %v983 = vadd.f32 %v982, %v920
  %v984 = vadd.f32 %v983, %v921
  %v985 = vadd.f32 %v984, %v922
  %v986 = vadd.f32 %v985, %v923
  %v987 = vadd.f32 %v986, %v924
  %v988 = vadd.f32 %v987, %v925
  %v989 = vadd.f32 %v988, %v926
  %v990 = vadd.f32 %v989, %v927
  %v991 = vadd.f32 %v990, %v928
  %v992 = vadd.f32 %v991, %v929
  %v993 = vadd.f32 %v992, %v930
  %v994 = vadd.f32 %v993, %v931
  %v995 = vadd.f32 %v994, %v932
  %v996 = vadd.f32 %v995, %v933
  %v997 = vadd.f32 %v996, %v934
  %v998 = vadd.f32 %v997, %v935
  %v999 = vadd.f32 %v998, %v936
  %v1000 = vadd.f32 %v999, %v937
  %v1001 = vadd.f32 %v1000, %v938
  %v1002 = vadd.f32 %v1001, %v939
  %v1003 = vadd.f32 %v1002, %v940
  %v1004 = vadd.f32 %v1003, %v941
  %v1005 = vadd.f32 %v1004, %v942
  %v1006 = vadd.f32 %v1005, %v943
  %v1007 = vadd.f32 %v1006, %v944
  %v1008 = vadd.f32 %v1007, %v945
  %v1009 = vadd.f32 %v1008, %v946
  %v1010 = vadd.f32 %v1009, %v947
  %v1011 = vadd.f32 %v1010, %v948
  %v1012 = vadd.f32 %v1011, %v949
  %v1013 = vadd.f32 %v1012, %v950
  %v1014 = vadd.f32 %v1013, %v951
  %v1015 = vadd.f32 %v1014, %v952
  %v1016 = vadd.f32 %v1015, %v953
  %v1017 = vadd.f32 %v1016, %v954
  %v1018 = vadd.f32 %v1017, %v955
  %v1019 = vrot.slane %v1018, 4
  %v1020 = vadd.f32 %v1018, %v1019
  %v1021 = vrot.slane %v1020, 2
  %v1022 = vadd.f32 %v1020, %v1021
  %v1023 = vrot.slane %v1022, 1
  %v1024 = vadd.f32 %v1022, %v1023
  %v1025 = vmul.f32 %v1024, 0.001953125
  %v1026 = vmul.f32 %v891, %v891
  %v1027 = vsub.f32 %v1025, %v1026
  %v1028 = vmax.f32 %v1027, 0.0
  %v1029 = vld [vmem:[%s2] sm:$0x1]
  %v1030 = vadd.f32 %v1028, 1e-05
  %v1031 = vrsqrt.pop %v1030
  %v1032 = vmul.f32 %v1029, %v1031
  %v1033 = vld [vmem:[%s3] sm:$0x1]
  %v1034 = vmul.f32 %v891, %v1032
  %v1035 = vsub.f32 %v1033, %v1034
  %v1037 = vlaneseq
  %v1038 = vshrl.u32 %v1037, 7
  %v1039 = vsub.s32 0, %v1038
  %v1040 = vrot.slane %v1032, %v1039
  %v1042 = vmul.f32 %v568, %v1040
  %v1043 = vmul.f32 %v571, %v1040
  %v1044 = vmul.f32 %v576, %v1040
  %v1045 = vmul.f32 %v579, %v1040
  %v1046 = vmul.f32 %v584, %v1040
  %v1047 = vmul.f32 %v587, %v1040
  %v1048 = vmul.f32 %v592, %v1040
  %v1049 = vmul.f32 %v595, %v1040
  %v1050 = vmul.f32 %v600, %v1040
  %v1051 = vmul.f32 %v603, %v1040
  %v1052 = vmul.f32 %v608, %v1040
  %v1053 = vmul.f32 %v611, %v1040
  %v1054 = vmul.f32 %v616, %v1040
  %v1055 = vmul.f32 %v619, %v1040
  %v1056 = vmul.f32 %v624, %v1040
  %v1057 = vmul.f32 %v627, %v1040
  %v1058 = vmul.f32 %v632, %v1040
  %v1059 = vmul.f32 %v635, %v1040
  %v1060 = vmul.f32 %v640, %v1040
  %v1061 = vmul.f32 %v643, %v1040
  %v1062 = vmul.f32 %v648, %v1040
  %v1063 = vmul.f32 %v651, %v1040
  %v1064 = vmul.f32 %v656, %v1040
  %v1065 = vmul.f32 %v659, %v1040
  %v1066 = vmul.f32 %v664, %v1040
  %v1067 = vmul.f32 %v667, %v1040
  %v1068 = vmul.f32 %v672, %v1040
  %v1069 = vmul.f32 %v675, %v1040
  %v1070 = vmul.f32 %v680, %v1040
  %v1071 = vmul.f32 %v683, %v1040
  %v1072 = vmul.f32 %v688, %v1040
  %v1073 = vmul.f32 %v691, %v1040
  %v1074 = vmul.f32 %v696, %v1040
  %v1075 = vmul.f32 %v699, %v1040
  %v1076 = vmul.f32 %v704, %v1040
  %v1077 = vmul.f32 %v707, %v1040
  %v1078 = vmul.f32 %v712, %v1040
  %v1079 = vmul.f32 %v715, %v1040
  %v1080 = vmul.f32 %v720, %v1040
  %v1081 = vmul.f32 %v723, %v1040
  %v1082 = vmul.f32 %v728, %v1040
  %v1083 = vmul.f32 %v731, %v1040
  %v1084 = vmul.f32 %v736, %v1040
  %v1085 = vmul.f32 %v739, %v1040
  %v1086 = vmul.f32 %v744, %v1040
  %v1087 = vmul.f32 %v747, %v1040
  %v1088 = vmul.f32 %v752, %v1040
  %v1089 = vmul.f32 %v755, %v1040
  %v1090 = vmul.f32 %v760, %v1040
  %v1091 = vmul.f32 %v763, %v1040
  %v1092 = vmul.f32 %v768, %v1040
  %v1093 = vmul.f32 %v771, %v1040
  %v1094 = vmul.f32 %v776, %v1040
  %v1095 = vmul.f32 %v779, %v1040
  %v1096 = vmul.f32 %v784, %v1040
  %v1097 = vmul.f32 %v787, %v1040
  %v1098 = vmul.f32 %v792, %v1040
  %v1099 = vmul.f32 %v795, %v1040
  %v1100 = vmul.f32 %v800, %v1040
  %v1101 = vmul.f32 %v803, %v1040
  %v1102 = vmul.f32 %v808, %v1040
  %v1103 = vmul.f32 %v811, %v1040
  %v1104 = vmul.f32 %v816, %v1040
  %v1105 = vmul.f32 %v819, %v1040
  %v1107 = vlaneseq
  %v1108 = vshrl.u32 %v1107, 7
  %v1109 = vsub.s32 0, %v1108
  %v1110 = vrot.slane %v1035, %v1109
  %v1112 = vadd.f32 %v1042, %v1110
  %v1113 = vadd.f32 %v1043, %v1110
  %v1114 = vadd.f32 %v1044, %v1110
  %v1115 = vadd.f32 %v1045, %v1110
  %v1116 = vadd.f32 %v1046, %v1110
  %v1117 = vadd.f32 %v1047, %v1110
  %v1118 = vadd.f32 %v1048, %v1110
  %v1119 = vadd.f32 %v1049, %v1110
  %v1120 = vadd.f32 %v1050, %v1110
  %v1121 = vadd.f32 %v1051, %v1110
  %v1122 = vadd.f32 %v1052, %v1110
  %v1123 = vadd.f32 %v1053, %v1110
  %v1124 = vadd.f32 %v1054, %v1110
  %v1125 = vadd.f32 %v1055, %v1110
  %v1126 = vadd.f32 %v1056, %v1110
  %v1127 = vadd.f32 %v1057, %v1110
  %v1128 = vadd.f32 %v1058, %v1110
  %v1129 = vadd.f32 %v1059, %v1110
  %v1130 = vadd.f32 %v1060, %v1110
  %v1131 = vadd.f32 %v1061, %v1110
  %v1132 = vadd.f32 %v1062, %v1110
  %v1133 = vadd.f32 %v1063, %v1110
  %v1134 = vadd.f32 %v1064, %v1110
  %v1135 = vadd.f32 %v1065, %v1110
  %v1136 = vadd.f32 %v1066, %v1110
  %v1137 = vadd.f32 %v1067, %v1110
  %v1138 = vadd.f32 %v1068, %v1110
  %v1139 = vadd.f32 %v1069, %v1110
  %v1140 = vadd.f32 %v1070, %v1110
  %v1141 = vadd.f32 %v1071, %v1110
  %v1142 = vadd.f32 %v1072, %v1110
  %v1143 = vadd.f32 %v1073, %v1110
  %v1144 = vadd.f32 %v1074, %v1110
  %v1145 = vadd.f32 %v1075, %v1110
  %v1146 = vadd.f32 %v1076, %v1110
  %v1147 = vadd.f32 %v1077, %v1110
  %v1148 = vadd.f32 %v1078, %v1110
  %v1149 = vadd.f32 %v1079, %v1110
  %v1150 = vadd.f32 %v1080, %v1110
  %v1151 = vadd.f32 %v1081, %v1110
  %v1152 = vadd.f32 %v1082, %v1110
  %v1153 = vadd.f32 %v1083, %v1110
  %v1154 = vadd.f32 %v1084, %v1110
  %v1155 = vadd.f32 %v1085, %v1110
  %v1156 = vadd.f32 %v1086, %v1110
  %v1157 = vadd.f32 %v1087, %v1110
  %v1158 = vadd.f32 %v1088, %v1110
  %v1159 = vadd.f32 %v1089, %v1110
  %v1160 = vadd.f32 %v1090, %v1110
  %v1161 = vadd.f32 %v1091, %v1110
  %v1162 = vadd.f32 %v1092, %v1110
  %v1163 = vadd.f32 %v1093, %v1110
  %v1164 = vadd.f32 %v1094, %v1110
  %v1165 = vadd.f32 %v1095, %v1110
  %v1166 = vadd.f32 %v1096, %v1110
  %v1167 = vadd.f32 %v1097, %v1110
  %v1168 = vadd.f32 %v1098, %v1110
  %v1169 = vadd.f32 %v1099, %v1110
  %v1170 = vadd.f32 %v1100, %v1110
  %v1171 = vadd.f32 %v1101, %v1110
  %v1172 = vadd.f32 %v1102, %v1110
  %v1173 = vadd.f32 %v1103, %v1110
  %v1174 = vadd.f32 %v1104, %v1110
  %v1175 = vadd.f32 %v1105, %v1110
  %v1176 = vld [vmem:[%s4] sm:$0xf]
  %v1177 = vld [vmem:[%s4 + $0x4] sm:$0xf]
  %v1178 = vld [vmem:[%s4 + $0x8] sm:$0xf]
  %v1179 = vld [vmem:[%s4 + $0xc] sm:$0xf]
  %v1180 = vld [vmem:[%s4 + $0x10] sm:$0xf]
  %v1181 = vld [vmem:[%s4 + $0x14] sm:$0xf]
  %v1182 = vld [vmem:[%s4 + $0x18] sm:$0xf]
  %v1183 = vld [vmem:[%s4 + $0x1c] sm:$0xf]
  %v1184 = vld [vmem:[%s4 + $0x20] sm:$0xf]
  %v1185 = vld [vmem:[%s4 + $0x24] sm:$0xf]
  %v1186 = vld [vmem:[%s4 + $0x28] sm:$0xf]
  %v1187 = vld [vmem:[%s4 + $0x2c] sm:$0xf]
  %v1188 = vld [vmem:[%s4 + $0x30] sm:$0xf]
  %v1189 = vld [vmem:[%s4 + $0x34] sm:$0xf]
  %v1190 = vld [vmem:[%s4 + $0x38] sm:$0xf]
  %v1191 = vld [vmem:[%s4 + $0x3c] sm:$0xf]
  %v1192 = vld [vmem:[%s4 + $0x40] sm:$0xf]
  %v1193 = vld [vmem:[%s4 + $0x44] sm:$0xf]
  %v1194 = vld [vmem:[%s4 + $0x48] sm:$0xf]
  %v1195 = vld [vmem:[%s4 + $0x4c] sm:$0xf]
  %v1196 = vld [vmem:[%s4 + $0x50] sm:$0xf]
  %v1197 = vld [vmem:[%s4 + $0x54] sm:$0xf]
  %v1198 = vld [vmem:[%s4 + $0x58] sm:$0xf]
  %v1199 = vld [vmem:[%s4 + $0x5c] sm:$0xf]
  %v1200 = vld [vmem:[%s4 + $0x60] sm:$0xf]
  %v1201 = vld [vmem:[%s4 + $0x64] sm:$0xf]
  %v1202 = vld [vmem:[%s4 + $0x68] sm:$0xf]
  %v1203 = vld [vmem:[%s4 + $0x6c] sm:$0xf]
  %v1204 = vld [vmem:[%s4 + $0x70] sm:$0xf]
  %v1205 = vld [vmem:[%s4 + $0x74] sm:$0xf]
  %v1206 = vld [vmem:[%s4 + $0x78] sm:$0xf]
  %v1207 = vld [vmem:[%s4 + $0x7c] sm:$0xf]
  %v1208 = vld [vmem:[%s4 + $0x80] sm:$0xf]
  %v1209 = vld [vmem:[%s4 + $0x84] sm:$0xf]
  %v1210 = vld [vmem:[%s4 + $0x88] sm:$0xf]
  %v1211 = vld [vmem:[%s4 + $0x8c] sm:$0xf]
  %v1212 = vld [vmem:[%s4 + $0x90] sm:$0xf]
  %v1213 = vld [vmem:[%s4 + $0x94] sm:$0xf]
  %v1214 = vld [vmem:[%s4 + $0x98] sm:$0xf]
  %v1215 = vld [vmem:[%s4 + $0x9c] sm:$0xf]
  %v1216 = vld [vmem:[%s4 + $0xa0] sm:$0xf]
  %v1217 = vld [vmem:[%s4 + $0xa4] sm:$0xf]
  %v1218 = vld [vmem:[%s4 + $0xa8] sm:$0xf]
  %v1219 = vld [vmem:[%s4 + $0xac] sm:$0xf]
  %v1220 = vld [vmem:[%s4 + $0xb0] sm:$0xf]
  %v1221 = vld [vmem:[%s4 + $0xb4] sm:$0xf]
  %v1222 = vld [vmem:[%s4 + $0xb8] sm:$0xf]
  %v1223 = vld [vmem:[%s4 + $0xbc] sm:$0xf]
  %v1224 = vld [vmem:[%s4 + $0xc0] sm:$0xf]
  %v1225 = vld [vmem:[%s4 + $0xc4] sm:$0xf]
  %v1226 = vld [vmem:[%s4 + $0xc8] sm:$0xf]
  %v1227 = vld [vmem:[%s4 + $0xcc] sm:$0xf]
  %v1228 = vld [vmem:[%s4 + $0xd0] sm:$0xf]
  %v1229 = vld [vmem:[%s4 + $0xd4] sm:$0xf]
  %v1230 = vld [vmem:[%s4 + $0xd8] sm:$0xf]
  %v1231 = vld [vmem:[%s4 + $0xdc] sm:$0xf]
  %v1232 = vld [vmem:[%s4 + $0xe0] sm:$0xf]
  %v1233 = vld [vmem:[%s4 + $0xe4] sm:$0xf]
  %v1234 = vld [vmem:[%s4 + $0xe8] sm:$0xf]
  %v1235 = vld [vmem:[%s4 + $0xec] sm:$0xf]
  %v1236 = vld [vmem:[%s4 + $0xf0] sm:$0xf]
  %v1237 = vld [vmem:[%s4 + $0xf4] sm:$0xf]
  %v1238 = vld [vmem:[%s4 + $0xf8] sm:$0xf]
  %v1239 = vld [vmem:[%s4 + $0xfc] sm:$0xf]
  %v1240 = vunpack.c.l.bf16 %v1176
  %v1241 = vunpack.c.l.bf16 %v1177
  %v1242 = vunpack.c.l.bf16 %v1178
  %v1243 = vunpack.c.l.bf16 %v1179
  %v1244 = vunpack.c.l.bf16 %v1180
  %v1245 = vunpack.c.l.bf16 %v1181
  %v1246 = vunpack.c.l.bf16 %v1182
  %v1247 = vunpack.c.l.bf16 %v1183
  %v1248 = vunpack.c.l.bf16 %v1184
  %v1249 = vunpack.c.l.bf16 %v1185
  %v1250 = vunpack.c.l.bf16 %v1186
  %v1251 = vunpack.c.l.bf16 %v1187
  %v1252 = vunpack.c.l.bf16 %v1188
  %v1253 = vunpack.c.l.bf16 %v1189
  %v1254 = vunpack.c.l.bf16 %v1190
  %v1255 = vunpack.c.l.bf16 %v1191
  %v1256 = vunpack.c.l.bf16 %v1192
  %v1257 = vunpack.c.l.bf16 %v1193
  %v1258 = vunpack.c.l.bf16 %v1194
  %v1259 = vunpack.c.l.bf16 %v1195
  %v1260 = vunpack.c.l.bf16 %v1196
  %v1261 = vunpack.c.l.bf16 %v1197
  %v1262 = vunpack.c.l.bf16 %v1198
  %v1263 = vunpack.c.l.bf16 %v1199
  %v1264 = vunpack.c.l.bf16 %v1200
  %v1265 = vunpack.c.l.bf16 %v1201
  %v1266 = vunpack.c.l.bf16 %v1202
  %v1267 = vunpack.c.l.bf16 %v1203
  %v1268 = vunpack.c.l.bf16 %v1204
  %v1269 = vunpack.c.l.bf16 %v1205
  %v1270 = vunpack.c.l.bf16 %v1206
  %v1271 = vunpack.c.l.bf16 %v1207
  %v1272 = vunpack.c.l.bf16 %v1208
  %v1273 = vunpack.c.l.bf16 %v1209
  %v1274 = vunpack.c.l.bf16 %v1210
  %v1275 = vunpack.c.l.bf16 %v1211
  %v1276 = vunpack.c.l.bf16 %v1212
  %v1277 = vunpack.c.l.bf16 %v1213
  %v1278 = vunpack.c.l.bf16 %v1214
  %v1279 = vunpack.c.l.bf16 %v1215
  %v1280 = vunpack.c.l.bf16 %v1216
  %v1281 = vunpack.c.l.bf16 %v1217
  %v1282 = vunpack.c.l.bf16 %v1218
  %v1283 = vunpack.c.l.bf16 %v1219
  %v1284 = vunpack.c.l.bf16 %v1220
  %v1285 = vunpack.c.l.bf16 %v1221
  %v1286 = vunpack.c.l.bf16 %v1222
  %v1287 = vunpack.c.l.bf16 %v1223
  %v1288 = vunpack.c.l.bf16 %v1224
  %v1289 = vunpack.c.l.bf16 %v1225
  %v1290 = vunpack.c.l.bf16 %v1226
  %v1291 = vunpack.c.l.bf16 %v1227
  %v1292 = vunpack.c.l.bf16 %v1228
  %v1293 = vunpack.c.l.bf16 %v1229
  %v1294 = vunpack.c.l.bf16 %v1230
  %v1295 = vunpack.c.l.bf16 %v1231
  %v1296 = vunpack.c.l.bf16 %v1232
  %v1297 = vunpack.c.l.bf16 %v1233
  %v1298 = vunpack.c.l.bf16 %v1234
  %v1299 = vunpack.c.l.bf16 %v1235
  %v1300 = vunpack.c.l.bf16 %v1236
  %v1301 = vunpack.c.l.bf16 %v1237
  %v1302 = vunpack.c.l.bf16 %v1238
  %v1303 = vunpack.c.l.bf16 %v1239
  %v1304 = vadd.f32 %v1112, %v1240
  %v1305 = vadd.f32 %v1113, %v1241
  %v1306 = vadd.f32 %v1114, %v1242
  %v1307 = vadd.f32 %v1115, %v1243
  %v1308 = vadd.f32 %v1116, %v1244
  %v1309 = vadd.f32 %v1117, %v1245
  %v1310 = vadd.f32 %v1118, %v1246
  %v1311 = vadd.f32 %v1119, %v1247
  %v1312 = vadd.f32 %v1120, %v1248
  %v1313 = vadd.f32 %v1121, %v1249
  %v1314 = vadd.f32 %v1122, %v1250
  %v1315 = vadd.f32 %v1123, %v1251
  %v1316 = vadd.f32 %v1124, %v1252
  %v1317 = vadd.f32 %v1125, %v1253
  %v1318 = vadd.f32 %v1126, %v1254
  %v1319 = vadd.f32 %v1127, %v1255
  %v1320 = vadd.f32 %v1128, %v1256
  %v1321 = vadd.f32 %v1129, %v1257
  %v1322 = vadd.f32 %v1130, %v1258
  %v1323 = vadd.f32 %v1131, %v1259
  %v1324 = vadd.f32 %v1132, %v1260
  %v1325 = vadd.f32 %v1133, %v1261
  %v1326 = vadd.f32 %v1134, %v1262
  %v1327 = vadd.f32 %v1135, %v1263
  %v1328 = vadd.f32 %v1136, %v1264
  %v1329 = vadd.f32 %v1137, %v1265
  %v1330 = vadd.f32 %v1138, %v1266
  %v1331 = vadd.f32 %v1139, %v1267
  %v1332 = vadd.f32 %v1140, %v1268
  %v1333 = vadd.f32 %v1141, %v1269
  %v1334 = vadd.f32 %v1142, %v1270
  %v1335 = vadd.f32 %v1143, %v1271
  %v1336 = vadd.f32 %v1144, %v1272
  %v1337 = vadd.f32 %v1145, %v1273
  %v1338 = vadd.f32 %v1146, %v1274
  %v1339 = vadd.f32 %v1147, %v1275
  %v1340 = vadd.f32 %v1148, %v1276
  %v1341 = vadd.f32 %v1149, %v1277
  %v1342 = vadd.f32 %v1150, %v1278
  %v1343 = vadd.f32 %v1151, %v1279
  %v1344 = vadd.f32 %v1152, %v1280
  %v1345 = vadd.f32 %v1153, %v1281
  %v1346 = vadd.f32 %v1154, %v1282
  %v1347 = vadd.f32 %v1155, %v1283
  %v1348 = vadd.f32 %v1156, %v1284
  %v1349 = vadd.f32 %v1157, %v1285
  %v1350 = vadd.f32 %v1158, %v1286
  %v1351 = vadd.f32 %v1159, %v1287
  %v1352 = vadd.f32 %v1160, %v1288
  %v1353 = vadd.f32 %v1161, %v1289
  %v1354 = vadd.f32 %v1162, %v1290
  %v1355 = vadd.f32 %v1163, %v1291
  %v1356 = vadd.f32 %v1164, %v1292
  %v1357 = vadd.f32 %v1165, %v1293
  %v1358 = vadd.f32 %v1166, %v1294
  %v1359 = vadd.f32 %v1167, %v1295
  %v1360 = vadd.f32 %v1168, %v1296
  %v1361 = vadd.f32 %v1169, %v1297
  %v1362 = vadd.f32 %v1170, %v1298
  %v1363 = vadd.f32 %v1171, %v1299
  %v1364 = vadd.f32 %v1172, %v1300
  %v1365 = vadd.f32 %v1173, %v1301
  %v1366 = vadd.f32 %v1174, %v1302
  %v1367 = vadd.f32 %v1175, %v1303
  %v1368 = vmax.f32 %v1304, 0.0
  %v1369 = vmax.f32 %v1305, 0.0
  %v1370 = vmax.f32 %v1306, 0.0
  %v1371 = vmax.f32 %v1307, 0.0
  %v1372 = vmax.f32 %v1308, 0.0
  %v1373 = vmax.f32 %v1309, 0.0
  %v1374 = vmax.f32 %v1310, 0.0
  %v1375 = vmax.f32 %v1311, 0.0
  %v1376 = vmax.f32 %v1312, 0.0
  %v1377 = vmax.f32 %v1313, 0.0
  %v1378 = vmax.f32 %v1314, 0.0
  %v1379 = vmax.f32 %v1315, 0.0
  %v1380 = vmax.f32 %v1316, 0.0
  %v1381 = vmax.f32 %v1317, 0.0
  %v1382 = vmax.f32 %v1318, 0.0
  %v1383 = vmax.f32 %v1319, 0.0
  %v1384 = vmax.f32 %v1320, 0.0
  %v1385 = vmax.f32 %v1321, 0.0
  %v1386 = vmax.f32 %v1322, 0.0
  %v1387 = vmax.f32 %v1323, 0.0
  %v1388 = vmax.f32 %v1324, 0.0
  %v1389 = vmax.f32 %v1325, 0.0
  %v1390 = vmax.f32 %v1326, 0.0
  %v1391 = vmax.f32 %v1327, 0.0
  %v1392 = vmax.f32 %v1328, 0.0
  %v1393 = vmax.f32 %v1329, 0.0
  %v1394 = vmax.f32 %v1330, 0.0
  %v1395 = vmax.f32 %v1331, 0.0
  %v1396 = vmax.f32 %v1332, 0.0
  %v1397 = vmax.f32 %v1333, 0.0
  %v1398 = vmax.f32 %v1334, 0.0
  %v1399 = vmax.f32 %v1335, 0.0
  %v1400 = vmax.f32 %v1336, 0.0
  %v1401 = vmax.f32 %v1337, 0.0
  %v1402 = vmax.f32 %v1338, 0.0
  %v1403 = vmax.f32 %v1339, 0.0
  %v1404 = vmax.f32 %v1340, 0.0
  %v1405 = vmax.f32 %v1341, 0.0
  %v1406 = vmax.f32 %v1342, 0.0
  %v1407 = vmax.f32 %v1343, 0.0
  %v1408 = vmax.f32 %v1344, 0.0
  %v1409 = vmax.f32 %v1345, 0.0
  %v1410 = vmax.f32 %v1346, 0.0
  %v1411 = vmax.f32 %v1347, 0.0
  %v1412 = vmax.f32 %v1348, 0.0
  %v1413 = vmax.f32 %v1349, 0.0
  %v1414 = vmax.f32 %v1350, 0.0
  %v1415 = vmax.f32 %v1351, 0.0
  %v1416 = vmax.f32 %v1352, 0.0
  %v1417 = vmax.f32 %v1353, 0.0
  %v1418 = vmax.f32 %v1354, 0.0
  %v1419 = vmax.f32 %v1355, 0.0
  %v1420 = vmax.f32 %v1356, 0.0
  %v1421 = vmax.f32 %v1357, 0.0
  %v1422 = vmax.f32 %v1358, 0.0
  %v1423 = vmax.f32 %v1359, 0.0
  %v1424 = vmax.f32 %v1360, 0.0
  %v1425 = vmax.f32 %v1361, 0.0
  %v1426 = vmax.f32 %v1362, 0.0
  %v1427 = vmax.f32 %v1363, 0.0
  %v1428 = vmax.f32 %v1364, 0.0
  %v1429 = vmax.f32 %v1365, 0.0
  %v1430 = vmax.f32 %v1366, 0.0
  %v1431 = vmax.f32 %v1367, 0.0
  %v1432 = vpack.c.bf16 %v1369, %v1368
  %v1433 = vpack.c.bf16 %v1371, %v1370
  %v1434 = vpack.c.bf16 %v1373, %v1372
  %v1435 = vpack.c.bf16 %v1375, %v1374
  %v1436 = vpack.c.bf16 %v1377, %v1376
  %v1437 = vpack.c.bf16 %v1379, %v1378
  %v1438 = vpack.c.bf16 %v1381, %v1380
  %v1439 = vpack.c.bf16 %v1383, %v1382
  %v1440 = vpack.c.bf16 %v1385, %v1384
  %v1441 = vpack.c.bf16 %v1387, %v1386
  %v1442 = vpack.c.bf16 %v1389, %v1388
  %v1443 = vpack.c.bf16 %v1391, %v1390
  %v1444 = vpack.c.bf16 %v1393, %v1392
  %v1445 = vpack.c.bf16 %v1395, %v1394
  %v1446 = vpack.c.bf16 %v1397, %v1396
  %v1447 = vpack.c.bf16 %v1399, %v1398
  %v1448 = vpack.c.bf16 %v1401, %v1400
  %v1449 = vpack.c.bf16 %v1403, %v1402
  %v1450 = vpack.c.bf16 %v1405, %v1404
  %v1451 = vpack.c.bf16 %v1407, %v1406
  %v1452 = vpack.c.bf16 %v1409, %v1408
  %v1453 = vpack.c.bf16 %v1411, %v1410
  %v1454 = vpack.c.bf16 %v1413, %v1412
  %v1455 = vpack.c.bf16 %v1415, %v1414
  %v1456 = vpack.c.bf16 %v1417, %v1416
  %v1457 = vpack.c.bf16 %v1419, %v1418
  %v1458 = vpack.c.bf16 %v1421, %v1420
  %v1459 = vpack.c.bf16 %v1423, %v1422
  %v1460 = vpack.c.bf16 %v1425, %v1424
  %v1461 = vpack.c.bf16 %v1427, %v1426
  %v1462 = vpack.c.bf16 %v1429, %v1428
  %v1463 = vpack.c.bf16 %v1431, %v1430
  %v1496 = vunpack.c.l.b16 %v1432
  %v1497 = vunpack.c.h.b16 %v1432
  %v1498 = vunpack.c.l.b16 %v1433
  %v1499 = vunpack.c.h.b16 %v1433
  %v1500 = vunpack.c.l.b16 %v1434
  %v1501 = vunpack.c.h.b16 %v1434
  %v1502 = vunpack.c.l.b16 %v1435
  %v1503 = vunpack.c.h.b16 %v1435
  %v1504 = vunpack.c.l.b16 %v1436
  %v1505 = vunpack.c.h.b16 %v1436
  %v1506 = vunpack.c.l.b16 %v1437
  %v1507 = vunpack.c.h.b16 %v1437
  %v1508 = vunpack.c.l.b16 %v1438
  %v1509 = vunpack.c.h.b16 %v1438
  %v1510 = vunpack.c.l.b16 %v1439
  %v1511 = vunpack.c.h.b16 %v1439
  %v1512 = vunpack.c.l.b16 %v1440
  %v1513 = vunpack.c.h.b16 %v1440
  %v1514 = vunpack.c.l.b16 %v1441
  %v1515 = vunpack.c.h.b16 %v1441
  %v1516 = vunpack.c.l.b16 %v1442
  %v1517 = vunpack.c.h.b16 %v1442
  %v1518 = vunpack.c.l.b16 %v1443
  %v1519 = vunpack.c.h.b16 %v1443
  %v1520 = vunpack.c.l.b16 %v1444
  %v1521 = vunpack.c.h.b16 %v1444
  %v1522 = vunpack.c.l.b16 %v1445
  %v1523 = vunpack.c.h.b16 %v1445
  %v1524 = vunpack.c.l.b16 %v1446
  %v1525 = vunpack.c.h.b16 %v1446
  %v1526 = vunpack.c.l.b16 %v1447
  %v1527 = vunpack.c.h.b16 %v1447
  %v1528 = vunpack.c.l.b16 %v1448
  %v1529 = vunpack.c.h.b16 %v1448
  %v1530 = vunpack.c.l.b16 %v1449
  %v1531 = vunpack.c.h.b16 %v1449
  %v1532 = vunpack.c.l.b16 %v1450
  %v1533 = vunpack.c.h.b16 %v1450
  %v1534 = vunpack.c.l.b16 %v1451
  %v1535 = vunpack.c.h.b16 %v1451
  %v1536 = vunpack.c.l.b16 %v1452
  %v1537 = vunpack.c.h.b16 %v1452
  %v1538 = vunpack.c.l.b16 %v1453
  %v1539 = vunpack.c.h.b16 %v1453
  %v1540 = vunpack.c.l.b16 %v1454
  %v1541 = vunpack.c.h.b16 %v1454
  %v1542 = vunpack.c.l.b16 %v1455
  %v1543 = vunpack.c.h.b16 %v1455
  %v1544 = vunpack.c.l.b16 %v1456
  %v1545 = vunpack.c.h.b16 %v1456
  %v1546 = vunpack.c.l.b16 %v1457
  %v1547 = vunpack.c.h.b16 %v1457
  %v1548 = vunpack.c.l.b16 %v1458
  %v1549 = vunpack.c.h.b16 %v1458
  %v1550 = vunpack.c.l.b16 %v1459
  %v1551 = vunpack.c.h.b16 %v1459
  %v1552 = vunpack.c.l.b16 %v1460
  %v1553 = vunpack.c.h.b16 %v1460
  %v1554 = vunpack.c.l.b16 %v1461
  %v1555 = vunpack.c.h.b16 %v1461
  %v1556 = vunpack.c.l.b16 %v1462
  %v1557 = vunpack.c.h.b16 %v1462
  %v1558 = vunpack.c.l.b16 %v1463
  %v1559 = vunpack.c.h.b16 %v1463
  %v1560 = vpack.c.b16 %v1496, %v1496
  %v1561 = vpack.c.b16 %v1497, %v1497
  %v1562 = vpack.c.b16 %v1498, %v1498
  %v1563 = vpack.c.b16 %v1499, %v1499
  %v1564 = vpack.c.b16 %v1500, %v1500
  %v1565 = vpack.c.b16 %v1501, %v1501
  %v1566 = vpack.c.b16 %v1502, %v1502
  %v1567 = vpack.c.b16 %v1503, %v1503
  %v1568 = vpack.c.b16 %v1504, %v1504
  %v1569 = vpack.c.b16 %v1505, %v1505
  %v1570 = vpack.c.b16 %v1506, %v1506
  %v1571 = vpack.c.b16 %v1507, %v1507
  %v1572 = vpack.c.b16 %v1508, %v1508
  %v1573 = vpack.c.b16 %v1509, %v1509
  %v1574 = vpack.c.b16 %v1510, %v1510
  %v1575 = vpack.c.b16 %v1511, %v1511
  %v1576 = vpack.c.b16 %v1512, %v1512
  %v1577 = vpack.c.b16 %v1513, %v1513
  %v1578 = vpack.c.b16 %v1514, %v1514
  %v1579 = vpack.c.b16 %v1515, %v1515
  %v1580 = vpack.c.b16 %v1516, %v1516
  %v1581 = vpack.c.b16 %v1517, %v1517
  %v1582 = vpack.c.b16 %v1518, %v1518
  %v1583 = vpack.c.b16 %v1519, %v1519
  %v1584 = vpack.c.b16 %v1520, %v1520
  %v1585 = vpack.c.b16 %v1521, %v1521
  %v1586 = vpack.c.b16 %v1522, %v1522
  %v1587 = vpack.c.b16 %v1523, %v1523
  %v1588 = vpack.c.b16 %v1524, %v1524
  %v1589 = vpack.c.b16 %v1525, %v1525
  %v1590 = vpack.c.b16 %v1526, %v1526
  %v1591 = vpack.c.b16 %v1527, %v1527
  %v1592 = vpack.c.b16 %v1528, %v1528
  %v1593 = vpack.c.b16 %v1529, %v1529
  %v1594 = vpack.c.b16 %v1530, %v1530
  %v1595 = vpack.c.b16 %v1531, %v1531
  %v1596 = vpack.c.b16 %v1532, %v1532
  %v1597 = vpack.c.b16 %v1533, %v1533
  %v1598 = vpack.c.b16 %v1534, %v1534
  %v1599 = vpack.c.b16 %v1535, %v1535
  %v1600 = vpack.c.b16 %v1536, %v1536
  %v1601 = vpack.c.b16 %v1537, %v1537
  %v1602 = vpack.c.b16 %v1538, %v1538
  %v1603 = vpack.c.b16 %v1539, %v1539
  %v1604 = vpack.c.b16 %v1540, %v1540
  %v1605 = vpack.c.b16 %v1541, %v1541
  %v1606 = vpack.c.b16 %v1542, %v1542
  %v1607 = vpack.c.b16 %v1543, %v1543
  %v1608 = vpack.c.b16 %v1544, %v1544
  %v1609 = vpack.c.b16 %v1545, %v1545
  %v1610 = vpack.c.b16 %v1546, %v1546
  %v1611 = vpack.c.b16 %v1547, %v1547
  %v1612 = vpack.c.b16 %v1548, %v1548
  %v1613 = vpack.c.b16 %v1549, %v1549
  %v1614 = vpack.c.b16 %v1550, %v1550
  %v1615 = vpack.c.b16 %v1551, %v1551
  %v1616 = vpack.c.b16 %v1552, %v1552
  %v1617 = vpack.c.b16 %v1553, %v1553
  %v1618 = vpack.c.b16 %v1554, %v1554
  %v1619 = vpack.c.b16 %v1555, %v1555
  %v1620 = vpack.c.b16 %v1556, %v1556
  %v1621 = vpack.c.b16 %v1557, %v1557
  %v1622 = vpack.c.b16 %v1558, %v1558
  %v1623 = vpack.c.b16 %v1559, %v1559
  %1688 = vst [vmem:[%s5] sm:$0xf] %v1560
  %1689 = vst [vmem:[%s5 + $0x4] sm:$0xf] %v1561
  %1690 = vst [vmem:[%s5 + $0x8] sm:$0xf] %v1562
  %1691 = vst [vmem:[%s5 + $0xc] sm:$0xf] %v1563
  %1692 = vst [vmem:[%s5 + $0x10] sm:$0xf] %v1564
  %1693 = vst [vmem:[%s5 + $0x14] sm:$0xf] %v1565
  %1694 = vst [vmem:[%s5 + $0x18] sm:$0xf] %v1566
  %1695 = vst [vmem:[%s5 + $0x1c] sm:$0xf] %v1567
  %1696 = vst [vmem:[%s5 + $0x20] sm:$0xf] %v1568
  %1697 = vst [vmem:[%s5 + $0x24] sm:$0xf] %v1569
  %1698 = vst [vmem:[%s5 + $0x28] sm:$0xf] %v1570
  %1699 = vst [vmem:[%s5 + $0x2c] sm:$0xf] %v1571
  %1700 = vst [vmem:[%s5 + $0x30] sm:$0xf] %v1572
  %1701 = vst [vmem:[%s5 + $0x34] sm:$0xf] %v1573
  %1702 = vst [vmem:[%s5 + $0x38] sm:$0xf] %v1574
  %1703 = vst [vmem:[%s5 + $0x3c] sm:$0xf] %v1575
  %1704 = vst [vmem:[%s5 + $0x40] sm:$0xf] %v1576
  %1705 = vst [vmem:[%s5 + $0x44] sm:$0xf] %v1577
  %1706 = vst [vmem:[%s5 + $0x48] sm:$0xf] %v1578
  %1707 = vst [vmem:[%s5 + $0x4c] sm:$0xf] %v1579
  %1708 = vst [vmem:[%s5 + $0x50] sm:$0xf] %v1580
  %1709 = vst [vmem:[%s5 + $0x54] sm:$0xf] %v1581
  %1710 = vst [vmem:[%s5 + $0x58] sm:$0xf] %v1582
  %1711 = vst [vmem:[%s5 + $0x5c] sm:$0xf] %v1583
  %1712 = vst [vmem:[%s5 + $0x60] sm:$0xf] %v1584
  %1713 = vst [vmem:[%s5 + $0x64] sm:$0xf] %v1585
  %1714 = vst [vmem:[%s5 + $0x68] sm:$0xf] %v1586
  %1715 = vst [vmem:[%s5 + $0x6c] sm:$0xf] %v1587
  %1716 = vst [vmem:[%s5 + $0x70] sm:$0xf] %v1588
  %1717 = vst [vmem:[%s5 + $0x74] sm:$0xf] %v1589
  %1718 = vst [vmem:[%s5 + $0x78] sm:$0xf] %v1590
  %1719 = vst [vmem:[%s5 + $0x7c] sm:$0xf] %v1591
  %1720 = vst [vmem:[%s5 + $0x80] sm:$0xf] %v1592
  %1721 = vst [vmem:[%s5 + $0x84] sm:$0xf] %v1593
  %1722 = vst [vmem:[%s5 + $0x88] sm:$0xf] %v1594
  %1723 = vst [vmem:[%s5 + $0x8c] sm:$0xf] %v1595
  %1724 = vst [vmem:[%s5 + $0x90] sm:$0xf] %v1596
  %1725 = vst [vmem:[%s5 + $0x94] sm:$0xf] %v1597
  %1726 = vst [vmem:[%s5 + $0x98] sm:$0xf] %v1598
  %1727 = vst [vmem:[%s5 + $0x9c] sm:$0xf] %v1599
  %1728 = vst [vmem:[%s5 + $0xa0] sm:$0xf] %v1600
  %1729 = vst [vmem:[%s5 + $0xa4] sm:$0xf] %v1601
  %1730 = vst [vmem:[%s5 + $0xa8] sm:$0xf] %v1602
  %1731 = vst [vmem:[%s5 + $0xac] sm:$0xf] %v1603
  %1732 = vst [vmem:[%s5 + $0xb0] sm:$0xf] %v1604
  %1733 = vst [vmem:[%s5 + $0xb4] sm:$0xf] %v1605
  %1734 = vst [vmem:[%s5 + $0xb8] sm:$0xf] %v1606
  %1735 = vst [vmem:[%s5 + $0xbc] sm:$0xf] %v1607
  %1736 = vst [vmem:[%s5 + $0xc0] sm:$0xf] %v1608
  %1737 = vst [vmem:[%s5 + $0xc4] sm:$0xf] %v1609
  %1738 = vst [vmem:[%s5 + $0xc8] sm:$0xf] %v1610
  %1739 = vst [vmem:[%s5 + $0xcc] sm:$0xf] %v1611
  %1740 = vst [vmem:[%s5 + $0xd0] sm:$0xf] %v1612
  %1741 = vst [vmem:[%s5 + $0xd4] sm:$0xf] %v1613
  %1742 = vst [vmem:[%s5 + $0xd8] sm:$0xf] %v1614
  %1743 = vst [vmem:[%s5 + $0xdc] sm:$0xf] %v1615
  %1744 = vst [vmem:[%s5 + $0xe0] sm:$0xf] %v1616
  %1745 = vst [vmem:[%s5 + $0xe4] sm:$0xf] %v1617
  %1746 = vst [vmem:[%s5 + $0xe8] sm:$0xf] %v1618
  %1747 = vst [vmem:[%s5 + $0xec] sm:$0xf] %v1619
  %1748 = vst [vmem:[%s5 + $0xf0] sm:$0xf] %v1620
  %1749 = vst [vmem:[%s5 + $0xf4] sm:$0xf] %v1621
  %1750 = vst [vmem:[%s5 + $0xf8] sm:$0xf] %v1622
  %1751 = vst [vmem:[%s5 + $0xfc] sm:$0xf] %v1623
  // Predicated region
  $region22: #{_lambda_.23} parent=0 // pred_check
    _
  $region23: #{_lambda_.23} parent=0 // pred_check_branch
    %1753 = sbr.rel (0) target = $region25
  $region24: #{_lambda_.23} parent=0 // pred_region
    _
  $region25: #{_lambda_.23} parent=0 // pred_fallthru
    _
  // Predicated region
  $region26: #{_lambda_.23} parent=0 // pred_check
    _
  $region27: #{_lambda_.23} parent=0 // pred_check_branch
    %1755 = sbr.rel (0) target = $region29
  $region28: #{_lambda_.23} parent=0 // pred_region
    _
  $region29: #{_lambda_.23} parent=0 // pred_fallthru
    _

// kernel: _lambda_.25
$region0: #{_lambda_.25}
  #allocation0 [shape = 'u32[]', space=smem, size = 0x4, offset = 0x4, fixed_abs, tag = 'smem constant byte address 0x4 - core index']
  #allocation1 [shape = 'u32[144,128]{1,0:T(1,128)}', space=vmem, size = 0x12000, scoped, tag = 'internal scratch']
  %s0 = inlined_call_operand.vmem [shape: bf16[128,256], index: 0, kind: input, shape index: {}]
  %s1 = inlined_call_operand.vmem [shape: bf16[256,128], index: 1, kind: input, shape index: {}]
  %s2 = inlined_call_operand.vmem [shape: f32[1,128], index: 2, kind: input, shape index: {}]
  %s3 = inlined_call_operand.vmem [shape: f32[1,128], index: 3, kind: input, shape index: {}]
  %s4 = inlined_call_operand.vmem [shape: bf16[128,128], index: 4, kind: output, shape index: {}]
  %s5 = sld [smem:[#allocation0]]
  $region26: #{_lambda_.25} parent=0
    _
  %s7 = ssub.s32 1, %s5
  %s8 = scalar_select 0, %s7, %s5
  // Predicated region
  $region2: #{_lambda_.25} parent=0 // pred_check
    _
  $region3: #{_lambda_.25} parent=0 // pred_check_branch
    %10 = sbr.rel (0) target = $region5
  $region4: #{_lambda_.25} parent=0 // pred_region
    _
  $region5: #{_lambda_.25} parent=0 // pred_fallthru
    _
  // Predicated region
  $region6: #{_lambda_.25} parent=0 // pred_check
    _
  $region7: #{_lambda_.25} parent=0 // pred_check_branch
    %12 = sbr.rel (0) target = $region9
  $region8: #{_lambda_.25} parent=0 // pred_region
    _
  $region9: #{_lambda_.25} parent=0 // pred_fallthru
    _
  // Predicated region
  $region10: #{_lambda_.25} parent=0 // pred_check
    _
  $region11: #{_lambda_.25} parent=0 // pred_check_branch
    %14 = sbr.rel (0) target = $region13
  $region12: #{_lambda_.25} parent=0 // pred_region
    _
  $region13: #{_lambda_.25} parent=0 // pred_fallthru
    _
  // Predicated region
  $region14: #{_lambda_.25} parent=0 // pred_check
    _
  $region15: #{_lambda_.25} parent=0 // pred_check_branch
    %16 = sbr.rel (0) target = $region17
  $region16: #{_lambda_.25} parent=0 // pred_region
    _
  $region17: #{_lambda_.25} parent=0 // pred_fallthru
    _
  %v18 = vld [vmem:[%s0] sm:$0xff]
  %v19 = vld [vmem:[%s0 + $0x8] sm:$0xff]
  %v20 = vld [vmem:[%s0 + $0x10] sm:$0xff]
  %v21 = vld [vmem:[%s0 + $0x18] sm:$0xff]
  %v22 = vld [vmem:[%s0 + $0x20] sm:$0xff]
  %v23 = vld [vmem:[%s0 + $0x28] sm:$0xff]
  %v24 = vld [vmem:[%s0 + $0x30] sm:$0xff]
  %v25 = vld [vmem:[%s0 + $0x38] sm:$0xff]
  %v26 = vld [vmem:[%s0 + $0x40] sm:$0xff]
  %v27 = vld [vmem:[%s0 + $0x48] sm:$0xff]
  %v28 = vld [vmem:[%s0 + $0x50] sm:$0xff]
  %v29 = vld [vmem:[%s0 + $0x58] sm:$0xff]
  %v30 = vld [vmem:[%s0 + $0x60] sm:$0xff]
  %v31 = vld [vmem:[%s0 + $0x68] sm:$0xff]
  %v32 = vld [vmem:[%s0 + $0x70] sm:$0xff]
  %v33 = vld [vmem:[%s0 + $0x78] sm:$0xff]
  %v34 = vld [vmem:[%s1] sm:$0xf]
  %v35 = vld [vmem:[%s1 + $0x4] sm:$0xf]
  %v36 = vld [vmem:[%s1 + $0x8] sm:$0xf]
  %v37 = vld [vmem:[%s1 + $0xc] sm:$0xf]
  %v38 = vld [vmem:[%s1 + $0x10] sm:$0xf]
  %v39 = vld [vmem:[%s1 + $0x14] sm:$0xf]
  %v40 = vld [vmem:[%s1 + $0x18] sm:$0xf]
  %v41 = vld [vmem:[%s1 + $0x1c] sm:$0xf]
  %v42 = vld [vmem:[%s1 + $0x20] sm:$0xf]
  %v43 = vld [vmem:[%s1 + $0x24] sm:$0xf]
  %v44 = vld [vmem:[%s1 + $0x28] sm:$0xf]
  %v45 = vld [vmem:[%s1 + $0x2c] sm:$0xf]
  %v46 = vld [vmem:[%s1 + $0x30] sm:$0xf]
  %v47 = vld [vmem:[%s1 + $0x34] sm:$0xf]
  %v48 = vld [vmem:[%s1 + $0x38] sm:$0xf]
  %v49 = vld [vmem:[%s1 + $0x3c] sm:$0xf]
  %v50 = vld [vmem:[%s1 + $0x40] sm:$0xf]
  %v51 = vld [vmem:[%s1 + $0x44] sm:$0xf]
  %v52 = vld [vmem:[%s1 + $0x48] sm:$0xf]
  %v53 = vld [vmem:[%s1 + $0x4c] sm:$0xf]
  %v54 = vld [vmem:[%s1 + $0x50] sm:$0xf]
  %v55 = vld [vmem:[%s1 + $0x54] sm:$0xf]
  %v56 = vld [vmem:[%s1 + $0x58] sm:$0xf]
  %v57 = vld [vmem:[%s1 + $0x5c] sm:$0xf]
  %v58 = vld [vmem:[%s1 + $0x60] sm:$0xf]
  %v59 = vld [vmem:[%s1 + $0x64] sm:$0xf]
  %v60 = vld [vmem:[%s1 + $0x68] sm:$0xf]
  %v61 = vld [vmem:[%s1 + $0x6c] sm:$0xf]
  %v62 = vld [vmem:[%s1 + $0x70] sm:$0xf]
  %v63 = vld [vmem:[%s1 + $0x74] sm:$0xf]
  %v64 = vld [vmem:[%s1 + $0x78] sm:$0xf]
  %v65 = vld [vmem:[%s1 + $0x7c] sm:$0xf]
  %v82 = vunpack.c.l.b16 %v18
  %v83 = vunpack.c.h.b16 %v18
  %v84 = vunpack.c.l.b16 %v19
  %v85 = vunpack.c.h.b16 %v19
  %v86 = vunpack.c.l.b16 %v20
  %v87 = vunpack.c.h.b16 %v20
  %v88 = vunpack.c.l.b16 %v21
  %v89 = vunpack.c.h.b16 %v21
  %v90 = vunpack.c.l.b16 %v22
  %v91 = vunpack.c.h.b16 %v22
  %v92 = vunpack.c.l.b16 %v23
  %v93 = vunpack.c.h.b16 %v23
  %v94 = vunpack.c.l.b16 %v24
  %v95 = vunpack.c.h.b16 %v24
  %v96 = vunpack.c.l.b16 %v25
  %v97 = vunpack.c.h.b16 %v25
  %v98 = vunpack.c.l.b16 %v26
  %v99 = vunpack.c.h.b16 %v26
  %v100 = vunpack.c.l.b16 %v27
  %v101 = vunpack.c.h.b16 %v27
  %v102 = vunpack.c.l.b16 %v28
  %v103 = vunpack.c.h.b16 %v28
  %v104 = vunpack.c.l.b16 %v29
  %v105 = vunpack.c.h.b16 %v29
  %v106 = vunpack.c.l.b16 %v30
  %v107 = vunpack.c.h.b16 %v30
  %v108 = vunpack.c.l.b16 %v31
  %v109 = vunpack.c.h.b16 %v31
  %v110 = vunpack.c.l.b16 %v32
  %v111 = vunpack.c.h.b16 %v32
  %v112 = vunpack.c.l.b16 %v33
  %v113 = vunpack.c.h.b16 %v33
  %v114 = vpack.c.b16 %v84, %v82
  %v115 = vpack.c.b16 %v85, %v83
  %v116 = vpack.c.b16 %v88, %v86
  %v117 = vpack.c.b16 %v89, %v87
  %v118 = vpack.c.b16 %v92, %v90
  %v119 = vpack.c.b16 %v93, %v91
  %v120 = vpack.c.b16 %v96, %v94
  %v121 = vpack.c.b16 %v97, %v95
  %v122 = vpack.c.b16 %v100, %v98
  %v123 = vpack.c.b16 %v101, %v99
  %v124 = vpack.c.b16 %v104, %v102
  %v125 = vpack.c.b16 %v105, %v103
  %v126 = vpack.c.b16 %v108, %v106
  %v127 = vpack.c.b16 %v109, %v107
  %v128 = vpack.c.b16 %v112, %v110
  %v129 = vpack.c.b16 %v113, %v111
  %v178 = vunpack.c.l.b16 %v34
  %v179 = vunpack.c.l.b16 %v35
  %v180 = vunpack.c.l.b16 %v36
  %v181 = vunpack.c.l.b16 %v37
  %v182 = vunpack.c.l.b16 %v38
  %v183 = vunpack.c.l.b16 %v39
  %v184 = vunpack.c.l.b16 %v40
  %v185 = vunpack.c.l.b16 %v41
  %v186 = vunpack.c.l.b16 %v42
  %v187 = vunpack.c.l.b16 %v43
  %v188 = vunpack.c.l.b16 %v44
  %v189 = vunpack.c.l.b16 %v45
  %v190 = vunpack.c.l.b16 %v46
  %v191 = vunpack.c.l.b16 %v47
  %v192 = vunpack.c.l.b16 %v48
  %v193 = vunpack.c.l.b16 %v49
  %v194 = vunpack.c.l.b16 %v50
  %v195 = vunpack.c.l.b16 %v51
  %v196 = vunpack.c.l.b16 %v52
  %v197 = vunpack.c.l.b16 %v53
  %v198 = vunpack.c.l.b16 %v54
  %v199 = vunpack.c.l.b16 %v55
  %v200 = vunpack.c.l.b16 %v56
  %v201 = vunpack.c.l.b16 %v57
  %v202 = vunpack.c.l.b16 %v58
  %v203 = vunpack.c.l.b16 %v59
  %v204 = vunpack.c.l.b16 %v60
  %v205 = vunpack.c.l.b16 %v61
  %v206 = vunpack.c.l.b16 %v62
  %v207 = vunpack.c.l.b16 %v63
  %v208 = vunpack.c.l.b16 %v64
  %v209 = vunpack.c.l.b16 %v65
  %v210 = vpack.c.b16 %v179, %v178
  %v211 = vpack.c.b16 %v181, %v180
  %v212 = vpack.c.b16 %v183, %v182
  %v213 = vpack.c.b16 %v185, %v184
  %v214 = vpack.c.b16 %v187, %v186
  %v215 = vpack.c.b16 %v189, %v188
  %v216 = vpack.c.b16 %v191, %v190
  %v217 = vpack.c.b16 %v193, %v192
  %v218 = vpack.c.b16 %v195, %v194
  %v219 = vpack.c.b16 %v197, %v196
  %v220 = vpack.c.b16 %v199, %v198
  %v221 = vpack.c.b16 %v201, %v200
  %v222 = vpack.c.b16 %v203, %v202
  %v223 = vpack.c.b16 %v205, %v204
  %v224 = vpack.c.b16 %v207, %v206
  %v225 = vpack.c.b16 %v209, %v208
  %242 = vmatprep.subr.bf16.mxu0 0
  %243 = vmatpush1.bf16.msra.mxu0 %v210
  %244 = vmatprep.subr.bf16.mxu0 0
  %245 = vmatpush1.bf16.msra.mxu0 %v211
  %246 = vmatprep.subr.bf16.mxu0 0
  %247 = vmatpush1.bf16.msra.mxu0 %v212
  %248 = vmatprep.subr.bf16.mxu0 0
  %249 = vmatpush1.bf16.msra.mxu0 %v213
  %250 = vmatprep.subr.bf16.mxu0 0
  %251 = vmatpush1.bf16.msra.mxu0 %v214
  %252 = vmatprep.subr.bf16.mxu0 0
  %253 = vmatpush1.bf16.msra.mxu0 %v215
  %254 = vmatprep.subr.bf16.mxu0 0
  %255 = vmatpush1.bf16.msra.mxu0 %v216
  %256 = vmatprep.subr.bf16.mxu0 0
  %257 = vmatpush1.bf16.msra.mxu0 %v217
  %258 = vmatprep.subr.bf16.mxu0 0
  %259 = vmatpush1.bf16.msra.mxu0 %v218
  %260 = vmatprep.subr.bf16.mxu0 0
  %261 = vmatpush1.bf16.msra.mxu0 %v219
  %262 = vmatprep.subr.bf16.mxu0 0
  %263 = vmatpush1.bf16.msra.mxu0 %v220
  %264 = vmatprep.subr.bf16.mxu0 0
  %265 = vmatpush1.bf16.msra.mxu0 %v221
  %266 = vmatprep.subr.bf16.mxu0 0
  %267 = vmatpush1.bf16.msra.mxu0 %v222
  %268 = vmatprep.subr.bf16.mxu0 0
  %269 = vmatpush1.bf16.msra.mxu0 %v223
  %270 = vmatprep.subr.bf16.mxu0 0
  %271 = vmatpush1.bf16.msra.mxu0 %v224
  %272 = vmatprep.subr.bf16.mxu0 0
  %273 = vmatpush1.bf16.msra.mxu0 %v225
  %274 = vmatprep.mubr.bf16.mxu0 %v115
  %275 = vmatmul.mubr.bf16.gmra.mrb[0].mxu0 %v114
  %v276 = vpop.f32.mrb[0].mxu0
  %v277 = vadd.f32 0.0, %v276
  %v278 = vpop.f32.mrb[0].mxu0
  %v279 = vpop.f32.mrb[0].mxu0
  %v280 = vadd.f32 0.0, %v279
  %v281 = vpop.f32.mrb[0].mxu0
  %282 = vmatprep.mubr.bf16.mxu0 %v117
  %283 = vmatmul.mubr.bf16.gmra.mrb[0].mxu0 %v116
  %v284 = vpop.f32.mrb[0].mxu0
  %v285 = vadd.f32 0.0, %v284
  %v286 = vpop.f32.mrb[0].mxu0
  %v287 = vpop.f32.mrb[0].mxu0
  %v288 = vadd.f32 0.0, %v287
  %v289 = vpop.f32.mrb[0].mxu0
  %290 = vmatprep.mubr.bf16.mxu0 %v119
  %291 = vmatmul.mubr.bf16.gmra.mrb[0].mxu0 %v118
  %v292 = vpop.f32.mrb[0].mxu0
  %v293 = vadd.f32 0.0, %v292
  %v294 = vpop.f32.mrb[0].mxu0
  %v295 = vpop.f32.mrb[0].mxu0
  %v296 = vadd.f32 0.0, %v295
  %v297 = vpop.f32.mrb[0].mxu0
  %298 = vmatprep.mubr.bf16.mxu0 %v121
  %299 = vmatmul.mubr.bf16.gmra.mrb[0].mxu0 %v120
  %v300 = vpop.f32.mrb[0].mxu0
  %v301 = vadd.f32 0.0, %v300
  %v302 = vpop.f32.mrb[0].mxu0
  %v303 = vpop.f32.mrb[0].mxu0
  %v304 = vadd.f32 0.0, %v303
  %v305 = vpop.f32.mrb[0].mxu0
  %306 = vmatprep.mubr.bf16.mxu0 %v123
  %307 = vmatmul.mubr.bf16.gmra.mrb[0].mxu0 %v122
  %v308 = vpop.f32.mrb[0].mxu0
  %v309 = vadd.f32 0.0, %v308
  %v310 = vpop.f32.mrb[0].mxu0
  %v311 = vpop.f32.mrb[0].mxu0
  %v312 = vadd.f32 0.0, %v311
  %v313 = vpop.f32.mrb[0].mxu0
  %314 = vmatprep.mubr.bf16.mxu0 %v125
  %315 = vmatmul.mubr.bf16.gmra.mrb[0].mxu0 %v124
  %v316 = vpop.f32.mrb[0].mxu0
  %v317 = vadd.f32 0.0, %v316
  %v318 = vpop.f32.mrb[0].mxu0
  %v319 = vpop.f32.mrb[0].mxu0
  %v320 = vadd.f32 0.0, %v319
  %v321 = vpop.f32.mrb[0].mxu0
  %322 = vmatprep.mubr.bf16.mxu0 %v127
  %323 = vmatmul.mubr.bf16.gmra.mrb[0].mxu0 %v126
  %v324 = vpop.f32.mrb[0].mxu0
  %v325 = vadd.f32 0.0, %v324
  %v326 = vpop.f32.mrb[0].mxu0
  %v327 = vpop.f32.mrb[0].mxu0
  %v328 = vadd.f32 0.0, %v327
  %v329 = vpop.f32.mrb[0].mxu0
  %330 = vmatprep.mubr.bf16.mxu0 %v129
  %331 = vmatmul.mubr.bf16.gmra.mrb[0].mxu0 %v128
  %v332 = vpop.f32.mrb[0].mxu0
  %v333 = vadd.f32 0.0, %v332
  %v334 = vpop.f32.mrb[0].mxu0
  %v335 = vpop.f32.mrb[0].mxu0
  %v336 = vadd.f32 0.0, %v335
  %v337 = vpop.f32.mrb[0].mxu0
  %338 = vdwg.mxu0
  %v339 = vadd.f32 %v277, %v280
  %v340 = vadd.f32 %v339, %v285
  %v341 = vadd.f32 %v340, %v288
  %v342 = vadd.f32 %v341, %v293
  %v343 = vadd.f32 %v342, %v296
  %v344 = vadd.f32 %v343, %v301
  %v345 = vadd.f32 %v344, %v304
  %v346 = vadd.f32 %v345, %v309
  %v347 = vadd.f32 %v346, %v312
  %v348 = vadd.f32 %v347, %v317
  %v349 = vadd.f32 %v348, %v320
  %v350 = vadd.f32 %v349, %v325
  %v351 = vadd.f32 %v350, %v328
  %v352 = vadd.f32 %v351, %v333
  %v353 = vadd.f32 %v352, %v336
  %v354 = vrot.slane %v353, 4
  %v355 = vadd.f32 %v353, %v354
  %v356 = vrot.slane %v355, 2
  %v357 = vadd.f32 %v355, %v356
  %v358 = vrot.slane %v357, 1
  %v359 = vadd.f32 %v357, %v358
  %v360 = vmul.f32 %v359, 0.0078125
  %v361 = vmul.f32 %v277, %v277
  %v362 = vmul.f32 %v280, %v280
  %v363 = vmul.f32 %v285, %v285
  %v364 = vmul.f32 %v288, %v288
  %v365 = vmul.f32 %v293, %v293
  %v366 = vmul.f32 %v296, %v296
  %v367 = vmul.f32 %v301, %v301
  %v368 = vmul.f32 %v304, %v304
  %v369 = vmul.f32 %v309, %v309
  %v370 = vmul.f32 %v312, %v312
  %v371 = vmul.f32 %v317, %v317
  %v372 = vmul.f32 %v320, %v320
  %v373 = vmul.f32 %v325, %v325
  %v374 = vmul.f32 %v328, %v328
  %v375 = vmul.f32 %v333, %v333
  %v376 = vmul.f32 %v336, %v336
  %v377 = vadd.f32 %v361, %v362
  %v378 = vadd.f32 %v377, %v363
  %v379 = vadd.f32 %v378, %v364
  %v380 = vadd.f32 %v379, %v365
  %v381 = vadd.f32 %v380, %v366
  %v382 = vadd.f32 %v381, %v367
  %v383 = vadd.f32 %v382, %v368
  %v384 = vadd.f32 %v383, %v369
  %v385 = vadd.f32 %v384, %v370
  %v386 = vadd.f32 %v385, %v371
  %v387 = vadd.f32 %v386, %v372
  %v388 = vadd.f32 %v387, %v373
  %v389 = vadd.f32 %v388, %v374
  %v390 = vadd.f32 %v389, %v375
  %v391 = vadd.f32 %v390, %v376
  %v392 = vrot.slane %v391, 4
  %v393 = vadd.f32 %v391, %v392
  %v394 = vrot.slane %v393, 2
  %v395 = vadd.f32 %v393, %v394
  %v396 = vrot.slane %v395, 1
  %v397 = vadd.f32 %v395, %v396
  %v398 = vmul.f32 %v397, 0.0078125
  %v399 = vmul.f32 %v360, %v360
  %v400 = vsub.f32 %v398, %v399
  %v401 = vmax.f32 %v400, 0.0
  %v402 = vld [vmem:[%s2] sm:$0x1]
  %v403 = vadd.f32 %v401, 1e-05
  %v404 = vrsqrt.pop %v403
  %v405 = vmul.f32 %v402, %v404
  %v406 = vld [vmem:[%s3] sm:$0x1]
  %v407 = vmul.f32 %v360, %v405
  %v408 = vsub.f32 %v406, %v407
  %v410 = vlaneseq
  %v411 = vshrl.u32 %v410, 7
  %v412 = vsub.s32 0, %v411
  %v413 = vrot.slane %v405, %v412
  %v415 = vmul.f32 %v277, %v413
  %v416 = vmul.f32 %v280, %v413
  %v417 = vmul.f32 %v285, %v413
  %v418 = vmul.f32 %v288, %v413
  %v419 = vmul.f32 %v293, %v413
  %v420 = vmul.f32 %v296, %v413
  %v421 = vmul.f32 %v301, %v413
  %v422 = vmul.f32 %v304, %v413
  %v423 = vmul.f32 %v309, %v413
  %v424 = vmul.f32 %v312, %v413
  %v425 = vmul.f32 %v317, %v413
  %v426 = vmul.f32 %v320, %v413
  %v427 = vmul.f32 %v325, %v413
  %v428 = vmul.f32 %v328, %v413
  %v429 = vmul.f32 %v333, %v413
  %v430 = vmul.f32 %v336, %v413
  %v432 = vlaneseq
  %v433 = vshrl.u32 %v432, 7
  %v434 = vsub.s32 0, %v433
  %v435 = vrot.slane %v408, %v434
  %v437 = vadd.f32 %v415, %v435
  %v438 = vadd.f32 %v416, %v435
  %v439 = vadd.f32 %v417, %v435
  %v440 = vadd.f32 %v418, %v435
  %v441 = vadd.f32 %v419, %v435
  %v442 = vadd.f32 %v420, %v435
  %v443 = vadd.f32 %v421, %v435
  %v444 = vadd.f32 %v422, %v435
  %v445 = vadd.f32 %v423, %v435
  %v446 = vadd.f32 %v424, %v435
  %v447 = vadd.f32 %v425, %v435
  %v448 = vadd.f32 %v426, %v435
  %v449 = vadd.f32 %v427, %v435
  %v450 = vadd.f32 %v428, %v435
  %v451 = vadd.f32 %v429, %v435
  %v452 = vadd.f32 %v430, %v435
  %v453 = vmax.f32 %v437, 0.0
  %v454 = vmax.f32 %v438, 0.0
  %v455 = vmax.f32 %v439, 0.0
  %v456 = vmax.f32 %v440, 0.0
  %v457 = vmax.f32 %v441, 0.0
  %v458 = vmax.f32 %v442, 0.0
  %v459 = vmax.f32 %v443, 0.0
  %v460 = vmax.f32 %v444, 0.0
  %v461 = vmax.f32 %v445, 0.0
  %v462 = vmax.f32 %v446, 0.0
  %v463 = vmax.f32 %v447, 0.0
  %v464 = vmax.f32 %v448, 0.0
  %v465 = vmax.f32 %v449, 0.0
  %v466 = vmax.f32 %v450, 0.0
  %v467 = vmax.f32 %v451, 0.0
  %v468 = vmax.f32 %v452, 0.0
  %v469 = vpack.c.bf16 %v454, %v453
  %v470 = vpack.c.bf16 %v456, %v455
  %v471 = vpack.c.bf16 %v458, %v457
  %v472 = vpack.c.bf16 %v460, %v459
  %v473 = vpack.c.bf16 %v462, %v461
  %v474 = vpack.c.bf16 %v464, %v463
  %v475 = vpack.c.bf16 %v466, %v465
  %v476 = vpack.c.bf16 %v468, %v467
  %v485 = vunpack.c.l.b16 %v469
  %v486 = vunpack.c.h.b16 %v469
  %v487 = vunpack.c.l.b16 %v470
  %v488 = vunpack.c.h.b16 %v470
  %v489 = vunpack.c.l.b16 %v471
  %v490 = vunpack.c.h.b16 %v471
  %v491 = vunpack.c.l.b16 %v472
  %v492 = vunpack.c.h.b16 %v472
  %v493 = vunpack.c.l.b16 %v473
  %v494 = vunpack.c.h.b16 %v473
  %v495 = vunpack.c.l.b16 %v474
  %v496 = vunpack.c.h.b16 %v474
  %v497 = vunpack.c.l.b16 %v475
  %v498 = vunpack.c.h.b16 %v475
  %v499 = vunpack.c.l.b16 %v476
  %v500 = vunpack.c.h.b16 %v476
  %v501 = vpack.c.b16 %v485, %v485
  %v502 = vpack.c.b16 %v486, %v486
  %v503 = vpack.c.b16 %v487, %v487
  %v504 = vpack.c.b16 %v488, %v488
  %v505 = vpack.c.b16 %v489, %v489
  %v506 = vpack.c.b16 %v490, %v490
  %v507 = vpack.c.b16 %v491, %v491
  %v508 = vpack.c.b16 %v492, %v492
  %v509 = vpack.c.b16 %v493, %v493
  %v510 = vpack.c.b16 %v494, %v494
  %v511 = vpack.c.b16 %v495, %v495
  %v512 = vpack.c.b16 %v496, %v496
  %v513 = vpack.c.b16 %v497, %v497
  %v514 = vpack.c.b16 %v498, %v498
  %v515 = vpack.c.b16 %v499, %v499
  %v516 = vpack.c.b16 %v500, %v500
  %533 = vst [vmem:[%s4] sm:$0xf] %v501
  %534 = vst [vmem:[%s4 + $0x4] sm:$0xf] %v502
  %535 = vst [vmem:[%s4 + $0x8] sm:$0xf] %v503
  %536 = vst [vmem:[%s4 + $0xc] sm:$0xf] %v504
  %537 = vst [vmem:[%s4 + $0x10] sm:$0xf] %v505
  %538 = vst [vmem:[%s4 + $0x14] sm:$0xf] %v506
  %539 = vst [vmem:[%s4 + $0x18] sm:$0xf] %v507
  %540 = vst [vmem:[%s4 + $0x1c] sm:$0xf] %v508
  %541 = vst [vmem:[%s4 + $0x20] sm:$0xf] %v509
  %542 = vst [vmem:[%s4 + $0x24] sm:$0xf] %v510
  %543 = vst [vmem:[%s4 + $0x28] sm:$0xf] %v511
  %544 = vst [vmem:[%s4 + $0x2c] sm:$0xf] %v512
  %545 = vst [vmem:[%s4 + $0x30] sm:$0xf] %v513
  %546 = vst [vmem:[%s4 + $0x34] sm:$0xf] %v514
  %547 = vst [vmem:[%s4 + $0x38] sm:$0xf] %v515
  %548 = vst [vmem:[%s4 + $0x3c] sm:$0xf] %v516
  // Predicated region
  $region18: #{_lambda_.25} parent=0 // pred_check
    _
  $region19: #{_lambda_.25} parent=0 // pred_check_branch
    %550 = sbr.rel (0) target = $region21
  $region20: #{_lambda_.25} parent=0 // pred_region
    _
  $region21: #{_lambda_.25} parent=0 // pred_fallthru
    _
  // Predicated region
  $region22: #{_lambda_.25} parent=0 // pred_check
    _
  $region23: #{_lambda_.25} parent=0 // pred_check_branch
    %552 = sbr.rel (0) target = $region25
  $region24: #{_lambda_.25} parent=0 // pred_region
    _
  $region25: #{_lambda_.25} parent=0 // pred_fallthru
    _

// kernel: _lambda_.24
$region0: #{_lambda_.24}
  #allocation0 [shape = 'u32[]', space=smem, size = 0x4, offset = 0x4, fixed_abs, tag = 'smem constant byte address 0x4 - core index']
  #allocation1 [shape = 'u32[144,128]{1,0:T(1,128)}', space=vmem, size = 0x12000, scoped, tag = 'internal scratch']
  %s0 = inlined_call_operand.vmem [shape: bf16[128,128], index: 0, kind: input, shape index: {}]
  %s1 = inlined_call_operand.vmem [shape: bf16[128,128], index: 1, kind: input, shape index: {}]
  %s2 = inlined_call_operand.vmem [shape: f32[1,128], index: 2, kind: input, shape index: {}]
  %s3 = inlined_call_operand.vmem [shape: f32[1,128], index: 3, kind: input, shape index: {}]
  %s4 = inlined_call_operand.vmem [shape: bf16[128,128], index: 4, kind: output, shape index: {}]
  %s5 = sld [smem:[#allocation0]]
  $region26: #{_lambda_.24} parent=0
    _
  %s7 = ssub.s32 1, %s5
  %s8 = scalar_select 0, %s7, %s5
  // Predicated region
  $region2: #{_lambda_.24} parent=0 // pred_check
    _
  $region3: #{_lambda_.24} parent=0 // pred_check_branch
    %10 = sbr.rel (0) target = $region5
  $region4: #{_lambda_.24} parent=0 // pred_region
    _
  $region5: #{_lambda_.24} parent=0 // pred_fallthru
    _
  // Predicated region
  $region6: #{_lambda_.24} parent=0 // pred_check
    _
  $region7: #{_lambda_.24} parent=0 // pred_check_branch
    %12 = sbr.rel (0) target = $region9
  $region8: #{_lambda_.24} parent=0 // pred_region
    _
  $region9: #{_lambda_.24} parent=0 // pred_fallthru
    _
  // Predicated region
  $region10: #{_lambda_.24} parent=0 // pred_check
    _
  $region11: #{_lambda_.24} parent=0 // pred_check_branch
    %14 = sbr.rel (0) target = $region13
  $region12: #{_lambda_.24} parent=0 // pred_region
    _
  $region13: #{_lambda_.24} parent=0 // pred_fallthru
    _
  // Predicated region
  $region14: #{_lambda_.24} parent=0 // pred_check
    _
  $region15: #{_lambda_.24} parent=0 // pred_check_branch
    %16 = sbr.rel (0) target = $region17
  $region16: #{_lambda_.24} parent=0 // pred_region
    _
  $region17: #{_lambda_.24} parent=0 // pred_fallthru
    _
  %v18 = vld [vmem:[%s0] sm:$0xf]
  %v19 = vld [vmem:[%s0 + $0x4] sm:$0xf]
  %v20 = vld [vmem:[%s0 + $0x8] sm:$0xf]
  %v21 = vld [vmem:[%s0 + $0xc] sm:$0xf]
  %v22 = vld [vmem:[%s0 + $0x10] sm:$0xf]
  %v23 = vld [vmem:[%s0 + $0x14] sm:$0xf]
  %v24 = vld [vmem:[%s0 + $0x18] sm:$0xf]
  %v25 = vld [vmem:[%s0 + $0x1c] sm:$0xf]
  %v26 = vld [vmem:[%s0 + $0x20] sm:$0xf]
  %v27 = vld [vmem:[%s0 + $0x24] sm:$0xf]
  %v28 = vld [vmem:[%s0 + $0x28] sm:$0xf]
  %v29 = vld [vmem:[%s0 + $0x2c] sm:$0xf]
  %v30 = vld [vmem:[%s0 + $0x30] sm:$0xf]
  %v31 = vld [vmem:[%s0 + $0x34] sm:$0xf]
  %v32 = vld [vmem:[%s0 + $0x38] sm:$0xf]
  %v33 = vld [vmem:[%s0 + $0x3c] sm:$0xf]
  %v34 = vld [vmem:[%s1] sm:$0xf]
  %v35 = vld [vmem:[%s1 + $0x4] sm:$0xf]
  %v36 = vld [vmem:[%s1 + $0x8] sm:$0xf]
  %v37 = vld [vmem:[%s1 + $0xc] sm:$0xf]
  %v38 = vld [vmem:[%s1 + $0x10] sm:$0xf]
  %v39 = vld [vmem:[%s1 + $0x14] sm:$0xf]
  %v40 = vld [vmem:[%s1 + $0x18] sm:$0xf]
  %v41 = vld [vmem:[%s1 + $0x1c] sm:$0xf]
  %v42 = vld [vmem:[%s1 + $0x20] sm:$0xf]
  %v43 = vld [vmem:[%s1 + $0x24] sm:$0xf]
  %v44 = vld [vmem:[%s1 + $0x28] sm:$0xf]
  %v45 = vld [vmem:[%s1 + $0x2c] sm:$0xf]
  %v46 = vld [vmem:[%s1 + $0x30] sm:$0xf]
  %v47 = vld [vmem:[%s1 + $0x34] sm:$0xf]
  %v48 = vld [vmem:[%s1 + $0x38] sm:$0xf]
  %v49 = vld [vmem:[%s1 + $0x3c] sm:$0xf]
  %v66 = vunpack.c.l.b16 %v18
  %v67 = vunpack.c.l.b16 %v19
  %v68 = vunpack.c.l.b16 %v20
  %v69 = vunpack.c.l.b16 %v21
  %v70 = vunpack.c.l.b16 %v22
  %v71 = vunpack.c.l.b16 %v23
  %v72 = vunpack.c.l.b16 %v24
  %v73 = vunpack.c.l.b16 %v25
  %v74 = vunpack.c.l.b16 %v26
  %v75 = vunpack.c.l.b16 %v27
  %v76 = vunpack.c.l.b16 %v28
  %v77 = vunpack.c.l.b16 %v29
  %v78 = vunpack.c.l.b16 %v30
  %v79 = vunpack.c.l.b16 %v31
  %v80 = vunpack.c.l.b16 %v32
  %v81 = vunpack.c.l.b16 %v33
  %v82 = vpack.c.b16 %v67, %v66
  %v83 = vpack.c.b16 %v69, %v68
  %v84 = vpack.c.b16 %v71, %v70
  %v85 = vpack.c.b16 %v73, %v72
  %v86 = vpack.c.b16 %v75, %v74
  %v87 = vpack.c.b16 %v77, %v76
  %v88 = vpack.c.b16 %v79, %v78
  %v89 = vpack.c.b16 %v81, %v80
  %v114 = vunpack.c.l.b16 %v34
  %v115 = vunpack.c.l.b16 %v35
  %v116 = vunpack.c.l.b16 %v36
  %v117 = vunpack.c.l.b16 %v37
  %v118 = vunpack.c.l.b16 %v38
  %v119 = vunpack.c.l.b16 %v39
  %v120 = vunpack.c.l.b16 %v40
  %v121 = vunpack.c.l.b16 %v41
  %v122 = vunpack.c.l.b16 %v42
  %v123 = vunpack.c.l.b16 %v43
  %v124 = vunpack.c.l.b16 %v44
  %v125 = vunpack.c.l.b16 %v45
  %v126 = vunpack.c.l.b16 %v46
  %v127 = vunpack.c.l.b16 %v47
  %v128 = vunpack.c.l.b16 %v48
  %v129 = vunpack.c.l.b16 %v49
  %v130 = vpack.c.b16 %v115, %v114
  %v131 = vpack.c.b16 %v117, %v116
  %v132 = vpack.c.b16 %v119, %v118
  %v133 = vpack.c.b16 %v121, %v120
  %v134 = vpack.c.b16 %v123, %v122
  %v135 = vpack.c.b16 %v125, %v124
  %v136 = vpack.c.b16 %v127, %v126
  %v137 = vpack.c.b16 %v129, %v128
  %146 = vmatprep.subr.bf16.mxu0 0
  %147 = vmatpush1.bf16.msra.mxu0 %v130
  %148 = vmatprep.subr.bf16.mxu0 0
  %149 = vmatpush1.bf16.msra.mxu0 %v131
  %150 = vmatprep.subr.bf16.mxu0 0
  %151 = vmatpush1.bf16.msra.mxu0 %v132
  %152 = vmatprep.subr.bf16.mxu0 0
  %153 = vmatpush1.bf16.msra.mxu0 %v133
  %154 = vmatprep.subr.bf16.mxu0 0
  %155 = vmatpush1.bf16.msra.mxu0 %v134
  %156 = vmatprep.subr.bf16.mxu0 0
  %157 = vmatpush1.bf16.msra.mxu0 %v135
  %158 = vmatprep.subr.bf16.mxu0 0
  %159 = vmatpush1.bf16.msra.mxu0 %v136
  %160 = vmatprep.subr.bf16.mxu0 0
  %161 = vmatpush1.bf16.msra.mxu0 %v137
  %162 = vmatprep.subr.bf16.mxu0 0
  %163 = vmatpush1.bf16.msra.mxu0 0
  %164 = vmatprep.subr.bf16.mxu0 0
  %165 = vmatpush1.bf16.msra.mxu0 0
  %166 = vmatprep.subr.bf16.mxu0 0
  %167 = vmatpush1.bf16.msra.mxu0 0
  %168 = vmatprep.subr.bf16.mxu0 0
  %169 = vmatpush1.bf16.msra.mxu0 0
  %170 = vmatprep.subr.bf16.mxu0 0
  %171 = vmatpush1.bf16.msra.mxu0 0
  %172 = vmatprep.subr.bf16.mxu0 0
  %173 = vmatpush1.bf16.msra.mxu0 0
  %174 = vmatprep.subr.bf16.mxu0 0
  %175 = vmatpush1.bf16.msra.mxu0 0
  %176 = vmatprep.subr.bf16.mxu0 0
  %177 = vmatpush1.bf16.msra.mxu0 0
  %178 = vmatprep.mubr.bf16.mxu0 0
  %179 = vmatmul.mubr.bf16.gmra.mrb[0].mxu0 %v82
  %v180 = vpop.f32.mrb[0].mxu0
  %v181 = vadd.f32 0.0, %v180
  %v182 = vpop.f32.mrb[0].mxu0
  %v183 = vpop.f32.mrb[0].mxu0
  %v184 = vadd.f32 0.0, %v183
  %v185 = vpop.f32.mrb[0].mxu0
  %186 = vmatprep.mubr.bf16.mxu0 0
  %187 = vmatmul.mubr.bf16.gmra.mrb[0].mxu0 %v83
  %v188 = vpop.f32.mrb[0].mxu0
  %v189 = vadd.f32 0.0, %v188
  %v190 = vpop.f32.mrb[0].mxu0
  %v191 = vpop.f32.mrb[0].mxu0
  %v192 = vadd.f32 0.0, %v191
  %v193 = vpop.f32.mrb[0].mxu0
  %194 = vmatprep.mubr.bf16.mxu0 0
  %195 = vmatmul.mubr.bf16.gmra.mrb[0].mxu0 %v84
  %v196 = vpop.f32.mrb[0].mxu0
  %v197 = vadd.f32 0.0, %v196
  %v198 = vpop.f32.mrb[0].mxu0
  %v199 = vpop.f32.mrb[0].mxu0
  %v200 = vadd.f32 0.0, %v199
  %v201 = vpop.f32.mrb[0].mxu0
  %202 = vmatprep.mubr.bf16.mxu0 0
  %203 = vmatmul.mubr.bf16.gmra.mrb[0].mxu0 %v85
  %v204 = vpop.f32.mrb[0].mxu0
  %v205 = vadd.f32 0.0, %v204
  %v206 = vpop.f32.mrb[0].mxu0
  %v207 = vpop.f32.mrb[0].mxu0
  %v208 = vadd.f32 0.0, %v207
  %v209 = vpop.f32.mrb[0].mxu0
  %210 = vmatprep.mubr.bf16.mxu0 0
  %211 = vmatmul.mubr.bf16.gmra.mrb[0].mxu0 %v86
  %v212 = vpop.f32.mrb[0].mxu0
  %v213 = vadd.f32 0.0, %v212
  %v214 = vpop.f32.mrb[0].mxu0
  %v215 = vpop.f32.mrb[0].mxu0
  %v216 = vadd.f32 0.0, %v215
  %v217 = vpop.f32.mrb[0].mxu0
  %218 = vmatprep.mubr.bf16.mxu0 0
  %219 = vmatmul.mubr.bf16.gmra.mrb[0].mxu0 %v87
  %v220 = vpop.f32.mrb[0].mxu0
  %v221 = vadd.f32 0.0, %v220
  %v222 = vpop.f32.mrb[0].mxu0
  %v223 = vpop.f32.mrb[0].mxu0
  %v224 = vadd.f32 0.0, %v223
  %v225 = vpop.f32.mrb[0].mxu0
  %226 = vmatprep.mubr.bf16.mxu0 0
  %227 = vmatmul.mubr.bf16.gmra.mrb[0].mxu0 %v88
  %v228 = vpop.f32.mrb[0].mxu0
  %v229 = vadd.f32 0.0, %v228
  %v230 = vpop.f32.mrb[0].mxu0
  %v231 = vpop.f32.mrb[0].mxu0
  %v232 = vadd.f32 0.0, %v231
  %v233 = vpop.f32.mrb[0].mxu0
  %234 = vmatprep.mubr.bf16.mxu0 0
  %235 = vmatmul.mubr.bf16.gmra.mrb[0].mxu0 %v89
  %v236 = vpop.f32.mrb[0].mxu0
  %v237 = vadd.f32 0.0, %v236
  %v238 = vpop.f32.mrb[0].mxu0
  %v239 = vpop.f32.mrb[0].mxu0
  %v240 = vadd.f32 0.0, %v239
  %v241 = vpop.f32.mrb[0].mxu0
  %242 = vdwg.mxu0
  %v243 = vadd.f32 %v181, %v184
  %v244 = vadd.f32 %v243, %v189
  %v245 = vadd.f32 %v244, %v192
  %v246 = vadd.f32 %v245, %v197
  %v247 = vadd.f32 %v246, %v200
  %v248 = vadd.f32 %v247, %v205
  %v249 = vadd.f32 %v248, %v208
  %v250 = vadd.f32 %v249, %v213
  %v251 = vadd.f32 %v250, %v216
  %v252 = vadd.f32 %v251, %v221
  %v253 = vadd.f32 %v252, %v224
  %v254 = vadd.f32 %v253, %v229
  %v255 = vadd.f32 %v254, %v232
  %v256 = vadd.f32 %v255, %v237
  %v257 = vadd.f32 %v256, %v240
  %v258 = vrot.slane %v257, 4
  %v259 = vadd.f32 %v257, %v258
  %v260 = vrot.slane %v259, 2
  %v261 = vadd.f32 %v259, %v260
  %v262 = vrot.slane %v261, 1
  %v263 = vadd.f32 %v261, %v262
  %v264 = vmul.f32 %v263, 0.0078125
  %v265 = vmul.f32 %v181, %v181
  %v266 = vmul.f32 %v184, %v184
  %v267 = vmul.f32 %v189, %v189
  %v268 = vmul.f32 %v192, %v192
  %v269 = vmul.f32 %v197, %v197
  %v270 = vmul.f32 %v200, %v200
  %v271 = vmul.f32 %v205, %v205
  %v272 = vmul.f32 %v208, %v208
  %v273 = vmul.f32 %v213, %v213
  %v274 = vmul.f32 %v216, %v216
  %v275 = vmul.f32 %v221, %v221
  %v276 = vmul.f32 %v224, %v224
  %v277 = vmul.f32 %v229, %v229
  %v278 = vmul.f32 %v232, %v232
  %v279 = vmul.f32 %v237, %v237
  %v280 = vmul.f32 %v240, %v240
  %v281 = vadd.f32 %v265, %v266
  %v282 = vadd.f32 %v281, %v267
  %v283 = vadd.f32 %v282, %v268
  %v284 = vadd.f32 %v283, %v269
  %v285 = vadd.f32 %v284, %v270
  %v286 = vadd.f32 %v285, %v271
  %v287 = vadd.f32 %v286, %v272
  %v288 = vadd.f32 %v287, %v273
  %v289 = vadd.f32 %v288, %v274
  %v290 = vadd.f32 %v289, %v275
  %v291 = vadd.f32 %v290, %v276
  %v292 = vadd.f32 %v291, %v277
  %v293 = vadd.f32 %v292, %v278
  %v294 = vadd.f32 %v293, %v279
  %v295 = vadd.f32 %v294, %v280
  %v296 = vrot.slane %v295, 4
  %v297 = vadd.f32 %v295, %v296
  %v298 = vrot.slane %v297, 2
  %v299 = vadd.f32 %v297, %v298
  %v300 = vrot.slane %v299, 1
  %v301 = vadd.f32 %v299, %v300
  %v302 = vmul.f32 %v301, 0.0078125
  %v303 = vmul.f32 %v264, %v264
  %v304 = vsub.f32 %v302, %v303
  %v305 = vmax.f32 %v304, 0.0
  %v306 = vld [vmem:[%s2] sm:$0x1]
  %v307 = vadd.f32 %v305, 1e-05
  %v308 = vrsqrt.pop %v307
  %v309 = vmul.f32 %v306, %v308
  %v310 = vld [vmem:[%s3] sm:$0x1]
  %v311 = vmul.f32 %v264, %v309
  %v312 = vsub.f32 %v310, %v311
  %v314 = vlaneseq
  %v315 = vshrl.u32 %v314, 7
  %v316 = vsub.s32 0, %v315
  %v317 = vrot.slane %v309, %v316
  %v319 = vmul.f32 %v181, %v317
  %v320 = vmul.f32 %v184, %v317
  %v321 = vmul.f32 %v189, %v317
  %v322 = vmul.f32 %v192, %v317
  %v323 = vmul.f32 %v197, %v317
  %v324 = vmul.f32 %v200, %v317
  %v325 = vmul.f32 %v205, %v317
  %v326 = vmul.f32 %v208, %v317
  %v327 = vmul.f32 %v213, %v317
  %v328 = vmul.f32 %v216, %v317
  %v329 = vmul.f32 %v221, %v317
  %v330 = vmul.f32 %v224, %v317
  %v331 = vmul.f32 %v229, %v317
  %v332 = vmul.f32 %v232, %v317
  %v333 = vmul.f32 %v237, %v317
  %v334 = vmul.f32 %v240, %v317
  %v336 = vlaneseq
  %v337 = vshrl.u32 %v336, 7
  %v338 = vsub.s32 0, %v337
  %v339 = vrot.slane %v312, %v338
  %v341 = vadd.f32 %v319, %v339
  %v342 = vadd.f32 %v320, %v339
  %v343 = vadd.f32 %v321, %v339
  %v344 = vadd.f32 %v322, %v339
  %v345 = vadd.f32 %v323, %v339
  %v346 = vadd.f32 %v324, %v339
  %v347 = vadd.f32 %v325, %v339
  %v348 = vadd.f32 %v326, %v339
  %v349 = vadd.f32 %v327, %v339
  %v350 = vadd.f32 %v328, %v339
  %v351 = vadd.f32 %v329, %v339
  %v352 = vadd.f32 %v330, %v339
  %v353 = vadd.f32 %v331, %v339
  %v354 = vadd.f32 %v332, %v339
  %v355 = vadd.f32 %v333, %v339
  %v356 = vadd.f32 %v334, %v339
  %v357 = vpack.c.bf16 %v342, %v341
  %v358 = vpack.c.bf16 %v344, %v343
  %v359 = vpack.c.bf16 %v346, %v345
  %v360 = vpack.c.bf16 %v348, %v347
  %v361 = vpack.c.bf16 %v350, %v349
  %v362 = vpack.c.bf16 %v352, %v351
  %v363 = vpack.c.bf16 %v354, %v353
  %v364 = vpack.c.bf16 %v356, %v355
  %v373 = vunpack.c.l.b16 %v357
  %v374 = vunpack.c.h.b16 %v357
  %v375 = vunpack.c.l.b16 %v358
  %v376 = vunpack.c.h.b16 %v358
  %v377 = vunpack.c.l.b16 %v359
  %v378 = vunpack.c.h.b16 %v359
  %v379 = vunpack.c.l.b16 %v360
  %v380 = vunpack.c.h.b16 %v360
  %v381 = vunpack.c.l.b16 %v361
  %v382 = vunpack.c.h.b16 %v361
  %v383 = vunpack.c.l.b16 %v362
  %v384 = vunpack.c.h.b16 %v362
  %v385 = vunpack.c.l.b16 %v363
  %v386 = vunpack.c.h.b16 %v363
  %v387 = vunpack.c.l.b16 %v364
  %v388 = vunpack.c.h.b16 %v364
  %v389 = vpack.c.b16 %v373, %v373
  %v390 = vpack.c.b16 %v374, %v374
  %v391 = vpack.c.b16 %v375, %v375
  %v392 = vpack.c.b16 %v376, %v376
  %v393 = vpack.c.b16 %v377, %v377
  %v394 = vpack.c.b16 %v378, %v378
  %v395 = vpack.c.b16 %v379, %v379
  %v396 = vpack.c.b16 %v380, %v380
  %v397 = vpack.c.b16 %v381, %v381
  %v398 = vpack.c.b16 %v382, %v382
  %v399 = vpack.c.b16 %v383, %v383
  %v400 = vpack.c.b16 %v384, %v384
  %v401 = vpack.c.b16 %v385, %v385
  %v402 = vpack.c.b16 %v386, %v386
  %v403 = vpack.c.b16 %v387, %v387
  %v404 = vpack.c.b16 %v388, %v388
  %421 = vst [vmem:[%s4] sm:$0xf] %v389
  %422 = vst [vmem:[%s4 + $0x4] sm:$0xf] %v390
  %423 = vst [vmem:[%s4 + $0x8] sm:$0xf] %v391
  %424 = vst [vmem:[%s4 + $0xc] sm:$0xf] %v392
  %425 = vst [vmem:[%s4 + $0x10] sm:$0xf] %v393
  %426 = vst [vmem:[%s4 + $0x14] sm:$0xf] %v394
  %427 = vst [vmem:[%s4 + $0x18] sm:$0xf] %v395
  %428 = vst [vmem:[%s4 + $0x1c] sm:$0xf] %v396
  %429 = vst [vmem:[%s4 + $0x20] sm:$0xf] %v397
  %430 = vst [vmem:[%s4 + $0x24] sm:$0xf] %v398
  %431 = vst [vmem:[%s4 + $0x28] sm:$0xf] %v399
  %432 = vst [vmem:[%s4 + $0x2c] sm:$0xf] %v400
  %433 = vst [vmem:[%s4 + $0x30] sm:$0xf] %v401
  %434 = vst [vmem:[%s4 + $0x34] sm:$0xf] %v402
  %435 = vst [vmem:[%s4 + $0x38] sm:$0xf] %v403
  %436 = vst [vmem:[%s4 + $0x3c] sm:$0xf] %v404
  // Predicated region
  $region18: #{_lambda_.24} parent=0 // pred_check
    _
  $region19: #{_lambda_.24} parent=0 // pred_check_branch
    %438 = sbr.rel (0) target = $region21
  $region20: #{_lambda_.24} parent=0 // pred_region
    _
  $region21: #{_lambda_.24} parent=0 // pred_fallthru
    _
  // Predicated region
  $region22: #{_lambda_.24} parent=0 // pred_check
    _
  $region23: #{_lambda_.24} parent=0 // pred_check_branch
    %440 = sbr.rel (0) target = $region25
  $region24: #{_lambda_.24} parent=0 // pred_region
    _
  $region25: #{_lambda_.24} parent=0 // pred_fallthru
    _

// kernel: _lambda_.26
$region0: #{_lambda_.26}
  #allocation0 [shape = 'u32[]', space=smem, size = 0x4, offset = 0x4, fixed_abs, tag = 'smem constant byte address 0x4 - core index']
  #allocation1 [shape = 'u32[144,128]{1,0:T(1,128)}', space=vmem, size = 0x12000, scoped, tag = 'internal scratch']
  %s0 = inlined_call_operand.vmem [shape: bf16[128,384], index: 0, kind: input, shape index: {}]
  %s1 = inlined_call_operand.vmem [shape: bf16[384,128], index: 1, kind: input, shape index: {}]
  %s2 = inlined_call_operand.vmem [shape: f32[1,128], index: 2, kind: input, shape index: {}]
  %s3 = inlined_call_operand.vmem [shape: f32[1,128], index: 3, kind: input, shape index: {}]
  %s4 = inlined_call_operand.vmem [shape: bf16[128,128], index: 4, kind: input, shape index: {}]
  %s5 = inlined_call_operand.vmem [shape: bf16[128,128], index: 5, kind: output, shape index: {}]
  %s6 = sld [smem:[#allocation0]]
  $region30: #{_lambda_.26} parent=0
    _
  %s8 = ssub.s32 1, %s6
  %s9 = scalar_select 0, %s8, %s6
  // Predicated region
  $region2: #{_lambda_.26} parent=0 // pred_check
    _
  $region3: #{_lambda_.26} parent=0 // pred_check_branch
    %11 = sbr.rel (0) target = $region5
  $region4: #{_lambda_.26} parent=0 // pred_region
    _
  $region5: #{_lambda_.26} parent=0 // pred_fallthru
    _
  // Predicated region
  $region6: #{_lambda_.26} parent=0 // pred_check
    _
  $region7: #{_lambda_.26} parent=0 // pred_check_branch
    %13 = sbr.rel (0) target = $region9
  $region8: #{_lambda_.26} parent=0 // pred_region
    _
  $region9: #{_lambda_.26} parent=0 // pred_fallthru
    _
  // Predicated region
  $region10: #{_lambda_.26} parent=0 // pred_check
    _
  $region11: #{_lambda_.26} parent=0 // pred_check_branch
    %15 = sbr.rel (0) target = $region13
  $region12: #{_lambda_.26} parent=0 // pred_region
    _
  $region13: #{_lambda_.26} parent=0 // pred_fallthru
    _
  // Predicated region
  $region14: #{_lambda_.26} parent=0 // pred_check
    _
  $region15: #{_lambda_.26} parent=0 // pred_check_branch
    %17 = sbr.rel (0) target = $region17
  $region16: #{_lambda_.26} parent=0 // pred_region
    _
  $region17: #{_lambda_.26} parent=0 // pred_fallthru
    _
  // Predicated region
  $region18: #{_lambda_.26} parent=0 // pred_check
    _
  $region19: #{_lambda_.26} parent=0 // pred_check_branch
    %19 = sbr.rel (0) target = $region21
  $region20: #{_lambda_.26} parent=0 // pred_region
    _
  $region21: #{_lambda_.26} parent=0 // pred_fallthru
    _
  %v21 = vld [vmem:[%s0] sm:$0xff]
  %v22 = vld [vmem:[%s0 + $0x8] sm:$0xf]
  %v23 = vld [vmem:[%s0 + $0xc] sm:$0xff]
  %v24 = vld [vmem:[%s0 + $0x14] sm:$0xf]
  %v25 = vld [vmem:[%s0 + $0x18] sm:$0xff]
  %v26 = vld [vmem:[%s0 + $0x20] sm:$0xf]
  %v27 = vld [vmem:[%s0 + $0x24] sm:$0xff]
  %v28 = vld [vmem:[%s0 + $0x2c] sm:$0xf]
  %v29 = vld [vmem:[%s0 + $0x30] sm:$0xff]
  %v30 = vld [vmem:[%s0 + $0x38] sm:$0xf]
  %v31 = vld [vmem:[%s0 + $0x3c] sm:$0xff]
  %v32 = vld [vmem:[%s0 + $0x44] sm:$0xf]
  %v33 = vld [vmem:[%s0 + $0x48] sm:$0xff]
  %v34 = vld [vmem:[%s0 + $0x50] sm:$0xf]
  %v35 = vld [vmem:[%s0 + $0x54] sm:$0xff]
  %v36 = vld [vmem:[%s0 + $0x5c] sm:$0xf]
  %v37 = vld [vmem:[%s0 + $0x60] sm:$0xff]
  %v38 = vld [vmem:[%s0 + $0x68] sm:$0xf]
  %v39 = vld [vmem:[%s0 + $0x6c] sm:$0xff]
  %v40 = vld [vmem:[%s0 + $0x74] sm:$0xf]
  %v41 = vld [vmem:[%s0 + $0x78] sm:$0xff]
  %v42 = vld [vmem:[%s0 + $0x80] sm:$0xf]
  %v43 = vld [vmem:[%s0 + $0x84] sm:$0xff]
  %v44 = vld [vmem:[%s0 + $0x8c] sm:$0xf]
  %v45 = vld [vmem:[%s0 + $0x90] sm:$0xff]
  %v46 = vld [vmem:[%s0 + $0x98] sm:$0xf]
  %v47 = vld [vmem:[%s0 + $0x9c] sm:$0xff]
  %v48 = vld [vmem:[%s0 + $0xa4] sm:$0xf]
  %v49 = vld [vmem:[%s0 + $0xa8] sm:$0xff]
  %v50 = vld [vmem:[%s0 + $0xb0] sm:$0xf]
  %v51 = vld [vmem:[%s0 + $0xb4] sm:$0xff]
  %v52 = vld [vmem:[%s0 + $0xbc] sm:$0xf]
  %v53 = vld [vmem:[%s1] sm:$0xf]
  %v54 = vld [vmem:[%s1 + $0x4] sm:$0xf]
  %v55 = vld [vmem:[%s1 + $0x8] sm:$0xf]
  %v56 = vld [vmem:[%s1 + $0xc] sm:$0xf]
  %v57 = vld [vmem:[%s1 + $0x10] sm:$0xf]
  %v58 = vld [vmem:[%s1 + $0x14] sm:$0xf]
  %v59 = vld [vmem:[%s1 + $0x18] sm:$0xf]
  %v60 = vld [vmem:[%s1 + $0x1c] sm:$0xf]
  %v61 = vld [vmem:[%s1 + $0x20] sm:$0xf]
  %v62 = vld [vmem:[%s1 + $0x24] sm:$0xf]
  %v63 = vld [vmem:[%s1 + $0x28] sm:$0xf]
  %v64 = vld [vmem:[%s1 + $0x2c] sm:$0xf]
  %v65 = vld [vmem:[%s1 + $0x30] sm:$0xf]
  %v66 = vld [vmem:[%s1 + $0x34] sm:$0xf]
  %v67 = vld [vmem:[%s1 + $0x38] sm:$0xf]
  %v68 = vld [vmem:[%s1 + $0x3c] sm:$0xf]
  %v69 = vld [vmem:[%s1 + $0x40] sm:$0xf]
  %v70 = vld [vmem:[%s1 + $0x44] sm:$0xf]
  %v71 = vld [vmem:[%s1 + $0x48] sm:$0xf]
  %v72 = vld [vmem:[%s1 + $0x4c] sm:$0xf]
  %v73 = vld [vmem:[%s1 + $0x50] sm:$0xf]
  %v74 = vld [vmem:[%s1 + $0x54] sm:$0xf]
  %v75 = vld [vmem:[%s1 + $0x58] sm:$0xf]
  %v76 = vld [vmem:[%s1 + $0x5c] sm:$0xf]
  %v77 = vld [vmem:[%s1 + $0x60] sm:$0xf]
  %v78 = vld [vmem:[%s1 + $0x64] sm:$0xf]
  %v79 = vld [vmem:[%s1 + $0x68] sm:$0xf]
  %v80 = vld [vmem:[%s1 + $0x6c] sm:$0xf]
  %v81 = vld [vmem:[%s1 + $0x70] sm:$0xf]
  %v82 = vld [vmem:[%s1 + $0x74] sm:$0xf]
  %v83 = vld [vmem:[%s1 + $0x78] sm:$0xf]
  %v84 = vld [vmem:[%s1 + $0x7c] sm:$0xf]
  %v85 = vld [vmem:[%s1 + $0x80] sm:$0xf]
  %v86 = vld [vmem:[%s1 + $0x84] sm:$0xf]
  %v87 = vld [vmem:[%s1 + $0x88] sm:$0xf]
  %v88 = vld [vmem:[%s1 + $0x8c] sm:$0xf]
  %v89 = vld [vmem:[%s1 + $0x90] sm:$0xf]
  %v90 = vld [vmem:[%s1 + $0x94] sm:$0xf]
  %v91 = vld [vmem:[%s1 + $0x98] sm:$0xf]
  %v92 = vld [vmem:[%s1 + $0x9c] sm:$0xf]
  %v93 = vld [vmem:[%s1 + $0xa0] sm:$0xf]
  %v94 = vld [vmem:[%s1 + $0xa4] sm:$0xf]
  %v95 = vld [vmem:[%s1 + $0xa8] sm:$0xf]
  %v96 = vld [vmem:[%s1 + $0xac] sm:$0xf]
  %v97 = vld [vmem:[%s1 + $0xb0] sm:$0xf]
  %v98 = vld [vmem:[%s1 + $0xb4] sm:$0xf]
  %v99 = vld [vmem:[%s1 + $0xb8] sm:$0xf]
  %v100 = vld [vmem:[%s1 + $0xbc] sm:$0xf]
  %v133 = vunpack.c.l.b16 %v21
  %v134 = vunpack.c.h.b16 %v21
  %v135 = vunpack.c.l.b16 %v22
  %v136 = vunpack.c.l.b16 %v23
  %v137 = vunpack.c.h.b16 %v23
  %v138 = vunpack.c.l.b16 %v24
  %v139 = vunpack.c.l.b16 %v25
  %v140 = vunpack.c.h.b16 %v25
  %v141 = vunpack.c.l.b16 %v26
  %v142 = vunpack.c.l.b16 %v27
  %v143 = vunpack.c.h.b16 %v27
  %v144 = vunpack.c.l.b16 %v28
  %v145 = vunpack.c.l.b16 %v29
  %v146 = vunpack.c.h.b16 %v29
  %v147 = vunpack.c.l.b16 %v30
  %v148 = vunpack.c.l.b16 %v31
  %v149 = vunpack.c.h.b16 %v31
  %v150 = vunpack.c.l.b16 %v32
  %v151 = vunpack.c.l.b16 %v33
  %v152 = vunpack.c.h.b16 %v33
  %v153 = vunpack.c.l.b16 %v34
  %v154 = vunpack.c.l.b16 %v35
  %v155 = vunpack.c.h.b16 %v35
  %v156 = vunpack.c.l.b16 %v36
  %v157 = vunpack.c.l.b16 %v37
  %v158 = vunpack.c.h.b16 %v37
  %v159 = vunpack.c.l.b16 %v38
  %v160 = vunpack.c.l.b16 %v39
  %v161 = vunpack.c.h.b16 %v39
  %v162 = vunpack.c.l.b16 %v40
  %v163 = vunpack.c.l.b16 %v41
  %v164 = vunpack.c.h.b16 %v41
  %v165 = vunpack.c.l.b16 %v42
  %v166 = vunpack.c.l.b16 %v43
  %v167 = vunpack.c.h.b16 %v43
  %v168 = vunpack.c.l.b16 %v44
  %v169 = vunpack.c.l.b16 %v45
  %v170 = vunpack.c.h.b16 %v45
  %v171 = vunpack.c.l.b16 %v46
  %v172 = vunpack.c.l.b16 %v47
  %v173 = vunpack.c.h.b16 %v47
  %v174 = vunpack.c.l.b16 %v48
  %v175 = vunpack.c.l.b16 %v49
  %v176 = vunpack.c.h.b16 %v49
  %v177 = vunpack.c.l.b16 %v50
  %v178 = vunpack.c.l.b16 %v51
  %v179 = vunpack.c.h.b16 %v51
  %v180 = vunpack.c.l.b16 %v52
  %v181 = vpack.c.b16 %v136, %v133
  %v182 = vpack.c.b16 %v137, %v134
  %v183 = vpack.c.b16 %v138, %v135
  %v184 = vpack.c.b16 %v142, %v139
  %v185 = vpack.c.b16 %v143, %v140
  %v186 = vpack.c.b16 %v144, %v141
  %v187 = vpack.c.b16 %v148, %v145
  %v188 = vpack.c.b16 %v149, %v146
  %v189 = vpack.c.b16 %v150, %v147
  %v190 = vpack.c.b16 %v154, %v151
  %v191 = vpack.c.b16 %v155, %v152
  %v192 = vpack.c.b16 %v156, %v153
  %v193 = vpack.c.b16 %v160, %v157
  %v194 = vpack.c.b16 %v161, %v158
  %v195 = vpack.c.b16 %v162, %v159
  %v196 = vpack.c.b16 %v166, %v163
  %v197 = vpack.c.b16 %v167, %v164
  %v198 = vpack.c.b16 %v168, %v165
  %v199 = vpack.c.b16 %v172, %v169
  %v200 = vpack.c.b16 %v173, %v170
  %v201 = vpack.c.b16 %v174, %v171
  %v202 = vpack.c.b16 %v178, %v175
  %v203 = vpack.c.b16 %v179, %v176
  %v204 = vpack.c.b16 %v180, %v177
  %v277 = vunpack.c.l.b16 %v53
  %v278 = vunpack.c.l.b16 %v54
  %v279 = vunpack.c.l.b16 %v55
  %v280 = vunpack.c.l.b16 %v56
  %v281 = vunpack.c.l.b16 %v57
  %v282 = vunpack.c.l.b16 %v58
  %v283 = vunpack.c.l.b16 %v59
  %v284 = vunpack.c.l.b16 %v60
  %v285 = vunpack.c.l.b16 %v61
  %v286 = vunpack.c.l.b16 %v62
  %v287 = vunpack.c.l.b16 %v63
  %v288 = vunpack.c.l.b16 %v64
  %v289 = vunpack.c.l.b16 %v65
  %v290 = vunpack.c.l.b16 %v66
  %v291 = vunpack.c.l.b16 %v67
  %v292 = vunpack.c.l.b16 %v68
  %v293 = vunpack.c.l.b16 %v69
  %v294 = vunpack.c.l.b16 %v70
  %v295 = vunpack.c.l.b16 %v71
  %v296 = vunpack.c.l.b16 %v72
  %v297 = vunpack.c.l.b16 %v73
  %v298 = vunpack.c.l.b16 %v74
  %v299 = vunpack.c.l.b16 %v75
  %v300 = vunpack.c.l.b16 %v76
  %v301 = vunpack.c.l.b16 %v77
  %v302 = vunpack.c.l.b16 %v78
  %v303 = vunpack.c.l.b16 %v79
  %v304 = vunpack.c.l.b16 %v80
  %v305 = vunpack.c.l.b16 %v81
  %v306 = vunpack.c.l.b16 %v82
  %v307 = vunpack.c.l.b16 %v83
  %v308 = vunpack.c.l.b16 %v84
  %v309 = vunpack.c.l.b16 %v85
  %v310 = vunpack.c.l.b16 %v86
  %v311 = vunpack.c.l.b16 %v87
  %v312 = vunpack.c.l.b16 %v88
  %v313 = vunpack.c.l.b16 %v89
  %v314 = vunpack.c.l.b16 %v90
  %v315 = vunpack.c.l.b16 %v91
  %v316 = vunpack.c.l.b16 %v92
  %v317 = vunpack.c.l.b16 %v93
  %v318 = vunpack.c.l.b16 %v94
  %v319 = vunpack.c.l.b16 %v95
  %v320 = vunpack.c.l.b16 %v96
  %v321 = vunpack.c.l.b16 %v97
  %v322 = vunpack.c.l.b16 %v98
  %v323 = vunpack.c.l.b16 %v99
  %v324 = vunpack.c.l.b16 %v100
  %v325 = vpack.c.b16 %v278, %v277
  %v326 = vpack.c.b16 %v280, %v279
  %v327 = vpack.c.b16 %v282, %v281
  %v328 = vpack.c.b16 %v284, %v283
  %v329 = vpack.c.b16 %v286, %v285
  %v330 = vpack.c.b16 %v288, %v287
  %v331 = vpack.c.b16 %v290, %v289
  %v332 = vpack.c.b16 %v292, %v291
  %v333 = vpack.c.b16 %v294, %v293
  %v334 = vpack.c.b16 %v296, %v295
  %v335 = vpack.c.b16 %v298, %v297
  %v336 = vpack.c.b16 %v300, %v299
  %v337 = vpack.c.b16 %v302, %v301
  %v338 = vpack.c.b16 %v304, %v303
  %v339 = vpack.c.b16 %v306, %v305
  %v340 = vpack.c.b16 %v308, %v307
  %v341 = vpack.c.b16 %v310, %v309
  %v342 = vpack.c.b16 %v312, %v311
  %v343 = vpack.c.b16 %v314, %v313
  %v344 = vpack.c.b16 %v316, %v315
  %v345 = vpack.c.b16 %v318, %v317
  %v346 = vpack.c.b16 %v320, %v319
  %v347 = vpack.c.b16 %v322, %v321
  %v348 = vpack.c.b16 %v324, %v323
  %373 = vmatprep.subr.bf16.mxu0 0
  %374 = vmatpush1.bf16.msra.mxu0 %v325
  %375 = vmatprep.subr.bf16.mxu0 0
  %376 = vmatpush1.bf16.msra.mxu0 %v326
  %377 = vmatprep.subr.bf16.mxu0 0
  %378 = vmatpush1.bf16.msra.mxu0 %v327
  %379 = vmatprep.subr.bf16.mxu0 0
  %380 = vmatpush1.bf16.msra.mxu0 %v328
  %381 = vmatprep.subr.bf16.mxu0 0
  %382 = vmatpush1.bf16.msra.mxu0 %v329
  %383 = vmatprep.subr.bf16.mxu0 0
  %384 = vmatpush1.bf16.msra.mxu0 %v330
  %385 = vmatprep.subr.bf16.mxu0 0
  %386 = vmatpush1.bf16.msra.mxu0 %v331
  %387 = vmatprep.subr.bf16.mxu0 0
  %388 = vmatpush1.bf16.msra.mxu0 %v332
  %389 = vmatprep.subr.bf16.mxu0 0
  %390 = vmatpush1.bf16.msra.mxu0 %v333
  %391 = vmatprep.subr.bf16.mxu0 0
  %392 = vmatpush1.bf16.msra.mxu0 %v334
  %393 = vmatprep.subr.bf16.mxu0 0
  %394 = vmatpush1.bf16.msra.mxu0 %v335
  %395 = vmatprep.subr.bf16.mxu0 0
  %396 = vmatpush1.bf16.msra.mxu0 %v336
  %397 = vmatprep.subr.bf16.mxu0 0
  %398 = vmatpush1.bf16.msra.mxu0 %v337
  %399 = vmatprep.subr.bf16.mxu0 0
  %400 = vmatpush1.bf16.msra.mxu0 %v338
  %401 = vmatprep.subr.bf16.mxu0 0
  %402 = vmatpush1.bf16.msra.mxu0 %v339
  %403 = vmatprep.subr.bf16.mxu0 0
  %404 = vmatpush1.bf16.msra.mxu0 %v340
  %405 = vmatprep.mubr.bf16.mxu0 %v182
  %406 = vmatmul.mubr.bf16.gmra.mrb[0].mxu0 %v181
  %v407 = vpop.f32.mrb[0].mxu0
  %v408 = vadd.f32 0.0, %v407
  %v409 = vpop.f32.mrb[0].mxu0
  %v410 = vpop.f32.mrb[0].mxu0
  %v411 = vadd.f32 0.0, %v410
  %v412 = vpop.f32.mrb[0].mxu0
  %413 = vmatprep.mubr.bf16.mxu0 %v185
  %414 = vmatmul.mubr.bf16.gmra.mrb[0].mxu0 %v184
  %v415 = vpop.f32.mrb[0].mxu0
  %v416 = vadd.f32 0.0, %v415
  %v417 = vpop.f32.mrb[0].mxu0
  %v418 = vpop.f32.mrb[0].mxu0
  %v419 = vadd.f32 0.0, %v418
  %v420 = vpop.f32.mrb[0].mxu0
  %421 = vmatprep.mubr.bf16.mxu0 %v188
  %422 = vmatmul.mubr.bf16.gmra.mrb[0].mxu0 %v187
  %v423 = vpop.f32.mrb[0].mxu0
  %v424 = vadd.f32 0.0, %v423
  %v425 = vpop.f32.mrb[0].mxu0
  %v426 = vpop.f32.mrb[0].mxu0
  %v427 = vadd.f32 0.0, %v426
  %v428 = vpop.f32.mrb[0].mxu0
  %429 = vmatprep.mubr.bf16.mxu0 %v191
  %430 = vmatmul.mubr.bf16.gmra.mrb[0].mxu0 %v190
  %v431 = vpop.f32.mrb[0].mxu0
  %v432 = vadd.f32 0.0, %v431
  %v433 = vpop.f32.mrb[0].mxu0
  %v434 = vpop.f32.mrb[0].mxu0
  %v435 = vadd.f32 0.0, %v434
  %v436 = vpop.f32.mrb[0].mxu0
  %437 = vmatprep.mubr.bf16.mxu0 %v194
  %438 = vmatmul.mubr.bf16.gmra.mrb[0].mxu0 %v193
  %v439 = vpop.f32.mrb[0].mxu0
  %v440 = vadd.f32 0.0, %v439
  %v441 = vpop.f32.mrb[0].mxu0
  %v442 = vpop.f32.mrb[0].mxu0
  %v443 = vadd.f32 0.0, %v442
  %v444 = vpop.f32.mrb[0].mxu0
  %445 = vmatprep.mubr.bf16.mxu0 %v197
  %446 = vmatmul.mubr.bf16.gmra.mrb[0].mxu0 %v196
  %v447 = vpop.f32.mrb[0].mxu0
  %v448 = vadd.f32 0.0, %v447
  %v449 = vpop.f32.mrb[0].mxu0
  %v450 = vpop.f32.mrb[0].mxu0
  %v451 = vadd.f32 0.0, %v450
  %v452 = vpop.f32.mrb[0].mxu0
  %453 = vmatprep.mubr.bf16.mxu0 %v200
  %454 = vmatmul.mubr.bf16.gmra.mrb[0].mxu0 %v199
  %v455 = vpop.f32.mrb[0].mxu0
  %v456 = vadd.f32 0.0, %v455
  %v457 = vpop.f32.mrb[0].mxu0
  %v458 = vpop.f32.mrb[0].mxu0
  %v459 = vadd.f32 0.0, %v458
  %v460 = vpop.f32.mrb[0].mxu0
  %461 = vmatprep.mubr.bf16.mxu0 %v203
  %462 = vmatmul.mubr.bf16.gmra.mrb[0].mxu0 %v202
  %v463 = vpop.f32.mrb[0].mxu0
  %v464 = vadd.f32 0.0, %v463
  %v465 = vpop.f32.mrb[0].mxu0
  %v466 = vpop.f32.mrb[0].mxu0
  %v467 = vadd.f32 0.0, %v466
  %v468 = vpop.f32.mrb[0].mxu0
  %469 = vdwg.mxu0
  %470 = vmatprep.subr.bf16.mxu0 0
  %471 = vmatpush1.bf16.msra.mxu0 %v341
  %472 = vmatprep.subr.bf16.mxu0 0
  %473 = vmatpush1.bf16.msra.mxu0 %v342
  %474 = vmatprep.subr.bf16.mxu0 0
  %475 = vmatpush1.bf16.msra.mxu0 %v343
  %476 = vmatprep.subr.bf16.mxu0 0
  %477 = vmatpush1.bf16.msra.mxu0 %v344
  %478 = vmatprep.subr.bf16.mxu0 0
  %479 = vmatpush1.bf16.msra.mxu0 %v345
  %480 = vmatprep.subr.bf16.mxu0 0
  %481 = vmatpush1.bf16.msra.mxu0 %v346
  %482 = vmatprep.subr.bf16.mxu0 0
  %483 = vmatpush1.bf16.msra.mxu0 %v347
  %484 = vmatprep.subr.bf16.mxu0 0
  %485 = vmatpush1.bf16.msra.mxu0 %v348
  %486 = vmatprep.subr.bf16.mxu0 0
  %487 = vmatpush1.bf16.msra.mxu0 0
  %488 = vmatprep.subr.bf16.mxu0 0
  %489 = vmatpush1.bf16.msra.mxu0 0
  %490 = vmatprep.subr.bf16.mxu0 0
  %491 = vmatpush1.bf16.msra.mxu0 0
  %492 = vmatprep.subr.bf16.mxu0 0
  %493 = vmatpush1.bf16.msra.mxu0 0
  %494 = vmatprep.subr.bf16.mxu0 0
  %495 = vmatpush1.bf16.msra.mxu0 0
  %496 = vmatprep.subr.bf16.mxu0 0
  %497 = vmatpush1.bf16.msra.mxu0 0
  %498 = vmatprep.subr.bf16.mxu0 0
  %499 = vmatpush1.bf16.msra.mxu0 0
  %500 = vmatprep.subr.bf16.mxu0 0
  %501 = vmatpush1.bf16.msra.mxu0 0
  %502 = vmatprep.mubr.bf16.mxu0 0
  %503 = vmatmul.mubr.bf16.gmra.mrb[0].mxu0 %v183
  %v504 = vpop.f32.mrb[0].mxu0
  %v505 = vadd.f32 %v408, %v504
  %v506 = vpop.f32.mrb[0].mxu0
  %v507 = vpop.f32.mrb[0].mxu0
  %v508 = vadd.f32 %v411, %v507
  %v509 = vpop.f32.mrb[0].mxu0
  %510 = vmatprep.mubr.bf16.mxu0 0
  %511 = vmatmul.mubr.bf16.gmra.mrb[0].mxu0 %v186
  %v512 = vpop.f32.mrb[0].mxu0
  %v513 = vadd.f32 %v416, %v512
  %v514 = vpop.f32.mrb[0].mxu0
  %v515 = vpop.f32.mrb[0].mxu0
  %v516 = vadd.f32 %v419, %v515
  %v517 = vpop.f32.mrb[0].mxu0
  %518 = vmatprep.mubr.bf16.mxu0 0
  %519 = vmatmul.mubr.bf16.gmra.mrb[0].mxu0 %v189
  %v520 = vpop.f32.mrb[0].mxu0
  %v521 = vadd.f32 %v424, %v520
  %v522 = vpop.f32.mrb[0].mxu0
  %v523 = vpop.f32.mrb[0].mxu0
  %v524 = vadd.f32 %v427, %v523
  %v525 = vpop.f32.mrb[0].mxu0
  %526 = vmatprep.mubr.bf16.mxu0 0
  %527 = vmatmul.mubr.bf16.gmra.mrb[0].mxu0 %v192
  %v528 = vpop.f32.mrb[0].mxu0
  %v529 = vadd.f32 %v432, %v528
  %v530 = vpop.f32.mrb[0].mxu0
  %v531 = vpop.f32.mrb[0].mxu0
  %v532 = vadd.f32 %v435, %v531
  %v533 = vpop.f32.mrb[0].mxu0
  %534 = vmatprep.mubr.bf16.mxu0 0
  %535 = vmatmul.mubr.bf16.gmra.mrb[0].mxu0 %v195
  %v536 = vpop.f32.mrb[0].mxu0
  %v537 = vadd.f32 %v440, %v536
  %v538 = vpop.f32.mrb[0].mxu0
  %v539 = vpop.f32.mrb[0].mxu0
  %v540 = vadd.f32 %v443, %v539
  %v541 = vpop.f32.mrb[0].mxu0
  %542 = vmatprep.mubr.bf16.mxu0 0
  %543 = vmatmul.mubr.bf16.gmra.mrb[0].mxu0 %v198
  %v544 = vpop.f32.mrb[0].mxu0
  %v545 = vadd.f32 %v448, %v544
  %v546 = vpop.f32.mrb[0].mxu0
  %v547 = vpop.f32.mrb[0].mxu0
  %v548 = vadd.f32 %v451, %v547
  %v549 = vpop.f32.mrb[0].mxu0
  %550 = vmatprep.mubr.bf16.mxu0 0
  %551 = vmatmul.mubr.bf16.gmra.mrb[0].mxu0 %v201
  %v552 = vpop.f32.mrb[0].mxu0
  %v553 = vadd.f32 %v456, %v552
  %v554 = vpop.f32.mrb[0].mxu0
  %v555 = vpop.f32.mrb[0].mxu0
  %v556 = vadd.f32 %v459, %v555
  %v557 = vpop.f32.mrb[0].mxu0
  %558 = vmatprep.mubr.bf16.mxu0 0
  %559 = vmatmul.mubr.bf16.gmra.mrb[0].mxu0 %v204
  %v560 = vpop.f32.mrb[0].mxu0
  %v561 = vadd.f32 %v464, %v560
  %v562 = vpop.f32.mrb[0].mxu0
  %v563 = vpop.f32.mrb[0].mxu0
  %v564 = vadd.f32 %v467, %v563
  %v565 = vpop.f32.mrb[0].mxu0
  %566 = vdwg.mxu0
  %v567 = vadd.f32 %v505, %v508
  %v568 = vadd.f32 %v567, %v513
  %v569 = vadd.f32 %v568, %v516
  %v570 = vadd.f32 %v569, %v521
  %v571 = vadd.f32 %v570, %v524
  %v572 = vadd.f32 %v571, %v529
  %v573 = vadd.f32 %v572, %v532
  %v574 = vadd.f32 %v573, %v537
  %v575 = vadd.f32 %v574, %v540
  %v576 = vadd.f32 %v575, %v545
  %v577 = vadd.f32 %v576, %v548
  %v578 = vadd.f32 %v577, %v553
  %v579 = vadd.f32 %v578, %v556
  %v580 = vadd.f32 %v579, %v561
  %v581 = vadd.f32 %v580, %v564
  %v582 = vrot.slane %v581, 4
  %v583 = vadd.f32 %v581, %v582
  %v584 = vrot.slane %v583, 2
  %v585 = vadd.f32 %v583, %v584
  %v586 = vrot.slane %v585, 1
  %v587 = vadd.f32 %v585, %v586
  %v588 = vmul.f32 %v587, 0.0078125
  %v589 = vmul.f32 %v505, %v505
  %v590 = vmul.f32 %v508, %v508
  %v591 = vmul.f32 %v513, %v513
  %v592 = vmul.f32 %v516, %v516
  %v593 = vmul.f32 %v521, %v521
  %v594 = vmul.f32 %v524, %v524
  %v595 = vmul.f32 %v529, %v529
  %v596 = vmul.f32 %v532, %v532
  %v597 = vmul.f32 %v537, %v537
  %v598 = vmul.f32 %v540, %v540
  %v599 = vmul.f32 %v545, %v545
  %v600 = vmul.f32 %v548, %v548
  %v601 = vmul.f32 %v553, %v553
  %v602 = vmul.f32 %v556, %v556
  %v603 = vmul.f32 %v561, %v561
  %v604 = vmul.f32 %v564, %v564
  %v605 = vadd.f32 %v589, %v590
  %v606 = vadd.f32 %v605, %v591
  %v607 = vadd.f32 %v606, %v592
  %v608 = vadd.f32 %v607, %v593
  %v609 = vadd.f32 %v608, %v594
  %v610 = vadd.f32 %v609, %v595
  %v611 = vadd.f32 %v610, %v596
  %v612 = vadd.f32 %v611, %v597
  %v613 = vadd.f32 %v612, %v598
  %v614 = vadd.f32 %v613, %v599
  %v615 = vadd.f32 %v614, %v600
  %v616 = vadd.f32 %v615, %v601
  %v617 = vadd.f32 %v616, %v602
  %v618 = vadd.f32 %v617, %v603
  %v619 = vadd.f32 %v618, %v604
  %v620 = vrot.slane %v619, 4
  %v621 = vadd.f32 %v619, %v620
  %v622 = vrot.slane %v621, 2
  %v623 = vadd.f32 %v621, %v622
  %v624 = vrot.slane %v623, 1
  %v625 = vadd.f32 %v623, %v624
  %v626 = vmul.f32 %v625, 0.0078125
  %v627 = vmul.f32 %v588, %v588
  %v628 = vsub.f32 %v626, %v627
  %v629 = vmax.f32 %v628, 0.0
  %v630 = vld [vmem:[%s2] sm:$0x1]
  %v631 = vadd.f32 %v629, 1e-05
  %v632 = vrsqrt.pop %v631
  %v633 = vmul.f32 %v630, %v632
  %v634 = vld [vmem:[%s3] sm:$0x1]
  %v635 = vmul.f32 %v588, %v633
  %v636 = vsub.f32 %v634, %v635
  %v638 = vlaneseq
  %v639 = vshrl.u32 %v638, 7
  %v640 = vsub.s32 0, %v639
  %v641 = vrot.slane %v633, %v640
  %v643 = vmul.f32 %v505, %v641
  %v644 = vmul.f32 %v508, %v641
  %v645 = vmul.f32 %v513, %v641
  %v646 = vmul.f32 %v516, %v641
  %v647 = vmul.f32 %v521, %v641
  %v648 = vmul.f32 %v524, %v641
  %v649 = vmul.f32 %v529, %v641
  %v650 = vmul.f32 %v532, %v641
  %v651 = vmul.f32 %v537, %v641
  %v652 = vmul.f32 %v540, %v641
  %v653 = vmul.f32 %v545, %v641
  %v654 = vmul.f32 %v548, %v641
  %v655 = vmul.f32 %v553, %v641
  %v656 = vmul.f32 %v556, %v641
  %v657 = vmul.f32 %v561, %v641
  %v658 = vmul.f32 %v564, %v641
  %v660 = vlaneseq
  %v661 = vshrl.u32 %v660, 7
  %v662 = vsub.s32 0, %v661
  %v663 = vrot.slane %v636, %v662
  %v665 = vadd.f32 %v643, %v663
  %v666 = vadd.f32 %v644, %v663
  %v667 = vadd.f32 %v645, %v663
  %v668 = vadd.f32 %v646, %v663
  %v669 = vadd.f32 %v647, %v663
  %v670 = vadd.f32 %v648, %v663
  %v671 = vadd.f32 %v649, %v663
  %v672 = vadd.f32 %v650, %v663
  %v673 = vadd.f32 %v651, %v663
  %v674 = vadd.f32 %v652, %v663
  %v675 = vadd.f32 %v653, %v663
  %v676 = vadd.f32 %v654, %v663
  %v677 = vadd.f32 %v655, %v663
  %v678 = vadd.f32 %v656, %v663
  %v679 = vadd.f32 %v657, %v663
  %v680 = vadd.f32 %v658, %v663
  %v681 = vld [vmem:[%s4] sm:$0xf]
  %v682 = vld [vmem:[%s4 + $0x4] sm:$0xf]
  %v683 = vld [vmem:[%s4 + $0x8] sm:$0xf]
  %v684 = vld [vmem:[%s4 + $0xc] sm:$0xf]
  %v685 = vld [vmem:[%s4 + $0x10] sm:$0xf]
  %v686 = vld [vmem:[%s4 + $0x14] sm:$0xf]
  %v687 = vld [vmem:[%s4 + $0x18] sm:$0xf]
  %v688 = vld [vmem:[%s4 + $0x1c] sm:$0xf]
  %v689 = vld [vmem:[%s4 + $0x20] sm:$0xf]
  %v690 = vld [vmem:[%s4 + $0x24] sm:$0xf]
  %v691 = vld [vmem:[%s4 + $0x28] sm:$0xf]
  %v692 = vld [vmem:[%s4 + $0x2c] sm:$0xf]
  %v693 = vld [vmem:[%s4 + $0x30] sm:$0xf]
  %v694 = vld [vmem:[%s4 + $0x34] sm:$0xf]
  %v695 = vld [vmem:[%s4 + $0x38] sm:$0xf]
  %v696 = vld [vmem:[%s4 + $0x3c] sm:$0xf]
  %v697 = vunpack.c.l.bf16 %v681
  %v698 = vunpack.c.l.bf16 %v682
  %v699 = vunpack.c.l.bf16 %v683
  %v700 = vunpack.c.l.bf16 %v684
  %v701 = vunpack.c.l.bf16 %v685
  %v702 = vunpack.c.l.bf16 %v686
  %v703 = vunpack.c.l.bf16 %v687
  %v704 = vunpack.c.l.bf16 %v688
  %v705 = vunpack.c.l.bf16 %v689
  %v706 = vunpack.c.l.bf16 %v690
  %v707 = vunpack.c.l.bf16 %v691
  %v708 = vunpack.c.l.bf16 %v692
  %v709 = vunpack.c.l.bf16 %v693
  %v710 = vunpack.c.l.bf16 %v694
  %v711 = vunpack.c.l.bf16 %v695
  %v712 = vunpack.c.l.bf16 %v696
  %v713 = vadd.f32 %v665, %v697
  %v714 = vadd.f32 %v666, %v698
  %v715 = vadd.f32 %v667, %v699
  %v716 = vadd.f32 %v668, %v700
  %v717 = vadd.f32 %v669, %v701
  %v718 = vadd.f32 %v670, %v702
  %v719 = vadd.f32 %v671, %v703
  %v720 = vadd.f32 %v672, %v704
  %v721 = vadd.f32 %v673, %v705
  %v722 = vadd.f32 %v674, %v706
  %v723 = vadd.f32 %v675, %v707
  %v724 = vadd.f32 %v676, %v708
  %v725 = vadd.f32 %v677, %v709
  %v726 = vadd.f32 %v678, %v710
  %v727 = vadd.f32 %v679, %v711
  %v728 = vadd.f32 %v680, %v712
  %v729 = vmax.f32 %v713, 0.0
  %v730 = vmax.f32 %v714, 0.0
  %v731 = vmax.f32 %v715, 0.0
  %v732 = vmax.f32 %v716, 0.0
  %v733 = vmax.f32 %v717, 0.0
  %v734 = vmax.f32 %v718, 0.0
  %v735 = vmax.f32 %v719, 0.0
  %v736 = vmax.f32 %v720, 0.0
  %v737 = vmax.f32 %v721, 0.0
  %v738 = vmax.f32 %v722, 0.0
  %v739 = vmax.f32 %v723, 0.0
  %v740 = vmax.f32 %v724, 0.0
  %v741 = vmax.f32 %v725, 0.0
  %v742 = vmax.f32 %v726, 0.0
  %v743 = vmax.f32 %v727, 0.0
  %v744 = vmax.f32 %v728, 0.0
  %v745 = vpack.c.bf16 %v730, %v729
  %v746 = vpack.c.bf16 %v732, %v731
  %v747 = vpack.c.bf16 %v734, %v733
  %v748 = vpack.c.bf16 %v736, %v735
  %v749 = vpack.c.bf16 %v738, %v737
  %v750 = vpack.c.bf16 %v740, %v739
  %v751 = vpack.c.bf16 %v742, %v741
  %v752 = vpack.c.bf16 %v744, %v743
  %v761 = vunpack.c.l.b16 %v745
  %v762 = vunpack.c.h.b16 %v745
  %v763 = vunpack.c.l.b16 %v746
  %v764 = vunpack.c.h.b16 %v746
  %v765 = vunpack.c.l.b16 %v747
  %v766 = vunpack.c.h.b16 %v747
  %v767 = vunpack.c.l.b16 %v748
  %v768 = vunpack.c.h.b16 %v748
  %v769 = vunpack.c.l.b16 %v749
  %v770 = vunpack.c.h.b16 %v749
  %v771 = vunpack.c.l.b16 %v750
  %v772 = vunpack.c.h.b16 %v750
  %v773 = vunpack.c.l.b16 %v751
  %v774 = vunpack.c.h.b16 %v751
  %v775 = vunpack.c.l.b16 %v752
  %v776 = vunpack.c.h.b16 %v752
  %v777 = vpack.c.b16 %v761, %v761
  %v778 = vpack.c.b16 %v762, %v762
  %v779 = vpack.c.b16 %v763, %v763
  %v780 = vpack.c.b16 %v764, %v764
  %v781 = vpack.c.b16 %v765, %v765
  %v782 = vpack.c.b16 %v766, %v766
  %v783 = vpack.c.b16 %v767, %v767
  %v784 = vpack.c.b16 %v768, %v768
  %v785 = vpack.c.b16 %v769, %v769
  %v786 = vpack.c.b16 %v770, %v770
  %v787 = vpack.c.b16 %v771, %v771
  %v788 = vpack.c.b16 %v772, %v772
  %v789 = vpack.c.b16 %v773, %v773
  %v790 = vpack.c.b16 %v774, %v774
  %v791 = vpack.c.b16 %v775, %v775
  %v792 = vpack.c.b16 %v776, %v776
  %809 = vst [vmem:[%s5] sm:$0xf] %v777
  %810 = vst [vmem:[%s5 + $0x4] sm:$0xf] %v778
  %811 = vst [vmem:[%s5 + $0x8] sm:$0xf] %v779
  %812 = vst [vmem:[%s5 + $0xc] sm:$0xf] %v780
  %813 = vst [vmem:[%s5 + $0x10] sm:$0xf] %v781
  %814 = vst [vmem:[%s5 + $0x14] sm:$0xf] %v782
  %815 = vst [vmem:[%s5 + $0x18] sm:$0xf] %v783
  %816 = vst [vmem:[%s5 + $0x1c] sm:$0xf] %v784
  %817 = vst [vmem:[%s5 + $0x20] sm:$0xf] %v785
  %818 = vst [vmem:[%s5 + $0x24] sm:$0xf] %v786
  %819 = vst [vmem:[%s5 + $0x28] sm:$0xf] %v787
  %820 = vst [vmem:[%s5 + $0x2c] sm:$0xf] %v788
  %821 = vst [vmem:[%s5 + $0x30] sm:$0xf] %v789
  %822 = vst [vmem:[%s5 + $0x34] sm:$0xf] %v790
  %823 = vst [vmem:[%s5 + $0x38] sm:$0xf] %v791
  %824 = vst [vmem:[%s5 + $0x3c] sm:$0xf] %v792
  // Predicated region
  $region22: #{_lambda_.26} parent=0 // pred_check
    _
  $region23: #{_lambda_.26} parent=0 // pred_check_branch
    %826 = sbr.rel (0) target = $region25
  $region24: #{_lambda_.26} parent=0 // pred_region
    _
  $region25: #{_lambda_.26} parent=0 // pred_fallthru
    _
  // Predicated region
  $region26: #{_lambda_.26} parent=0 // pred_check
    _
  $region27: #{_lambda_.26} parent=0 // pred_check_branch
    %828 = sbr.rel (0) target = $region29
  $region28: #{_lambda_.26} parent=0 // pred_region
    _
  $region29: #{_lambda_.26} parent=0 // pred_fallthru
    _

// kernel: _lambda_.28
$region0: #{_lambda_.28}
  #allocation0 [shape = 'u32[]', space=smem, size = 0x4, offset = 0x4, fixed_abs, tag = 'smem constant byte address 0x4 - core index']
  #allocation1 [shape = 'u32[144,128]{1,0:T(1,128)}', space=vmem, size = 0x12000, scoped, tag = 'internal scratch']
  %s0 = inlined_call_operand.vmem [shape: bf16[32,384], index: 0, kind: input, shape index: {}]
  %s1 = inlined_call_operand.vmem [shape: bf16[384,128], index: 1, kind: input, shape index: {}]
  %s2 = inlined_call_operand.vmem [shape: f32[1,128], index: 2, kind: input, shape index: {}]
  %s3 = inlined_call_operand.vmem [shape: f32[1,128], index: 3, kind: input, shape index: {}]
  %s4 = inlined_call_operand.vmem [shape: bf16[32,128], index: 4, kind: output, shape index: {}]
  %s5 = sld [smem:[#allocation0]]
  $region26: #{_lambda_.28} parent=0
    _
  %s7 = ssub.s32 1, %s5
  %s8 = scalar_select 0, %s7, %s5
  // Predicated region
  $region2: #{_lambda_.28} parent=0 // pred_check
    _
  $region3: #{_lambda_.28} parent=0 // pred_check_branch
    %10 = sbr.rel (0) target = $region5
  $region4: #{_lambda_.28} parent=0 // pred_region
    _
  $region5: #{_lambda_.28} parent=0 // pred_fallthru
    _
  // Predicated region
  $region6: #{_lambda_.28} parent=0 // pred_check
    _
  $region7: #{_lambda_.28} parent=0 // pred_check_branch
    %12 = sbr.rel (0) target = $region9
  $region8: #{_lambda_.28} parent=0 // pred_region
    _
  $region9: #{_lambda_.28} parent=0 // pred_fallthru
    _
  // Predicated region
  $region10: #{_lambda_.28} parent=0 // pred_check
    _
  $region11: #{_lambda_.28} parent=0 // pred_check_branch
    %14 = sbr.rel (0) target = $region13
  $region12: #{_lambda_.28} parent=0 // pred_region
    _
  $region13: #{_lambda_.28} parent=0 // pred_fallthru
    _
  // Predicated region
  $region14: #{_lambda_.28} parent=0 // pred_check
    _
  $region15: #{_lambda_.28} parent=0 // pred_check_branch
    %16 = sbr.rel (0) target = $region17
  $region16: #{_lambda_.28} parent=0 // pred_region
    _
  $region17: #{_lambda_.28} parent=0 // pred_fallthru
    _
  %v18 = vld [vmem:[%s0] sm:$0xff]
  %v19 = vld [vmem:[%s0 + $0x8] sm:$0xf]
  %v20 = vld [vmem:[%s0 + $0xc] sm:$0xff]
  %v21 = vld [vmem:[%s0 + $0x14] sm:$0xf]
  %v22 = vld [vmem:[%s0 + $0x18] sm:$0xff]
  %v23 = vld [vmem:[%s0 + $0x20] sm:$0xf]
  %v24 = vld [vmem:[%s0 + $0x24] sm:$0xff]
  %v25 = vld [vmem:[%s0 + $0x2c] sm:$0xf]
  %v26 = vld [vmem:[%s1] sm:$0xf]
  %v27 = vld [vmem:[%s1 + $0x4] sm:$0xf]
  %v28 = vld [vmem:[%s1 + $0x8] sm:$0xf]
  %v29 = vld [vmem:[%s1 + $0xc] sm:$0xf]
  %v30 = vld [vmem:[%s1 + $0x10] sm:$0xf]
  %v31 = vld [vmem:[%s1 + $0x14] sm:$0xf]
  %v32 = vld [vmem:[%s1 + $0x18] sm:$0xf]
  %v33 = vld [vmem:[%s1 + $0x1c] sm:$0xf]
  %v34 = vld [vmem:[%s1 + $0x20] sm:$0xf]
  %v35 = vld [vmem:[%s1 + $0x24] sm:$0xf]
  %v36 = vld [vmem:[%s1 + $0x28] sm:$0xf]
  %v37 = vld [vmem:[%s1 + $0x2c] sm:$0xf]
  %v38 = vld [vmem:[%s1 + $0x30] sm:$0xf]
  %v39 = vld [vmem:[%s1 + $0x34] sm:$0xf]
  %v40 = vld [vmem:[%s1 + $0x38] sm:$0xf]
  %v41 = vld [vmem:[%s1 + $0x3c] sm:$0xf]
  %v42 = vld [vmem:[%s1 + $0x40] sm:$0xf]
  %v43 = vld [vmem:[%s1 + $0x44] sm:$0xf]
  %v44 = vld [vmem:[%s1 + $0x48] sm:$0xf]
  %v45 = vld [vmem:[%s1 + $0x4c] sm:$0xf]
  %v46 = vld [vmem:[%s1 + $0x50] sm:$0xf]
  %v47 = vld [vmem:[%s1 + $0x54] sm:$0xf]
  %v48 = vld [vmem:[%s1 + $0x58] sm:$0xf]
  %v49 = vld [vmem:[%s1 + $0x5c] sm:$0xf]
  %v50 = vld [vmem:[%s1 + $0x60] sm:$0xf]
  %v51 = vld [vmem:[%s1 + $0x64] sm:$0xf]
  %v52 = vld [vmem:[%s1 + $0x68] sm:$0xf]
  %v53 = vld [vmem:[%s1 + $0x6c] sm:$0xf]
  %v54 = vld [vmem:[%s1 + $0x70] sm:$0xf]
  %v55 = vld [vmem:[%s1 + $0x74] sm:$0xf]
  %v56 = vld [vmem:[%s1 + $0x78] sm:$0xf]
  %v57 = vld [vmem:[%s1 + $0x7c] sm:$0xf]
  %v58 = vld [vmem:[%s1 + $0x80] sm:$0xf]
  %v59 = vld [vmem:[%s1 + $0x84] sm:$0xf]
  %v60 = vld [vmem:[%s1 + $0x88] sm:$0xf]
  %v61 = vld [vmem:[%s1 + $0x8c] sm:$0xf]
  %v62 = vld [vmem:[%s1 + $0x90] sm:$0xf]
  %v63 = vld [vmem:[%s1 + $0x94] sm:$0xf]
  %v64 = vld [vmem:[%s1 + $0x98] sm:$0xf]
  %v65 = vld [vmem:[%s1 + $0x9c] sm:$0xf]
  %v66 = vld [vmem:[%s1 + $0xa0] sm:$0xf]
  %v67 = vld [vmem:[%s1 + $0xa4] sm:$0xf]
  %v68 = vld [vmem:[%s1 + $0xa8] sm:$0xf]
  %v69 = vld [vmem:[%s1 + $0xac] sm:$0xf]
  %v70 = vld [vmem:[%s1 + $0xb0] sm:$0xf]
  %v71 = vld [vmem:[%s1 + $0xb4] sm:$0xf]
  %v72 = vld [vmem:[%s1 + $0xb8] sm:$0xf]
  %v73 = vld [vmem:[%s1 + $0xbc] sm:$0xf]
  %v82 = vunpack.c.l.b16 %v18
  %v83 = vunpack.c.h.b16 %v18
  %v84 = vunpack.c.l.b16 %v19
  %v85 = vunpack.c.l.b16 %v20
  %v86 = vunpack.c.h.b16 %v20
  %v87 = vunpack.c.l.b16 %v21
  %v88 = vunpack.c.l.b16 %v22
  %v89 = vunpack.c.h.b16 %v22
  %v90 = vunpack.c.l.b16 %v23
  %v91 = vunpack.c.l.b16 %v24
  %v92 = vunpack.c.h.b16 %v24
  %v93 = vunpack.c.l.b16 %v25
  %v94 = vpack.c.b16 %v85, %v82
  %v95 = vpack.c.b16 %v86, %v83
  %v96 = vpack.c.b16 %v87, %v84
  %v97 = vpack.c.b16 %v91, %v88
  %v98 = vpack.c.b16 %v92, %v89
  %v99 = vpack.c.b16 %v93, %v90
  %v154 = vunpack.c.l.b16 %v26
  %v155 = vunpack.c.l.b16 %v27
  %v156 = vunpack.c.l.b16 %v28
  %v157 = vunpack.c.l.b16 %v29
  %v158 = vunpack.c.l.b16 %v30
  %v159 = vunpack.c.l.b16 %v31
  %v160 = vunpack.c.l.b16 %v32
  %v161 = vunpack.c.l.b16 %v33
  %v162 = vunpack.c.l.b16 %v34
  %v163 = vunpack.c.l.b16 %v35
  %v164 = vunpack.c.l.b16 %v36
  %v165 = vunpack.c.l.b16 %v37
  %v166 = vunpack.c.l.b16 %v38
  %v167 = vunpack.c.l.b16 %v39
  %v168 = vunpack.c.l.b16 %v40
  %v169 = vunpack.c.l.b16 %v41
  %v170 = vunpack.c.l.b16 %v42
  %v171 = vunpack.c.l.b16 %v43
  %v172 = vunpack.c.l.b16 %v44
  %v173 = vunpack.c.l.b16 %v45
  %v174 = vunpack.c.l.b16 %v46
  %v175 = vunpack.c.l.b16 %v47
  %v176 = vunpack.c.l.b16 %v48
  %v177 = vunpack.c.l.b16 %v49
  %v178 = vunpack.c.l.b16 %v50
  %v179 = vunpack.c.l.b16 %v51
  %v180 = vunpack.c.l.b16 %v52
  %v181 = vunpack.c.l.b16 %v53
  %v182 = vunpack.c.l.b16 %v54
  %v183 = vunpack.c.l.b16 %v55
  %v184 = vunpack.c.l.b16 %v56
  %v185 = vunpack.c.l.b16 %v57
  %v186 = vunpack.c.l.b16 %v58
  %v187 = vunpack.c.l.b16 %v59
  %v188 = vunpack.c.l.b16 %v60
  %v189 = vunpack.c.l.b16 %v61
  %v190 = vunpack.c.l.b16 %v62
  %v191 = vunpack.c.l.b16 %v63
  %v192 = vunpack.c.l.b16 %v64
  %v193 = vunpack.c.l.b16 %v65
  %v194 = vunpack.c.l.b16 %v66
  %v195 = vunpack.c.l.b16 %v67
  %v196 = vunpack.c.l.b16 %v68
  %v197 = vunpack.c.l.b16 %v69
  %v198 = vunpack.c.l.b16 %v70
  %v199 = vunpack.c.l.b16 %v71
  %v200 = vunpack.c.l.b16 %v72
  %v201 = vunpack.c.l.b16 %v73
  %v202 = vpack.c.b16 %v155, %v154
  %v203 = vpack.c.b16 %v157, %v156
  %v204 = vpack.c.b16 %v159, %v158
  %v205 = vpack.c.b16 %v161, %v160
  %v206 = vpack.c.b16 %v163, %v162
  %v207 = vpack.c.b16 %v165, %v164
  %v208 = vpack.c.b16 %v167, %v166
  %v209 = vpack.c.b16 %v169, %v168
  %v210 = vpack.c.b16 %v171, %v170
  %v211 = vpack.c.b16 %v173, %v172
  %v212 = vpack.c.b16 %v175, %v174
  %v213 = vpack.c.b16 %v177, %v176
  %v214 = vpack.c.b16 %v179, %v178
  %v215 = vpack.c.b16 %v181, %v180
  %v216 = vpack.c.b16 %v183, %v182
  %v217 = vpack.c.b16 %v185, %v184
  %v218 = vpack.c.b16 %v187, %v186
  %v219 = vpack.c.b16 %v189, %v188
  %v220 = vpack.c.b16 %v191, %v190
  %v221 = vpack.c.b16 %v193, %v192
  %v222 = vpack.c.b16 %v195, %v194
  %v223 = vpack.c.b16 %v197, %v196
  %v224 = vpack.c.b16 %v199, %v198
  %v225 = vpack.c.b16 %v201, %v200
  %250 = vmatprep.subr.bf16.mxu0 0
  %251 = vmatpush1.bf16.msra.mxu0 %v202
  %252 = vmatprep.subr.bf16.mxu0 0
  %253 = vmatpush1.bf16.msra.mxu0 %v203
  %254 = vmatprep.subr.bf16.mxu0 0
  %255 = vmatpush1.bf16.msra.mxu0 %v204
  %256 = vmatprep.subr.bf16.mxu0 0
  %257 = vmatpush1.bf16.msra.mxu0 %v205
  %258 = vmatprep.subr.bf16.mxu0 0
  %259 = vmatpush1.bf16.msra.mxu0 %v206
  %260 = vmatprep.subr.bf16.mxu0 0
  %261 = vmatpush1.bf16.msra.mxu0 %v207
  %262 = vmatprep.subr.bf16.mxu0 0
  %263 = vmatpush1.bf16.msra.mxu0 %v208
  %264 = vmatprep.subr.bf16.mxu0 0
  %265 = vmatpush1.bf16.msra.mxu0 %v209
  %266 = vmatprep.subr.bf16.mxu0 0
  %267 = vmatpush1.bf16.msra.mxu0 %v210
  %268 = vmatprep.subr.bf16.mxu0 0
  %269 = vmatpush1.bf16.msra.mxu0 %v211
  %270 = vmatprep.subr.bf16.mxu0 0
  %271 = vmatpush1.bf16.msra.mxu0 %v212
  %272 = vmatprep.subr.bf16.mxu0 0
  %273 = vmatpush1.bf16.msra.mxu0 %v213
  %274 = vmatprep.subr.bf16.mxu0 0
  %275 = vmatpush1.bf16.msra.mxu0 %v214
  %276 = vmatprep.subr.bf16.mxu0 0
  %277 = vmatpush1.bf16.msra.mxu0 %v215
  %278 = vmatprep.subr.bf16.mxu0 0
  %279 = vmatpush1.bf16.msra.mxu0 %v216
  %280 = vmatprep.subr.bf16.mxu0 0
  %281 = vmatpush1.bf16.msra.mxu0 %v217
  %282 = vmatprep.mubr.bf16.mxu0 %v95
  %283 = vmatmul.mubr.bf16.gmra.mrb[0].mxu0 %v94
  %v284 = vpop.f32.mrb[0].mxu0
  %v285 = vadd.f32 0.0, %v284
  %v286 = vpop.f32.mrb[0].mxu0
  %v287 = vpop.f32.mrb[0].mxu0
  %v288 = vadd.f32 0.0, %v287
  %v289 = vpop.f32.mrb[0].mxu0
  %290 = vmatprep.mubr.bf16.mxu0 %v98
  %291 = vmatmul.mubr.bf16.gmra.mrb[0].mxu0 %v97
  %v292 = vpop.f32.mrb[0].mxu0
  %v293 = vadd.f32 0.0, %v292
  %v294 = vpop.f32.mrb[0].mxu0
  %v295 = vpop.f32.mrb[0].mxu0
  %v296 = vadd.f32 0.0, %v295
  %v297 = vpop.f32.mrb[0].mxu0
  %298 = vdwg.mxu0
  %299 = vmatprep.subr.bf16.mxu0 0
  %300 = vmatpush1.bf16.msra.mxu0 %v218
  %301 = vmatprep.subr.bf16.mxu0 0
  %302 = vmatpush1.bf16.msra.mxu0 %v219
  %303 = vmatprep.subr.bf16.mxu0 0
  %304 = vmatpush1.bf16.msra.mxu0 %v220
  %305 = vmatprep.subr.bf16.mxu0 0
  %306 = vmatpush1.bf16.msra.mxu0 %v221
  %307 = vmatprep.subr.bf16.mxu0 0
  %308 = vmatpush1.bf16.msra.mxu0 %v222
  %309 = vmatprep.subr.bf16.mxu0 0
  %310 = vmatpush1.bf16.msra.mxu0 %v223
  %311 = vmatprep.subr.bf16.mxu0 0
  %312 = vmatpush1.bf16.msra.mxu0 %v224
  %313 = vmatprep.subr.bf16.mxu0 0
  %314 = vmatpush1.bf16.msra.mxu0 %v225
  %315 = vmatprep.subr.bf16.mxu0 0
  %316 = vmatpush1.bf16.msra.mxu0 0
  %317 = vmatprep.subr.bf16.mxu0 0
  %318 = vmatpush1.bf16.msra.mxu0 0
  %319 = vmatprep.subr.bf16.mxu0 0
  %320 = vmatpush1.bf16.msra.mxu0 0
  %321 = vmatprep.subr.bf16.mxu0 0
  %322 = vmatpush1.bf16.msra.mxu0 0
  %323 = vmatprep.subr.bf16.mxu0 0
  %324 = vmatpush1.bf16.msra.mxu0 0
  %325 = vmatprep.subr.bf16.mxu0 0
  %326 = vmatpush1.bf16.msra.mxu0 0
  %327 = vmatprep.subr.bf16.mxu0 0
  %328 = vmatpush1.bf16.msra.mxu0 0
  %329 = vmatprep.subr.bf16.mxu0 0
  %330 = vmatpush1.bf16.msra.mxu0 0
  %331 = vmatprep.mubr.bf16.mxu0 0
  %332 = vmatmul.mubr.bf16.gmra.mrb[0].mxu0 %v96
  %v333 = vpop.f32.mrb[0].mxu0
  %v334 = vadd.f32 %v285, %v333
  %v335 = vpop.f32.mrb[0].mxu0
  %v336 = vpop.f32.mrb[0].mxu0
  %v337 = vadd.f32 %v288, %v336
  %v338 = vpop.f32.mrb[0].mxu0
  %339 = vmatprep.mubr.bf16.mxu0 0
  %340 = vmatmul.mubr.bf16.gmra.mrb[0].mxu0 %v99
  %v341 = vpop.f32.mrb[0].mxu0
  %v342 = vadd.f32 %v293, %v341
  %v343 = vpop.f32.mrb[0].mxu0
  %v344 = vpop.f32.mrb[0].mxu0
  %v345 = vadd.f32 %v296, %v344
  %v346 = vpop.f32.mrb[0].mxu0
  %347 = vdwg.mxu0
  %v348 = vadd.f32 %v334, %v337
  %v349 = vadd.f32 %v348, %v342
  %v350 = vadd.f32 %v349, %v345
  %v351 = vrot.slane %v350, 4
  %v352 = vadd.f32 %v350, %v351
  %v353 = vrot.slane %v352, 2
  %v354 = vadd.f32 %v352, %v353
  %v355 = vrot.slane %v354, 1
  %v356 = vadd.f32 %v354, %v355
  %v357 = vmul.f32 %v356, 0.03125
  %v358 = vmul.f32 %v334, %v334
  %v359 = vmul.f32 %v337, %v337
  %v360 = vmul.f32 %v342, %v342
  %v361 = vmul.f32 %v345, %v345
  %v362 = vadd.f32 %v358, %v359
  %v363 = vadd.f32 %v362, %v360
  %v364 = vadd.f32 %v363, %v361
  %v365 = vrot.slane %v364, 4
  %v366 = vadd.f32 %v364, %v365
  %v367 = vrot.slane %v366, 2
  %v368 = vadd.f32 %v366, %v367
  %v369 = vrot.slane %v368, 1
  %v370 = vadd.f32 %v368, %v369
  %v371 = vmul.f32 %v370, 0.03125
  %v372 = vmul.f32 %v357, %v357
  %v373 = vsub.f32 %v371, %v372
  %v374 = vmax.f32 %v373, 0.0
  %v375 = vld [vmem:[%s2] sm:$0x1]
  %v376 = vadd.f32 %v374, 1e-05
  %v377 = vrsqrt.pop %v376
  %v378 = vmul.f32 %v375, %v377
  %v379 = vld [vmem:[%s3] sm:$0x1]
  %v380 = vmul.f32 %v357, %v378
  %v381 = vsub.f32 %v379, %v380
  %v383 = vlaneseq
  %v384 = vshrl.u32 %v383, 7
  %v385 = vsub.s32 0, %v384
  %v386 = vrot.slane %v378, %v385
  %v388 = vmul.f32 %v334, %v386
  %v389 = vmul.f32 %v337, %v386
  %v390 = vmul.f32 %v342, %v386
  %v391 = vmul.f32 %v345, %v386
  %v393 = vlaneseq
  %v394 = vshrl.u32 %v393, 7
  %v395 = vsub.s32 0, %v394
  %v396 = vrot.slane %v381, %v395
  %v398 = vadd.f32 %v388, %v396
  %v399 = vadd.f32 %v389, %v396
  %v400 = vadd.f32 %v390, %v396
  %v401 = vadd.f32 %v391, %v396
  %v402 = vmax.f32 %v398, 0.0
  %v403 = vmax.f32 %v399, 0.0
  %v404 = vmax.f32 %v400, 0.0
  %v405 = vmax.f32 %v401, 0.0
  %v406 = vpack.c.bf16 %v403, %v402
  %v407 = vpack.c.bf16 %v405, %v404
  %v410 = vunpack.c.l.b16 %v406
  %v411 = vunpack.c.h.b16 %v406
  %v412 = vunpack.c.l.b16 %v407
  %v413 = vunpack.c.h.b16 %v407
  %v414 = vpack.c.b16 %v410, %v410
  %v415 = vpack.c.b16 %v411, %v411
  %v416 = vpack.c.b16 %v412, %v412
  %v417 = vpack.c.b16 %v413, %v413
  %422 = vst [vmem:[%s4] sm:$0xf] %v414
  %423 = vst [vmem:[%s4 + $0x4] sm:$0xf] %v415
  %424 = vst [vmem:[%s4 + $0x8] sm:$0xf] %v416
  %425 = vst [vmem:[%s4 + $0xc] sm:$0xf] %v417
  // Predicated region
  $region18: #{_lambda_.28} parent=0 // pred_check
    _
  $region19: #{_lambda_.28} parent=0 // pred_check_branch
    %427 = sbr.rel (0) target = $region21
  $region20: #{_lambda_.28} parent=0 // pred_region
    _
  $region21: #{_lambda_.28} parent=0 // pred_fallthru
    _
  // Predicated region
  $region22: #{_lambda_.28} parent=0 // pred_check
    _
  $region23: #{_lambda_.28} parent=0 // pred_check_branch
    %429 = sbr.rel (0) target = $region25
  $region24: #{_lambda_.28} parent=0 // pred_region
    _
  $region25: #{_lambda_.28} parent=0 // pred_fallthru
    _

// kernel: _lambda_.27
$region0: #{_lambda_.27}
  #allocation0 [shape = 'u32[]', space=smem, size = 0x4, offset = 0x4, fixed_abs, tag = 'smem constant byte address 0x4 - core index']
  #allocation1 [shape = 'u32[144,128]{1,0:T(1,128)}', space=vmem, size = 0x12000, scoped, tag = 'internal scratch']
  %s0 = inlined_call_operand.vmem [shape: bf16[32,128], index: 0, kind: input, shape index: {}]
  %s1 = inlined_call_operand.vmem [shape: bf16[128,128], index: 1, kind: input, shape index: {}]
  %s2 = inlined_call_operand.vmem [shape: f32[1,128], index: 2, kind: input, shape index: {}]
  %s3 = inlined_call_operand.vmem [shape: f32[1,128], index: 3, kind: input, shape index: {}]
  %s4 = inlined_call_operand.vmem [shape: bf16[32,128], index: 4, kind: output, shape index: {}]
  %s5 = sld [smem:[#allocation0]]
  $region26: #{_lambda_.27} parent=0
    _
  %s7 = ssub.s32 1, %s5
  %s8 = scalar_select 0, %s7, %s5
  // Predicated region
  $region2: #{_lambda_.27} parent=0 // pred_check
    _
  $region3: #{_lambda_.27} parent=0 // pred_check_branch
    %10 = sbr.rel (0) target = $region5
  $region4: #{_lambda_.27} parent=0 // pred_region
    _
  $region5: #{_lambda_.27} parent=0 // pred_fallthru
    _
  // Predicated region
  $region6: #{_lambda_.27} parent=0 // pred_check
    _
  $region7: #{_lambda_.27} parent=0 // pred_check_branch
    %12 = sbr.rel (0) target = $region9
  $region8: #{_lambda_.27} parent=0 // pred_region
    _
  $region9: #{_lambda_.27} parent=0 // pred_fallthru
    _
  // Predicated region
  $region10: #{_lambda_.27} parent=0 // pred_check
    _
  $region11: #{_lambda_.27} parent=0 // pred_check_branch
    %14 = sbr.rel (0) target = $region13
  $region12: #{_lambda_.27} parent=0 // pred_region
    _
  $region13: #{_lambda_.27} parent=0 // pred_fallthru
    _
  // Predicated region
  $region14: #{_lambda_.27} parent=0 // pred_check
    _
  $region15: #{_lambda_.27} parent=0 // pred_check_branch
    %16 = sbr.rel (0) target = $region17
  $region16: #{_lambda_.27} parent=0 // pred_region
    _
  $region17: #{_lambda_.27} parent=0 // pred_fallthru
    _
  %v18 = vld [vmem:[%s0] sm:$0xf]
  %v19 = vld [vmem:[%s0 + $0x4] sm:$0xf]
  %v20 = vld [vmem:[%s0 + $0x8] sm:$0xf]
  %v21 = vld [vmem:[%s0 + $0xc] sm:$0xf]
  %v22 = vld [vmem:[%s1] sm:$0xf]
  %v23 = vld [vmem:[%s1 + $0x4] sm:$0xf]
  %v24 = vld [vmem:[%s1 + $0x8] sm:$0xf]
  %v25 = vld [vmem:[%s1 + $0xc] sm:$0xf]
  %v26 = vld [vmem:[%s1 + $0x10] sm:$0xf]
  %v27 = vld [vmem:[%s1 + $0x14] sm:$0xf]
  %v28 = vld [vmem:[%s1 + $0x18] sm:$0xf]
  %v29 = vld [vmem:[%s1 + $0x1c] sm:$0xf]
  %v30 = vld [vmem:[%s1 + $0x20] sm:$0xf]
  %v31 = vld [vmem:[%s1 + $0x24] sm:$0xf]
  %v32 = vld [vmem:[%s1 + $0x28] sm:$0xf]
  %v33 = vld [vmem:[%s1 + $0x2c] sm:$0xf]
  %v34 = vld [vmem:[%s1 + $0x30] sm:$0xf]
  %v35 = vld [vmem:[%s1 + $0x34] sm:$0xf]
  %v36 = vld [vmem:[%s1 + $0x38] sm:$0xf]
  %v37 = vld [vmem:[%s1 + $0x3c] sm:$0xf]
  %v42 = vunpack.c.l.b16 %v18
  %v43 = vunpack.c.l.b16 %v19
  %v44 = vunpack.c.l.b16 %v20
  %v45 = vunpack.c.l.b16 %v21
  %v46 = vpack.c.b16 %v43, %v42
  %v47 = vpack.c.b16 %v45, %v44
  %v66 = vunpack.c.l.b16 %v22
  %v67 = vunpack.c.l.b16 %v23
  %v68 = vunpack.c.l.b16 %v24
  %v69 = vunpack.c.l.b16 %v25
  %v70 = vunpack.c.l.b16 %v26
  %v71 = vunpack.c.l.b16 %v27
  %v72 = vunpack.c.l.b16 %v28
  %v73 = vunpack.c.l.b16 %v29
  %v74 = vunpack.c.l.b16 %v30
  %v75 = vunpack.c.l.b16 %v31
  %v76 = vunpack.c.l.b16 %v32
  %v77 = vunpack.c.l.b16 %v33
  %v78 = vunpack.c.l.b16 %v34
  %v79 = vunpack.c.l.b16 %v35
  %v80 = vunpack.c.l.b16 %v36
  %v81 = vunpack.c.l.b16 %v37
  %v82 = vpack.c.b16 %v67, %v66
  %v83 = vpack.c.b16 %v69, %v68
  %v84 = vpack.c.b16 %v71, %v70
  %v85 = vpack.c.b16 %v73, %v72
  %v86 = vpack.c.b16 %v75, %v74
  %v87 = vpack.c.b16 %v77, %v76
  %v88 = vpack.c.b16 %v79, %v78
  %v89 = vpack.c.b16 %v81, %v80
  %98 = vmatprep.subr.bf16.mxu0 0
  %99 = vmatpush1.bf16.msra.mxu0 %v82
  %100 = vmatprep.subr.bf16.mxu0 0
  %101 = vmatpush1.bf16.msra.mxu0 %v83
  %102 = vmatprep.subr.bf16.mxu0 0
  %103 = vmatpush1.bf16.msra.mxu0 %v84
  %104 = vmatprep.subr.bf16.mxu0 0
  %105 = vmatpush1.bf16.msra.mxu0 %v85
  %106 = vmatprep.subr.bf16.mxu0 0
  %107 = vmatpush1.bf16.msra.mxu0 %v86
  %108 = vmatprep.subr.bf16.mxu0 0
  %109 = vmatpush1.bf16.msra.mxu0 %v87
  %110 = vmatprep.subr.bf16.mxu0 0
  %111 = vmatpush1.bf16.msra.mxu0 %v88
  %112 = vmatprep.subr.bf16.mxu0 0
  %113 = vmatpush1.bf16.msra.mxu0 %v89
  %114 = vmatprep.subr.bf16.mxu0 0
  %115 = vmatpush1.bf16.msra.mxu0 0
  %116 = vmatprep.subr.bf16.mxu0 0
  %117 = vmatpush1.bf16.msra.mxu0 0
  %118 = vmatprep.subr.bf16.mxu0 0
  %119 = vmatpush1.bf16.msra.mxu0 0
  %120 = vmatprep.subr.bf16.mxu0 0
  %121 = vmatpush1.bf16.msra.mxu0 0
  %122 = vmatprep.subr.bf16.mxu0 0
  %123 = vmatpush1.bf16.msra.mxu0 0
  %124 = vmatprep.subr.bf16.mxu0 0
  %125 = vmatpush1.bf16.msra.mxu0 0
  %126 = vmatprep.subr.bf16.mxu0 0
  %127 = vmatpush1.bf16.msra.mxu0 0
  %128 = vmatprep.subr.bf16.mxu0 0
  %129 = vmatpush1.bf16.msra.mxu0 0
  %130 = vmatprep.mubr.bf16.mxu0 0
  %131 = vmatmul.mubr.bf16.gmra.mrb[0].mxu0 %v46
  %v132 = vpop.f32.mrb[0].mxu0
  %v133 = vadd.f32 0.0, %v132
  %v134 = vpop.f32.mrb[0].mxu0
  %v135 = vpop.f32.mrb[0].mxu0
  %v136 = vadd.f32 0.0, %v135
  %v137 = vpop.f32.mrb[0].mxu0
  %138 = vmatprep.mubr.bf16.mxu0 0
  %139 = vmatmul.mubr.bf16.gmra.mrb[0].mxu0 %v47
  %v140 = vpop.f32.mrb[0].mxu0
  %v141 = vadd.f32 0.0, %v140
  %v142 = vpop.f32.mrb[0].mxu0
  %v143 = vpop.f32.mrb[0].mxu0
  %v144 = vadd.f32 0.0, %v143
  %v145 = vpop.f32.mrb[0].mxu0
  %146 = vdwg.mxu0
  %v147 = vadd.f32 %v133, %v136
  %v148 = vadd.f32 %v147, %v141
  %v149 = vadd.f32 %v148, %v144
  %v150 = vrot.slane %v149, 4
  %v151 = vadd.f32 %v149, %v150
  %v152 = vrot.slane %v151, 2
  %v153 = vadd.f32 %v151, %v152
  %v154 = vrot.slane %v153, 1
  %v155 = vadd.f32 %v153, %v154
  %v156 = vmul.f32 %v155, 0.03125
  %v157 = vmul.f32 %v133, %v133
  %v158 = vmul.f32 %v136, %v136
  %v159 = vmul.f32 %v141, %v141
  %v160 = vmul.f32 %v144, %v144
  %v161 = vadd.f32 %v157, %v158
  %v162 = vadd.f32 %v161, %v159
  %v163 = vadd.f32 %v162, %v160
  %v164 = vrot.slane %v163, 4
  %v165 = vadd.f32 %v163, %v164
  %v166 = vrot.slane %v165, 2
  %v167 = vadd.f32 %v165, %v166
  %v168 = vrot.slane %v167, 1
  %v169 = vadd.f32 %v167, %v168
  %v170 = vmul.f32 %v169, 0.03125
  %v171 = vmul.f32 %v156, %v156
  %v172 = vsub.f32 %v170, %v171
  %v173 = vmax.f32 %v172, 0.0
  %v174 = vld [vmem:[%s2] sm:$0x1]
  %v175 = vadd.f32 %v173, 1e-05
  %v176 = vrsqrt.pop %v175
  %v177 = vmul.f32 %v174, %v176
  %v178 = vld [vmem:[%s3] sm:$0x1]
  %v179 = vmul.f32 %v156, %v177
  %v180 = vsub.f32 %v178, %v179
  %v182 = vlaneseq
  %v183 = vshrl.u32 %v182, 7
  %v184 = vsub.s32 0, %v183
  %v185 = vrot.slane %v177, %v184
  %v187 = vmul.f32 %v133, %v185
  %v188 = vmul.f32 %v136, %v185
  %v189 = vmul.f32 %v141, %v185
  %v190 = vmul.f32 %v144, %v185
  %v192 = vlaneseq
  %v193 = vshrl.u32 %v192, 7
  %v194 = vsub.s32 0, %v193
  %v195 = vrot.slane %v180, %v194
  %v197 = vadd.f32 %v187, %v195
  %v198 = vadd.f32 %v188, %v195
  %v199 = vadd.f32 %v189, %v195
  %v200 = vadd.f32 %v190, %v195
  %v201 = vpack.c.bf16 %v198, %v197
  %v202 = vpack.c.bf16 %v200, %v199
  %v205 = vunpack.c.l.b16 %v201
  %v206 = vunpack.c.h.b16 %v201
  %v207 = vunpack.c.l.b16 %v202
  %v208 = vunpack.c.h.b16 %v202
  %v209 = vpack.c.b16 %v205, %v205
  %v210 = vpack.c.b16 %v206, %v206
  %v211 = vpack.c.b16 %v207, %v207
  %v212 = vpack.c.b16 %v208, %v208
  %217 = vst [vmem:[%s4] sm:$0xf] %v209
  %218 = vst [vmem:[%s4 + $0x4] sm:$0xf] %v210
  %219 = vst [vmem:[%s4 + $0x8] sm:$0xf] %v211
  %220 = vst [vmem:[%s4 + $0xc] sm:$0xf] %v212
  // Predicated region
  $region18: #{_lambda_.27} parent=0 // pred_check
    _
  $region19: #{_lambda_.27} parent=0 // pred_check_branch
    %222 = sbr.rel (0) target = $region21
  $region20: #{_lambda_.27} parent=0 // pred_region
    _
  $region21: #{_lambda_.27} parent=0 // pred_fallthru
    _
  // Predicated region
  $region22: #{_lambda_.27} parent=0 // pred_check
    _
  $region23: #{_lambda_.27} parent=0 // pred_check_branch
    %224 = sbr.rel (0) target = $region25
  $region24: #{_lambda_.27} parent=0 // pred_region
    _
  $region25: #{_lambda_.27} parent=0 // pred_fallthru
    _

// kernel: _lambda_.29
$region0: #{_lambda_.29}
  #allocation0 [shape = 'u32[]', space=smem, size = 0x4, offset = 0x4, fixed_abs, tag = 'smem constant byte address 0x4 - core index']
  #allocation1 [shape = 'u32[144,128]{1,0:T(1,128)}', space=vmem, size = 0x12000, scoped, tag = 'internal scratch']
  %s0 = inlined_call_operand.vmem [shape: bf16[32,640], index: 0, kind: input, shape index: {}]
  %s1 = inlined_call_operand.vmem [shape: bf16[640,128], index: 1, kind: input, shape index: {}]
  %s2 = inlined_call_operand.vmem [shape: f32[1,128], index: 2, kind: input, shape index: {}]
  %s3 = inlined_call_operand.vmem [shape: f32[1,128], index: 3, kind: input, shape index: {}]
  %s4 = inlined_call_operand.vmem [shape: bf16[32,128], index: 4, kind: input, shape index: {}]
  %s5 = inlined_call_operand.hbm [shape: f32[2,128], index: 5, kind: output, shape index: {}]
  %s6 = sld [smem:[#allocation0]]
  $region30: #{_lambda_.29} parent=0
    _
  %s8 = ssub.s32 1, %s6
  %s9 = scalar_select 0, %s8, %s6
  $region1: #{_lambda_.29} parent=0
    #allocation2 [shape = 'u8[1024]{0}', space=vmem, size = 0x400, scoped, tag = 'output window, operand 0, single buffered']
    #allocation3 [shape = 's32[1]{0}', space=sflag, size = 0x4, scoped, tag = 'scoped memory for _lambda_.29']
    %10 = vsyncpa [#allocation3], 0
    // Predicated region
    $region2: #{_lambda_.29} parent=1 // pred_check
      _
    $region3: #{_lambda_.29} parent=1 // pred_check_branch
      %12 = sbr.rel (0) target = $region5
    $region4: #{_lambda_.29} parent=1 // pred_region
      _
    $region5: #{_lambda_.29} parent=1 // pred_fallthru
      _
    // Predicated region
    $region6: #{_lambda_.29} parent=1 // pred_check
      _
    $region7: #{_lambda_.29} parent=1 // pred_check_branch
      %14 = sbr.rel (0) target = $region9
    $region8: #{_lambda_.29} parent=1 // pred_region
      _
    $region9: #{_lambda_.29} parent=1 // pred_fallthru
      _
    // Predicated region
    $region10: #{_lambda_.29} parent=1 // pred_check
      _
    $region11: #{_lambda_.29} parent=1 // pred_check_branch
      %16 = sbr.rel (0) target = $region13
    $region12: #{_lambda_.29} parent=1 // pred_region
      _
    $region13: #{_lambda_.29} parent=1 // pred_fallthru
      _
    // Predicated region
    $region14: #{_lambda_.29} parent=1 // pred_check
      _
    $region15: #{_lambda_.29} parent=1 // pred_check_branch
      %18 = sbr.rel (0) target = $region17
    $region16: #{_lambda_.29} parent=1 // pred_region
      _
    $region17: #{_lambda_.29} parent=1 // pred_fallthru
      _
    // Predicated region
    $region18: #{_lambda_.29} parent=1 // pred_check
      _
    $region19: #{_lambda_.29} parent=1 // pred_check_branch
      %20 = sbr.rel (0) target = $region21
    $region20: #{_lambda_.29} parent=1 // pred_region
      _
    $region21: #{_lambda_.29} parent=1 // pred_fallthru
      _
    %v22 = vld [vmem:[%s0] sm:$0xff]
    %v23 = vld [vmem:[%s0 + $0x8] sm:$0xff]
    %v24 = vld [vmem:[%s0 + $0x10] sm:$0xf]
    %v25 = vld [vmem:[%s0 + $0x14] sm:$0xff]
    %v26 = vld [vmem:[%s0 + $0x1c] sm:$0xff]
    %v27 = vld [vmem:[%s0 + $0x24] sm:$0xf]
    %v28 = vld [vmem:[%s0 + $0x28] sm:$0xff]
    %v29 = vld [vmem:[%s0 + $0x30] sm:$0xff]
    %v30 = vld [vmem:[%s0 + $0x38] sm:$0xf]
    %v31 = vld [vmem:[%s0 + $0x3c] sm:$0xff]
    %v32 = vld [vmem:[%s0 + $0x44] sm:$0xff]
    %v33 = vld [vmem:[%s0 + $0x4c] sm:$0xf]
    %v34 = vld [vmem:[%s1] sm:$0xf]
    %v35 = vld [vmem:[%s1 + $0x4] sm:$0xf]
    %v36 = vld [vmem:[%s1 + $0x8] sm:$0xf]
    %v37 = vld [vmem:[%s1 + $0xc] sm:$0xf]
    %v38 = vld [vmem:[%s1 + $0x10] sm:$0xf]
    %v39 = vld [vmem:[%s1 + $0x14] sm:$0xf]
    %v40 = vld [vmem:[%s1 + $0x18] sm:$0xf]
    %v41 = vld [vmem:[%s1 + $0x1c] sm:$0xf]
    %v42 = vld [vmem:[%s1 + $0x20] sm:$0xf]
    %v43 = vld [vmem:[%s1 + $0x24] sm:$0xf]
    %v44 = vld [vmem:[%s1 + $0x28] sm:$0xf]
    %v45 = vld [vmem:[%s1 + $0x2c] sm:$0xf]
    %v46 = vld [vmem:[%s1 + $0x30] sm:$0xf]
    %v47 = vld [vmem:[%s1 + $0x34] sm:$0xf]
    %v48 = vld [vmem:[%s1 + $0x38] sm:$0xf]
    %v49 = vld [vmem:[%s1 + $0x3c] sm:$0xf]
    %v50 = vld [vmem:[%s1 + $0x40] sm:$0xf]
    %v51 = vld [vmem:[%s1 + $0x44] sm:$0xf]
    %v52 = vld [vmem:[%s1 + $0x48] sm:$0xf]
    %v53 = vld [vmem:[%s1 + $0x4c] sm:$0xf]
    %v54 = vld [vmem:[%s1 + $0x50] sm:$0xf]
    %v55 = vld [vmem:[%s1 + $0x54] sm:$0xf]
    %v56 = vld [vmem:[%s1 + $0x58] sm:$0xf]
    %v57 = vld [vmem:[%s1 + $0x5c] sm:$0xf]
    %v58 = vld [vmem:[%s1 + $0x60] sm:$0xf]
    %v59 = vld [vmem:[%s1 + $0x64] sm:$0xf]
    %v60 = vld [vmem:[%s1 + $0x68] sm:$0xf]
    %v61 = vld [vmem:[%s1 + $0x6c] sm:$0xf]
    %v62 = vld [vmem:[%s1 + $0x70] sm:$0xf]
    %v63 = vld [vmem:[%s1 + $0x74] sm:$0xf]
    %v64 = vld [vmem:[%s1 + $0x78] sm:$0xf]
    %v65 = vld [vmem:[%s1 + $0x7c] sm:$0xf]
    %v66 = vld [vmem:[%s1 + $0x80] sm:$0xf]
    %v67 = vld [vmem:[%s1 + $0x84] sm:$0xf]
    %v68 = vld [vmem:[%s1 + $0x88] sm:$0xf]
    %v69 = vld [vmem:[%s1 + $0x8c] sm:$0xf]
    %v70 = vld [vmem:[%s1 + $0x90] sm:$0xf]
    %v71 = vld [vmem:[%s1 + $0x94] sm:$0xf]
    %v72 = vld [vmem:[%s1 + $0x98] sm:$0xf]
    %v73 = vld [vmem:[%s1 + $0x9c] sm:$0xf]
    %v74 = vld [vmem:[%s1 + $0xa0] sm:$0xf]
    %v75 = vld [vmem:[%s1 + $0xa4] sm:$0xf]
    %v76 = vld [vmem:[%s1 + $0xa8] sm:$0xf]
    %v77 = vld [vmem:[%s1 + $0xac] sm:$0xf]
    %v78 = vld [vmem:[%s1 + $0xb0] sm:$0xf]
    %v79 = vld [vmem:[%s1 + $0xb4] sm:$0xf]
    %v80 = vld [vmem:[%s1 + $0xb8] sm:$0xf]
    %v81 = vld [vmem:[%s1 + $0xbc] sm:$0xf]
    %v82 = vld [vmem:[%s1 + $0xc0] sm:$0xf]
    %v83 = vld [vmem:[%s1 + $0xc4] sm:$0xf]
    %v84 = vld [vmem:[%s1 + $0xc8] sm:$0xf]
    %v85 = vld [vmem:[%s1 + $0xcc] sm:$0xf]
    %v86 = vld [vmem:[%s1 + $0xd0] sm:$0xf]
    %v87 = vld [vmem:[%s1 + $0xd4] sm:$0xf]
    %v88 = vld [vmem:[%s1 + $0xd8] sm:$0xf]
    %v89 = vld [vmem:[%s1 + $0xdc] sm:$0xf]
    %v90 = vld [vmem:[%s1 + $0xe0] sm:$0xf]
    %v91 = vld [vmem:[%s1 + $0xe4] sm:$0xf]
    %v92 = vld [vmem:[%s1 + $0xe8] sm:$0xf]
    %v93 = vld [vmem:[%s1 + $0xec] sm:$0xf]
    %v94 = vld [vmem:[%s1 + $0xf0] sm:$0xf]
    %v95 = vld [vmem:[%s1 + $0xf4] sm:$0xf]
    %v96 = vld [vmem:[%s1 + $0xf8] sm:$0xf]
    %v97 = vld [vmem:[%s1 + $0xfc] sm:$0xf]
    %v98 = vld [vmem:[%s1 + $0x100] sm:$0xf]
    %v99 = vld [vmem:[%s1 + $0x104] sm:$0xf]
    %v100 = vld [vmem:[%s1 + $0x108] sm:$0xf]
    %v101 = vld [vmem:[%s1 + $0x10c] sm:$0xf]
    %v102 = vld [vmem:[%s1 + $0x110] sm:$0xf]
    %v103 = vld [vmem:[%s1 + $0x114] sm:$0xf]
    %v104 = vld [vmem:[%s1 + $0x118] sm:$0xf]
    %v105 = vld [vmem:[%s1 + $0x11c] sm:$0xf]
    %v106 = vld [vmem:[%s1 + $0x120] sm:$0xf]
    %v107 = vld [vmem:[%s1 + $0x124] sm:$0xf]
    %v108 = vld [vmem:[%s1 + $0x128] sm:$0xf]
    %v109 = vld [vmem:[%s1 + $0x12c] sm:$0xf]
    %v110 = vld [vmem:[%s1 + $0x130] sm:$0xf]
    %v111 = vld [vmem:[%s1 + $0x134] sm:$0xf]
    %v112 = vld [vmem:[%s1 + $0x138] sm:$0xf]
    %v113 = vld [vmem:[%s1 + $0x13c] sm:$0xf]
    %v126 = vunpack.c.l.b16 %v22
    %v127 = vunpack.c.h.b16 %v22
    %v128 = vunpack.c.l.b16 %v23
    %v129 = vunpack.c.h.b16 %v23
    %v130 = vunpack.c.l.b16 %v24
    %v131 = vunpack.c.l.b16 %v25
    %v132 = vunpack.c.h.b16 %v25
    %v133 = vunpack.c.l.b16 %v26
    %v134 = vunpack.c.h.b16 %v26
    %v135 = vunpack.c.l.b16 %v27
    %v136 = vunpack.c.l.b16 %v28
    %v137 = vunpack.c.h.b16 %v28
    %v138 = vunpack.c.l.b16 %v29
    %v139 = vunpack.c.h.b16 %v29
    %v140 = vunpack.c.l.b16 %v30
    %v141 = vunpack.c.l.b16 %v31
    %v142 = vunpack.c.h.b16 %v31
    %v143 = vunpack.c.l.b16 %v32
    %v144 = vunpack.c.h.b16 %v32
    %v145 = vunpack.c.l.b16 %v33
    %v146 = vpack.c.b16 %v131, %v126
    %v147 = vpack.c.b16 %v132, %v127
    %v148 = vpack.c.b16 %v133, %v128
    %v149 = vpack.c.b16 %v134, %v129
    %v150 = vpack.c.b16 %v135, %v130
    %v151 = vpack.c.b16 %v141, %v136
    %v152 = vpack.c.b16 %v142, %v137
    %v153 = vpack.c.b16 %v143, %v138
    %v154 = vpack.c.b16 %v144, %v139
    %v155 = vpack.c.b16 %v145, %v140
    %v246 = vunpack.c.l.b16 %v34
    %v247 = vunpack.c.l.b16 %v35
    %v248 = vunpack.c.l.b16 %v36
    %v249 = vunpack.c.l.b16 %v37
    %v250 = vunpack.c.l.b16 %v38
    %v251 = vunpack.c.l.b16 %v39
    %v252 = vunpack.c.l.b16 %v40
    %v253 = vunpack.c.l.b16 %v41
    %v254 = vunpack.c.l.b16 %v42
    %v255 = vunpack.c.l.b16 %v43
    %v256 = vunpack.c.l.b16 %v44
    %v257 = vunpack.c.l.b16 %v45
    %v258 = vunpack.c.l.b16 %v46
    %v259 = vunpack.c.l.b16 %v47
    %v260 = vunpack.c.l.b16 %v48
    %v261 = vunpack.c.l.b16 %v49
    %v262 = vunpack.c.l.b16 %v50
    %v263 = vunpack.c.l.b16 %v51
    %v264 = vunpack.c.l.b16 %v52
    %v265 = vunpack.c.l.b16 %v53
    %v266 = vunpack.c.l.b16 %v54
    %v267 = vunpack.c.l.b16 %v55
    %v268 = vunpack.c.l.b16 %v56
    %v269 = vunpack.c.l.b16 %v57
    %v270 = vunpack.c.l.b16 %v58
    %v271 = vunpack.c.l.b16 %v59
    %v272 = vunpack.c.l.b16 %v60
    %v273 = vunpack.c.l.b16 %v61
    %v274 = vunpack.c.l.b16 %v62
    %v275 = vunpack.c.l.b16 %v63
    %v276 = vunpack.c.l.b16 %v64
    %v277 = vunpack.c.l.b16 %v65
    %v278 = vunpack.c.l.b16 %v66
    %v279 = vunpack.c.l.b16 %v67
    %v280 = vunpack.c.l.b16 %v68
    %v281 = vunpack.c.l.b16 %v69
    %v282 = vunpack.c.l.b16 %v70
    %v283 = vunpack.c.l.b16 %v71
    %v284 = vunpack.c.l.b16 %v72
    %v285 = vunpack.c.l.b16 %v73
    %v286 = vunpack.c.l.b16 %v74
    %v287 = vunpack.c.l.b16 %v75
    %v288 = vunpack.c.l.b16 %v76
    %v289 = vunpack.c.l.b16 %v77
    %v290 = vunpack.c.l.b16 %v78
    %v291 = vunpack.c.l.b16 %v79
    %v292 = vunpack.c.l.b16 %v80
    %v293 = vunpack.c.l.b16 %v81
    %v294 = vunpack.c.l.b16 %v82
    %v295 = vunpack.c.l.b16 %v83
    %v296 = vunpack.c.l.b16 %v84
    %v297 = vunpack.c.l.b16 %v85
    %v298 = vunpack.c.l.b16 %v86
    %v299 = vunpack.c.l.b16 %v87
    %v300 = vunpack.c.l.b16 %v88
    %v301 = vunpack.c.l.b16 %v89
    %v302 = vunpack.c.l.b16 %v90
    %v303 = vunpack.c.l.b16 %v91
    %v304 = vunpack.c.l.b16 %v92
    %v305 = vunpack.c.l.b16 %v93
    %v306 = vunpack.c.l.b16 %v94
    %v307 = vunpack.c.l.b16 %v95
    %v308 = vunpack.c.l.b16 %v96
    %v309 = vunpack.c.l.b16 %v97
    %v310 = vunpack.c.l.b16 %v98
    %v311 = vunpack.c.l.b16 %v99
    %v312 = vunpack.c.l.b16 %v100
    %v313 = vunpack.c.l.b16 %v101
    %v314 = vunpack.c.l.b16 %v102
    %v315 = vunpack.c.l.b16 %v103
    %v316 = vunpack.c.l.b16 %v104
    %v317 = vunpack.c.l.b16 %v105
    %v318 = vunpack.c.l.b16 %v106
    %v319 = vunpack.c.l.b16 %v107
    %v320 = vunpack.c.l.b16 %v108
    %v321 = vunpack.c.l.b16 %v109
    %v322 = vunpack.c.l.b16 %v110
    %v323 = vunpack.c.l.b16 %v111
    %v324 = vunpack.c.l.b16 %v112
    %v325 = vunpack.c.l.b16 %v113
    %v326 = vpack.c.b16 %v247, %v246
    %v327 = vpack.c.b16 %v249, %v248
    %v328 = vpack.c.b16 %v251, %v250
    %v329 = vpack.c.b16 %v253, %v252
    %v330 = vpack.c.b16 %v255, %v254
    %v331 = vpack.c.b16 %v257, %v256
    %v332 = vpack.c.b16 %v259, %v258
    %v333 = vpack.c.b16 %v261, %v260
    %v334 = vpack.c.b16 %v263, %v262
    %v335 = vpack.c.b16 %v265, %v264
    %v336 = vpack.c.b16 %v267, %v266
    %v337 = vpack.c.b16 %v269, %v268
    %v338 = vpack.c.b16 %v271, %v270
    %v339 = vpack.c.b16 %v273, %v272
    %v340 = vpack.c.b16 %v275, %v274
    %v341 = vpack.c.b16 %v277, %v276
    %v342 = vpack.c.b16 %v279, %v278
    %v343 = vpack.c.b16 %v281, %v280
    %v344 = vpack.c.b16 %v283, %v282
    %v345 = vpack.c.b16 %v285, %v284
    %v346 = vpack.c.b16 %v287, %v286
    %v347 = vpack.c.b16 %v289, %v288
    %v348 = vpack.c.b16 %v291, %v290
    %v349 = vpack.c.b16 %v293, %v292
    %v350 = vpack.c.b16 %v295, %v294
    %v351 = vpack.c.b16 %v297, %v296
    %v352 = vpack.c.b16 %v299, %v298
    %v353 = vpack.c.b16 %v301, %v300
    %v354 = vpack.c.b16 %v303, %v302
    %v355 = vpack.c.b16 %v305, %v304
    %v356 = vpack.c.b16 %v307, %v306
    %v357 = vpack.c.b16 %v309, %v308
    %v358 = vpack.c.b16 %v311, %v310
    %v359 = vpack.c.b16 %v313, %v312
    %v360 = vpack.c.b16 %v315, %v314
    %v361 = vpack.c.b16 %v317, %v316
    %v362 = vpack.c.b16 %v319, %v318
    %v363 = vpack.c.b16 %v321, %v320
    %v364 = vpack.c.b16 %v323, %v322
    %v365 = vpack.c.b16 %v325, %v324
    %406 = vmatprep.subr.bf16.mxu0 0
    %407 = vmatpush1.bf16.msra.mxu0 %v326
    %408 = vmatprep.subr.bf16.mxu0 0
    %409 = vmatpush1.bf16.msra.mxu0 %v327
    %410 = vmatprep.subr.bf16.mxu0 0
    %411 = vmatpush1.bf16.msra.mxu0 %v328
    %412 = vmatprep.subr.bf16.mxu0 0
    %413 = vmatpush1.bf16.msra.mxu0 %v329
    %414 = vmatprep.subr.bf16.mxu0 0
    %415 = vmatpush1.bf16.msra.mxu0 %v330
    %416 = vmatprep.subr.bf16.mxu0 0
    %417 = vmatpush1.bf16.msra.mxu0 %v331
    %418 = vmatprep.subr.bf16.mxu0 0
    %419 = vmatpush1.bf16.msra.mxu0 %v332
    %420 = vmatprep.subr.bf16.mxu0 0
    %421 = vmatpush1.bf16.msra.mxu0 %v333
    %422 = vmatprep.subr.bf16.mxu0 0
    %423 = vmatpush1.bf16.msra.mxu0 %v334
    %424 = vmatprep.subr.bf16.mxu0 0
    %425 = vmatpush1.bf16.msra.mxu0 %v335
    %426 = vmatprep.subr.bf16.mxu0 0
    %427 = vmatpush1.bf16.msra.mxu0 %v336
    %428 = vmatprep.subr.bf16.mxu0 0
    %429 = vmatpush1.bf16.msra.mxu0 %v337
    %430 = vmatprep.subr.bf16.mxu0 0
    %431 = vmatpush1.bf16.msra.mxu0 %v338
    %432 = vmatprep.subr.bf16.mxu0 0
    %433 = vmatpush1.bf16.msra.mxu0 %v339
    %434 = vmatprep.subr.bf16.mxu0 0
    %435 = vmatpush1.bf16.msra.mxu0 %v340
    %436 = vmatprep.subr.bf16.mxu0 0
    %437 = vmatpush1.bf16.msra.mxu0 %v341
    %438 = vmatprep.mubr.bf16.mxu0 %v147
    %439 = vmatmul.mubr.bf16.gmra.mrb[0].mxu0 %v146
    %v440 = vpop.f32.mrb[0].mxu0
    %v441 = vadd.f32 0.0, %v440
    %v442 = vpop.f32.mrb[0].mxu0
    %v443 = vpop.f32.mrb[0].mxu0
    %v444 = vadd.f32 0.0, %v443
    %v445 = vpop.f32.mrb[0].mxu0
    %446 = vmatprep.mubr.bf16.mxu0 %v152
    %447 = vmatmul.mubr.bf16.gmra.mrb[0].mxu0 %v151
    %v448 = vpop.f32.mrb[0].mxu0
    %v449 = vadd.f32 0.0, %v448
    %v450 = vpop.f32.mrb[0].mxu0
    %v451 = vpop.f32.mrb[0].mxu0
    %v452 = vadd.f32 0.0, %v451
    %v453 = vpop.f32.mrb[0].mxu0
    %454 = vdwg.mxu0
    %455 = vmatprep.subr.bf16.mxu0 0
    %456 = vmatpush1.bf16.msra.mxu0 %v342
    %457 = vmatprep.subr.bf16.mxu0 0
    %458 = vmatpush1.bf16.msra.mxu0 %v343
    %459 = vmatprep.subr.bf16.mxu0 0
    %460 = vmatpush1.bf16.msra.mxu0 %v344
    %461 = vmatprep.subr.bf16.mxu0 0
    %462 = vmatpush1.bf16.msra.mxu0 %v345
    %463 = vmatprep.subr.bf16.mxu0 0
    %464 = vmatpush1.bf16.msra.mxu0 %v346
    %465 = vmatprep.subr.bf16.mxu0 0
    %466 = vmatpush1.bf16.msra.mxu0 %v347
    %467 = vmatprep.subr.bf16.mxu0 0
    %468 = vmatpush1.bf16.msra.mxu0 %v348
    %469 = vmatprep.subr.bf16.mxu0 0
    %470 = vmatpush1.bf16.msra.mxu0 %v349
    %471 = vmatprep.subr.bf16.mxu0 0
    %472 = vmatpush1.bf16.msra.mxu0 %v350
    %473 = vmatprep.subr.bf16.mxu0 0
    %474 = vmatpush1.bf16.msra.mxu0 %v351
    %475 = vmatprep.subr.bf16.mxu0 0
    %476 = vmatpush1.bf16.msra.mxu0 %v352
    %477 = vmatprep.subr.bf16.mxu0 0
    %478 = vmatpush1.bf16.msra.mxu0 %v353
    %479 = vmatprep.subr.bf16.mxu0 0
    %480 = vmatpush1.bf16.msra.mxu0 %v354
    %481 = vmatprep.subr.bf16.mxu0 0
    %482 = vmatpush1.bf16.msra.mxu0 %v355
    %483 = vmatprep.subr.bf16.mxu0 0
    %484 = vmatpush1.bf16.msra.mxu0 %v356
    %485 = vmatprep.subr.bf16.mxu0 0
    %486 = vmatpush1.bf16.msra.mxu0 %v357
    %487 = vmatprep.mubr.bf16.mxu0 %v149
    %488 = vmatmul.mubr.bf16.gmra.mrb[0].mxu0 %v148
    %v489 = vpop.f32.mrb[0].mxu0
    %v490 = vadd.f32 %v441, %v489
    %v491 = vpop.f32.mrb[0].mxu0
    %v492 = vpop.f32.mrb[0].mxu0
    %v493 = vadd.f32 %v444, %v492
    %v494 = vpop.f32.mrb[0].mxu0
    %495 = vmatprep.mubr.bf16.mxu0 %v154
    %496 = vmatmul.mubr.bf16.gmra.mrb[0].mxu0 %v153
    %v497 = vpop.f32.mrb[0].mxu0
    %v498 = vadd.f32 %v449, %v497
    %v499 = vpop.f32.mrb[0].mxu0
    %v500 = vpop.f32.mrb[0].mxu0
    %v501 = vadd.f32 %v452, %v500
    %v502 = vpop.f32.mrb[0].mxu0
    %503 = vdwg.mxu0
    %504 = vmatprep.subr.bf16.mxu0 0
    %505 = vmatpush1.bf16.msra.mxu0 %v358
    %506 = vmatprep.subr.bf16.mxu0 0
    %507 = vmatpush1.bf16.msra.mxu0 %v359
    %508 = vmatprep.subr.bf16.mxu0 0
    %509 = vmatpush1.bf16.msra.mxu0 %v360
    %510 = vmatprep.subr.bf16.mxu0 0
    %511 = vmatpush1.bf16.msra.mxu0 %v361
    %512 = vmatprep.subr.bf16.mxu0 0
    %513 = vmatpush1.bf16.msra.mxu0 %v362
    %514 = vmatprep.subr.bf16.mxu0 0
    %515 = vmatpush1.bf16.msra.mxu0 %v363
    %516 = vmatprep.subr.bf16.mxu0 0
    %517 = vmatpush1.bf16.msra.mxu0 %v364
    %518 = vmatprep.subr.bf16.mxu0 0
    %519 = vmatpush1.bf16.msra.mxu0 %v365
    %520 = vmatprep.subr.bf16.mxu0 0
    %521 = vmatpush1.bf16.msra.mxu0 0
    %522 = vmatprep.subr.bf16.mxu0 0
    %523 = vmatpush1.bf16.msra.mxu0 0
    %524 = vmatprep.subr.bf16.mxu0 0
    %525 = vmatpush1.bf16.msra.mxu0 0
    %526 = vmatprep.subr.bf16.mxu0 0
    %527 = vmatpush1.bf16.msra.mxu0 0
    %528 = vmatprep.subr.bf16.mxu0 0
    %529 = vmatpush1.bf16.msra.mxu0 0
    %530 = vmatprep.subr.bf16.mxu0 0
    %531 = vmatpush1.bf16.msra.mxu0 0
    %532 = vmatprep.subr.bf16.mxu0 0
    %533 = vmatpush1.bf16.msra.mxu0 0
    %534 = vmatprep.subr.bf16.mxu0 0
    %535 = vmatpush1.bf16.msra.mxu0 0
    %536 = vmatprep.mubr.bf16.mxu0 0
    %537 = vmatmul.mubr.bf16.gmra.mrb[0].mxu0 %v150
    %v538 = vpop.f32.mrb[0].mxu0
    %v539 = vadd.f32 %v490, %v538
    %v540 = vpop.f32.mrb[0].mxu0
    %v541 = vpop.f32.mrb[0].mxu0
    %v542 = vadd.f32 %v493, %v541
    %v543 = vpop.f32.mrb[0].mxu0
    %544 = vmatprep.mubr.bf16.mxu0 0
    %545 = vmatmul.mubr.bf16.gmra.mrb[0].mxu0 %v155
    %v546 = vpop.f32.mrb[0].mxu0
    %v547 = vadd.f32 %v498, %v546
    %v548 = vpop.f32.mrb[0].mxu0
    %v549 = vpop.f32.mrb[0].mxu0
    %v550 = vadd.f32 %v501, %v549
    %v551 = vpop.f32.mrb[0].mxu0
    %552 = vdwg.mxu0
    %v553 = vadd.f32 %v539, %v542
    %v554 = vadd.f32 %v553, %v547
    %v555 = vadd.f32 %v554, %v550
    %v556 = vrot.slane %v555, 4
    %v557 = vadd.f32 %v555, %v556
    %v558 = vrot.slane %v557, 2
    %v559 = vadd.f32 %v557, %v558
    %v560 = vrot.slane %v559, 1
    %v561 = vadd.f32 %v559, %v560
    %v562 = vmul.f32 %v561, 0.03125
    %v563 = vmul.f32 %v539, %v539
    %v564 = vmul.f32 %v542, %v542
    %v565 = vmul.f32 %v547, %v547
    %v566 = vmul.f32 %v550, %v550
    %v567 = vadd.f32 %v563, %v564
    %v568 = vadd.f32 %v567, %v565
    %v569 = vadd.f32 %v568, %v566
    %v570 = vrot.slane %v569, 4
    %v571 = vadd.f32 %v569, %v570
    %v572 = vrot.slane %v571, 2
    %v573 = vadd.f32 %v571, %v572
    %v574 = vrot.slane %v573, 1
    %v575 = vadd.f32 %v573, %v574
    %v576 = vmul.f32 %v575, 0.03125
    %v577 = vmul.f32 %v562, %v562
    %v578 = vsub.f32 %v576, %v577
    %v579 = vmax.f32 %v578, 0.0
    %v580 = vld [vmem:[%s2] sm:$0x1]
    %v581 = vadd.f32 %v579, 1e-05
    %v582 = vrsqrt.pop %v581
    %v583 = vmul.f32 %v580, %v582
    %v584 = vld [vmem:[%s3] sm:$0x1]
    %v585 = vmul.f32 %v562, %v583
    %v586 = vsub.f32 %v584, %v585
    %v588 = vlaneseq
    %v589 = vshrl.u32 %v588, 7
    %v590 = vsub.s32 0, %v589
    %v591 = vrot.slane %v583, %v590
    %v593 = vmul.f32 %v539, %v591
    %v594 = vmul.f32 %v542, %v591
    %v595 = vmul.f32 %v547, %v591
    %v596 = vmul.f32 %v550, %v591
    %v598 = vlaneseq
    %v599 = vshrl.u32 %v598, 7
    %v600 = vsub.s32 0, %v599
    %v601 = vrot.slane %v586, %v600
    %v603 = vadd.f32 %v593, %v601
    %v604 = vadd.f32 %v594, %v601
    %v605 = vadd.f32 %v595, %v601
    %v606 = vadd.f32 %v596, %v601
    %v607 = vld [vmem:[%s4] sm:$0xf]
    %v608 = vld [vmem:[%s4 + $0x4] sm:$0xf]
    %v609 = vld [vmem:[%s4 + $0x8] sm:$0xf]
    %v610 = vld [vmem:[%s4 + $0xc] sm:$0xf]
    %v611 = vunpack.c.l.bf16 %v607
    %v612 = vunpack.c.l.bf16 %v608
    %v613 = vunpack.c.l.bf16 %v609
    %v614 = vunpack.c.l.bf16 %v610
    %v615 = vadd.f32 %v603, %v611
    %v616 = vadd.f32 %v604, %v612
    %v617 = vadd.f32 %v605, %v613
    %v618 = vadd.f32 %v606, %v614
    %v619 = vmax.f32 %v615, 0.0
    %v620 = vmax.f32 %v616, 0.0
    %v621 = vmax.f32 %v617, 0.0
    %v622 = vmax.f32 %v618, 0.0
    %v623 = vadd.f32 %v619, %v620
    %v624 = vrot.slane %v623, 4
    %v625 = vadd.f32 %v623, %v624
    %v626 = vrot.slane %v625, 2
    %v627 = vadd.f32 %v625, %v626
    %v628 = vrot.slane %v627, 1
    %v629 = vadd.f32 %v627, %v628
    %v630 = vrcp.pop 16.0
    %v631 = vmul.f32 %v629, %v630
    %v632 = vadd.f32 %v621, %v622
    %v633 = vrot.slane %v632, 4
    %v634 = vadd.f32 %v632, %v633
    %v635 = vrot.slane %v634, 2
    %v636 = vadd.f32 %v634, %v635
    %v637 = vrot.slane %v636, 1
    %v638 = vadd.f32 %v636, %v637
    %v639 = vmul.f32 %v638, %v630
    %vm640 = vcmask 1040384
    %v641 = vsel %vm640, %v631, %v639
    %642 = vst [vmem:[#allocation2] sm:$0x3] %v641
    // Predicated region
    $region22: #{_lambda_.29} parent=1 // pred_check
      _
    $region23: #{_lambda_.29} parent=1 // pred_check_branch
      %644 = sbr.rel (0) target = $region25
    $region24: #{_lambda_.29} parent=1 // pred_region
      %s646 = ssub.s32 32, 32
      %647 = vsyncadd [#allocation3], %s646
      %s649 = sshll.u32 [#allocation2], 4
      %s650 = int_to_ptr.vmem [resolvable:$true] %s649
      %652 = dma.vmem_to_hbm [thread:$0]  %s650, 32, %s5, [#allocation3]
    $region25: #{_lambda_.29} parent=1 // pred_fallthru
      _
    // Predicated region
    $region26: #{_lambda_.29} parent=1 // pred_check
      _
    $region27: #{_lambda_.29} parent=1 // pred_check_branch
      %654 = sbr.rel (0) target = $region29
    $region28: #{_lambda_.29} parent=1 // pred_region
      %655 = dma.done [#allocation3], 32
    $region29: #{_lambda_.29} parent=1 // pred_fallthru
      _
    %656 = vsyncpa [#allocation3], 1

</llo_original>
